<compile_context>
chip_gen: v7x
topology: tpu7x:2x2x1
jax: 0.10.0
libtpu: 0.0.40
codegen_flags: <defaults>
</compile_context>

<pallas_src>
import functools

import jax
import jax.numpy as jnp
import numpy as np
from jax import lax
from jax.experimental import pallas as pl
from jax.experimental.pallas import tpu as pltpu


# --------------------------------------------------------------------------- #
# small helpers
# --------------------------------------------------------------------------- #
def _ceil_to(x, m):
    return ((x + m - 1) // m) * m


_VMEM_BUDGET = 20 * 1024 * 1024  # conservative estimate target (<< 32 MiB scoped)


# --------------------------------------------------------------------------- #
# Pallas kernels
# --------------------------------------------------------------------------- #
def _preact_dot(p_ref, w_ref, s_ref, t_ref, act, mm_dtype):
    """Pending per-channel affine (deferred BatchNorm) + activation + MXU dot.
    Elementwise math stays in f32 (v5e-safe); operands cast to mm_dtype at the dot."""
    p = p_ref[...].astype(jnp.float32) * s_ref[...] + t_ref[...]
    if act == "leaky":
        p = jnp.where(p >= 0.0, p, 0.2 * p)
    elif act == "relu":
        p = jnp.maximum(p, 0.0)
    return jnp.dot(p.astype(mm_dtype), w_ref[...], preferred_element_type=jnp.float32)


def _finalize(acc, b_ref, y_ref, st_ref, tanh_out, m_valid, tm):
    """+bias -> masked per-M-tile BN partial sums -> optional tanh -> store."""
    y = acc + b_ref[...]
    rows = pl.program_id(0) * tm + lax.broadcasted_iota(jnp.int32, y.shape, 0)
    yv = jnp.where(rows < m_valid, y, 0.0)          # mask zero-padded M rows
    st_ref[0, 0:1, :] = jnp.sum(yv, axis=0, keepdims=True)
    st_ref[0, 1:2, :] = jnp.sum(yv * yv, axis=0, keepdims=True)
    if tanh_out:
        y = jnp.tanh(y)
    y_ref[...] = y.astype(y_ref.dtype)


def _mm_resident_kernel(*refs, ngroups, act, tanh_out, m_valid, tm, mm_dtype):
    """grid (nm,): full-K weight VMEM residency, no accumulator scratch.
    refs = [patches, weight, scale_row, shift_row] * ngroups + [bias, y, stats]."""
    b_ref = refs[4 * ngroups]
    y_ref = refs[4 * ngroups + 1]
    st_ref = refs[4 * ngroups + 2]
    acc = None
    for g in range(ngroups):
        d = _preact_dot(*refs[4 * g:4 * g + 4], act=act, mm_dtype=mm_dtype)
        acc = d if acc is None else acc + d
    _finalize(acc, b_ref, y_ref, st_ref, tanh_out, m_valid, tm)


def _mm_ktile_kernel(p_ref, w_ref, s_ref, t_ref, b_ref, y_ref, st_ref, acc_ref,
                     *, act, tanh_out, m_valid, tm, mm_dtype):
    """grid (nm, nk): K tiled ('arbitrary') with f32 accumulator.  Fallback used
    only when the weights are too large to keep VMEM-resident."""
    k = pl.program_id(1)

    @pl.when(k == 0)
    def _init():
        acc_ref[...] = jnp.zeros_like(acc_ref)

    acc_ref[...] += _preact_dot(p_ref, w_ref, s_ref, t_ref, act=act,
                                mm_dtype=mm_dtype)

    @pl.when(k == pl.num_programs(1) - 1)
    def _fin():
        _finalize(acc_ref[...], b_ref, y_ref, st_ref, tanh_out, m_valid, tm)


# --------------------------------------------------------------------------- #
# fused matmul wrapper (pallas_call)
# --------------------------------------------------------------------------- #
def _fused_matmul(groups, bias, act, tanh_out, mm_dtype, out_dtype):
    """groups: list of (patches(M,K_g), wmat(K_g,N), scale_row(K_g,), shift_row(K_g,)).
    Computes y = act_applied-dot sum over groups (+bias, +tanh) with BN partial
    statistics.  Returns (y[(Mp,Npad)] out_dtype, stats[(2,Npad)] f32)."""
    M = groups[0][0].shape[0]
    N = groups[0][1].shape[1]
    Npad = max(128, _ceil_to(N, 128))           # lane-dense output / weight columns
    isz = jnp.dtype(mm_dtype).itemsize
    osz = jnp.dtype(out_dtype).itemsize

    # M tiling: big tiles, but >=2 tiles on the largest layers (v7x megacore).
    if M <= 256:
        tm = _ceil_to(M, 8)
    elif M <= 2048:
        tm = 256
    else:
        tm = 512

    kps = [max(128, _ceil_to(g[0].shape[1], 128)) for g in groups]

    def single_k_bytes(tm_):
        b = 2 * tm_ * Npad * osz + 2 * 2 * Npad * 4 + 2 * Npad * 4
        for kp in kps:
            b += 2 * tm_ * kp * isz + 2 * kp * Npad * isz + 4 * kp * 4
        return b

    while tm > 64 and single_k_bytes(tm) > _VMEM_BUDGET:
        tm //= 2
    tm = max(8, tm)
    Mp = _ceil_to(M, tm)
    nm = Mp // tm

    brow = (jnp.zeros((1, Npad), jnp.float32) if bias is None else
            jnp.pad(bias.astype(jnp.float32), (0, Npad - N))[None, :])

    if single_k_bytes(tm) <= _VMEM_BUDGET:
        # ---- full-K weight residency path (grid over M only) ----
        ins, in_specs = [], []
        for (p, w, srow, trow), kp in zip(groups, kps):
            K = p.shape[1]
            ins += [
                jnp.pad(p.astype(mm_dtype), ((0, Mp - M), (0, kp - K))),
                jnp.pad(w.astype(mm_dtype), ((0, kp - K), (0, Npad - N))),
                jnp.pad(srow.astype(jnp.float32), (0, kp - K))[None, :],
                jnp.pad(trow.astype(jnp.float32), (0, kp - K))[None, :],
            ]
            in_specs += [
                pl.BlockSpec((tm, kp), lambda m: (m, 0)),
                pl.BlockSpec((kp, Npad), lambda m: (0, 0)),
                pl.BlockSpec((1, kp), lambda m: (0, 0)),
                pl.BlockSpec((1, kp), lambda m: (0, 0)),
            ]
        ins.append(brow)
        in_specs.append(pl.BlockSpec((1, Npad), lambda m: (0, 0)))

        kernel = functools.partial(
            _mm_resident_kernel, ngroups=len(groups), act=act, tanh_out=tanh_out,
            m_valid=M, tm=tm, mm_dtype=mm_dtype)
        y, st = pl.pallas_call(
            kernel,
            out_shape=(jax.ShapeDtypeStruct((Mp, Npad), out_dtype),
                       jax.ShapeDtypeStruct((nm, 2, Npad), jnp.float32)),
            grid_spec=pltpu.PrefetchScalarGridSpec(
                num_scalar_prefetch=0,
                grid=(nm,),
                in_specs=in_specs,
                out_specs=[pl.BlockSpec((tm, Npad), lambda m: (m, 0)),
                           pl.BlockSpec((1, 2, Npad), lambda m: (m, 0, 0))]),
            compiler_params=pltpu.CompilerParams(
                dimension_semantics=("parallel",),
                vmem_limit_bytes=32 * 1024 * 1024),
        )(*ins)
        return y, jnp.sum(st, axis=0)

    # ---- fallback: concat groups, tile K with an f32 accumulator ----
    if len(groups) > 1:
        p = jnp.concatenate([g[0] for g in groups], axis=1)
        w = jnp.concatenate([g[1] for g in groups], axis=0)
        srow = jnp.concatenate([g[2] for g in groups])
        trow = jnp.concatenate([g[3] for g in groups])
    else:
        p, w, srow, trow = groups[0]
    K = p.shape[1]
    K128 = _ceil_to(K, 128)
    nk = -(-K128 // 512)
    tk = _ceil_to(-(-K128 // nk), 128)
    Kp = nk * tk
    tm = min(tm, 256)
    Mp = _ceil_to(M, tm)
    nm = Mp // tm

    kernel = functools.partial(
        _mm_ktile_kernel, act=act, tanh_out=tanh_out, m_valid=M, tm=tm,
        mm_dtype=mm_dtype)
    y, st = pl.pallas_call(
        kernel,
        out_shape=(jax.ShapeDtypeStruct((Mp, Npad), out_dtype),
                   jax.ShapeDtypeStruct((nm, 2, Npad), jnp.float32)),
        grid_spec=pltpu.PrefetchScalarGridSpec(
            num_scalar_prefetch=0,
            grid=(nm, nk),
            in_specs=[
                pl.BlockSpec((tm, tk), lambda m, k: (m, k)),
                pl.BlockSpec((tk, Npad), lambda m, k: (k, 0)),
                pl.BlockSpec((1, tk), lambda m, k: (0, k)),
                pl.BlockSpec((1, tk), lambda m, k: (0, k)),
                pl.BlockSpec((1, Npad), lambda m, k: (0, 0)),
            ],
            out_specs=[pl.BlockSpec((tm, Npad), lambda m, k: (m, 0)),
                       pl.BlockSpec((1, 2, Npad), lambda m, k: (m, 0, 0))],
            scratch_shapes=[pltpu.VMEM((tm, Npad), jnp.float32)]),
        compiler_params=pltpu.CompilerParams(
            dimension_semantics=("parallel", "arbitrary"),
            vmem_limit_bytes=32 * 1024 * 1024),
    )(jnp.pad(p.astype(mm_dtype), ((0, Mp - M), (0, Kp - K))),
      jnp.pad(w.astype(mm_dtype), ((0, Kp - K), (0, Npad - N))),
      jnp.pad(srow.astype(jnp.float32), (0, Kp - K))[None, :],
      jnp.pad(trow.astype(jnp.float32), (0, Kp - K))[None, :],
      brow)
    return y, jnp.sum(st, axis=0)


# --------------------------------------------------------------------------- #
# conv lowering glue (im2col / weight packing / pending-affine segments)
# --------------------------------------------------------------------------- #
def _im2col(x_nhwc, k, stride, pad, border=None):
    """(N,H,W,C) -> (N*Ho*Wo, k*k*C); patch column ordering (kh, kw, c).
    `border` (C,) is the per-channel padding value (None -> 0); set to -shift/scale
    so the padding ring maps to exactly 0 after the in-kernel pending affine."""
    Nb, H, W, C = x_nhwc.shape
    if pad > 0:
        if border is None:
            xp = jnp.pad(x_nhwc, ((0, 0), (pad, pad), (pad, pad), (0, 0)))
        else:
            bv = border.astype(x_nhwc.dtype)
            rows = jnp.broadcast_to(bv, (Nb, pad, W, C))
            xp = jnp.concatenate([rows, x_nhwc, rows], axis=1)
            cols = jnp.broadcast_to(bv, (Nb, H + 2 * pad, pad, C))
            xp = jnp.concatenate([cols, xp, cols], axis=2)
    else:
        xp = x_nhwc
    Ho = (H + 2 * pad - k) // stride + 1
    Wo = (W + 2 * pad - k) // stride + 1
    taps = []
    for kh in range(k):
        for kw in range(k):
            taps.append(xp[:, kh:kh + stride * Ho:stride,
                           kw:kw + stride * Wo:stride, :])
    p = jnp.stack(taps, axis=3)
    return p.reshape(Nb * Ho * Wo, k * k * C), Ho, Wo


# parity -> ((window_offset_in_pad1_3x3, kernel_index), ...) for ConvT(k4,s2,p1)
_PHASE_TAPS = {0: ((0, 3), (1, 1)), 1: ((1, 2), (2, 0))}


def _upconv_wmat(w_t):
    """ConvTranspose2d(k=4,s=2,p=1) weight slice (Cin, Cout, 4, 4) -> (9*Cin, 4*Cout)
    matrix acting on 3x3 patches of the pad-1 input; column = (2*rpar+cpar)*Cout+co."""
    cin, cout = w_t.shape[0], w_t.shape[1]
    wm = jnp.zeros((9 * cin, 4 * cout), w_t.dtype)
    for a in (0, 1):
        for b in (0, 1):
            col = (a * 2 + b) * cout
            for dr, kh in _PHASE_TAPS[a]:
                for dc, kw in _PHASE_TAPS[b]:
                    win = dr * 3 + dc
                    wm = wm.at[win * cin:(win + 1) * cin, col:col + cout].set(
                        w_t[:, :, kh, kw])
    return wm


def _seg_border(sc, sh):
    if sh is None:
        return None
    s = jnp.where(sc == 0, 1.0, sc)
    return -sh / s


def _seg_rows(sc, sh, C, kk):
    s = jnp.ones((C,), jnp.float32) if sc is None else sc.astype(jnp.float32)
    t = jnp.zeros((C,), jnp.float32) if sh is None else sh.astype(jnp.float32)
    return jnp.tile(s, kk), jnp.tile(t, kk)


def _conv_down(segs, w, act, mm_dtype, want_stats):
    """[pending-affine segments] -> act -> Conv2d(k=4,s=2,p=1,bias=False) as one
    fused multi-group Pallas matmul.  Returns (y_nhwc raw, stats|None, count)."""
    Nb = segs[0][0].shape[0]
    O = w.shape[0]
    groups, off = [], 0
    for vals, sc, sh in segs:
        C = vals.shape[-1]
        patches, Ho, Wo = _im2col(vals, 4, 2, 1, _seg_border(sc, sh))
        wmat = jnp.transpose(w[:, off:off + C], (2, 3, 1, 0)).reshape(16 * C, O)
        srow, trow = _seg_rows(sc, sh, C, 16)
        groups.append((patches, wmat, srow, trow))
        off += C
    y_mat, stats = _fused_matmul(groups, None, act, False, mm_dtype, mm_dtype)
    M = Nb * Ho * Wo
    y_nhwc = y_mat[:M, :O].reshape(Nb, Ho, Wo, O)
    return y_nhwc, (stats[:, :O] if want_stats else None), M


def _conv_up(segs, w_t, bias, act, tanh_out, mm_dtype, want_stats, out_dtype):
    """[pending-affine segments] -> act -> ConvTranspose2d(k=4,s=2,p=1) as one fused
    dense multi-group Pallas matmul (all 4 output phases in the lane axis)."""
    Nb, Hh, Wh, _ = segs[0][0].shape
    O = w_t.shape[1]
    groups, off = [], 0
    for vals, sc, sh in segs:
        C = vals.shape[-1]
        patches, _, _ = _im2col(vals, 3, 1, 1, _seg_border(sc, sh))
        wmat = _upconv_wmat(w_t[off:off + C])
        srow, trow = _seg_rows(sc, sh, C, 9)
        groups.append((patches, wmat, srow, trow))
        off += C
    brow = None if bias is None else jnp.tile(bias, 4)
    y_mat, stats = _fused_matmul(groups, brow, act, tanh_out, mm_dtype, out_dtype)
    M = Nb * Hh * Wh
    y = y_mat[:M, :4 * O].reshape(Nb, Hh, Wh, 2, 2, O)
    y_nhwc = jnp.transpose(y, (0, 1, 3, 2, 4, 5)).reshape(Nb, 2 * Hh, 2 * Wh, O)
    stats = stats[:, :4 * O].reshape(2, 4, O).sum(axis=1) if want_stats else None
    return y_nhwc, stats, 4 * M


def _bn_params(stats, count, gamma, beta):
    """Training-mode BatchNorm (biased variance, eps=1e-5) folded into one
    per-channel (scale, shift) pair that is applied lazily by the consumer."""
    mean = stats[0] / count
    var = jnp.maximum(stats[1] / count - mean * mean, 0.0)
    scale = gamma * lax.rsqrt(var + 1e-5)
    shift = beta - mean * scale
    return scale, shift


# --------------------------------------------------------------------------- #
# U-Net block / generator forward (Pallas path)
# --------------------------------------------------------------------------- #
# Activations flow as lists of segments (values_nhwc, pending_scale, pending_shift);
# skip connections are list concatenation (no data movement), and every consumer
# matmul applies the pending BN affine + activation in-kernel.
def _block_pallas(x_segs, p, mm_dtype):
    kind = p["kind"]
    if kind == "outermost":
        h, _, _ = _conv_down(x_segs, p["w_down"], "none", mm_dtype, False)
        m_segs = _block_pallas([(h, None, None)], p["sub"], mm_dtype)
        y, _, _ = _conv_up(m_segs, p["w_up"], p["up_bias"], "relu", True,
                           mm_dtype, False, jnp.float32)
        return y

    if kind == "innermost":
        h, _, _ = _conv_down(x_segs, p["w_down"], "leaky", mm_dtype, False)
        y, st, cnt = _conv_up([(h, None, None)], p["w_up"], None, "relu", False,
                              mm_dtype, True, mm_dtype)
        sc, sh = _bn_params(st, cnt, p["up_gamma"], p["up_beta"])
        return x_segs + [(y, sc, sh)]

    # middle block
    h, st, cnt = _conv_down(x_segs, p["w_down"], "leaky", mm_dtype, True)
    dsc, dsh = _bn_params(st, cnt, p["dn_gamma"], p["dn_beta"])
    m_segs = _block_pallas([(h, dsc, dsh)], p["sub"], mm_dtype)
    y, st, cnt = _conv_up(m_segs, p["w_up"], None, "relu", False,
                          mm_dtype, True, mm_dtype)
    usc, ush = _bn_params(st, cnt, p["up_gamma"], p["up_beta"])
    return x_segs + [(y, usc, ush)]


def unet_forward(inp_5d, params, T, output_nc, mm_dtype):
    """UnetGenerator.forward: (B, T, C, H, W) -> (B, T*output_nc, H, W)."""
    B, T_, C, H, W = inp_5d.shape
    x = inp_5d.reshape(B * T_, C, H, W)
    x_nhwc = jnp.transpose(x, (0, 2, 3, 1)).astype(mm_dtype)
    y_nhwc = _block_pallas([(x_nhwc, None, None)], params, mm_dtype)
    y = jnp.transpose(y_nhwc, (0, 3, 1, 2))
    return y.reshape(-1, T * output_nc, y.shape[2], y.shape[3])


# --------------------------------------------------------------------------- #
# parameters (mirrors UnetGenerator construction)
# --------------------------------------------------------------------------- #
def _init_block(key, outer_nc, inner_nc, input_nc, sub, kind):
    ks = jax.random.split(key, 7)
    up_in = inner_nc if kind == "innermost" else 2 * inner_nc
    p = {
        "kind": kind,
        "sub": sub,
        "w_down": jax.random.normal(ks[0], (inner_nc, input_nc, 4, 4), jnp.float32)
        / np.sqrt(16 * input_nc),
        "w_up": jax.random.normal(ks[1], (up_in, outer_nc, 4, 4), jnp.float32)
        / np.sqrt(16 * up_in),
    }
    if kind == "middle":
        p["dn_gamma"] = 1.0 + 0.1 * jax.random.normal(ks[2], (inner_nc,), jnp.float32)
        p["dn_beta"] = 0.1 * jax.random.normal(ks[3], (inner_nc,), jnp.float32)
    if kind == "outermost":
        p["up_bias"] = 0.1 * jax.random.normal(ks[4], (outer_nc,), jnp.float32)
    else:
        p["up_gamma"] = 1.0 + 0.1 * jax.random.normal(ks[5], (outer_nc,), jnp.float32)
        p["up_beta"] = 0.1 * jax.random.normal(ks[6], (outer_nc,), jnp.float32)
    return p


def init_unet_params(key, input_nc, output_nc, ngf, num_downs):
    keys = jax.random.split(key, num_downs)
    blk = _init_block(keys[0], ngf * 8, ngf * 8, ngf * 8, None, "innermost")
    ki = 1
    for _ in range(num_downs - 5):
        blk = _init_block(keys[ki], ngf * 8, ngf * 8, ngf * 8, blk, "middle"); ki += 1
    blk = _init_block(keys[ki], ngf * 4, ngf * 8, ngf * 4, blk, "middle"); ki += 1
    blk = _init_block(keys[ki], ngf * 2, ngf * 4, ngf * 2, blk, "middle"); ki += 1
    blk = _init_block(keys[ki], ngf, ngf * 2, ngf, blk, "middle"); ki += 1
    blk = _init_block(keys[ki], output_nc, ngf, input_nc, blk, "outermost")
    return blk


# --------------------------------------------------------------------------- #
# pure-JAX reference (faithful translation of the PyTorch module)
# --------------------------------------------------------------------------- #
def _conv_ref(x, w, stride, pad):
    return lax.conv_general_dilated(
        x, w, (stride, stride), ((pad, pad), (pad, pad)),
        dimension_numbers=("NCHW", "OIHW", "NCHW"),
        precision=lax.Precision.HIGHEST)


def _convT_ref(x, w_t):
    wc = jnp.transpose(w_t, (1, 0, 2, 3))[:, :, ::-1, ::-1]
    return lax.conv_general_dilated(
        x, wc, (1, 1), ((2, 2), (2, 2)), lhs_dilation=(2, 2),
        dimension_numbers=("NCHW", "OIHW", "NCHW"),
        precision=lax.Precision.HIGHEST)


def _bn_ref(y, gamma, beta):
    mean = jnp.mean(y, axis=(0, 2, 3), keepdims=True)
    var = jnp.mean((y - mean) ** 2, axis=(0, 2, 3), keepdims=True)
    return ((y - mean) * lax.rsqrt(var + 1e-5) * gamma.reshape(1, -1, 1, 1)
            + beta.reshape(1, -1, 1, 1))


def _lrelu(x):
    return jnp.where(x >= 0, x, 0.2 * x)


def _block_ref(x, p):
    kind = p["kind"]
    if kind == "outermost":
        h = _conv_ref(x, p["w_down"], 2, 1)
        m = _block_ref(h, p["sub"])
        y = _convT_ref(jnp.maximum(m, 0.0), p["w_up"]) + p["up_bias"].reshape(1, -1, 1, 1)
        return jnp.tanh(y)
    if kind == "innermost":
        h = _conv_ref(_lrelu(x), p["w_down"], 2, 1)
        y = _bn_ref(_convT_ref(jnp.maximum(h, 0.0), p["w_up"]),
                    p["up_gamma"], p["up_beta"])
        return jnp.concatenate([x, y], axis=1)
    h = _bn_ref(_conv_ref(_lrelu(x), p["w_down"], 2, 1), p["dn_gamma"], p["dn_beta"])
    m = _block_ref(h, p["sub"])
    y = _bn_ref(_convT_ref(jnp.maximum(m, 0.0), p["w_up"]),
                p["up_gamma"], p["up_beta"])
    return jnp.concatenate([x, y], axis=1)


def unet_reference(inp_5d, params, T, output_nc):
    B, T_, C, H, W = inp_5d.shape
    x = inp_5d.reshape(B * T_, C, H, W)
    y = _block_ref(x, params)
    return y.reshape(-1, T * output_nc, y.shape[2], y.shape[3])


# --------------------------------------------------------------------------- #
# main
# --------------------------------------------------------------------------- #
if __name__ == "__main__":
    # Small full UnetGenerator: input_nc=3, output_nc=3, T=2, num_downs=5, ngf=8.
    B, T, input_nc, output_nc, ngf, num_downs, H, W = 1, 2, 3, 3, 8, 5, 32, 32

    key = jax.random.PRNGKey(0)
    kx, kp = jax.random.split(key)
    inp = jax.random.normal(kx, (B, T, input_nc, H, W), jnp.float32)
    params = init_unet_params(kp, input_nc, output_nc, ngf, num_downs)

    fwd_bf16 = jax.jit(lambda v: unet_forward(v, params, T, output_nc, jnp.bfloat16))
    fwd_f32 = jax.jit(lambda v: unet_forward(v, params, T, output_nc, jnp.float32))
    ref_fn = jax.jit(lambda v: unet_reference(v, params, T, output_nc))

    out = jax.block_until_ready(fwd_bf16(inp))        # optimized (bf16) path
    out_f32 = jax.block_until_ready(fwd_f32(inp))     # f32-operand path (numerics check)
    ref = jax.block_until_ready(ref_fn(inp))

    assert out.shape == (B, T * output_nc, H, W), out.shape
    assert out_f32.shape == ref.shape

    # f32-operand kernels match the reference tightly.
    np.testing.assert_allclose(np.asarray(out_f32), np.asarray(ref), rtol=1e-2, atol=1e-2)
    # bf16 intermediates: loose tolerance accounts for bf16 rounding through 10 convs.
    np.testing.assert_allclose(np.asarray(out), np.asarray(ref), rtol=2e-1, atol=2e-1)

    print("KERNEL_OK")
</pallas_src>

<mosaic_0001>
module attributes {stable_mosaic.version = 11 : i64} {
  func.func @_mm_resident_kernel(%arg0: i32, %arg1: memref<256x128xbf16, #tpu.memory_space<vmem>>, %arg2: memref<128x128xbf16, #tpu.memory_space<vmem>>, %arg3: memref<1x128xf32, #tpu.memory_space<vmem>>, %arg4: memref<1x128xf32, #tpu.memory_space<vmem>>, %arg5: memref<1x128xf32, #tpu.memory_space<vmem>>, %arg6: memref<256x128xbf16, #tpu.memory_space<vmem>>, %arg7: memref<1x2x128xf32, #tpu.memory_space<vmem>>) attributes {dimension_semantics = [#tpu.dimension_semantics<parallel>], iteration_bounds = array<i64: 2>, scalar_prefetch = 0 : i64, scratch_operands = 0 : i64, tpu.core_type = #tpu.core_type<tc>, window_params = [{transform_indices = @transform_0, window_bounds = array<i64: 256, 128>}, {pipeline_mode = #tpu.pipeline_mode<synchronous>, transform_indices = @transform_1, window_bounds = array<i64: 128, 128>}, {pipeline_mode = #tpu.pipeline_mode<synchronous>, transform_indices = @transform_2, window_bounds = array<i64: 1, 128>}, {pipeline_mode = #tpu.pipeline_mode<synchronous>, transform_indices = @transform_3, window_bounds = array<i64: 1, 128>}, {pipeline_mode = #tpu.pipeline_mode<synchronous>, transform_indices = @transform_4, window_bounds = array<i64: 1, 128>}, {transform_indices = @transform_5, window_bounds = array<i64: 256, 128>}, {transform_indices = @transform_6, window_bounds = array<i64: 1, 2, 128>}]} {
    %c0 = arith.constant 0 : index
    %c0_0 = arith.constant 0 : index
    %0 = vector.load %arg1[%c0, %c0_0] : memref<256x128xbf16, #tpu.memory_space<vmem>>, vector<256x128xbf16>
    %1 = arith.extf %0 : vector<256x128xbf16> to vector<256x128xf32>
    %c0_1 = arith.constant 0 : index
    %c0_2 = arith.constant 0 : index
    %2 = vector.load %arg3[%c0_1, %c0_2] : memref<1x128xf32, #tpu.memory_space<vmem>>, vector<1x128xf32>
    %3 = vector.broadcast %2 : vector<1x128xf32> to vector<256x128xf32>
    %4 = arith.mulf %1, %3 : vector<256x128xf32>
    %c0_3 = arith.constant 0 : index
    %c0_4 = arith.constant 0 : index
    %5 = vector.load %arg4[%c0_3, %c0_4] : memref<1x128xf32, #tpu.memory_space<vmem>>, vector<1x128xf32>
    %6 = vector.broadcast %5 : vector<1x128xf32> to vector<256x128xf32>
    %7 = arith.addf %4, %6 : vector<256x128xf32>
    %8 = arith.truncf %7 : vector<256x128xf32> to vector<256x128xbf16>
    %c0_5 = arith.constant 0 : index
    %c0_6 = arith.constant 0 : index
    %9 = vector.load %arg2[%c0_5, %c0_6] : memref<128x128xbf16, #tpu.memory_space<vmem>>, vector<128x128xbf16>
    %cst = arith.constant dense<0.000000e+00> : vector<256x128xf32>
    %10 = tpu.matmul %8, %9, %cst {dimension_numbers = #tpu.dot_dimension_numbers<[1], [0], [0], [1], [0, 0, 1, 1], [], []>} : vector<256x128xbf16>, vector<128x128xbf16>, vector<256x128xf32> -> vector<256x128xf32>
    %c0_7 = arith.constant 0 : index
    %c0_8 = arith.constant 0 : index
    %11 = vector.load %arg5[%c0_7, %c0_8] : memref<1x128xf32, #tpu.memory_space<vmem>>, vector<1x128xf32>
    %12 = vector.broadcast %11 : vector<1x128xf32> to vector<256x128xf32>
    %13 = arith.addf %10, %12 : vector<256x128xf32>
    %c256_i32 = arith.constant 256 : i32
    %14 = arith.muli %arg0, %c256_i32 : i32
    %15 = tpu.iota {dimensions = array<i32: 0>} : vector<256x128xi32>
    %16 = vector.broadcast %14 : i32 to vector<256x128xi32>
    %17 = arith.addi %16, %15 : vector<256x128xi32>
    %c512_i32 = arith.constant 512 : i32
    %18 = vector.broadcast %c512_i32 : i32 to vector<256x128xi32>
    %19 = arith.cmpi slt, %17, %18 : vector<256x128xi32>
    %cst_9 = arith.constant 0.000000e+00 : f32
    %20 = vector.broadcast %cst_9 : f32 to vector<256x128xf32>
    %21 = arith.select %19, %13, %20 : vector<256x128xi1>, vector<256x128xf32>
    %cst_10 = arith.constant dense<0.000000e+00> : vector<128xf32>
    %22 = vector.multi_reduction <add>, %21, %cst_10 [0] : vector<256x128xf32> to vector<128xf32>
    %23 = vector.shape_cast %22 : vector<128xf32> to vector<1x128xf32>
    %c0_11 = arith.constant 0 : index
    %c0_12 = arith.constant 0 : index
    %c0_13 = arith.constant 0 : index
    %24 = vector.load %arg7[%c0_11, %c0_12, %c0_13] : memref<1x2x128xf32, #tpu.memory_space<vmem>>, vector<1x1x128xf32>
    %25 = vector.shape_cast %24 : vector<1x1x128xf32> to vector<1x128xf32>
    %26 = vector.shape_cast %23 : vector<1x128xf32> to vector<1x1x128xf32>
    tpu.vector_store %arg7[%c0_11, %c0_12, %c0_13], %26 {strides = array<i32>} : memref<1x2x128xf32, #tpu.memory_space<vmem>>, vector<1x1x128xf32>,
    %27 = arith.mulf %21, %21 : vector<256x128xf32>
    %cst_14 = arith.constant dense<0.000000e+00> : vector<128xf32>
    %28 = vector.multi_reduction <add>, %27, %cst_14 [0] : vector<256x128xf32> to vector<128xf32>
    %29 = vector.shape_cast %28 : vector<128xf32> to vector<1x128xf32>
    %c0_15 = arith.constant 0 : index
    %c1 = arith.constant 1 : index
    %c0_16 = arith.constant 0 : index
    %30 = vector.load %arg7[%c0_15, %c1, %c0_16] : memref<1x2x128xf32, #tpu.memory_space<vmem>>, vector<1x1x128xf32>
    %31 = vector.shape_cast %30 : vector<1x1x128xf32> to vector<1x128xf32>
    %32 = vector.shape_cast %29 : vector<1x128xf32> to vector<1x1x128xf32>
    tpu.vector_store %arg7[%c0_15, %c1, %c0_16], %32 {strides = array<i32>} : memref<1x2x128xf32, #tpu.memory_space<vmem>>, vector<1x1x128xf32>,
    %33 = arith.truncf %13 : vector<256x128xf32> to vector<256x128xbf16>
    %c0_17 = arith.constant 0 : index
    %c0_18 = arith.constant 0 : index
    %34 = vector.load %arg6[%c0_17, %c0_18] : memref<256x128xbf16, #tpu.memory_space<vmem>>, vector<256x128xbf16>
    tpu.vector_store %arg6[%c0_17, %c0_18], %33 {strides = array<i32>} : memref<256x128xbf16, #tpu.memory_space<vmem>>, vector<256x128xbf16>,
    return
  }
  func.func @transform_0(%arg0: i32) -> (i32, i32) {
    %c0_i32 = arith.constant 0 : i32
    %c0_i32_0 = arith.constant 0 : i32
    return %arg0, %c0_i32 : i32, i32
  }
  func.func @transform_1(%arg0: i32) -> (i32, i32) {
    %c0_i32 = arith.constant 0 : i32
    %c0_i32_0 = arith.constant 0 : i32
    %c0_i32_1 = arith.constant 0 : i32
    return %c0_i32, %c0_i32_0 : i32, i32
  }
  func.func @transform_2(%arg0: i32) -> (i32, i32) {
    %c0_i32 = arith.constant 0 : i32
    %c0_i32_0 = arith.constant 0 : i32
    %c0_i32_1 = arith.constant 0 : i32
    return %c0_i32, %c0_i32_0 : i32, i32
  }
  func.func @transform_3(%arg0: i32) -> (i32, i32) {
    %c0_i32 = arith.constant 0 : i32
    %c0_i32_0 = arith.constant 0 : i32
    %c0_i32_1 = arith.constant 0 : i32
    return %c0_i32, %c0_i32_0 : i32, i32
  }
  func.func @transform_4(%arg0: i32) -> (i32, i32) {
    %c0_i32 = arith.constant 0 : i32
    %c0_i32_0 = arith.constant 0 : i32
    %c0_i32_1 = arith.constant 0 : i32
    return %c0_i32, %c0_i32_0 : i32, i32
  }
  func.func @transform_5(%arg0: i32) -> (i32, i32) {
    %c0_i32 = arith.constant 0 : i32
    %c0_i32_0 = arith.constant 0 : i32
    return %arg0, %c0_i32 : i32, i32
  }
  func.func @transform_6(%arg0: i32) -> (i32, i32, i32) {
    %c0_i32 = arith.constant 0 : i32
    %c0_i32_0 = arith.constant 0 : i32
    %c0_i32_1 = arith.constant 0 : i32
    return %arg0, %c0_i32, %c0_i32_0 : i32, i32, i32
  }
}

module attributes {stable_mosaic.version = 11 : i64} {
  func.func @_mm_resident_kernel(%arg0: i32, %arg1: memref<128x128xbf16, #tpu.memory_space<vmem>>, %arg2: memref<128x128xbf16, #tpu.memory_space<vmem>>, %arg3: memref<1x128xf32, #tpu.memory_space<vmem>>, %arg4: memref<1x128xf32, #tpu.memory_space<vmem>>, %arg5: memref<1x128xf32, #tpu.memory_space<vmem>>, %arg6: memref<128x128xbf16, #tpu.memory_space<vmem>>, %arg7: memref<1x2x128xf32, #tpu.memory_space<vmem>>) attributes {dimension_semantics = [#tpu.dimension_semantics<parallel>], iteration_bounds = array<i64: 1>, scalar_prefetch = 0 : i64, scratch_operands = 0 : i64, tpu.core_type = #tpu.core_type<tc>, window_params = [{transform_indices = @transform_0, window_bounds = array<i64: 128, 128>}, {pipeline_mode = #tpu.pipeline_mode<synchronous>, transform_indices = @transform_1, window_bounds = array<i64: 128, 128>}, {pipeline_mode = #tpu.pipeline_mode<synchronous>, transform_indices = @transform_2, window_bounds = array<i64: 1, 128>}, {pipeline_mode = #tpu.pipeline_mode<synchronous>, transform_indices = @transform_3, window_bounds = array<i64: 1, 128>}, {pipeline_mode = #tpu.pipeline_mode<synchronous>, transform_indices = @transform_4, window_bounds = array<i64: 1, 128>}, {transform_indices = @transform_5, window_bounds = array<i64: 128, 128>}, {transform_indices = @transform_6, window_bounds = array<i64: 1, 2, 128>}]} {
    %c0 = arith.constant 0 : index
    %c0_0 = arith.constant 0 : index
    %0 = vector.load %arg1[%c0, %c0_0] : memref<128x128xbf16, #tpu.memory_space<vmem>>, vector<128x128xbf16>
    %1 = arith.extf %0 : vector<128x128xbf16> to vector<128x128xf32>
    %c0_1 = arith.constant 0 : index
    %c0_2 = arith.constant 0 : index
    %2 = vector.load %arg3[%c0_1, %c0_2] : memref<1x128xf32, #tpu.memory_space<vmem>>, vector<1x128xf32>
    %3 = vector.broadcast %2 : vector<1x128xf32> to vector<128x128xf32>
    %4 = arith.mulf %1, %3 : vector<128x128xf32>
    %c0_3 = arith.constant 0 : index
    %c0_4 = arith.constant 0 : index
    %5 = vector.load %arg4[%c0_3, %c0_4] : memref<1x128xf32, #tpu.memory_space<vmem>>, vector<1x128xf32>
    %6 = vector.broadcast %5 : vector<1x128xf32> to vector<128x128xf32>
    %7 = arith.addf %4, %6 : vector<128x128xf32>
    %cst = arith.constant 0.000000e+00 : f32
    %8 = vector.broadcast %cst : f32 to vector<128x128xf32>
    %9 = arith.cmpf oge, %7, %8 : vector<128x128xf32>
    %cst_5 = arith.constant 2.000000e-01 : f32
    %10 = vector.broadcast %cst_5 : f32 to vector<128x128xf32>
    %11 = arith.mulf %10, %7 : vector<128x128xf32>
    %12 = arith.select %9, %7, %11 : vector<128x128xi1>, vector<128x128xf32>
    %13 = arith.truncf %12 : vector<128x128xf32> to vector<128x128xbf16>
    %c0_6 = arith.constant 0 : index
    %c0_7 = arith.constant 0 : index
    %14 = vector.load %arg2[%c0_6, %c0_7] : memref<128x128xbf16, #tpu.memory_space<vmem>>, vector<128x128xbf16>
    %cst_8 = arith.constant dense<0.000000e+00> : vector<128x128xf32>
    %15 = tpu.matmul %13, %14, %cst_8 {dimension_numbers = #tpu.dot_dimension_numbers<[1], [0], [0], [1], [0, 0, 1, 1], [], []>} : vector<128x128xbf16>, vector<128x128xbf16>, vector<128x128xf32> -> vector<128x128xf32>
    %c0_9 = arith.constant 0 : index
    %c0_10 = arith.constant 0 : index
    %16 = vector.load %arg5[%c0_9, %c0_10] : memref<1x128xf32, #tpu.memory_space<vmem>>, vector<1x128xf32>
    %17 = vector.broadcast %16 : vector<1x128xf32> to vector<128x128xf32>
    %18 = arith.addf %15, %17 : vector<128x128xf32>
    %c128_i32 = arith.constant 128 : i32
    %19 = arith.muli %arg0, %c128_i32 : i32
    %20 = tpu.iota {dimensions = array<i32: 0>} : vector<128x128xi32>
    %21 = vector.broadcast %19 : i32 to vector<128x128xi32>
    %22 = arith.addi %21, %20 : vector<128x128xi32>
    %c128_i32_11 = arith.constant 128 : i32
    %23 = vector.broadcast %c128_i32_11 : i32 to vector<128x128xi32>
    %24 = arith.cmpi slt, %22, %23 : vector<128x128xi32>
    %cst_12 = arith.constant 0.000000e+00 : f32
    %25 = vector.broadcast %cst_12 : f32 to vector<128x128xf32>
    %26 = arith.select %24, %18, %25 : vector<128x128xi1>, vector<128x128xf32>
    %cst_13 = arith.constant dense<0.000000e+00> : vector<128xf32>
    %27 = vector.multi_reduction <add>, %26, %cst_13 [0] : vector<128x128xf32> to vector<128xf32>
    %28 = vector.shape_cast %27 : vector<128xf32> to vector<1x128xf32>
    %c0_14 = arith.constant 0 : index
    %c0_15 = arith.constant 0 : index
    %c0_16 = arith.constant 0 : index
    %29 = vector.load %arg7[%c0_14, %c0_15, %c0_16] : memref<1x2x128xf32, #tpu.memory_space<vmem>>, vector<1x1x128xf32>
    %30 = vector.shape_cast %29 : vector<1x1x128xf32> to vector<1x128xf32>
    %31 = vector.shape_cast %28 : vector<1x128xf32> to vector<1x1x128xf32>
    tpu.vector_store %arg7[%c0_14, %c0_15, %c0_16], %31 {strides = array<i32>} : memref<1x2x128xf32, #tpu.memory_space<vmem>>, vector<1x1x128xf32>,
    %32 = arith.mulf %26, %26 : vector<128x128xf32>
    %cst_17 = arith.constant dense<0.000000e+00> : vector<128xf32>
    %33 = vector.multi_reduction <add>, %32, %cst_17 [0] : vector<128x128xf32> to vector<128xf32>
    %34 = vector.shape_cast %33 : vector<128xf32> to vector<1x128xf32>
    %c0_18 = arith.constant 0 : index
    %c1 = arith.constant 1 : index
    %c0_19 = arith.constant 0 : index
    %35 = vector.load %arg7[%c0_18, %c1, %c0_19] : memref<1x2x128xf32, #tpu.memory_space<vmem>>, vector<1x1x128xf32>
    %36 = vector.shape_cast %35 : vector<1x1x128xf32> to vector<1x128xf32>
    %37 = vector.shape_cast %34 : vector<1x128xf32> to vector<1x1x128xf32>
    tpu.vector_store %arg7[%c0_18, %c1, %c0_19], %37 {strides = array<i32>} : memref<1x2x128xf32, #tpu.memory_space<vmem>>, vector<1x1x128xf32>,
    %38 = arith.truncf %18 : vector<128x128xf32> to vector<128x128xbf16>
    %c0_20 = arith.constant 0 : index
    %c0_21 = arith.constant 0 : index
    %39 = vector.load %arg6[%c0_20, %c0_21] : memref<128x128xbf16, #tpu.memory_space<vmem>>, vector<128x128xbf16>
    tpu.vector_store %arg6[%c0_20, %c0_21], %38 {strides = array<i32>} : memref<128x128xbf16, #tpu.memory_space<vmem>>, vector<128x128xbf16>,
    return
  }
  func.func @transform_0(%arg0: i32) -> (i32, i32) {
    %c0_i32 = arith.constant 0 : i32
    %c0_i32_0 = arith.constant 0 : i32
    return %arg0, %c0_i32 : i32, i32
  }
  func.func @transform_1(%arg0: i32) -> (i32, i32) {
    %c0_i32 = arith.constant 0 : i32
    %c0_i32_0 = arith.constant 0 : i32
    %c0_i32_1 = arith.constant 0 : i32
    return %c0_i32, %c0_i32_0 : i32, i32
  }
  func.func @transform_2(%arg0: i32) -> (i32, i32) {
    %c0_i32 = arith.constant 0 : i32
    %c0_i32_0 = arith.constant 0 : i32
    %c0_i32_1 = arith.constant 0 : i32
    return %c0_i32, %c0_i32_0 : i32, i32
  }
  func.func @transform_3(%arg0: i32) -> (i32, i32) {
    %c0_i32 = arith.constant 0 : i32
    %c0_i32_0 = arith.constant 0 : i32
    %c0_i32_1 = arith.constant 0 : i32
    return %c0_i32, %c0_i32_0 : i32, i32
  }
  func.func @transform_4(%arg0: i32) -> (i32, i32) {
    %c0_i32 = arith.constant 0 : i32
    %c0_i32_0 = arith.constant 0 : i32
    %c0_i32_1 = arith.constant 0 : i32
    return %c0_i32, %c0_i32_0 : i32, i32
  }
  func.func @transform_5(%arg0: i32) -> (i32, i32) {
    %c0_i32 = arith.constant 0 : i32
    %c0_i32_0 = arith.constant 0 : i32
    return %arg0, %c0_i32 : i32, i32
  }
  func.func @transform_6(%arg0: i32) -> (i32, i32, i32) {
    %c0_i32 = arith.constant 0 : i32
    %c0_i32_0 = arith.constant 0 : i32
    %c0_i32_1 = arith.constant 0 : i32
    return %arg0, %c0_i32, %c0_i32_0 : i32, i32, i32
  }
}

module attributes {stable_mosaic.version = 11 : i64} {
  func.func @_mm_resident_kernel(%arg0: i32, %arg1: memref<32x256xbf16, #tpu.memory_space<vmem>>, %arg2: memref<256x128xbf16, #tpu.memory_space<vmem>>, %arg3: memref<1x256xf32, #tpu.memory_space<vmem>>, %arg4: memref<1x256xf32, #tpu.memory_space<vmem>>, %arg5: memref<1x128xf32, #tpu.memory_space<vmem>>, %arg6: memref<32x128xbf16, #tpu.memory_space<vmem>>, %arg7: memref<1x2x128xf32, #tpu.memory_space<vmem>>) attributes {dimension_semantics = [#tpu.dimension_semantics<parallel>], iteration_bounds = array<i64: 1>, scalar_prefetch = 0 : i64, scratch_operands = 0 : i64, tpu.core_type = #tpu.core_type<tc>, window_params = [{transform_indices = @transform_0, window_bounds = array<i64: 32, 256>}, {pipeline_mode = #tpu.pipeline_mode<synchronous>, transform_indices = @transform_1, window_bounds = array<i64: 256, 128>}, {pipeline_mode = #tpu.pipeline_mode<synchronous>, transform_indices = @transform_2, window_bounds = array<i64: 1, 256>}, {pipeline_mode = #tpu.pipeline_mode<synchronous>, transform_indices = @transform_3, window_bounds = array<i64: 1, 256>}, {pipeline_mode = #tpu.pipeline_mode<synchronous>, transform_indices = @transform_4, window_bounds = array<i64: 1, 128>}, {transform_indices = @transform_5, window_bounds = array<i64: 32, 128>}, {transform_indices = @transform_6, window_bounds = array<i64: 1, 2, 128>}]} {
    %c0 = arith.constant 0 : index
    %c0_0 = arith.constant 0 : index
    %0 = vector.load %arg1[%c0, %c0_0] : memref<32x256xbf16, #tpu.memory_space<vmem>>, vector<32x256xbf16>
    %1 = arith.extf %0 : vector<32x256xbf16> to vector<32x256xf32>
    %c0_1 = arith.constant 0 : index
    %c0_2 = arith.constant 0 : index
    %2 = vector.load %arg3[%c0_1, %c0_2] : memref<1x256xf32, #tpu.memory_space<vmem>>, vector<1x256xf32>
    %3 = vector.broadcast %2 : vector<1x256xf32> to vector<32x256xf32>
    %4 = arith.mulf %1, %3 : vector<32x256xf32>
    %c0_3 = arith.constant 0 : index
    %c0_4 = arith.constant 0 : index
    %5 = vector.load %arg4[%c0_3, %c0_4] : memref<1x256xf32, #tpu.memory_space<vmem>>, vector<1x256xf32>
    %6 = vector.broadcast %5 : vector<1x256xf32> to vector<32x256xf32>
    %7 = arith.addf %4, %6 : vector<32x256xf32>
    %cst = arith.constant 0.000000e+00 : f32
    %8 = vector.broadcast %cst : f32 to vector<32x256xf32>
    %9 = arith.cmpf oge, %7, %8 : vector<32x256xf32>
    %cst_5 = arith.constant 2.000000e-01 : f32
    %10 = vector.broadcast %cst_5 : f32 to vector<32x256xf32>
    %11 = arith.mulf %10, %7 : vector<32x256xf32>
    %12 = arith.select %9, %7, %11 : vector<32x256xi1>, vector<32x256xf32>
    %13 = arith.truncf %12 : vector<32x256xf32> to vector<32x256xbf16>
    %c0_6 = arith.constant 0 : index
    %c0_7 = arith.constant 0 : index
    %14 = vector.load %arg2[%c0_6, %c0_7] : memref<256x128xbf16, #tpu.memory_space<vmem>>, vector<256x128xbf16>
    %cst_8 = arith.constant dense<0.000000e+00> : vector<32x128xf32>
    %15 = tpu.matmul %13, %14, %cst_8 {dimension_numbers = #tpu.dot_dimension_numbers<[1], [0], [0], [1], [0, 0, 1, 1], [], []>} : vector<32x256xbf16>, vector<256x128xbf16>, vector<32x128xf32> -> vector<32x128xf32>
    %c0_9 = arith.constant 0 : index
    %c0_10 = arith.constant 0 : index
    %16 = vector.load %arg5[%c0_9, %c0_10] : memref<1x128xf32, #tpu.memory_space<vmem>>, vector<1x128xf32>
    %17 = vector.broadcast %16 : vector<1x128xf32> to vector<32x128xf32>
    %18 = arith.addf %15, %17 : vector<32x128xf32>
    %c32_i32 = arith.constant 32 : i32
    %19 = arith.muli %arg0, %c32_i32 : i32
    %20 = tpu.iota {dimensions = array<i32: 0>} : vector<32x128xi32>
    %21 = vector.broadcast %19 : i32 to vector<32x128xi32>
    %22 = arith.addi %21, %20 : vector<32x128xi32>
    %c32_i32_11 = arith.constant 32 : i32
    %23 = vector.broadcast %c32_i32_11 : i32 to vector<32x128xi32>
    %24 = arith.cmpi slt, %22, %23 : vector<32x128xi32>
    %cst_12 = arith.constant 0.000000e+00 : f32
    %25 = vector.broadcast %cst_12 : f32 to vector<32x128xf32>
    %26 = arith.select %24, %18, %25 : vector<32x128xi1>, vector<32x128xf32>
    %cst_13 = arith.constant dense<0.000000e+00> : vector<128xf32>
    %27 = vector.multi_reduction <add>, %26, %cst_13 [0] : vector<32x128xf32> to vector<128xf32>
    %28 = vector.shape_cast %27 : vector<128xf32> to vector<1x128xf32>
    %c0_14 = arith.constant 0 : index
    %c0_15 = arith.constant 0 : index
    %c0_16 = arith.constant 0 : index
    %29 = vector.load %arg7[%c0_14, %c0_15, %c0_16] : memref<1x2x128xf32, #tpu.memory_space<vmem>>, vector<1x1x128xf32>
    %30 = vector.shape_cast %29 : vector<1x1x128xf32> to vector<1x128xf32>
    %31 = vector.shape_cast %28 : vector<1x128xf32> to vector<1x1x128xf32>
    tpu.vector_store %arg7[%c0_14, %c0_15, %c0_16], %31 {strides = array<i32>} : memref<1x2x128xf32, #tpu.memory_space<vmem>>, vector<1x1x128xf32>,
    %32 = arith.mulf %26, %26 : vector<32x128xf32>
    %cst_17 = arith.constant dense<0.000000e+00> : vector<128xf32>
    %33 = vector.multi_reduction <add>, %32, %cst_17 [0] : vector<32x128xf32> to vector<128xf32>
    %34 = vector.shape_cast %33 : vector<128xf32> to vector<1x128xf32>
    %c0_18 = arith.constant 0 : index
    %c1 = arith.constant 1 : index
    %c0_19 = arith.constant 0 : index
    %35 = vector.load %arg7[%c0_18, %c1, %c0_19] : memref<1x2x128xf32, #tpu.memory_space<vmem>>, vector<1x1x128xf32>
    %36 = vector.shape_cast %35 : vector<1x1x128xf32> to vector<1x128xf32>
    %37 = vector.shape_cast %34 : vector<1x128xf32> to vector<1x1x128xf32>
    tpu.vector_store %arg7[%c0_18, %c1, %c0_19], %37 {strides = array<i32>} : memref<1x2x128xf32, #tpu.memory_space<vmem>>, vector<1x1x128xf32>,
    %38 = arith.truncf %18 : vector<32x128xf32> to vector<32x128xbf16>
    %c0_20 = arith.constant 0 : index
    %c0_21 = arith.constant 0 : index
    %39 = vector.load %arg6[%c0_20, %c0_21] : memref<32x128xbf16, #tpu.memory_space<vmem>>, vector<32x128xbf16>
    tpu.vector_store %arg6[%c0_20, %c0_21], %38 {strides = array<i32>} : memref<32x128xbf16, #tpu.memory_space<vmem>>, vector<32x128xbf16>,
    return
  }
  func.func @transform_0(%arg0: i32) -> (i32, i32) {
    %c0_i32 = arith.constant 0 : i32
    %c0_i32_0 = arith.constant 0 : i32
    return %arg0, %c0_i32 : i32, i32
  }
  func.func @transform_1(%arg0: i32) -> (i32, i32) {
    %c0_i32 = arith.constant 0 : i32
    %c0_i32_0 = arith.constant 0 : i32
    %c0_i32_1 = arith.constant 0 : i32
    return %c0_i32, %c0_i32_0 : i32, i32
  }
  func.func @transform_2(%arg0: i32) -> (i32, i32) {
    %c0_i32 = arith.constant 0 : i32
    %c0_i32_0 = arith.constant 0 : i32
    %c0_i32_1 = arith.constant 0 : i32
    return %c0_i32, %c0_i32_0 : i32, i32
  }
  func.func @transform_3(%arg0: i32) -> (i32, i32) {
    %c0_i32 = arith.constant 0 : i32
    %c0_i32_0 = arith.constant 0 : i32
    %c0_i32_1 = arith.constant 0 : i32
    return %c0_i32, %c0_i32_0 : i32, i32
  }
  func.func @transform_4(%arg0: i32) -> (i32, i32) {
    %c0_i32 = arith.constant 0 : i32
    %c0_i32_0 = arith.constant 0 : i32
    %c0_i32_1 = arith.constant 0 : i32
    return %c0_i32, %c0_i32_0 : i32, i32
  }
  func.func @transform_5(%arg0: i32) -> (i32, i32) {
    %c0_i32 = arith.constant 0 : i32
    %c0_i32_0 = arith.constant 0 : i32
    return %arg0, %c0_i32 : i32, i32
  }
  func.func @transform_6(%arg0: i32) -> (i32, i32, i32) {
    %c0_i32 = arith.constant 0 : i32
    %c0_i32_0 = arith.constant 0 : i32
    %c0_i32_1 = arith.constant 0 : i32
    return %arg0, %c0_i32, %c0_i32_0 : i32, i32, i32
  }
}

module attributes {stable_mosaic.version = 11 : i64} {
  func.func @_mm_resident_kernel(%arg0: i32, %arg1: memref<8x512xbf16, #tpu.memory_space<vmem>>, %arg2: memref<512x128xbf16, #tpu.memory_space<vmem>>, %arg3: memref<1x512xf32, #tpu.memory_space<vmem>>, %arg4: memref<1x512xf32, #tpu.memory_space<vmem>>, %arg5: memref<1x128xf32, #tpu.memory_space<vmem>>, %arg6: memref<8x128xbf16, #tpu.memory_space<vmem>>, %arg7: memref<1x2x128xf32, #tpu.memory_space<vmem>>) attributes {dimension_semantics = [#tpu.dimension_semantics<parallel>], iteration_bounds = array<i64: 1>, scalar_prefetch = 0 : i64, scratch_operands = 0 : i64, tpu.core_type = #tpu.core_type<tc>, window_params = [{transform_indices = @transform_0, window_bounds = array<i64: 8, 512>}, {pipeline_mode = #tpu.pipeline_mode<synchronous>, transform_indices = @transform_1, window_bounds = array<i64: 512, 128>}, {pipeline_mode = #tpu.pipeline_mode<synchronous>, transform_indices = @transform_2, window_bounds = array<i64: 1, 512>}, {pipeline_mode = #tpu.pipeline_mode<synchronous>, transform_indices = @transform_3, window_bounds = array<i64: 1, 512>}, {pipeline_mode = #tpu.pipeline_mode<synchronous>, transform_indices = @transform_4, window_bounds = array<i64: 1, 128>}, {transform_indices = @transform_5, window_bounds = array<i64: 8, 128>}, {transform_indices = @transform_6, window_bounds = array<i64: 1, 2, 128>}]} {
    %c0 = arith.constant 0 : index
    %c0_0 = arith.constant 0 : index
    %0 = vector.load %arg1[%c0, %c0_0] : memref<8x512xbf16, #tpu.memory_space<vmem>>, vector<8x512xbf16>
    %1 = arith.extf %0 : vector<8x512xbf16> to vector<8x512xf32>
    %c0_1 = arith.constant 0 : index
    %c0_2 = arith.constant 0 : index
    %2 = vector.load %arg3[%c0_1, %c0_2] : memref<1x512xf32, #tpu.memory_space<vmem>>, vector<1x512xf32>
    %3 = vector.broadcast %2 : vector<1x512xf32> to vector<8x512xf32>
    %4 = arith.mulf %1, %3 : vector<8x512xf32>
    %c0_3 = arith.constant 0 : index
    %c0_4 = arith.constant 0 : index
    %5 = vector.load %arg4[%c0_3, %c0_4] : memref<1x512xf32, #tpu.memory_space<vmem>>, vector<1x512xf32>
    %6 = vector.broadcast %5 : vector<1x512xf32> to vector<8x512xf32>
    %7 = arith.addf %4, %6 : vector<8x512xf32>
    %cst = arith.constant 0.000000e+00 : f32
    %8 = vector.broadcast %cst : f32 to vector<8x512xf32>
    %9 = arith.cmpf oge, %7, %8 : vector<8x512xf32>
    %cst_5 = arith.constant 2.000000e-01 : f32
    %10 = vector.broadcast %cst_5 : f32 to vector<8x512xf32>
    %11 = arith.mulf %10, %7 : vector<8x512xf32>
    %12 = arith.select %9, %7, %11 : vector<8x512xi1>, vector<8x512xf32>
    %13 = arith.truncf %12 : vector<8x512xf32> to vector<8x512xbf16>
    %c0_6 = arith.constant 0 : index
    %c0_7 = arith.constant 0 : index
    %14 = vector.load %arg2[%c0_6, %c0_7] : memref<512x128xbf16, #tpu.memory_space<vmem>>, vector<512x128xbf16>
    %cst_8 = arith.constant dense<0.000000e+00> : vector<8x128xf32>
    %15 = tpu.matmul %13, %14, %cst_8 {dimension_numbers = #tpu.dot_dimension_numbers<[1], [0], [0], [1], [0, 0, 1, 1], [], []>} : vector<8x512xbf16>, vector<512x128xbf16>, vector<8x128xf32> -> vector<8x128xf32>
    %c0_9 = arith.constant 0 : index
    %c0_10 = arith.constant 0 : index
    %16 = vector.load %arg5[%c0_9, %c0_10] : memref<1x128xf32, #tpu.memory_space<vmem>>, vector<1x128xf32>
    %17 = vector.broadcast %16 : vector<1x128xf32> to vector<8x128xf32>
    %18 = arith.addf %15, %17 : vector<8x128xf32>
    %c8_i32 = arith.constant 8 : i32
    %19 = arith.muli %arg0, %c8_i32 : i32
    %20 = tpu.iota {dimensions = array<i32: 0>} : vector<8x128xi32>
    %21 = vector.broadcast %19 : i32 to vector<8x128xi32>
    %22 = arith.addi %21, %20 : vector<8x128xi32>
    %c8_i32_11 = arith.constant 8 : i32
    %23 = vector.broadcast %c8_i32_11 : i32 to vector<8x128xi32>
    %24 = arith.cmpi slt, %22, %23 : vector<8x128xi32>
    %cst_12 = arith.constant 0.000000e+00 : f32
    %25 = vector.broadcast %cst_12 : f32 to vector<8x128xf32>
    %26 = arith.select %24, %18, %25 : vector<8x128xi1>, vector<8x128xf32>
    %cst_13 = arith.constant dense<0.000000e+00> : vector<128xf32>
    %27 = vector.multi_reduction <add>, %26, %cst_13 [0] : vector<8x128xf32> to vector<128xf32>
    %28 = vector.shape_cast %27 : vector<128xf32> to vector<1x128xf32>
    %c0_14 = arith.constant 0 : index
    %c0_15 = arith.constant 0 : index
    %c0_16 = arith.constant 0 : index
    %29 = vector.load %arg7[%c0_14, %c0_15, %c0_16] : memref<1x2x128xf32, #tpu.memory_space<vmem>>, vector<1x1x128xf32>
    %30 = vector.shape_cast %29 : vector<1x1x128xf32> to vector<1x128xf32>
    %31 = vector.shape_cast %28 : vector<1x128xf32> to vector<1x1x128xf32>
    tpu.vector_store %arg7[%c0_14, %c0_15, %c0_16], %31 {strides = array<i32>} : memref<1x2x128xf32, #tpu.memory_space<vmem>>, vector<1x1x128xf32>,
    %32 = arith.mulf %26, %26 : vector<8x128xf32>
    %cst_17 = arith.constant dense<0.000000e+00> : vector<128xf32>
    %33 = vector.multi_reduction <add>, %32, %cst_17 [0] : vector<8x128xf32> to vector<128xf32>
    %34 = vector.shape_cast %33 : vector<128xf32> to vector<1x128xf32>
    %c0_18 = arith.constant 0 : index
    %c1 = arith.constant 1 : index
    %c0_19 = arith.constant 0 : index
    %35 = vector.load %arg7[%c0_18, %c1, %c0_19] : memref<1x2x128xf32, #tpu.memory_space<vmem>>, vector<1x1x128xf32>
    %36 = vector.shape_cast %35 : vector<1x1x128xf32> to vector<1x128xf32>
    %37 = vector.shape_cast %34 : vector<1x128xf32> to vector<1x1x128xf32>
    tpu.vector_store %arg7[%c0_18, %c1, %c0_19], %37 {strides = array<i32>} : memref<1x2x128xf32, #tpu.memory_space<vmem>>, vector<1x1x128xf32>,
    %38 = arith.truncf %18 : vector<8x128xf32> to vector<8x128xbf16>
    %c0_20 = arith.constant 0 : index
    %c0_21 = arith.constant 0 : index
    %39 = vector.load %arg6[%c0_20, %c0_21] : memref<8x128xbf16, #tpu.memory_space<vmem>>, vector<8x128xbf16>
    tpu.vector_store %arg6[%c0_20, %c0_21], %38 {strides = array<i32>} : memref<8x128xbf16, #tpu.memory_space<vmem>>, vector<8x128xbf16>,
    return
  }
  func.func @transform_0(%arg0: i32) -> (i32, i32) {
    %c0_i32 = arith.constant 0 : i32
    %c0_i32_0 = arith.constant 0 : i32
    return %arg0, %c0_i32 : i32, i32
  }
  func.func @transform_1(%arg0: i32) -> (i32, i32) {
    %c0_i32 = arith.constant 0 : i32
    %c0_i32_0 = arith.constant 0 : i32
    %c0_i32_1 = arith.constant 0 : i32
    return %c0_i32, %c0_i32_0 : i32, i32
  }
  func.func @transform_2(%arg0: i32) -> (i32, i32) {
    %c0_i32 = arith.constant 0 : i32
    %c0_i32_0 = arith.constant 0 : i32
    %c0_i32_1 = arith.constant 0 : i32
    return %c0_i32, %c0_i32_0 : i32, i32
  }
  func.func @transform_3(%arg0: i32) -> (i32, i32) {
    %c0_i32 = arith.constant 0 : i32
    %c0_i32_0 = arith.constant 0 : i32
    %c0_i32_1 = arith.constant 0 : i32
    return %c0_i32, %c0_i32_0 : i32, i32
  }
  func.func @transform_4(%arg0: i32) -> (i32, i32) {
    %c0_i32 = arith.constant 0 : i32
    %c0_i32_0 = arith.constant 0 : i32
    %c0_i32_1 = arith.constant 0 : i32
    return %c0_i32, %c0_i32_0 : i32, i32
  }
  func.func @transform_5(%arg0: i32) -> (i32, i32) {
    %c0_i32 = arith.constant 0 : i32
    %c0_i32_0 = arith.constant 0 : i32
    return %arg0, %c0_i32 : i32, i32
  }
  func.func @transform_6(%arg0: i32) -> (i32, i32, i32) {
    %c0_i32 = arith.constant 0 : i32
    %c0_i32_0 = arith.constant 0 : i32
    %c0_i32_1 = arith.constant 0 : i32
    return %arg0, %c0_i32, %c0_i32_0 : i32, i32, i32
  }
}

module attributes {stable_mosaic.version = 11 : i64} {
  func.func @_mm_resident_kernel(%arg0: i32, %arg1: memref<8x1024xbf16, #tpu.memory_space<vmem>>, %arg2: memref<1024x128xbf16, #tpu.memory_space<vmem>>, %arg3: memref<1x1024xf32, #tpu.memory_space<vmem>>, %arg4: memref<1x1024xf32, #tpu.memory_space<vmem>>, %arg5: memref<1x128xf32, #tpu.memory_space<vmem>>, %arg6: memref<8x128xbf16, #tpu.memory_space<vmem>>, %arg7: memref<1x2x128xf32, #tpu.memory_space<vmem>>) attributes {dimension_semantics = [#tpu.dimension_semantics<parallel>], iteration_bounds = array<i64: 1>, scalar_prefetch = 0 : i64, scratch_operands = 0 : i64, tpu.core_type = #tpu.core_type<tc>, window_params = [{transform_indices = @transform_0, window_bounds = array<i64: 8, 1024>}, {pipeline_mode = #tpu.pipeline_mode<synchronous>, transform_indices = @transform_1, window_bounds = array<i64: 1024, 128>}, {pipeline_mode = #tpu.pipeline_mode<synchronous>, transform_indices = @transform_2, window_bounds = array<i64: 1, 1024>}, {pipeline_mode = #tpu.pipeline_mode<synchronous>, transform_indices = @transform_3, window_bounds = array<i64: 1, 1024>}, {pipeline_mode = #tpu.pipeline_mode<synchronous>, transform_indices = @transform_4, window_bounds = array<i64: 1, 128>}, {transform_indices = @transform_5, window_bounds = array<i64: 8, 128>}, {transform_indices = @transform_6, window_bounds = array<i64: 1, 2, 128>}]} {
    %c0 = arith.constant 0 : index
    %c0_0 = arith.constant 0 : index
    %0 = vector.load %arg1[%c0, %c0_0] : memref<8x1024xbf16, #tpu.memory_space<vmem>>, vector<8x1024xbf16>
    %1 = arith.extf %0 : vector<8x1024xbf16> to vector<8x1024xf32>
    %c0_1 = arith.constant 0 : index
    %c0_2 = arith.constant 0 : index
    %2 = vector.load %arg3[%c0_1, %c0_2] : memref<1x1024xf32, #tpu.memory_space<vmem>>, vector<1x1024xf32>
    %3 = vector.broadcast %2 : vector<1x1024xf32> to vector<8x1024xf32>
    %4 = arith.mulf %1, %3 : vector<8x1024xf32>
    %c0_3 = arith.constant 0 : index
    %c0_4 = arith.constant 0 : index
    %5 = vector.load %arg4[%c0_3, %c0_4] : memref<1x1024xf32, #tpu.memory_space<vmem>>, vector<1x1024xf32>
    %6 = vector.broadcast %5 : vector<1x1024xf32> to vector<8x1024xf32>
    %7 = arith.addf %4, %6 : vector<8x1024xf32>
    %cst = arith.constant 0.000000e+00 : f32
    %8 = vector.broadcast %cst : f32 to vector<8x1024xf32>
    %9 = arith.cmpf oge, %7, %8 : vector<8x1024xf32>
    %cst_5 = arith.constant 2.000000e-01 : f32
    %10 = vector.broadcast %cst_5 : f32 to vector<8x1024xf32>
    %11 = arith.mulf %10, %7 : vector<8x1024xf32>
    %12 = arith.select %9, %7, %11 : vector<8x1024xi1>, vector<8x1024xf32>
    %13 = arith.truncf %12 : vector<8x1024xf32> to vector<8x1024xbf16>
    %c0_6 = arith.constant 0 : index
    %c0_7 = arith.constant 0 : index
    %14 = vector.load %arg2[%c0_6, %c0_7] : memref<1024x128xbf16, #tpu.memory_space<vmem>>, vector<1024x128xbf16>
    %cst_8 = arith.constant dense<0.000000e+00> : vector<8x128xf32>
    %15 = tpu.matmul %13, %14, %cst_8 {dimension_numbers = #tpu.dot_dimension_numbers<[1], [0], [0], [1], [0, 0, 1, 1], [], []>} : vector<8x1024xbf16>, vector<1024x128xbf16>, vector<8x128xf32> -> vector<8x128xf32>
    %c0_9 = arith.constant 0 : index
    %c0_10 = arith.constant 0 : index
    %16 = vector.load %arg5[%c0_9, %c0_10] : memref<1x128xf32, #tpu.memory_space<vmem>>, vector<1x128xf32>
    %17 = vector.broadcast %16 : vector<1x128xf32> to vector<8x128xf32>
    %18 = arith.addf %15, %17 : vector<8x128xf32>
    %c8_i32 = arith.constant 8 : i32
    %19 = arith.muli %arg0, %c8_i32 : i32
    %20 = tpu.iota {dimensions = array<i32: 0>} : vector<8x128xi32>
    %21 = vector.broadcast %19 : i32 to vector<8x128xi32>
    %22 = arith.addi %21, %20 : vector<8x128xi32>
    %c2_i32 = arith.constant 2 : i32
    %23 = vector.broadcast %c2_i32 : i32 to vector<8x128xi32>
    %24 = arith.cmpi slt, %22, %23 : vector<8x128xi32>
    %cst_11 = arith.constant 0.000000e+00 : f32
    %25 = vector.broadcast %cst_11 : f32 to vector<8x128xf32>
    %26 = arith.select %24, %18, %25 : vector<8x128xi1>, vector<8x128xf32>
    %cst_12 = arith.constant dense<0.000000e+00> : vector<128xf32>
    %27 = vector.multi_reduction <add>, %26, %cst_12 [0] : vector<8x128xf32> to vector<128xf32>
    %28 = vector.shape_cast %27 : vector<128xf32> to vector<1x128xf32>
    %c0_13 = arith.constant 0 : index
    %c0_14 = arith.constant 0 : index
    %c0_15 = arith.constant 0 : index
    %29 = vector.load %arg7[%c0_13, %c0_14, %c0_15] : memref<1x2x128xf32, #tpu.memory_space<vmem>>, vector<1x1x128xf32>
    %30 = vector.shape_cast %29 : vector<1x1x128xf32> to vector<1x128xf32>
    %31 = vector.shape_cast %28 : vector<1x128xf32> to vector<1x1x128xf32>
    tpu.vector_store %arg7[%c0_13, %c0_14, %c0_15], %31 {strides = array<i32>} : memref<1x2x128xf32, #tpu.memory_space<vmem>>, vector<1x1x128xf32>,
    %32 = arith.mulf %26, %26 : vector<8x128xf32>
    %cst_16 = arith.constant dense<0.000000e+00> : vector<128xf32>
    %33 = vector.multi_reduction <add>, %32, %cst_16 [0] : vector<8x128xf32> to vector<128xf32>
    %34 = vector.shape_cast %33 : vector<128xf32> to vector<1x128xf32>
    %c0_17 = arith.constant 0 : index
    %c1 = arith.constant 1 : index
    %c0_18 = arith.constant 0 : index
    %35 = vector.load %arg7[%c0_17, %c1, %c0_18] : memref<1x2x128xf32, #tpu.memory_space<vmem>>, vector<1x1x128xf32>
    %36 = vector.shape_cast %35 : vector<1x1x128xf32> to vector<1x128xf32>
    %37 = vector.shape_cast %34 : vector<1x128xf32> to vector<1x1x128xf32>
    tpu.vector_store %arg7[%c0_17, %c1, %c0_18], %37 {strides = array<i32>} : memref<1x2x128xf32, #tpu.memory_space<vmem>>, vector<1x1x128xf32>,
    %38 = arith.truncf %18 : vector<8x128xf32> to vector<8x128xbf16>
    %c0_19 = arith.constant 0 : index
    %c0_20 = arith.constant 0 : index
    %39 = vector.load %arg6[%c0_19, %c0_20] : memref<8x128xbf16, #tpu.memory_space<vmem>>, vector<8x128xbf16>
    tpu.vector_store %arg6[%c0_19, %c0_20], %38 {strides = array<i32>} : memref<8x128xbf16, #tpu.memory_space<vmem>>, vector<8x128xbf16>,
    return
  }
  func.func @transform_0(%arg0: i32) -> (i32, i32) {
    %c0_i32 = arith.constant 0 : i32
    %c0_i32_0 = arith.constant 0 : i32
    return %arg0, %c0_i32 : i32, i32
  }
  func.func @transform_1(%arg0: i32) -> (i32, i32) {
    %c0_i32 = arith.constant 0 : i32
    %c0_i32_0 = arith.constant 0 : i32
    %c0_i32_1 = arith.constant 0 : i32
    return %c0_i32, %c0_i32_0 : i32, i32
  }
  func.func @transform_2(%arg0: i32) -> (i32, i32) {
    %c0_i32 = arith.constant 0 : i32
    %c0_i32_0 = arith.constant 0 : i32
    %c0_i32_1 = arith.constant 0 : i32
    return %c0_i32, %c0_i32_0 : i32, i32
  }
  func.func @transform_3(%arg0: i32) -> (i32, i32) {
    %c0_i32 = arith.constant 0 : i32
    %c0_i32_0 = arith.constant 0 : i32
    %c0_i32_1 = arith.constant 0 : i32
    return %c0_i32, %c0_i32_0 : i32, i32
  }
  func.func @transform_4(%arg0: i32) -> (i32, i32) {
    %c0_i32 = arith.constant 0 : i32
    %c0_i32_0 = arith.constant 0 : i32
    %c0_i32_1 = arith.constant 0 : i32
    return %c0_i32, %c0_i32_0 : i32, i32
  }
  func.func @transform_5(%arg0: i32) -> (i32, i32) {
    %c0_i32 = arith.constant 0 : i32
    %c0_i32_0 = arith.constant 0 : i32
    return %arg0, %c0_i32 : i32, i32
  }
  func.func @transform_6(%arg0: i32) -> (i32, i32, i32) {
    %c0_i32 = arith.constant 0 : i32
    %c0_i32_0 = arith.constant 0 : i32
    %c0_i32_1 = arith.constant 0 : i32
    return %arg0, %c0_i32, %c0_i32_0 : i32, i32, i32
  }
}

module attributes {stable_mosaic.version = 11 : i64} {
  func.func @_mm_resident_kernel(%arg0: i32, %arg1: memref<8x640xbf16, #tpu.memory_space<vmem>>, %arg2: memref<640x256xbf16, #tpu.memory_space<vmem>>, %arg3: memref<1x640xf32, #tpu.memory_space<vmem>>, %arg4: memref<1x640xf32, #tpu.memory_space<vmem>>, %arg5: memref<1x256xf32, #tpu.memory_space<vmem>>, %arg6: memref<8x256xbf16, #tpu.memory_space<vmem>>, %arg7: memref<1x2x256xf32, #tpu.memory_space<vmem>>) attributes {dimension_semantics = [#tpu.dimension_semantics<parallel>], iteration_bounds = array<i64: 1>, scalar_prefetch = 0 : i64, scratch_operands = 0 : i64, tpu.core_type = #tpu.core_type<tc>, window_params = [{transform_indices = @transform_0, window_bounds = array<i64: 8, 640>}, {pipeline_mode = #tpu.pipeline_mode<synchronous>, transform_indices = @transform_1, window_bounds = array<i64: 640, 256>}, {pipeline_mode = #tpu.pipeline_mode<synchronous>, transform_indices = @transform_2, window_bounds = array<i64: 1, 640>}, {pipeline_mode = #tpu.pipeline_mode<synchronous>, transform_indices = @transform_3, window_bounds = array<i64: 1, 640>}, {pipeline_mode = #tpu.pipeline_mode<synchronous>, transform_indices = @transform_4, window_bounds = array<i64: 1, 256>}, {transform_indices = @transform_5, window_bounds = array<i64: 8, 256>}, {transform_indices = @transform_6, window_bounds = array<i64: 1, 2, 256>}]} {
    %c0 = arith.constant 0 : index
    %c0_0 = arith.constant 0 : index
    %0 = vector.load %arg1[%c0, %c0_0] : memref<8x640xbf16, #tpu.memory_space<vmem>>, vector<8x640xbf16>
    %1 = arith.extf %0 : vector<8x640xbf16> to vector<8x640xf32>
    %c0_1 = arith.constant 0 : index
    %c0_2 = arith.constant 0 : index
    %2 = vector.load %arg3[%c0_1, %c0_2] : memref<1x640xf32, #tpu.memory_space<vmem>>, vector<1x640xf32>
    %3 = vector.broadcast %2 : vector<1x640xf32> to vector<8x640xf32>
    %4 = arith.mulf %1, %3 : vector<8x640xf32>
    %c0_3 = arith.constant 0 : index
    %c0_4 = arith.constant 0 : index
    %5 = vector.load %arg4[%c0_3, %c0_4] : memref<1x640xf32, #tpu.memory_space<vmem>>, vector<1x640xf32>
    %6 = vector.broadcast %5 : vector<1x640xf32> to vector<8x640xf32>
    %7 = arith.addf %4, %6 : vector<8x640xf32>
    %cst = arith.constant 0.000000e+00 : f32
    %8 = vector.broadcast %cst : f32 to vector<8x640xf32>
    %9 = arith.maximumf %7, %8 : vector<8x640xf32>
    %10 = arith.truncf %9 : vector<8x640xf32> to vector<8x640xbf16>
    %c0_5 = arith.constant 0 : index
    %c0_6 = arith.constant 0 : index
    %11 = vector.load %arg2[%c0_5, %c0_6] : memref<640x256xbf16, #tpu.memory_space<vmem>>, vector<640x256xbf16>
    %cst_7 = arith.constant dense<0.000000e+00> : vector<8x256xf32>
    %12 = tpu.matmul %10, %11, %cst_7 {dimension_numbers = #tpu.dot_dimension_numbers<[1], [0], [0], [1], [0, 0, 1, 1], [], []>} : vector<8x640xbf16>, vector<640x256xbf16>, vector<8x256xf32> -> vector<8x256xf32>
    %c0_8 = arith.constant 0 : index
    %c0_9 = arith.constant 0 : index
    %13 = vector.load %arg5[%c0_8, %c0_9] : memref<1x256xf32, #tpu.memory_space<vmem>>, vector<1x256xf32>
    %14 = vector.broadcast %13 : vector<1x256xf32> to vector<8x256xf32>
    %15 = arith.addf %12, %14 : vector<8x256xf32>
    %c8_i32 = arith.constant 8 : i32
    %16 = arith.muli %arg0, %c8_i32 : i32
    %17 = tpu.iota {dimensions = array<i32: 0>} : vector<8x256xi32>
    %18 = vector.broadcast %16 : i32 to vector<8x256xi32>
    %19 = arith.addi %18, %17 : vector<8x256xi32>
    %c2_i32 = arith.constant 2 : i32
    %20 = vector.broadcast %c2_i32 : i32 to vector<8x256xi32>
    %21 = arith.cmpi slt, %19, %20 : vector<8x256xi32>
    %cst_10 = arith.constant 0.000000e+00 : f32
    %22 = vector.broadcast %cst_10 : f32 to vector<8x256xf32>
    %23 = arith.select %21, %15, %22 : vector<8x256xi1>, vector<8x256xf32>
    %cst_11 = arith.constant dense<0.000000e+00> : vector<256xf32>
    %24 = vector.multi_reduction <add>, %23, %cst_11 [0] : vector<8x256xf32> to vector<256xf32>
    %25 = vector.shape_cast %24 : vector<256xf32> to vector<1x256xf32>
    %c0_12 = arith.constant 0 : index
    %c0_13 = arith.constant 0 : index
    %c0_14 = arith.constant 0 : index
    %26 = vector.load %arg7[%c0_12, %c0_13, %c0_14] : memref<1x2x256xf32, #tpu.memory_space<vmem>>, vector<1x1x256xf32>
    %27 = vector.shape_cast %26 : vector<1x1x256xf32> to vector<1x256xf32>
    %28 = vector.shape_cast %25 : vector<1x256xf32> to vector<1x1x256xf32>
    tpu.vector_store %arg7[%c0_12, %c0_13, %c0_14], %28 {strides = array<i32>} : memref<1x2x256xf32, #tpu.memory_space<vmem>>, vector<1x1x256xf32>,
    %29 = arith.mulf %23, %23 : vector<8x256xf32>
    %cst_15 = arith.constant dense<0.000000e+00> : vector<256xf32>
    %30 = vector.multi_reduction <add>, %29, %cst_15 [0] : vector<8x256xf32> to vector<256xf32>
    %31 = vector.shape_cast %30 : vector<256xf32> to vector<1x256xf32>
    %c0_16 = arith.constant 0 : index
    %c1 = arith.constant 1 : index
    %c0_17 = arith.constant 0 : index
    %32 = vector.load %arg7[%c0_16, %c1, %c0_17] : memref<1x2x256xf32, #tpu.memory_space<vmem>>, vector<1x1x256xf32>
    %33 = vector.shape_cast %32 : vector<1x1x256xf32> to vector<1x256xf32>
    %34 = vector.shape_cast %31 : vector<1x256xf32> to vector<1x1x256xf32>
    tpu.vector_store %arg7[%c0_16, %c1, %c0_17], %34 {strides = array<i32>} : memref<1x2x256xf32, #tpu.memory_space<vmem>>, vector<1x1x256xf32>,
    %35 = arith.truncf %15 : vector<8x256xf32> to vector<8x256xbf16>
    %c0_18 = arith.constant 0 : index
    %c0_19 = arith.constant 0 : index
    %36 = vector.load %arg6[%c0_18, %c0_19] : memref<8x256xbf16, #tpu.memory_space<vmem>>, vector<8x256xbf16>
    tpu.vector_store %arg6[%c0_18, %c0_19], %35 {strides = array<i32>} : memref<8x256xbf16, #tpu.memory_space<vmem>>, vector<8x256xbf16>,
    return
  }
  func.func @transform_0(%arg0: i32) -> (i32, i32) {
    %c0_i32 = arith.constant 0 : i32
    %c0_i32_0 = arith.constant 0 : i32
    return %arg0, %c0_i32 : i32, i32
  }
  func.func @transform_1(%arg0: i32) -> (i32, i32) {
    %c0_i32 = arith.constant 0 : i32
    %c0_i32_0 = arith.constant 0 : i32
    %c0_i32_1 = arith.constant 0 : i32
    return %c0_i32, %c0_i32_0 : i32, i32
  }
  func.func @transform_2(%arg0: i32) -> (i32, i32) {
    %c0_i32 = arith.constant 0 : i32
    %c0_i32_0 = arith.constant 0 : i32
    %c0_i32_1 = arith.constant 0 : i32
    return %c0_i32, %c0_i32_0 : i32, i32
  }
  func.func @transform_3(%arg0: i32) -> (i32, i32) {
    %c0_i32 = arith.constant 0 : i32
    %c0_i32_0 = arith.constant 0 : i32
    %c0_i32_1 = arith.constant 0 : i32
    return %c0_i32, %c0_i32_0 : i32, i32
  }
  func.func @transform_4(%arg0: i32) -> (i32, i32) {
    %c0_i32 = arith.constant 0 : i32
    %c0_i32_0 = arith.constant 0 : i32
    %c0_i32_1 = arith.constant 0 : i32
    return %c0_i32, %c0_i32_0 : i32, i32
  }
  func.func @transform_5(%arg0: i32) -> (i32, i32) {
    %c0_i32 = arith.constant 0 : i32
    %c0_i32_0 = arith.constant 0 : i32
    return %arg0, %c0_i32 : i32, i32
  }
  func.func @transform_6(%arg0: i32) -> (i32, i32, i32) {
    %c0_i32 = arith.constant 0 : i32
    %c0_i32_0 = arith.constant 0 : i32
    %c0_i32_1 = arith.constant 0 : i32
    return %arg0, %c0_i32, %c0_i32_0 : i32, i32, i32
  }
}

module attributes {stable_mosaic.version = 11 : i64} {
  func.func @_mm_resident_kernel(%arg0: i32, %arg1: memref<8x640xbf16, #tpu.memory_space<vmem>>, %arg2: memref<640x128xbf16, #tpu.memory_space<vmem>>, %arg3: memref<1x640xf32, #tpu.memory_space<vmem>>, %arg4: memref<1x640xf32, #tpu.memory_space<vmem>>, %arg5: memref<8x640xbf16, #tpu.memory_space<vmem>>, %arg6: memref<640x128xbf16, #tpu.memory_space<vmem>>, %arg7: memref<1x640xf32, #tpu.memory_space<vmem>>, %arg8: memref<1x640xf32, #tpu.memory_space<vmem>>, %arg9: memref<1x128xf32, #tpu.memory_space<vmem>>, %arg10: memref<8x128xbf16, #tpu.memory_space<vmem>>, %arg11: memref<1x2x128xf32, #tpu.memory_space<vmem>>) attributes {dimension_semantics = [#tpu.dimension_semantics<parallel>], iteration_bounds = array<i64: 1>, scalar_prefetch = 0 : i64, scratch_operands = 0 : i64, tpu.core_type = #tpu.core_type<tc>, window_params = [{transform_indices = @transform_0, window_bounds = array<i64: 8, 640>}, {pipeline_mode = #tpu.pipeline_mode<synchronous>, transform_indices = @transform_1, window_bounds = array<i64: 640, 128>}, {pipeline_mode = #tpu.pipeline_mode<synchronous>, transform_indices = @transform_2, window_bounds = array<i64: 1, 640>}, {pipeline_mode = #tpu.pipeline_mode<synchronous>, transform_indices = @transform_3, window_bounds = array<i64: 1, 640>}, {transform_indices = @transform_4, window_bounds = array<i64: 8, 640>}, {pipeline_mode = #tpu.pipeline_mode<synchronous>, transform_indices = @transform_5, window_bounds = array<i64: 640, 128>}, {pipeline_mode = #tpu.pipeline_mode<synchronous>, transform_indices = @transform_6, window_bounds = array<i64: 1, 640>}, {pipeline_mode = #tpu.pipeline_mode<synchronous>, transform_indices = @transform_7, window_bounds = array<i64: 1, 640>}, {pipeline_mode = #tpu.pipeline_mode<synchronous>, transform_indices = @transform_8, window_bounds = array<i64: 1, 128>}, {transform_indices = @transform_9, window_bounds = array<i64: 8, 128>}, {transform_indices = @transform_10, window_bounds = array<i64: 1, 2, 128>}]} {
    %c0 = arith.constant 0 : index
    %c0_0 = arith.constant 0 : index
    %0 = vector.load %arg1[%c0, %c0_0] : memref<8x640xbf16, #tpu.memory_space<vmem>>, vector<8x640xbf16>
    %1 = arith.extf %0 : vector<8x640xbf16> to vector<8x640xf32>
    %c0_1 = arith.constant 0 : index
    %c0_2 = arith.constant 0 : index
    %2 = vector.load %arg3[%c0_1, %c0_2] : memref<1x640xf32, #tpu.memory_space<vmem>>, vector<1x640xf32>
    %3 = vector.broadcast %2 : vector<1x640xf32> to vector<8x640xf32>
    %4 = arith.mulf %1, %3 : vector<8x640xf32>
    %c0_3 = arith.constant 0 : index
    %c0_4 = arith.constant 0 : index
    %5 = vector.load %arg4[%c0_3, %c0_4] : memref<1x640xf32, #tpu.memory_space<vmem>>, vector<1x640xf32>
    %6 = vector.broadcast %5 : vector<1x640xf32> to vector<8x640xf32>
    %7 = arith.addf %4, %6 : vector<8x640xf32>
    %cst = arith.constant 0.000000e+00 : f32
    %8 = vector.broadcast %cst : f32 to vector<8x640xf32>
    %9 = arith.maximumf %7, %8 : vector<8x640xf32>
    %10 = arith.truncf %9 : vector<8x640xf32> to vector<8x640xbf16>
    %c0_5 = arith.constant 0 : index
    %c0_6 = arith.constant 0 : index
    %11 = vector.load %arg2[%c0_5, %c0_6] : memref<640x128xbf16, #tpu.memory_space<vmem>>, vector<640x128xbf16>
    %cst_7 = arith.constant dense<0.000000e+00> : vector<8x128xf32>
    %12 = tpu.matmul %10, %11, %cst_7 {dimension_numbers = #tpu.dot_dimension_numbers<[1], [0], [0], [1], [0, 0, 1, 1], [], []>} : vector<8x640xbf16>, vector<640x128xbf16>, vector<8x128xf32> -> vector<8x128xf32>
    %c0_8 = arith.constant 0 : index
    %c0_9 = arith.constant 0 : index
    %13 = vector.load %arg5[%c0_8, %c0_9] : memref<8x640xbf16, #tpu.memory_space<vmem>>, vector<8x640xbf16>
    %14 = arith.extf %13 : vector<8x640xbf16> to vector<8x640xf32>
    %c0_10 = arith.constant 0 : index
    %c0_11 = arith.constant 0 : index
    %15 = vector.load %arg7[%c0_10, %c0_11] : memref<1x640xf32, #tpu.memory_space<vmem>>, vector<1x640xf32>
    %16 = vector.broadcast %15 : vector<1x640xf32> to vector<8x640xf32>
    %17 = arith.mulf %14, %16 : vector<8x640xf32>
    %c0_12 = arith.constant 0 : index
    %c0_13 = arith.constant 0 : index
    %18 = vector.load %arg8[%c0_12, %c0_13] : memref<1x640xf32, #tpu.memory_space<vmem>>, vector<1x640xf32>
    %19 = vector.broadcast %18 : vector<1x640xf32> to vector<8x640xf32>
    %20 = arith.addf %17, %19 : vector<8x640xf32>
    %cst_14 = arith.constant 0.000000e+00 : f32
    %21 = vector.broadcast %cst_14 : f32 to vector<8x640xf32>
    %22 = arith.maximumf %20, %21 : vector<8x640xf32>
    %23 = arith.truncf %22 : vector<8x640xf32> to vector<8x640xbf16>
    %c0_15 = arith.constant 0 : index
    %c0_16 = arith.constant 0 : index
    %24 = vector.load %arg6[%c0_15, %c0_16] : memref<640x128xbf16, #tpu.memory_space<vmem>>, vector<640x128xbf16>
    %cst_17 = arith.constant dense<0.000000e+00> : vector<8x128xf32>
    %25 = tpu.matmul %23, %24, %cst_17 {dimension_numbers = #tpu.dot_dimension_numbers<[1], [0], [0], [1], [0, 0, 1, 1], [], []>} : vector<8x640xbf16>, vector<640x128xbf16>, vector<8x128xf32> -> vector<8x128xf32>
    %26 = arith.addf %12, %25 : vector<8x128xf32>
    %c0_18 = arith.constant 0 : index
    %c0_19 = arith.constant 0 : index
    %27 = vector.load %arg9[%c0_18, %c0_19] : memref<1x128xf32, #tpu.memory_space<vmem>>, vector<1x128xf32>
    %28 = vector.broadcast %27 : vector<1x128xf32> to vector<8x128xf32>
    %29 = arith.addf %26, %28 : vector<8x128xf32>
    %c8_i32 = arith.constant 8 : i32
    %30 = arith.muli %arg0, %c8_i32 : i32
    %31 = tpu.iota {dimensions = array<i32: 0>} : vector<8x128xi32>
    %32 = vector.broadcast %30 : i32 to vector<8x128xi32>
    %33 = arith.addi %32, %31 : vector<8x128xi32>
    %c8_i32_20 = arith.constant 8 : i32
    %34 = vector.broadcast %c8_i32_20 : i32 to vector<8x128xi32>
    %35 = arith.cmpi slt, %33, %34 : vector<8x128xi32>
    %cst_21 = arith.constant 0.000000e+00 : f32
    %36 = vector.broadcast %cst_21 : f32 to vector<8x128xf32>
    %37 = arith.select %35, %29, %36 : vector<8x128xi1>, vector<8x128xf32>
    %cst_22 = arith.constant dense<0.000000e+00> : vector<128xf32>
    %38 = vector.multi_reduction <add>, %37, %cst_22 [0] : vector<8x128xf32> to vector<128xf32>
    %39 = vector.shape_cast %38 : vector<128xf32> to vector<1x128xf32>
    %c0_23 = arith.constant 0 : index
    %c0_24 = arith.constant 0 : index
    %c0_25 = arith.constant 0 : index
    %40 = vector.load %arg11[%c0_23, %c0_24, %c0_25] : memref<1x2x128xf32, #tpu.memory_space<vmem>>, vector<1x1x128xf32>
    %41 = vector.shape_cast %40 : vector<1x1x128xf32> to vector<1x128xf32>
    %42 = vector.shape_cast %39 : vector<1x128xf32> to vector<1x1x128xf32>
    tpu.vector_store %arg11[%c0_23, %c0_24, %c0_25], %42 {strides = array<i32>} : memref<1x2x128xf32, #tpu.memory_space<vmem>>, vector<1x1x128xf32>,
    %43 = arith.mulf %37, %37 : vector<8x128xf32>
    %cst_26 = arith.constant dense<0.000000e+00> : vector<128xf32>
    %44 = vector.multi_reduction <add>, %43, %cst_26 [0] : vector<8x128xf32> to vector<128xf32>
    %45 = vector.shape_cast %44 : vector<128xf32> to vector<1x128xf32>
    %c0_27 = arith.constant 0 : index
    %c1 = arith.constant 1 : index
    %c0_28 = arith.constant 0 : index
    %46 = vector.load %arg11[%c0_27, %c1, %c0_28] : memref<1x2x128xf32, #tpu.memory_space<vmem>>, vector<1x1x128xf32>
    %47 = vector.shape_cast %46 : vector<1x1x128xf32> to vector<1x128xf32>
    %48 = vector.shape_cast %45 : vector<1x128xf32> to vector<1x1x128xf32>
    tpu.vector_store %arg11[%c0_27, %c1, %c0_28], %48 {strides = array<i32>} : memref<1x2x128xf32, #tpu.memory_space<vmem>>, vector<1x1x128xf32>,
    %49 = arith.truncf %29 : vector<8x128xf32> to vector<8x128xbf16>
    %c0_29 = arith.constant 0 : index
    %c0_30 = arith.constant 0 : index
    %50 = vector.load %arg10[%c0_29, %c0_30] : memref<8x128xbf16, #tpu.memory_space<vmem>>, vector<8x128xbf16>
    tpu.vector_store %arg10[%c0_29, %c0_30], %49 {strides = array<i32>} : memref<8x128xbf16, #tpu.memory_space<vmem>>, vector<8x128xbf16>,
    return
  }
  func.func @transform_0(%arg0: i32) -> (i32, i32) {
    %c0_i32 = arith.constant 0 : i32
    %c0_i32_0 = arith.constant 0 : i32
    return %arg0, %c0_i32 : i32, i32
  }
  func.func @transform_1(%arg0: i32) -> (i32, i32) {
    %c0_i32 = arith.constant 0 : i32
    %c0_i32_0 = arith.constant 0 : i32
    %c0_i32_1 = arith.constant 0 : i32
    return %c0_i32, %c0_i32_0 : i32, i32
  }
  func.func @transform_2(%arg0: i32) -> (i32, i32) {
    %c0_i32 = arith.constant 0 : i32
    %c0_i32_0 = arith.constant 0 : i32
    %c0_i32_1 = arith.constant 0 : i32
    return %c0_i32, %c0_i32_0 : i32, i32
  }
  func.func @transform_3(%arg0: i32) -> (i32, i32) {
    %c0_i32 = arith.constant 0 : i32
    %c0_i32_0 = arith.constant 0 : i32
    %c0_i32_1 = arith.constant 0 : i32
    return %c0_i32, %c0_i32_0 : i32, i32
  }
  func.func @transform_4(%arg0: i32) -> (i32, i32) {
    %c0_i32 = arith.constant 0 : i32
    %c0_i32_0 = arith.constant 0 : i32
    return %arg0, %c0_i32 : i32, i32
  }
  func.func @transform_5(%arg0: i32) -> (i32, i32) {
    %c0_i32 = arith.constant 0 : i32
    %c0_i32_0 = arith.constant 0 : i32
    %c0_i32_1 = arith.constant 0 : i32
    return %c0_i32, %c0_i32_0 : i32, i32
  }
  func.func @transform_6(%arg0: i32) -> (i32, i32) {
    %c0_i32 = arith.constant 0 : i32
    %c0_i32_0 = arith.constant 0 : i32
    %c0_i32_1 = arith.constant 0 : i32
    return %c0_i32, %c0_i32_0 : i32, i32
  }
  func.func @transform_7(%arg0: i32) -> (i32, i32) {
    %c0_i32 = arith.constant 0 : i32
    %c0_i32_0 = arith.constant 0 : i32
    %c0_i32_1 = arith.constant 0 : i32
    return %c0_i32, %c0_i32_0 : i32, i32
  }
  func.func @transform_8(%arg0: i32) -> (i32, i32) {
    %c0_i32 = arith.constant 0 : i32
    %c0_i32_0 = arith.constant 0 : i32
    %c0_i32_1 = arith.constant 0 : i32
    return %c0_i32, %c0_i32_0 : i32, i32
  }
  func.func @transform_9(%arg0: i32) -> (i32, i32) {
    %c0_i32 = arith.constant 0 : i32
    %c0_i32_0 = arith.constant 0 : i32
    return %arg0, %c0_i32 : i32, i32
  }
  func.func @transform_10(%arg0: i32) -> (i32, i32, i32) {
    %c0_i32 = arith.constant 0 : i32
    %c0_i32_0 = arith.constant 0 : i32
    %c0_i32_1 = arith.constant 0 : i32
    return %arg0, %c0_i32, %c0_i32_0 : i32, i32, i32
  }
}

module attributes {stable_mosaic.version = 11 : i64} {
  func.func @_mm_resident_kernel(%arg0: i32, %arg1: memref<32x384xbf16, #tpu.memory_space<vmem>>, %arg2: memref<384x128xbf16, #tpu.memory_space<vmem>>, %arg3: memref<1x384xf32, #tpu.memory_space<vmem>>, %arg4: memref<1x384xf32, #tpu.memory_space<vmem>>, %arg5: memref<32x384xbf16, #tpu.memory_space<vmem>>, %arg6: memref<384x128xbf16, #tpu.memory_space<vmem>>, %arg7: memref<1x384xf32, #tpu.memory_space<vmem>>, %arg8: memref<1x384xf32, #tpu.memory_space<vmem>>, %arg9: memref<1x128xf32, #tpu.memory_space<vmem>>, %arg10: memref<32x128xbf16, #tpu.memory_space<vmem>>, %arg11: memref<1x2x128xf32, #tpu.memory_space<vmem>>) attributes {dimension_semantics = [#tpu.dimension_semantics<parallel>], iteration_bounds = array<i64: 1>, scalar_prefetch = 0 : i64, scratch_operands = 0 : i64, tpu.core_type = #tpu.core_type<tc>, window_params = [{transform_indices = @transform_0, window_bounds = array<i64: 32, 384>}, {pipeline_mode = #tpu.pipeline_mode<synchronous>, transform_indices = @transform_1, window_bounds = array<i64: 384, 128>}, {pipeline_mode = #tpu.pipeline_mode<synchronous>, transform_indices = @transform_2, window_bounds = array<i64: 1, 384>}, {pipeline_mode = #tpu.pipeline_mode<synchronous>, transform_indices = @transform_3, window_bounds = array<i64: 1, 384>}, {transform_indices = @transform_4, window_bounds = array<i64: 32, 384>}, {pipeline_mode = #tpu.pipeline_mode<synchronous>, transform_indices = @transform_5, window_bounds = array<i64: 384, 128>}, {pipeline_mode = #tpu.pipeline_mode<synchronous>, transform_indices = @transform_6, window_bounds = array<i64: 1, 384>}, {pipeline_mode = #tpu.pipeline_mode<synchronous>, transform_indices = @transform_7, window_bounds = array<i64: 1, 384>}, {pipeline_mode = #tpu.pipeline_mode<synchronous>, transform_indices = @transform_8, window_bounds = array<i64: 1, 128>}, {transform_indices = @transform_9, window_bounds = array<i64: 32, 128>}, {transform_indices = @transform_10, window_bounds = array<i64: 1, 2, 128>}]} {
    %c0 = arith.constant 0 : index
    %c0_0 = arith.constant 0 : index
    %0 = vector.load %arg1[%c0, %c0_0] : memref<32x384xbf16, #tpu.memory_space<vmem>>, vector<32x384xbf16>
    %1 = arith.extf %0 : vector<32x384xbf16> to vector<32x384xf32>
    %c0_1 = arith.constant 0 : index
    %c0_2 = arith.constant 0 : index
    %2 = vector.load %arg3[%c0_1, %c0_2] : memref<1x384xf32, #tpu.memory_space<vmem>>, vector<1x384xf32>
    %3 = vector.broadcast %2 : vector<1x384xf32> to vector<32x384xf32>
    %4 = arith.mulf %1, %3 : vector<32x384xf32>
    %c0_3 = arith.constant 0 : index
    %c0_4 = arith.constant 0 : index
    %5 = vector.load %arg4[%c0_3, %c0_4] : memref<1x384xf32, #tpu.memory_space<vmem>>, vector<1x384xf32>
    %6 = vector.broadcast %5 : vector<1x384xf32> to vector<32x384xf32>
    %7 = arith.addf %4, %6 : vector<32x384xf32>
    %cst = arith.constant 0.000000e+00 : f32
    %8 = vector.broadcast %cst : f32 to vector<32x384xf32>
    %9 = arith.maximumf %7, %8 : vector<32x384xf32>
    %10 = arith.truncf %9 : vector<32x384xf32> to vector<32x384xbf16>
    %c0_5 = arith.constant 0 : index
    %c0_6 = arith.constant 0 : index
    %11 = vector.load %arg2[%c0_5, %c0_6] : memref<384x128xbf16, #tpu.memory_space<vmem>>, vector<384x128xbf16>
    %cst_7 = arith.constant dense<0.000000e+00> : vector<32x128xf32>
    %12 = tpu.matmul %10, %11, %cst_7 {dimension_numbers = #tpu.dot_dimension_numbers<[1], [0], [0], [1], [0, 0, 1, 1], [], []>} : vector<32x384xbf16>, vector<384x128xbf16>, vector<32x128xf32> -> vector<32x128xf32>
    %c0_8 = arith.constant 0 : index
    %c0_9 = arith.constant 0 : index
    %13 = vector.load %arg5[%c0_8, %c0_9] : memref<32x384xbf16, #tpu.memory_space<vmem>>, vector<32x384xbf16>
    %14 = arith.extf %13 : vector<32x384xbf16> to vector<32x384xf32>
    %c0_10 = arith.constant 0 : index
    %c0_11 = arith.constant 0 : index
    %15 = vector.load %arg7[%c0_10, %c0_11] : memref<1x384xf32, #tpu.memory_space<vmem>>, vector<1x384xf32>
    %16 = vector.broadcast %15 : vector<1x384xf32> to vector<32x384xf32>
    %17 = arith.mulf %14, %16 : vector<32x384xf32>
    %c0_12 = arith.constant 0 : index
    %c0_13 = arith.constant 0 : index
    %18 = vector.load %arg8[%c0_12, %c0_13] : memref<1x384xf32, #tpu.memory_space<vmem>>, vector<1x384xf32>
    %19 = vector.broadcast %18 : vector<1x384xf32> to vector<32x384xf32>
    %20 = arith.addf %17, %19 : vector<32x384xf32>
    %cst_14 = arith.constant 0.000000e+00 : f32
    %21 = vector.broadcast %cst_14 : f32 to vector<32x384xf32>
    %22 = arith.maximumf %20, %21 : vector<32x384xf32>
    %23 = arith.truncf %22 : vector<32x384xf32> to vector<32x384xbf16>
    %c0_15 = arith.constant 0 : index
    %c0_16 = arith.constant 0 : index
    %24 = vector.load %arg6[%c0_15, %c0_16] : memref<384x128xbf16, #tpu.memory_space<vmem>>, vector<384x128xbf16>
    %cst_17 = arith.constant dense<0.000000e+00> : vector<32x128xf32>
    %25 = tpu.matmul %23, %24, %cst_17 {dimension_numbers = #tpu.dot_dimension_numbers<[1], [0], [0], [1], [0, 0, 1, 1], [], []>} : vector<32x384xbf16>, vector<384x128xbf16>, vector<32x128xf32> -> vector<32x128xf32>
    %26 = arith.addf %12, %25 : vector<32x128xf32>
    %c0_18 = arith.constant 0 : index
    %c0_19 = arith.constant 0 : index
    %27 = vector.load %arg9[%c0_18, %c0_19] : memref<1x128xf32, #tpu.memory_space<vmem>>, vector<1x128xf32>
    %28 = vector.broadcast %27 : vector<1x128xf32> to vector<32x128xf32>
    %29 = arith.addf %26, %28 : vector<32x128xf32>
    %c32_i32 = arith.constant 32 : i32
    %30 = arith.muli %arg0, %c32_i32 : i32
    %31 = tpu.iota {dimensions = array<i32: 0>} : vector<32x128xi32>
    %32 = vector.broadcast %30 : i32 to vector<32x128xi32>
    %33 = arith.addi %32, %31 : vector<32x128xi32>
    %c32_i32_20 = arith.constant 32 : i32
    %34 = vector.broadcast %c32_i32_20 : i32 to vector<32x128xi32>
    %35 = arith.cmpi slt, %33, %34 : vector<32x128xi32>
    %cst_21 = arith.constant 0.000000e+00 : f32
    %36 = vector.broadcast %cst_21 : f32 to vector<32x128xf32>
    %37 = arith.select %35, %29, %36 : vector<32x128xi1>, vector<32x128xf32>
    %cst_22 = arith.constant dense<0.000000e+00> : vector<128xf32>
    %38 = vector.multi_reduction <add>, %37, %cst_22 [0] : vector<32x128xf32> to vector<128xf32>
    %39 = vector.shape_cast %38 : vector<128xf32> to vector<1x128xf32>
    %c0_23 = arith.constant 0 : index
    %c0_24 = arith.constant 0 : index
    %c0_25 = arith.constant 0 : index
    %40 = vector.load %arg11[%c0_23, %c0_24, %c0_25] : memref<1x2x128xf32, #tpu.memory_space<vmem>>, vector<1x1x128xf32>
    %41 = vector.shape_cast %40 : vector<1x1x128xf32> to vector<1x128xf32>
    %42 = vector.shape_cast %39 : vector<1x128xf32> to vector<1x1x128xf32>
    tpu.vector_store %arg11[%c0_23, %c0_24, %c0_25], %42 {strides = array<i32>} : memref<1x2x128xf32, #tpu.memory_space<vmem>>, vector<1x1x128xf32>,
    %43 = arith.mulf %37, %37 : vector<32x128xf32>
    %cst_26 = arith.constant dense<0.000000e+00> : vector<128xf32>
    %44 = vector.multi_reduction <add>, %43, %cst_26 [0] : vector<32x128xf32> to vector<128xf32>
    %45 = vector.shape_cast %44 : vector<128xf32> to vector<1x128xf32>
    %c0_27 = arith.constant 0 : index
    %c1 = arith.constant 1 : index
    %c0_28 = arith.constant 0 : index
    %46 = vector.load %arg11[%c0_27, %c1, %c0_28] : memref<1x2x128xf32, #tpu.memory_space<vmem>>, vector<1x1x128xf32>
    %47 = vector.shape_cast %46 : vector<1x1x128xf32> to vector<1x128xf32>
    %48 = vector.shape_cast %45 : vector<1x128xf32> to vector<1x1x128xf32>
    tpu.vector_store %arg11[%c0_27, %c1, %c0_28], %48 {strides = array<i32>} : memref<1x2x128xf32, #tpu.memory_space<vmem>>, vector<1x1x128xf32>,
    %49 = arith.truncf %29 : vector<32x128xf32> to vector<32x128xbf16>
    %c0_29 = arith.constant 0 : index
    %c0_30 = arith.constant 0 : index
    %50 = vector.load %arg10[%c0_29, %c0_30] : memref<32x128xbf16, #tpu.memory_space<vmem>>, vector<32x128xbf16>
    tpu.vector_store %arg10[%c0_29, %c0_30], %49 {strides = array<i32>} : memref<32x128xbf16, #tpu.memory_space<vmem>>, vector<32x128xbf16>,
    return
  }
  func.func @transform_0(%arg0: i32) -> (i32, i32) {
    %c0_i32 = arith.constant 0 : i32
    %c0_i32_0 = arith.constant 0 : i32
    return %arg0, %c0_i32 : i32, i32
  }
  func.func @transform_1(%arg0: i32) -> (i32, i32) {
    %c0_i32 = arith.constant 0 : i32
    %c0_i32_0 = arith.constant 0 : i32
    %c0_i32_1 = arith.constant 0 : i32
    return %c0_i32, %c0_i32_0 : i32, i32
  }
  func.func @transform_2(%arg0: i32) -> (i32, i32) {
    %c0_i32 = arith.constant 0 : i32
    %c0_i32_0 = arith.constant 0 : i32
    %c0_i32_1 = arith.constant 0 : i32
    return %c0_i32, %c0_i32_0 : i32, i32
  }
  func.func @transform_3(%arg0: i32) -> (i32, i32) {
    %c0_i32 = arith.constant 0 : i32
    %c0_i32_0 = arith.constant 0 : i32
    %c0_i32_1 = arith.constant 0 : i32
    return %c0_i32, %c0_i32_0 : i32, i32
  }
  func.func @transform_4(%arg0: i32) -> (i32, i32) {
    %c0_i32 = arith.constant 0 : i32
    %c0_i32_0 = arith.constant 0 : i32
    return %arg0, %c0_i32 : i32, i32
  }
  func.func @transform_5(%arg0: i32) -> (i32, i32) {
    %c0_i32 = arith.constant 0 : i32
    %c0_i32_0 = arith.constant 0 : i32
    %c0_i32_1 = arith.constant 0 : i32
    return %c0_i32, %c0_i32_0 : i32, i32
  }
  func.func @transform_6(%arg0: i32) -> (i32, i32) {
    %c0_i32 = arith.constant 0 : i32
    %c0_i32_0 = arith.constant 0 : i32
    %c0_i32_1 = arith.constant 0 : i32
    return %c0_i32, %c0_i32_0 : i32, i32
  }
  func.func @transform_7(%arg0: i32) -> (i32, i32) {
    %c0_i32 = arith.constant 0 : i32
    %c0_i32_0 = arith.constant 0 : i32
    %c0_i32_1 = arith.constant 0 : i32
    return %c0_i32, %c0_i32_0 : i32, i32
  }
  func.func @transform_8(%arg0: i32) -> (i32, i32) {
    %c0_i32 = arith.constant 0 : i32
    %c0_i32_0 = arith.constant 0 : i32
    %c0_i32_1 = arith.constant 0 : i32
    return %c0_i32, %c0_i32_0 : i32, i32
  }
  func.func @transform_9(%arg0: i32) -> (i32, i32) {
    %c0_i32 = arith.constant 0 : i32
    %c0_i32_0 = arith.constant 0 : i32
    return %arg0, %c0_i32 : i32, i32
  }
  func.func @transform_10(%arg0: i32) -> (i32, i32, i32) {
    %c0_i32 = arith.constant 0 : i32
    %c0_i32_0 = arith.constant 0 : i32
    %c0_i32_1 = arith.constant 0 : i32
    return %arg0, %c0_i32, %c0_i32_0 : i32, i32, i32
  }
}

module attributes {stable_mosaic.version = 11 : i64} {
  func.func @_mm_resident_kernel(%arg0: i32, %arg1: memref<128x256xbf16, #tpu.memory_space<vmem>>, %arg2: memref<256x128xbf16, #tpu.memory_space<vmem>>, %arg3: memref<1x256xf32, #tpu.memory_space<vmem>>, %arg4: memref<1x256xf32, #tpu.memory_space<vmem>>, %arg5: memref<128x256xbf16, #tpu.memory_space<vmem>>, %arg6: memref<256x128xbf16, #tpu.memory_space<vmem>>, %arg7: memref<1x256xf32, #tpu.memory_space<vmem>>, %arg8: memref<1x256xf32, #tpu.memory_space<vmem>>, %arg9: memref<1x128xf32, #tpu.memory_space<vmem>>, %arg10: memref<128x128xbf16, #tpu.memory_space<vmem>>, %arg11: memref<1x2x128xf32, #tpu.memory_space<vmem>>) attributes {dimension_semantics = [#tpu.dimension_semantics<parallel>], iteration_bounds = array<i64: 1>, scalar_prefetch = 0 : i64, scratch_operands = 0 : i64, tpu.core_type = #tpu.core_type<tc>, window_params = [{transform_indices = @transform_0, window_bounds = array<i64: 128, 256>}, {pipeline_mode = #tpu.pipeline_mode<synchronous>, transform_indices = @transform_1, window_bounds = array<i64: 256, 128>}, {pipeline_mode = #tpu.pipeline_mode<synchronous>, transform_indices = @transform_2, window_bounds = array<i64: 1, 256>}, {pipeline_mode = #tpu.pipeline_mode<synchronous>, transform_indices = @transform_3, window_bounds = array<i64: 1, 256>}, {transform_indices = @transform_4, window_bounds = array<i64: 128, 256>}, {pipeline_mode = #tpu.pipeline_mode<synchronous>, transform_indices = @transform_5, window_bounds = array<i64: 256, 128>}, {pipeline_mode = #tpu.pipeline_mode<synchronous>, transform_indices = @transform_6, window_bounds = array<i64: 1, 256>}, {pipeline_mode = #tpu.pipeline_mode<synchronous>, transform_indices = @transform_7, window_bounds = array<i64: 1, 256>}, {pipeline_mode = #tpu.pipeline_mode<synchronous>, transform_indices = @transform_8, window_bounds = array<i64: 1, 128>}, {transform_indices = @transform_9, window_bounds = array<i64: 128, 128>}, {transform_indices = @transform_10, window_bounds = array<i64: 1, 2, 128>}]} {
    %c0 = arith.constant 0 : index
    %c0_0 = arith.constant 0 : index
    %0 = vector.load %arg1[%c0, %c0_0] : memref<128x256xbf16, #tpu.memory_space<vmem>>, vector<128x256xbf16>
    %1 = arith.extf %0 : vector<128x256xbf16> to vector<128x256xf32>
    %c0_1 = arith.constant 0 : index
    %c0_2 = arith.constant 0 : index
    %2 = vector.load %arg3[%c0_1, %c0_2] : memref<1x256xf32, #tpu.memory_space<vmem>>, vector<1x256xf32>
    %3 = vector.broadcast %2 : vector<1x256xf32> to vector<128x256xf32>
    %4 = arith.mulf %1, %3 : vector<128x256xf32>
    %c0_3 = arith.constant 0 : index
    %c0_4 = arith.constant 0 : index
    %5 = vector.load %arg4[%c0_3, %c0_4] : memref<1x256xf32, #tpu.memory_space<vmem>>, vector<1x256xf32>
    %6 = vector.broadcast %5 : vector<1x256xf32> to vector<128x256xf32>
    %7 = arith.addf %4, %6 : vector<128x256xf32>
    %cst = arith.constant 0.000000e+00 : f32
    %8 = vector.broadcast %cst : f32 to vector<128x256xf32>
    %9 = arith.maximumf %7, %8 : vector<128x256xf32>
    %10 = arith.truncf %9 : vector<128x256xf32> to vector<128x256xbf16>
    %c0_5 = arith.constant 0 : index
    %c0_6 = arith.constant 0 : index
    %11 = vector.load %arg2[%c0_5, %c0_6] : memref<256x128xbf16, #tpu.memory_space<vmem>>, vector<256x128xbf16>
    %cst_7 = arith.constant dense<0.000000e+00> : vector<128x128xf32>
    %12 = tpu.matmul %10, %11, %cst_7 {dimension_numbers = #tpu.dot_dimension_numbers<[1], [0], [0], [1], [0, 0, 1, 1], [], []>} : vector<128x256xbf16>, vector<256x128xbf16>, vector<128x128xf32> -> vector<128x128xf32>
    %c0_8 = arith.constant 0 : index
    %c0_9 = arith.constant 0 : index
    %13 = vector.load %arg5[%c0_8, %c0_9] : memref<128x256xbf16, #tpu.memory_space<vmem>>, vector<128x256xbf16>
    %14 = arith.extf %13 : vector<128x256xbf16> to vector<128x256xf32>
    %c0_10 = arith.constant 0 : index
    %c0_11 = arith.constant 0 : index
    %15 = vector.load %arg7[%c0_10, %c0_11] : memref<1x256xf32, #tpu.memory_space<vmem>>, vector<1x256xf32>
    %16 = vector.broadcast %15 : vector<1x256xf32> to vector<128x256xf32>
    %17 = arith.mulf %14, %16 : vector<128x256xf32>
    %c0_12 = arith.constant 0 : index
    %c0_13 = arith.constant 0 : index
    %18 = vector.load %arg8[%c0_12, %c0_13] : memref<1x256xf32, #tpu.memory_space<vmem>>, vector<1x256xf32>
    %19 = vector.broadcast %18 : vector<1x256xf32> to vector<128x256xf32>
    %20 = arith.addf %17, %19 : vector<128x256xf32>
    %cst_14 = arith.constant 0.000000e+00 : f32
    %21 = vector.broadcast %cst_14 : f32 to vector<128x256xf32>
    %22 = arith.maximumf %20, %21 : vector<128x256xf32>
    %23 = arith.truncf %22 : vector<128x256xf32> to vector<128x256xbf16>
    %c0_15 = arith.constant 0 : index
    %c0_16 = arith.constant 0 : index
    %24 = vector.load %arg6[%c0_15, %c0_16] : memref<256x128xbf16, #tpu.memory_space<vmem>>, vector<256x128xbf16>
    %cst_17 = arith.constant dense<0.000000e+00> : vector<128x128xf32>
    %25 = tpu.matmul %23, %24, %cst_17 {dimension_numbers = #tpu.dot_dimension_numbers<[1], [0], [0], [1], [0, 0, 1, 1], [], []>} : vector<128x256xbf16>, vector<256x128xbf16>, vector<128x128xf32> -> vector<128x128xf32>
    %26 = arith.addf %12, %25 : vector<128x128xf32>
    %c0_18 = arith.constant 0 : index
    %c0_19 = arith.constant 0 : index
    %27 = vector.load %arg9[%c0_18, %c0_19] : memref<1x128xf32, #tpu.memory_space<vmem>>, vector<1x128xf32>
    %28 = vector.broadcast %27 : vector<1x128xf32> to vector<128x128xf32>
    %29 = arith.addf %26, %28 : vector<128x128xf32>
    %c128_i32 = arith.constant 128 : i32
    %30 = arith.muli %arg0, %c128_i32 : i32
    %31 = tpu.iota {dimensions = array<i32: 0>} : vector<128x128xi32>
    %32 = vector.broadcast %30 : i32 to vector<128x128xi32>
    %33 = arith.addi %32, %31 : vector<128x128xi32>
    %c128_i32_20 = arith.constant 128 : i32
    %34 = vector.broadcast %c128_i32_20 : i32 to vector<128x128xi32>
    %35 = arith.cmpi slt, %33, %34 : vector<128x128xi32>
    %cst_21 = arith.constant 0.000000e+00 : f32
    %36 = vector.broadcast %cst_21 : f32 to vector<128x128xf32>
    %37 = arith.select %35, %29, %36 : vector<128x128xi1>, vector<128x128xf32>
    %cst_22 = arith.constant dense<0.000000e+00> : vector<128xf32>
    %38 = vector.multi_reduction <add>, %37, %cst_22 [0] : vector<128x128xf32> to vector<128xf32>
    %39 = vector.shape_cast %38 : vector<128xf32> to vector<1x128xf32>
    %c0_23 = arith.constant 0 : index
    %c0_24 = arith.constant 0 : index
    %c0_25 = arith.constant 0 : index
    %40 = vector.load %arg11[%c0_23, %c0_24, %c0_25] : memref<1x2x128xf32, #tpu.memory_space<vmem>>, vector<1x1x128xf32>
    %41 = vector.shape_cast %40 : vector<1x1x128xf32> to vector<1x128xf32>
    %42 = vector.shape_cast %39 : vector<1x128xf32> to vector<1x1x128xf32>
    tpu.vector_store %arg11[%c0_23, %c0_24, %c0_25], %42 {strides = array<i32>} : memref<1x2x128xf32, #tpu.memory_space<vmem>>, vector<1x1x128xf32>,
    %43 = arith.mulf %37, %37 : vector<128x128xf32>
    %cst_26 = arith.constant dense<0.000000e+00> : vector<128xf32>
    %44 = vector.multi_reduction <add>, %43, %cst_26 [0] : vector<128x128xf32> to vector<128xf32>
    %45 = vector.shape_cast %44 : vector<128xf32> to vector<1x128xf32>
    %c0_27 = arith.constant 0 : index
    %c1 = arith.constant 1 : index
    %c0_28 = arith.constant 0 : index
    %46 = vector.load %arg11[%c0_27, %c1, %c0_28] : memref<1x2x128xf32, #tpu.memory_space<vmem>>, vector<1x1x128xf32>
    %47 = vector.shape_cast %46 : vector<1x1x128xf32> to vector<1x128xf32>
    %48 = vector.shape_cast %45 : vector<1x128xf32> to vector<1x1x128xf32>
    tpu.vector_store %arg11[%c0_27, %c1, %c0_28], %48 {strides = array<i32>} : memref<1x2x128xf32, #tpu.memory_space<vmem>>, vector<1x1x128xf32>,
    %49 = arith.truncf %29 : vector<128x128xf32> to vector<128x128xbf16>
    %c0_29 = arith.constant 0 : index
    %c0_30 = arith.constant 0 : index
    %50 = vector.load %arg10[%c0_29, %c0_30] : memref<128x128xbf16, #tpu.memory_space<vmem>>, vector<128x128xbf16>
    tpu.vector_store %arg10[%c0_29, %c0_30], %49 {strides = array<i32>} : memref<128x128xbf16, #tpu.memory_space<vmem>>, vector<128x128xbf16>,
    return
  }
  func.func @transform_0(%arg0: i32) -> (i32, i32) {
    %c0_i32 = arith.constant 0 : i32
    %c0_i32_0 = arith.constant 0 : i32
    return %arg0, %c0_i32 : i32, i32
  }
  func.func @transform_1(%arg0: i32) -> (i32, i32) {
    %c0_i32 = arith.constant 0 : i32
    %c0_i32_0 = arith.constant 0 : i32
    %c0_i32_1 = arith.constant 0 : i32
    return %c0_i32, %c0_i32_0 : i32, i32
  }
  func.func @transform_2(%arg0: i32) -> (i32, i32) {
    %c0_i32 = arith.constant 0 : i32
    %c0_i32_0 = arith.constant 0 : i32
    %c0_i32_1 = arith.constant 0 : i32
    return %c0_i32, %c0_i32_0 : i32, i32
  }
  func.func @transform_3(%arg0: i32) -> (i32, i32) {
    %c0_i32 = arith.constant 0 : i32
    %c0_i32_0 = arith.constant 0 : i32
    %c0_i32_1 = arith.constant 0 : i32
    return %c0_i32, %c0_i32_0 : i32, i32
  }
  func.func @transform_4(%arg0: i32) -> (i32, i32) {
    %c0_i32 = arith.constant 0 : i32
    %c0_i32_0 = arith.constant 0 : i32
    return %arg0, %c0_i32 : i32, i32
  }
  func.func @transform_5(%arg0: i32) -> (i32, i32) {
    %c0_i32 = arith.constant 0 : i32
    %c0_i32_0 = arith.constant 0 : i32
    %c0_i32_1 = arith.constant 0 : i32
    return %c0_i32, %c0_i32_0 : i32, i32
  }
  func.func @transform_6(%arg0: i32) -> (i32, i32) {
    %c0_i32 = arith.constant 0 : i32
    %c0_i32_0 = arith.constant 0 : i32
    %c0_i32_1 = arith.constant 0 : i32
    return %c0_i32, %c0_i32_0 : i32, i32
  }
  func.func @transform_7(%arg0: i32) -> (i32, i32) {
    %c0_i32 = arith.constant 0 : i32
    %c0_i32_0 = arith.constant 0 : i32
    %c0_i32_1 = arith.constant 0 : i32
    return %c0_i32, %c0_i32_0 : i32, i32
  }
  func.func @transform_8(%arg0: i32) -> (i32, i32) {
    %c0_i32 = arith.constant 0 : i32
    %c0_i32_0 = arith.constant 0 : i32
    %c0_i32_1 = arith.constant 0 : i32
    return %c0_i32, %c0_i32_0 : i32, i32
  }
  func.func @transform_9(%arg0: i32) -> (i32, i32) {
    %c0_i32 = arith.constant 0 : i32
    %c0_i32_0 = arith.constant 0 : i32
    return %arg0, %c0_i32 : i32, i32
  }
  func.func @transform_10(%arg0: i32) -> (i32, i32, i32) {
    %c0_i32 = arith.constant 0 : i32
    %c0_i32_0 = arith.constant 0 : i32
    %c0_i32_1 = arith.constant 0 : i32
    return %arg0, %c0_i32, %c0_i32_0 : i32, i32, i32
  }
}

module attributes {stable_mosaic.version = 11 : i64} {
  func.func @_mm_resident_kernel(%arg0: i32, %arg1: memref<256x128xbf16, #tpu.memory_space<vmem>>, %arg2: memref<128x128xbf16, #tpu.memory_space<vmem>>, %arg3: memref<1x128xf32, #tpu.memory_space<vmem>>, %arg4: memref<1x128xf32, #tpu.memory_space<vmem>>, %arg5: memref<256x128xbf16, #tpu.memory_space<vmem>>, %arg6: memref<128x128xbf16, #tpu.memory_space<vmem>>, %arg7: memref<1x128xf32, #tpu.memory_space<vmem>>, %arg8: memref<1x128xf32, #tpu.memory_space<vmem>>, %arg9: memref<1x128xf32, #tpu.memory_space<vmem>>, %arg10: memref<256x128xf32, #tpu.memory_space<vmem>>, %arg11: memref<1x2x128xf32, #tpu.memory_space<vmem>>) attributes {dimension_semantics = [#tpu.dimension_semantics<parallel>], iteration_bounds = array<i64: 2>, scalar_prefetch = 0 : i64, scratch_operands = 0 : i64, tpu.core_type = #tpu.core_type<tc>, window_params = [{transform_indices = @transform_0, window_bounds = array<i64: 256, 128>}, {pipeline_mode = #tpu.pipeline_mode<synchronous>, transform_indices = @transform_1, window_bounds = array<i64: 128, 128>}, {pipeline_mode = #tpu.pipeline_mode<synchronous>, transform_indices = @transform_2, window_bounds = array<i64: 1, 128>}, {pipeline_mode = #tpu.pipeline_mode<synchronous>, transform_indices = @transform_3, window_bounds = array<i64: 1, 128>}, {transform_indices = @transform_4, window_bounds = array<i64: 256, 128>}, {pipeline_mode = #tpu.pipeline_mode<synchronous>, transform_indices = @transform_5, window_bounds = array<i64: 128, 128>}, {pipeline_mode = #tpu.pipeline_mode<synchronous>, transform_indices = @transform_6, window_bounds = array<i64: 1, 128>}, {pipeline_mode = #tpu.pipeline_mode<synchronous>, transform_indices = @transform_7, window_bounds = array<i64: 1, 128>}, {pipeline_mode = #tpu.pipeline_mode<synchronous>, transform_indices = @transform_8, window_bounds = array<i64: 1, 128>}, {transform_indices = @transform_9, window_bounds = array<i64: 256, 128>}, {transform_indices = @transform_10, window_bounds = array<i64: 1, 2, 128>}]} {
    %c0 = arith.constant 0 : index
    %c0_0 = arith.constant 0 : index
    %0 = vector.load %arg1[%c0, %c0_0] : memref<256x128xbf16, #tpu.memory_space<vmem>>, vector<256x128xbf16>
    %1 = arith.extf %0 : vector<256x128xbf16> to vector<256x128xf32>
    %c0_1 = arith.constant 0 : index
    %c0_2 = arith.constant 0 : index
    %2 = vector.load %arg3[%c0_1, %c0_2] : memref<1x128xf32, #tpu.memory_space<vmem>>, vector<1x128xf32>
    %3 = vector.broadcast %2 : vector<1x128xf32> to vector<256x128xf32>
    %4 = arith.mulf %1, %3 : vector<256x128xf32>
    %c0_3 = arith.constant 0 : index
    %c0_4 = arith.constant 0 : index
    %5 = vector.load %arg4[%c0_3, %c0_4] : memref<1x128xf32, #tpu.memory_space<vmem>>, vector<1x128xf32>
    %6 = vector.broadcast %5 : vector<1x128xf32> to vector<256x128xf32>
    %7 = arith.addf %4, %6 : vector<256x128xf32>
    %cst = arith.constant 0.000000e+00 : f32
    %8 = vector.broadcast %cst : f32 to vector<256x128xf32>
    %9 = arith.maximumf %7, %8 : vector<256x128xf32>
    %10 = arith.truncf %9 : vector<256x128xf32> to vector<256x128xbf16>
    %c0_5 = arith.constant 0 : index
    %c0_6 = arith.constant 0 : index
    %11 = vector.load %arg2[%c0_5, %c0_6] : memref<128x128xbf16, #tpu.memory_space<vmem>>, vector<128x128xbf16>
    %cst_7 = arith.constant dense<0.000000e+00> : vector<256x128xf32>
    %12 = tpu.matmul %10, %11, %cst_7 {dimension_numbers = #tpu.dot_dimension_numbers<[1], [0], [0], [1], [0, 0, 1, 1], [], []>} : vector<256x128xbf16>, vector<128x128xbf16>, vector<256x128xf32> -> vector<256x128xf32>
    %c0_8 = arith.constant 0 : index
    %c0_9 = arith.constant 0 : index
    %13 = vector.load %arg5[%c0_8, %c0_9] : memref<256x128xbf16, #tpu.memory_space<vmem>>, vector<256x128xbf16>
    %14 = arith.extf %13 : vector<256x128xbf16> to vector<256x128xf32>
    %c0_10 = arith.constant 0 : index
    %c0_11 = arith.constant 0 : index
    %15 = vector.load %arg7[%c0_10, %c0_11] : memref<1x128xf32, #tpu.memory_space<vmem>>, vector<1x128xf32>
    %16 = vector.broadcast %15 : vector<1x128xf32> to vector<256x128xf32>
    %17 = arith.mulf %14, %16 : vector<256x128xf32>
    %c0_12 = arith.constant 0 : index
    %c0_13 = arith.constant 0 : index
    %18 = vector.load %arg8[%c0_12, %c0_13] : memref<1x128xf32, #tpu.memory_space<vmem>>, vector<1x128xf32>
    %19 = vector.broadcast %18 : vector<1x128xf32> to vector<256x128xf32>
    %20 = arith.addf %17, %19 : vector<256x128xf32>
    %cst_14 = arith.constant 0.000000e+00 : f32
    %21 = vector.broadcast %cst_14 : f32 to vector<256x128xf32>
    %22 = arith.maximumf %20, %21 : vector<256x128xf32>
    %23 = arith.truncf %22 : vector<256x128xf32> to vector<256x128xbf16>
    %c0_15 = arith.constant 0 : index
    %c0_16 = arith.constant 0 : index
    %24 = vector.load %arg6[%c0_15, %c0_16] : memref<128x128xbf16, #tpu.memory_space<vmem>>, vector<128x128xbf16>
    %cst_17 = arith.constant dense<0.000000e+00> : vector<256x128xf32>
    %25 = tpu.matmul %23, %24, %cst_17 {dimension_numbers = #tpu.dot_dimension_numbers<[1], [0], [0], [1], [0, 0, 1, 1], [], []>} : vector<256x128xbf16>, vector<128x128xbf16>, vector<256x128xf32> -> vector<256x128xf32>
    %26 = arith.addf %12, %25 : vector<256x128xf32>
    %c0_18 = arith.constant 0 : index
    %c0_19 = arith.constant 0 : index
    %27 = vector.load %arg9[%c0_18, %c0_19] : memref<1x128xf32, #tpu.memory_space<vmem>>, vector<1x128xf32>
    %28 = vector.broadcast %27 : vector<1x128xf32> to vector<256x128xf32>
    %29 = arith.addf %26, %28 : vector<256x128xf32>
    %c256_i32 = arith.constant 256 : i32
    %30 = arith.muli %arg0, %c256_i32 : i32
    %31 = tpu.iota {dimensions = array<i32: 0>} : vector<256x128xi32>
    %32 = vector.broadcast %30 : i32 to vector<256x128xi32>
    %33 = arith.addi %32, %31 : vector<256x128xi32>
    %c512_i32 = arith.constant 512 : i32
    %34 = vector.broadcast %c512_i32 : i32 to vector<256x128xi32>
    %35 = arith.cmpi slt, %33, %34 : vector<256x128xi32>
    %cst_20 = arith.constant 0.000000e+00 : f32
    %36 = vector.broadcast %cst_20 : f32 to vector<256x128xf32>
    %37 = arith.select %35, %29, %36 : vector<256x128xi1>, vector<256x128xf32>
    %cst_21 = arith.constant dense<0.000000e+00> : vector<128xf32>
    %38 = vector.multi_reduction <add>, %37, %cst_21 [0] : vector<256x128xf32> to vector<128xf32>
    %39 = vector.shape_cast %38 : vector<128xf32> to vector<1x128xf32>
    %c0_22 = arith.constant 0 : index
    %c0_23 = arith.constant 0 : index
    %c0_24 = arith.constant 0 : index
    %40 = vector.load %arg11[%c0_22, %c0_23, %c0_24] : memref<1x2x128xf32, #tpu.memory_space<vmem>>, vector<1x1x128xf32>
    %41 = vector.shape_cast %40 : vector<1x1x128xf32> to vector<1x128xf32>
    %42 = vector.shape_cast %39 : vector<1x128xf32> to vector<1x1x128xf32>
    tpu.vector_store %arg11[%c0_22, %c0_23, %c0_24], %42 {strides = array<i32>} : memref<1x2x128xf32, #tpu.memory_space<vmem>>, vector<1x1x128xf32>,
    %43 = arith.mulf %37, %37 : vector<256x128xf32>
    %cst_25 = arith.constant dense<0.000000e+00> : vector<128xf32>
    %44 = vector.multi_reduction <add>, %43, %cst_25 [0] : vector<256x128xf32> to vector<128xf32>
    %45 = vector.shape_cast %44 : vector<128xf32> to vector<1x128xf32>
    %c0_26 = arith.constant 0 : index
    %c1 = arith.constant 1 : index
    %c0_27 = arith.constant 0 : index
    %46 = vector.load %arg11[%c0_26, %c1, %c0_27] : memref<1x2x128xf32, #tpu.memory_space<vmem>>, vector<1x1x128xf32>
    %47 = vector.shape_cast %46 : vector<1x1x128xf32> to vector<1x128xf32>
    %48 = vector.shape_cast %45 : vector<1x128xf32> to vector<1x1x128xf32>
    tpu.vector_store %arg11[%c0_26, %c1, %c0_27], %48 {strides = array<i32>} : memref<1x2x128xf32, #tpu.memory_space<vmem>>, vector<1x1x128xf32>,
    %49 = math.tanh %29 : vector<256x128xf32>
    %c0_28 = arith.constant 0 : index
    %c0_29 = arith.constant 0 : index
    %50 = vector.load %arg10[%c0_28, %c0_29] : memref<256x128xf32, #tpu.memory_space<vmem>>, vector<256x128xf32>
    tpu.vector_store %arg10[%c0_28, %c0_29], %49 {strides = array<i32>} : memref<256x128xf32, #tpu.memory_space<vmem>>, vector<256x128xf32>,
    return
  }
  func.func @transform_0(%arg0: i32) -> (i32, i32) {
    %c0_i32 = arith.constant 0 : i32
    %c0_i32_0 = arith.constant 0 : i32
    return %arg0, %c0_i32 : i32, i32
  }
  func.func @transform_1(%arg0: i32) -> (i32, i32) {
    %c0_i32 = arith.constant 0 : i32
    %c0_i32_0 = arith.constant 0 : i32
    %c0_i32_1 = arith.constant 0 : i32
    return %c0_i32, %c0_i32_0 : i32, i32
  }
  func.func @transform_2(%arg0: i32) -> (i32, i32) {
    %c0_i32 = arith.constant 0 : i32
    %c0_i32_0 = arith.constant 0 : i32
    %c0_i32_1 = arith.constant 0 : i32
    return %c0_i32, %c0_i32_0 : i32, i32
  }
  func.func @transform_3(%arg0: i32) -> (i32, i32) {
    %c0_i32 = arith.constant 0 : i32
    %c0_i32_0 = arith.constant 0 : i32
    %c0_i32_1 = arith.constant 0 : i32
    return %c0_i32, %c0_i32_0 : i32, i32
  }
  func.func @transform_4(%arg0: i32) -> (i32, i32) {
    %c0_i32 = arith.constant 0 : i32
    %c0_i32_0 = arith.constant 0 : i32
    return %arg0, %c0_i32 : i32, i32
  }
  func.func @transform_5(%arg0: i32) -> (i32, i32) {
    %c0_i32 = arith.constant 0 : i32
    %c0_i32_0 = arith.constant 0 : i32
    %c0_i32_1 = arith.constant 0 : i32
    return %c0_i32, %c0_i32_0 : i32, i32
  }
  func.func @transform_6(%arg0: i32) -> (i32, i32) {
    %c0_i32 = arith.constant 0 : i32
    %c0_i32_0 = arith.constant 0 : i32
    %c0_i32_1 = arith.constant 0 : i32
    return %c0_i32, %c0_i32_0 : i32, i32
  }
  func.func @transform_7(%arg0: i32) -> (i32, i32) {
    %c0_i32 = arith.constant 0 : i32
    %c0_i32_0 = arith.constant 0 : i32
    %c0_i32_1 = arith.constant 0 : i32
    return %c0_i32, %c0_i32_0 : i32, i32
  }
  func.func @transform_8(%arg0: i32) -> (i32, i32) {
    %c0_i32 = arith.constant 0 : i32
    %c0_i32_0 = arith.constant 0 : i32
    %c0_i32_1 = arith.constant 0 : i32
    return %c0_i32, %c0_i32_0 : i32, i32
  }
  func.func @transform_9(%arg0: i32) -> (i32, i32) {
    %c0_i32 = arith.constant 0 : i32
    %c0_i32_0 = arith.constant 0 : i32
    return %arg0, %c0_i32 : i32, i32
  }
  func.func @transform_10(%arg0: i32) -> (i32, i32, i32) {
    %c0_i32 = arith.constant 0 : i32
    %c0_i32_0 = arith.constant 0 : i32
    %c0_i32_1 = arith.constant 0 : i32
    return %arg0, %c0_i32, %c0_i32_0 : i32, i32, i32
  }
}

</mosaic_0001>

<llo_original>
// kernel: tile.118
$region0: #{tile.118}
  #allocation0 [shape = 's32[1]{0}', space=sflag, size = 0x4, scoped, tag = 'scoped memory for tile.118']
  %s0 = inlined_call_operand.<no memory space> [shape: f32[], index: 0, kind: input, shape index: {}]
  %s1 = inlined_call_operand.vmem [shape: f32[48], index: 1, kind: output, shape index: {}]
  %v2 = vstv %s0
  %3 = vst [vmem:[%s1] sm:$0x1] %v2

// kernel: _lambda_.10
$region0: #{_lambda_.10}
  #allocation0 [shape = 'u32[]', space=smem, size = 0x4, offset = 0x4, fixed_abs, tag = 'smem constant byte address 0x4 - core index']
  #allocation1 [shape = 'u32[144,128]{1,0:T(1,128)}', space=vmem, size = 0x12000, scoped, tag = 'internal scratch']
  %s0 = inlined_call_operand.vmem [shape: bf16[512,128], index: 0, kind: input, shape index: {}]
  %s1 = inlined_call_operand.vmem [shape: bf16[128,128], index: 1, kind: input, shape index: {}]
  %s2 = inlined_call_operand.vmem [shape: f32[1,128], index: 2, kind: input, shape index: {}]
  %s3 = inlined_call_operand.vmem [shape: f32[1,128], index: 3, kind: input, shape index: {}]
  %s4 = inlined_call_operand.vmem [shape: f32[1,128], index: 4, kind: input, shape index: {}]
  %s5 = inlined_call_operand.vmem [shape: bf16[512,128], index: 5, kind: output, shape index: {0}]
  %s6 = inlined_call_operand.hbm [shape: f32[2,2,128], index: 6, kind: output, shape index: {1}]
  %7 = xla_tuple %s5, %s6
  %s8 = sld [smem:[#allocation0]]
  $region61: #{_lambda_.10} parent=0
    _
  %s10 = ssub.s32 1, %s8
  %s11 = scalar_select 0, %s10, %s8
  $region1: #{_lambda_.10} parent=0
    #allocation2 [shape = 'u8[2048]{0}', space=vmem, size = 0x800, scoped, tag = 'output window, operand 1']
    #allocation3 [shape = 's32[2]{0}', space=sflag, size = 0x8, scoped, tag = 'scoped memory for _lambda_.10']
    %12 = vsyncpa [#allocation3], 0
    %s13 = scalar_lea.sflag [#allocation3], 1
    %14 = vsyncpa %s13, 0
    loop: start=0, step=1, limit=4
    $region2: #{_lambda_.10} parent=1 // loop_pre_header
      _
    $region3: #{_lambda_.10} parent=1 // loop_header
      %s16 = sphi 0, %s20
      %p17 = scmp.ge.s32.totalorder %s16, 4
      %s26 = sphi 0, %s28
      %s29 = sphi 0, %s26
      %s30 = sphi 0, %s29
      %s46 = sphi 0, %s30
      %s50 = sphi 0, %s50
      %s52 = sphi 0, %s50
      %s53 = sphi 0, %s52
      %s67 = sphi 0, %s53
      %s71 = sphi 0, %s71
      %s73 = sphi 0, %s71
      %s74 = sphi 0, %s73
      %s88 = sphi 0, %s74
      %s92 = sphi 0, %s92
      %s94 = sphi 0, %s92
      %s95 = sphi 0, %s94
      %s109 = sphi 0, %s95
      %s113 = sphi 0, %s113
      %s115 = sphi 0, %s113
      %s116 = sphi 0, %s115
      %s130 = sphi 0, %s116
      %s136 = sphi 0, %s138
      %s139 = sphi 0, %s136
      %s140 = sphi 0, %s139
      %s156 = sphi 0, %s140
      %s162 = sphi 0, %s164
      %s165 = sphi 0, %s162
      %s166 = sphi 0, %s165
      %s182 = sphi 0, %s166
    $region4: #{_lambda_.10} parent=1 // loop_header_branch
      %19 = sbr.rel (%p17) target = $region8
    $region5: #{_lambda_.10} parent=1 // loop_body
      %s21 = ssub.s32 %s16, 1
      %s22 = ssub.s32 %s16, 2
      %s23 = sadd.s32 %s16, 1
      %s24 = ssub.s32 %s16, %s23
      %p25 = scmp.eq.s32.totalorder %s24, 0
      %s27 = sadd.s32 %s26, 1
      %s28 = scalar_select %p25, %s26, %s27
      %p31 = pneg %p25
      %p32 = scmp.eq.s32.totalorder %s16, 1
      %p33 = por %p31, %p32
      %p34 = scmp.ne.s32.totalorder %s26, %s29
      %p35 = scmp.eq.s32.totalorder %s16, 0
      %p36 = por %p34, %p35
      %p37 = scmp.ne.s32.totalorder %s26, %s29
      %p38 = scmp.eq.s32.totalorder %s21, 1
      %p39 = por %p37, %p38
      %p40 = scmp.ne.s32.totalorder %s29, %s30
      %p41 = scmp.eq.s32.totalorder %s21, 0
      %p42 = por %p40, %p41
      %p43 = scmp.ne.s32.totalorder %s29, %s30
      %p44 = scmp.eq.s32.totalorder %s22, 1
      %p45 = por %p43, %p44
      %p47 = scmp.ne.s32.totalorder %s30, %s46
      %p48 = scmp.eq.s32.totalorder %s22, 0
      %p49 = por %p47, %p48
      %s51 = sadd.s32 %s50, 1
      %p54 = scmp.eq.s32.totalorder %s16, 1
      %p55 = scmp.ne.s32.totalorder %s50, %s52
      %p56 = scmp.eq.s32.totalorder %s16, 0
      %p57 = por %p55, %p56
      %p58 = scmp.ne.s32.totalorder %s50, %s52
      %p59 = scmp.eq.s32.totalorder %s21, 1
      %p60 = por %p58, %p59
      %p61 = scmp.ne.s32.totalorder %s52, %s53
      %p62 = scmp.eq.s32.totalorder %s21, 0
      %p63 = por %p61, %p62
      %p64 = scmp.ne.s32.totalorder %s52, %s53
      %p65 = scmp.eq.s32.totalorder %s22, 1
      %p66 = por %p64, %p65
      %p68 = scmp.ne.s32.totalorder %s53, %s67
      %p69 = scmp.eq.s32.totalorder %s22, 0
      %p70 = por %p68, %p69
      %s72 = sadd.s32 %s71, 1
      %p75 = scmp.eq.s32.totalorder %s16, 1
      %p76 = scmp.ne.s32.totalorder %s71, %s73
      %p77 = scmp.eq.s32.totalorder %s16, 0
      %p78 = por %p76, %p77
      %p79 = scmp.ne.s32.totalorder %s71, %s73
      %p80 = scmp.eq.s32.totalorder %s21, 1
      %p81 = por %p79, %p80
      %p82 = scmp.ne.s32.totalorder %s73, %s74
      %p83 = scmp.eq.s32.totalorder %s21, 0
      %p84 = por %p82, %p83
      %p85 = scmp.ne.s32.totalorder %s73, %s74
      %p86 = scmp.eq.s32.totalorder %s22, 1
      %p87 = por %p85, %p86
      %p89 = scmp.ne.s32.totalorder %s74, %s88
      %p90 = scmp.eq.s32.totalorder %s22, 0
      %p91 = por %p89, %p90
      %s93 = sadd.s32 %s92, 1
      %p96 = scmp.eq.s32.totalorder %s16, 1
      %p97 = scmp.ne.s32.totalorder %s92, %s94
      %p98 = scmp.eq.s32.totalorder %s16, 0
      %p99 = por %p97, %p98
      %p100 = scmp.ne.s32.totalorder %s92, %s94
      %p101 = scmp.eq.s32.totalorder %s21, 1
      %p102 = por %p100, %p101
      %p103 = scmp.ne.s32.totalorder %s94, %s95
      %p104 = scmp.eq.s32.totalorder %s21, 0
      %p105 = por %p103, %p104
      %p106 = scmp.ne.s32.totalorder %s94, %s95
      %p107 = scmp.eq.s32.totalorder %s22, 1
      %p108 = por %p106, %p107
      %p110 = scmp.ne.s32.totalorder %s95, %s109
      %p111 = scmp.eq.s32.totalorder %s22, 0
      %p112 = por %p110, %p111
      %s114 = sadd.s32 %s113, 1
      %p117 = scmp.eq.s32.totalorder %s16, 1
      %p118 = scmp.ne.s32.totalorder %s113, %s115
      %p119 = scmp.eq.s32.totalorder %s16, 0
      %p120 = por %p118, %p119
      %p121 = scmp.ne.s32.totalorder %s113, %s115
      %p122 = scmp.eq.s32.totalorder %s21, 1
      %p123 = por %p121, %p122
      %p124 = scmp.ne.s32.totalorder %s115, %s116
      %p125 = scmp.eq.s32.totalorder %s21, 0
      %p126 = por %p124, %p125
      %p127 = scmp.ne.s32.totalorder %s115, %s116
      %p128 = scmp.eq.s32.totalorder %s22, 1
      %p129 = por %p127, %p128
      %p131 = scmp.ne.s32.totalorder %s116, %s130
      %p132 = scmp.eq.s32.totalorder %s22, 0
      %p133 = por %p131, %p132
      %s134 = ssub.s32 %s16, %s23
      %p135 = scmp.eq.s32.totalorder %s134, 0
      %s137 = sadd.s32 %s136, 1
      %s138 = scalar_select %p135, %s136, %s137
      %p141 = pneg %p135
      %p142 = scmp.eq.s32.totalorder %s16, 1
      %p143 = por %p141, %p142
      %p144 = scmp.ne.s32.totalorder %s136, %s139
      %p145 = scmp.eq.s32.totalorder %s16, 0
      %p146 = por %p144, %p145
      %p147 = scmp.ne.s32.totalorder %s136, %s139
      %p148 = scmp.eq.s32.totalorder %s21, 1
      %p149 = por %p147, %p148
      %p150 = scmp.ne.s32.totalorder %s139, %s140
      %p151 = scmp.eq.s32.totalorder %s21, 0
      %p152 = por %p150, %p151
      %p153 = scmp.ne.s32.totalorder %s139, %s140
      %p154 = scmp.eq.s32.totalorder %s22, 1
      %p155 = por %p153, %p154
      %p157 = scmp.ne.s32.totalorder %s140, %s156
      %p158 = scmp.eq.s32.totalorder %s22, 0
      %p159 = por %p157, %p158
      %s160 = ssub.s32 %s16, %s23
      %p161 = scmp.eq.s32.totalorder %s160, 0
      %s163 = sadd.s32 %s162, 1
      %s164 = scalar_select %p161, %s162, %s163
      %p167 = pneg %p161
      %p168 = scmp.eq.s32.totalorder %s16, 1
      %p169 = por %p167, %p168
      %p170 = scmp.ne.s32.totalorder %s162, %s165
      %p171 = scmp.eq.s32.totalorder %s16, 0
      %p172 = por %p170, %p171
      %p173 = scmp.ne.s32.totalorder %s162, %s165
      %p174 = scmp.eq.s32.totalorder %s21, 1
      %p175 = por %p173, %p174
      %p176 = scmp.ne.s32.totalorder %s165, %s166
      %p177 = scmp.eq.s32.totalorder %s21, 0
      %p178 = por %p176, %p177
      %p179 = scmp.ne.s32.totalorder %s165, %s166
      %p180 = scmp.eq.s32.totalorder %s22, 1
      %p181 = por %p179, %p180
      %p183 = scmp.ne.s32.totalorder %s166, %s182
      %p184 = scmp.eq.s32.totalorder %s22, 0
      %p185 = por %p183, %p184
      %p186 = scmp.le.s32.totalorder 1, %s16
      %p187 = scmp.lt.s32.totalorder %s16, 3
      %p188 = pnand %p186, %p187
      %p189 = pneg %p188
      // Predicated region
      $region9: #{_lambda_.10} parent=5 // pred_check
        _
      $region10: #{_lambda_.10} parent=5 // pred_check_branch
        %191 = sbr.rel (%p188) target = $region12
      $region11: #{_lambda_.10} parent=5 // pred_region
        %s192 = ssub.s32 %s16, 1
        // Predicated region
        $region13: #{_lambda_.10} parent=11 // pred_check
          %p193 = pneg %p63
        $region14: #{_lambda_.10} parent=11 // pred_check_branch
          %195 = sbr.rel (%p193) target = $region16
        $region15: #{_lambda_.10} parent=11 // pred_region
          _
        $region16: #{_lambda_.10} parent=11 // pred_fallthru
          _
        // Predicated region
        $region17: #{_lambda_.10} parent=11 // pred_check
          %p196 = pneg %p84
        $region18: #{_lambda_.10} parent=11 // pred_check_branch
          %198 = sbr.rel (%p196) target = $region20
        $region19: #{_lambda_.10} parent=11 // pred_region
          _
        $region20: #{_lambda_.10} parent=11 // pred_fallthru
          _
        // Predicated region
        $region21: #{_lambda_.10} parent=11 // pred_check
          %p199 = pneg %p105
        $region22: #{_lambda_.10} parent=11 // pred_check_branch
          %201 = sbr.rel (%p199) target = $region24
        $region23: #{_lambda_.10} parent=11 // pred_region
          _
        $region24: #{_lambda_.10} parent=11 // pred_fallthru
          _
        // Predicated region
        $region25: #{_lambda_.10} parent=11 // pred_check
          %p202 = pneg %p126
        $region26: #{_lambda_.10} parent=11 // pred_check_branch
          %204 = sbr.rel (%p202) target = $region28
        $region27: #{_lambda_.10} parent=11 // pred_region
          _
        $region28: #{_lambda_.10} parent=11 // pred_fallthru
          _
      $region12: #{_lambda_.10} parent=5 // pred_fallthru
        _
      %p205 = scmp.lt.s32.totalorder %s16, 2
      // Predicated region
      $region29: #{_lambda_.10} parent=5 // pred_check
        %p206 = pneg %p205
      $region30: #{_lambda_.10} parent=5 // pred_check_branch
        %208 = sbr.rel (%p206) target = $region32
      $region31: #{_lambda_.10} parent=5 // pred_region
        // Predicated region
        $region33: #{_lambda_.10} parent=31 // pred_check
          %p209 = pneg %p36
        $region34: #{_lambda_.10} parent=31 // pred_check_branch
          %211 = sbr.rel (%p209) target = $region36
        $region35: #{_lambda_.10} parent=31 // pred_region
          %s212 = smul.u32 32, %s16
          %p213 = scmp.lt.s32.totalorder %s212, 63
          %s214 = scalar_select %p213, %s212, 63
          %s215 = smul.addr %s214, 4
          %s216 = scalar_lea.vmem %s0, %s215
          %s217 = smul.u32 32, %s16
        $region36: #{_lambda_.10} parent=31 // pred_fallthru
          _
      $region32: #{_lambda_.10} parent=5 // pred_fallthru
        _
      %p218 = scmp.le.s32.totalorder 1, %s16
      %p219 = scmp.lt.s32.totalorder %s16, 3
      %p220 = pnand %p218, %p219
      %p221 = pneg %p220
      // Predicated region
      $region37: #{_lambda_.10} parent=5 // pred_check
        _
      $region38: #{_lambda_.10} parent=5 // pred_check_branch
        %223 = sbr.rel (%p220) target = $region40
      $region39: #{_lambda_.10} parent=5 // pred_region
        %s224 = ssub.s32 %s16, 1
        %s225 = smul.u32 32, %s21
        %p226 = scmp.lt.s32.totalorder %s225, 63
        %s227 = scalar_select %p226, %s225, 63
        %s228 = smul.addr %s227, 4
        %s229 = scalar_lea.vmem %s0, %s228
        %p230 = pneg %p42
        %p231 = pneg %p39
        %p232 = pneg %p63
        %p233 = pneg %p60
        %p234 = pneg %p84
        %p235 = pneg %p81
        %p236 = pneg %p105
        %p237 = pneg %p102
        %p238 = pneg %p126
        %p239 = pneg %p123
        %p240 = pneg %p152
        %p241 = pneg %p149
        %s242 = smul.u32 32, %s21
        %p243 = scmp.lt.s32.totalorder %s242, 63
        %s244 = scalar_select %p243, %s242, 63
        %s245 = smul.addr %s244, 4
        %s246 = scalar_lea.vmem %s5, %s245
        %p247 = pneg %p178
        %p248 = pneg %p175
        %s249 = sand.u32 %s165, 1
        %s250 = scalar_lea.sflag [#allocation3], %s249
        %s251 = sand.u32 %s165, 1
        %s252 = smul.addr %s251, 2
        %s253 = scalar_lea.vmem [#allocation2], %s252
        %s254 = smul.u32 32, %s21
        %p255 = scmp.lt.s32.totalorder %s254, 63
        %s256 = scalar_select %p255, %s254, 63
        %s257 = smul.addr %s256, 4
        %s258 = scalar_lea.vmem %s0, %s257
        %s259 = smul.u32 32, %s21
        %s260 = smul.u32 32, %s21
        %p261 = scmp.lt.s32.totalorder %s260, 63
        %s262 = scalar_select %p261, %s260, 63
        %s263 = smul.addr %s262, 4
        %s264 = scalar_lea.vmem %s5, %s263
        %s265 = smul.u32 32, %s21
        %v267 = vld [vmem:[%s258] sm:$0xf]
        %v268 = vld [vmem:[%s258 + $0x4] sm:$0xf]
        %v269 = vld [vmem:[%s258 + $0x8] sm:$0xf]
        %v270 = vld [vmem:[%s258 + $0xc] sm:$0xf]
        %v271 = vld [vmem:[%s258 + $0x10] sm:$0xf]
        %v272 = vld [vmem:[%s258 + $0x14] sm:$0xf]
        %v273 = vld [vmem:[%s258 + $0x18] sm:$0xf]
        %v274 = vld [vmem:[%s258 + $0x1c] sm:$0xf]
        %v275 = vld [vmem:[%s258 + $0x20] sm:$0xf]
        %v276 = vld [vmem:[%s258 + $0x24] sm:$0xf]
        %v277 = vld [vmem:[%s258 + $0x28] sm:$0xf]
        %v278 = vld [vmem:[%s258 + $0x2c] sm:$0xf]
        %v279 = vld [vmem:[%s258 + $0x30] sm:$0xf]
        %v280 = vld [vmem:[%s258 + $0x34] sm:$0xf]
        %v281 = vld [vmem:[%s258 + $0x38] sm:$0xf]
        %v282 = vld [vmem:[%s258 + $0x3c] sm:$0xf]
        %v283 = vld [vmem:[%s258 + $0x40] sm:$0xf]
        %v284 = vld [vmem:[%s258 + $0x44] sm:$0xf]
        %v285 = vld [vmem:[%s258 + $0x48] sm:$0xf]
        %v286 = vld [vmem:[%s258 + $0x4c] sm:$0xf]
        %v287 = vld [vmem:[%s258 + $0x50] sm:$0xf]
        %v288 = vld [vmem:[%s258 + $0x54] sm:$0xf]
        %v289 = vld [vmem:[%s258 + $0x58] sm:$0xf]
        %v290 = vld [vmem:[%s258 + $0x5c] sm:$0xf]
        %v291 = vld [vmem:[%s258 + $0x60] sm:$0xf]
        %v292 = vld [vmem:[%s258 + $0x64] sm:$0xf]
        %v293 = vld [vmem:[%s258 + $0x68] sm:$0xf]
        %v294 = vld [vmem:[%s258 + $0x6c] sm:$0xf]
        %v295 = vld [vmem:[%s258 + $0x70] sm:$0xf]
        %v296 = vld [vmem:[%s258 + $0x74] sm:$0xf]
        %v297 = vld [vmem:[%s258 + $0x78] sm:$0xf]
        %v298 = vld [vmem:[%s258 + $0x7c] sm:$0xf]
        %v299 = vunpack.c.l.bf16 %v267
        %v300 = vunpack.c.l.bf16 %v268
        %v301 = vunpack.c.l.bf16 %v269
        %v302 = vunpack.c.l.bf16 %v270
        %v303 = vunpack.c.l.bf16 %v271
        %v304 = vunpack.c.l.bf16 %v272
        %v305 = vunpack.c.l.bf16 %v273
        %v306 = vunpack.c.l.bf16 %v274
        %v307 = vunpack.c.l.bf16 %v275
        %v308 = vunpack.c.l.bf16 %v276
        %v309 = vunpack.c.l.bf16 %v277
        %v310 = vunpack.c.l.bf16 %v278
        %v311 = vunpack.c.l.bf16 %v279
        %v312 = vunpack.c.l.bf16 %v280
        %v313 = vunpack.c.l.bf16 %v281
        %v314 = vunpack.c.l.bf16 %v282
        %v315 = vunpack.c.l.bf16 %v283
        %v316 = vunpack.c.l.bf16 %v284
        %v317 = vunpack.c.l.bf16 %v285
        %v318 = vunpack.c.l.bf16 %v286
        %v319 = vunpack.c.l.bf16 %v287
        %v320 = vunpack.c.l.bf16 %v288
        %v321 = vunpack.c.l.bf16 %v289
        %v322 = vunpack.c.l.bf16 %v290
        %v323 = vunpack.c.l.bf16 %v291
        %v324 = vunpack.c.l.bf16 %v292
        %v325 = vunpack.c.l.bf16 %v293
        %v326 = vunpack.c.l.bf16 %v294
        %v327 = vunpack.c.l.bf16 %v295
        %v328 = vunpack.c.l.bf16 %v296
        %v329 = vunpack.c.l.bf16 %v297
        %v330 = vunpack.c.l.bf16 %v298
        %v331 = vld [vmem:[%s2] sm:$0x1]
        %v333 = vlaneseq
        %v334 = vshrl.u32 %v333, 7
        %v335 = vsub.s32 0, %v334
        %v336 = vrot.slane %v331, %v335
        %v338 = vmul.f32 %v299, %v336
        %v339 = vmul.f32 %v300, %v336
        %v340 = vmul.f32 %v301, %v336
        %v341 = vmul.f32 %v302, %v336
        %v342 = vmul.f32 %v303, %v336
        %v343 = vmul.f32 %v304, %v336
        %v344 = vmul.f32 %v305, %v336
        %v345 = vmul.f32 %v306, %v336
        %v346 = vmul.f32 %v307, %v336
        %v347 = vmul.f32 %v308, %v336
        %v348 = vmul.f32 %v309, %v336
        %v349 = vmul.f32 %v310, %v336
        %v350 = vmul.f32 %v311, %v336
        %v351 = vmul.f32 %v312, %v336
        %v352 = vmul.f32 %v313, %v336
        %v353 = vmul.f32 %v314, %v336
        %v354 = vmul.f32 %v315, %v336
        %v355 = vmul.f32 %v316, %v336
        %v356 = vmul.f32 %v317, %v336
        %v357 = vmul.f32 %v318, %v336
        %v358 = vmul.f32 %v319, %v336
        %v359 = vmul.f32 %v320, %v336
        %v360 = vmul.f32 %v321, %v336
        %v361 = vmul.f32 %v322, %v336
        %v362 = vmul.f32 %v323, %v336
        %v363 = vmul.f32 %v324, %v336
        %v364 = vmul.f32 %v325, %v336
        %v365 = vmul.f32 %v326, %v336
        %v366 = vmul.f32 %v327, %v336
        %v367 = vmul.f32 %v328, %v336
        %v368 = vmul.f32 %v329, %v336
        %v369 = vmul.f32 %v330, %v336
        %v370 = vld [vmem:[%s3] sm:$0x1]
        %v372 = vlaneseq
        %v373 = vshrl.u32 %v372, 7
        %v374 = vsub.s32 0, %v373
        %v375 = vrot.slane %v370, %v374
        %v377 = vadd.f32 %v338, %v375
        %v378 = vadd.f32 %v339, %v375
        %v379 = vadd.f32 %v340, %v375
        %v380 = vadd.f32 %v341, %v375
        %v381 = vadd.f32 %v342, %v375
        %v382 = vadd.f32 %v343, %v375
        %v383 = vadd.f32 %v344, %v375
        %v384 = vadd.f32 %v345, %v375
        %v385 = vadd.f32 %v346, %v375
        %v386 = vadd.f32 %v347, %v375
        %v387 = vadd.f32 %v348, %v375
        %v388 = vadd.f32 %v349, %v375
        %v389 = vadd.f32 %v350, %v375
        %v390 = vadd.f32 %v351, %v375
        %v391 = vadd.f32 %v352, %v375
        %v392 = vadd.f32 %v353, %v375
        %v393 = vadd.f32 %v354, %v375
        %v394 = vadd.f32 %v355, %v375
        %v395 = vadd.f32 %v356, %v375
        %v396 = vadd.f32 %v357, %v375
        %v397 = vadd.f32 %v358, %v375
        %v398 = vadd.f32 %v359, %v375
        %v399 = vadd.f32 %v360, %v375
        %v400 = vadd.f32 %v361, %v375
        %v401 = vadd.f32 %v362, %v375
        %v402 = vadd.f32 %v363, %v375
        %v403 = vadd.f32 %v364, %v375
        %v404 = vadd.f32 %v365, %v375
        %v405 = vadd.f32 %v366, %v375
        %v406 = vadd.f32 %v367, %v375
        %v407 = vadd.f32 %v368, %v375
        %v408 = vadd.f32 %v369, %v375
        %v409 = vpack.c.bf16 %v378, %v377
        %v410 = vpack.c.bf16 %v380, %v379
        %v411 = vpack.c.bf16 %v382, %v381
        %v412 = vpack.c.bf16 %v384, %v383
        %v413 = vpack.c.bf16 %v386, %v385
        %v414 = vpack.c.bf16 %v388, %v387
        %v415 = vpack.c.bf16 %v390, %v389
        %v416 = vpack.c.bf16 %v392, %v391
        %v417 = vpack.c.bf16 %v394, %v393
        %v418 = vpack.c.bf16 %v396, %v395
        %v419 = vpack.c.bf16 %v398, %v397
        %v420 = vpack.c.bf16 %v400, %v399
        %v421 = vpack.c.bf16 %v402, %v401
        %v422 = vpack.c.bf16 %v404, %v403
        %v423 = vpack.c.bf16 %v406, %v405
        %v424 = vpack.c.bf16 %v408, %v407
        %v425 = vld [vmem:[%s1] sm:$0xf]
        %v426 = vld [vmem:[%s1 + $0x4] sm:$0xf]
        %v427 = vld [vmem:[%s1 + $0x8] sm:$0xf]
        %v428 = vld [vmem:[%s1 + $0xc] sm:$0xf]
        %v429 = vld [vmem:[%s1 + $0x10] sm:$0xf]
        %v430 = vld [vmem:[%s1 + $0x14] sm:$0xf]
        %v431 = vld [vmem:[%s1 + $0x18] sm:$0xf]
        %v432 = vld [vmem:[%s1 + $0x1c] sm:$0xf]
        %v433 = vld [vmem:[%s1 + $0x20] sm:$0xf]
        %v434 = vld [vmem:[%s1 + $0x24] sm:$0xf]
        %v435 = vld [vmem:[%s1 + $0x28] sm:$0xf]
        %v436 = vld [vmem:[%s1 + $0x2c] sm:$0xf]
        %v437 = vld [vmem:[%s1 + $0x30] sm:$0xf]
        %v438 = vld [vmem:[%s1 + $0x34] sm:$0xf]
        %v439 = vld [vmem:[%s1 + $0x38] sm:$0xf]
        %v440 = vld [vmem:[%s1 + $0x3c] sm:$0xf]
        %v441 = vld [vmem:[%s4] sm:$0x1]
        %v443 = vlaneseq
        %v444 = vshrl.u32 %v443, 7
        %v445 = vsub.s32 0, %v444
        %v446 = vrot.slane %v441, %v445
        %v464 = vunpack.c.l.b16 %v425
        %v465 = vunpack.c.l.b16 %v426
        %v466 = vunpack.c.l.b16 %v427
        %v467 = vunpack.c.l.b16 %v428
        %v468 = vunpack.c.l.b16 %v429
        %v469 = vunpack.c.l.b16 %v430
        %v470 = vunpack.c.l.b16 %v431
        %v471 = vunpack.c.l.b16 %v432
        %v472 = vunpack.c.l.b16 %v433
        %v473 = vunpack.c.l.b16 %v434
        %v474 = vunpack.c.l.b16 %v435
        %v475 = vunpack.c.l.b16 %v436
        %v476 = vunpack.c.l.b16 %v437
        %v477 = vunpack.c.l.b16 %v438
        %v478 = vunpack.c.l.b16 %v439
        %v479 = vunpack.c.l.b16 %v440
        %v480 = vpack.c.b16 %v465, %v464
        %v481 = vpack.c.b16 %v467, %v466
        %v482 = vpack.c.b16 %v469, %v468
        %v483 = vpack.c.b16 %v471, %v470
        %v484 = vpack.c.b16 %v473, %v472
        %v485 = vpack.c.b16 %v475, %v474
        %v486 = vpack.c.b16 %v477, %v476
        %v487 = vpack.c.b16 %v479, %v478
        %496 = vmatprep.subr.bf16.mxu0 0
        %497 = vmatpush1.bf16.msra.mxu0 %v480
        %498 = vmatprep.subr.bf16.mxu0 0
        %499 = vmatpush1.bf16.msra.mxu0 %v481
        %500 = vmatprep.subr.bf16.mxu0 0
        %501 = vmatpush1.bf16.msra.mxu0 %v482
        %502 = vmatprep.subr.bf16.mxu0 0
        %503 = vmatpush1.bf16.msra.mxu0 %v483
        %504 = vmatprep.subr.bf16.mxu0 0
        %505 = vmatpush1.bf16.msra.mxu0 %v484
        %506 = vmatprep.subr.bf16.mxu0 0
        %507 = vmatpush1.bf16.msra.mxu0 %v485
        %508 = vmatprep.subr.bf16.mxu0 0
        %509 = vmatpush1.bf16.msra.mxu0 %v486
        %510 = vmatprep.subr.bf16.mxu0 0
        %511 = vmatpush1.bf16.msra.mxu0 %v487
        %512 = vmatprep.subr.bf16.mxu0 0
        %513 = vmatpush1.bf16.msra.mxu0 0
        %514 = vmatprep.subr.bf16.mxu0 0
        %515 = vmatpush1.bf16.msra.mxu0 0
        %516 = vmatprep.subr.bf16.mxu0 0
        %517 = vmatpush1.bf16.msra.mxu0 0
        %518 = vmatprep.subr.bf16.mxu0 0
        %519 = vmatpush1.bf16.msra.mxu0 0
        %520 = vmatprep.subr.bf16.mxu0 0
        %521 = vmatpush1.bf16.msra.mxu0 0
        %522 = vmatprep.subr.bf16.mxu0 0
        %523 = vmatpush1.bf16.msra.mxu0 0
        %524 = vmatprep.subr.bf16.mxu0 0
        %525 = vmatpush1.bf16.msra.mxu0 0
        %526 = vmatprep.subr.bf16.mxu0 0
        %527 = vmatpush1.bf16.msra.mxu0 0
        %528 = vmatprep.mubr.bf16.mxu0 0
        %529 = vmatmul.mubr.bf16.gmra.mrb[0].mxu0 %v409
        %v530 = vpop.f32.mrb[0].mxu0
        %v531 = vadd.f32 %v446, %v530
        %v532 = vpop.f32.mrb[0].mxu0
        %v533 = vpop.f32.mrb[0].mxu0
        %v534 = vadd.f32 %v446, %v533
        %v535 = vpop.f32.mrb[0].mxu0
        %536 = vmatprep.mubr.bf16.mxu0 0
        %537 = vmatmul.mubr.bf16.gmra.mrb[0].mxu0 %v410
        %v538 = vpop.f32.mrb[0].mxu0
        %v539 = vadd.f32 %v446, %v538
        %v540 = vpop.f32.mrb[0].mxu0
        %v541 = vpop.f32.mrb[0].mxu0
        %v542 = vadd.f32 %v446, %v541
        %v543 = vpop.f32.mrb[0].mxu0
        %544 = vmatprep.mubr.bf16.mxu0 0
        %545 = vmatmul.mubr.bf16.gmra.mrb[0].mxu0 %v411
        %v546 = vpop.f32.mrb[0].mxu0
        %v547 = vadd.f32 %v446, %v546
        %v548 = vpop.f32.mrb[0].mxu0
        %v549 = vpop.f32.mrb[0].mxu0
        %v550 = vadd.f32 %v446, %v549
        %v551 = vpop.f32.mrb[0].mxu0
        %552 = vmatprep.mubr.bf16.mxu0 0
        %553 = vmatmul.mubr.bf16.gmra.mrb[0].mxu0 %v412
        %v554 = vpop.f32.mrb[0].mxu0
        %v555 = vadd.f32 %v446, %v554
        %v556 = vpop.f32.mrb[0].mxu0
        %v557 = vpop.f32.mrb[0].mxu0
        %v558 = vadd.f32 %v446, %v557
        %v559 = vpop.f32.mrb[0].mxu0
        %560 = vmatprep.mubr.bf16.mxu0 0
        %561 = vmatmul.mubr.bf16.gmra.mrb[0].mxu0 %v413
        %v562 = vpop.f32.mrb[0].mxu0
        %v563 = vadd.f32 %v446, %v562
        %v564 = vpop.f32.mrb[0].mxu0
        %v565 = vpop.f32.mrb[0].mxu0
        %v566 = vadd.f32 %v446, %v565
        %v567 = vpop.f32.mrb[0].mxu0
        %568 = vmatprep.mubr.bf16.mxu0 0
        %569 = vmatmul.mubr.bf16.gmra.mrb[0].mxu0 %v414
        %v570 = vpop.f32.mrb[0].mxu0
        %v571 = vadd.f32 %v446, %v570
        %v572 = vpop.f32.mrb[0].mxu0
        %v573 = vpop.f32.mrb[0].mxu0
        %v574 = vadd.f32 %v446, %v573
        %v575 = vpop.f32.mrb[0].mxu0
        %576 = vmatprep.mubr.bf16.mxu0 0
        %577 = vmatmul.mubr.bf16.gmra.mrb[0].mxu0 %v415
        %v578 = vpop.f32.mrb[0].mxu0
        %v579 = vadd.f32 %v446, %v578
        %v580 = vpop.f32.mrb[0].mxu0
        %v581 = vpop.f32.mrb[0].mxu0
        %v582 = vadd.f32 %v446, %v581
        %v583 = vpop.f32.mrb[0].mxu0
        %584 = vmatprep.mubr.bf16.mxu0 0
        %585 = vmatmul.mubr.bf16.gmra.mrb[0].mxu0 %v416
        %v586 = vpop.f32.mrb[0].mxu0
        %v587 = vadd.f32 %v446, %v586
        %v588 = vpop.f32.mrb[0].mxu0
        %v589 = vpop.f32.mrb[0].mxu0
        %v590 = vadd.f32 %v446, %v589
        %v591 = vpop.f32.mrb[0].mxu0
        %592 = vmatprep.mubr.bf16.mxu0 0
        %593 = vmatmul.mubr.bf16.gmra.mrb[0].mxu0 %v417
        %v594 = vpop.f32.mrb[0].mxu0
        %v595 = vadd.f32 %v446, %v594
        %v596 = vpop.f32.mrb[0].mxu0
        %v597 = vpop.f32.mrb[0].mxu0
        %v598 = vadd.f32 %v446, %v597
        %v599 = vpop.f32.mrb[0].mxu0
        %600 = vmatprep.mubr.bf16.mxu0 0
        %601 = vmatmul.mubr.bf16.gmra.mrb[0].mxu0 %v418
        %v602 = vpop.f32.mrb[0].mxu0
        %v603 = vadd.f32 %v446, %v602
        %v604 = vpop.f32.mrb[0].mxu0
        %v605 = vpop.f32.mrb[0].mxu0
        %v606 = vadd.f32 %v446, %v605
        %v607 = vpop.f32.mrb[0].mxu0
        %608 = vmatprep.mubr.bf16.mxu0 0
        %609 = vmatmul.mubr.bf16.gmra.mrb[0].mxu0 %v419
        %v610 = vpop.f32.mrb[0].mxu0
        %v611 = vadd.f32 %v446, %v610
        %v612 = vpop.f32.mrb[0].mxu0
        %v613 = vpop.f32.mrb[0].mxu0
        %v614 = vadd.f32 %v446, %v613
        %v615 = vpop.f32.mrb[0].mxu0
        %616 = vmatprep.mubr.bf16.mxu0 0
        %617 = vmatmul.mubr.bf16.gmra.mrb[0].mxu0 %v420
        %v618 = vpop.f32.mrb[0].mxu0
        %v619 = vadd.f32 %v446, %v618
        %v620 = vpop.f32.mrb[0].mxu0
        %v621 = vpop.f32.mrb[0].mxu0
        %v622 = vadd.f32 %v446, %v621
        %v623 = vpop.f32.mrb[0].mxu0
        %624 = vmatprep.mubr.bf16.mxu0 0
        %625 = vmatmul.mubr.bf16.gmra.mrb[0].mxu0 %v421
        %v626 = vpop.f32.mrb[0].mxu0
        %v627 = vadd.f32 %v446, %v626
        %v628 = vpop.f32.mrb[0].mxu0
        %v629 = vpop.f32.mrb[0].mxu0
        %v630 = vadd.f32 %v446, %v629
        %v631 = vpop.f32.mrb[0].mxu0
        %632 = vmatprep.mubr.bf16.mxu0 0
        %633 = vmatmul.mubr.bf16.gmra.mrb[0].mxu0 %v422
        %v634 = vpop.f32.mrb[0].mxu0
        %v635 = vadd.f32 %v446, %v634
        %v636 = vpop.f32.mrb[0].mxu0
        %v637 = vpop.f32.mrb[0].mxu0
        %v638 = vadd.f32 %v446, %v637
        %v639 = vpop.f32.mrb[0].mxu0
        %640 = vmatprep.mubr.bf16.mxu0 0
        %641 = vmatmul.mubr.bf16.gmra.mrb[0].mxu0 %v423
        %v642 = vpop.f32.mrb[0].mxu0
        %v643 = vadd.f32 %v446, %v642
        %v644 = vpop.f32.mrb[0].mxu0
        %v645 = vpop.f32.mrb[0].mxu0
        %v646 = vadd.f32 %v446, %v645
        %v647 = vpop.f32.mrb[0].mxu0
        %648 = vmatprep.mubr.bf16.mxu0 0
        %649 = vmatmul.mubr.bf16.gmra.mrb[0].mxu0 %v424
        %v650 = vpop.f32.mrb[0].mxu0
        %v651 = vadd.f32 %v446, %v650
        %v652 = vpop.f32.mrb[0].mxu0
        %v653 = vpop.f32.mrb[0].mxu0
        %v654 = vadd.f32 %v446, %v653
        %v655 = vpop.f32.mrb[0].mxu0
        %656 = vdwg.mxu0
        %s657 = smul.u32 %s21, 256
        %v658 = vlaneseq
        %v659 = vshrl.u32 %v658, 7
        %v660 = vadd.s32 %v659, 8
        %v661 = vadd.s32 %v659, 16
        %v662 = vadd.s32 %v659, 24
        %v663 = vadd.s32 %v659, 32
        %v664 = vadd.s32 %v659, 40
        %v665 = vadd.s32 %v659, 48
        %v666 = vadd.s32 %v659, 56
        %v667 = vadd.s32 %v659, 64
        %v668 = vadd.s32 %v659, 72
        %v669 = vadd.s32 %v659, 80
        %v670 = vadd.s32 %v659, 88
        %v671 = vadd.s32 %v659, 96
        %v672 = vadd.s32 %v659, 104
        %v673 = vadd.s32 %v659, 112
        %v674 = vadd.s32 %v659, 120
        %v675 = vadd.s32 %v659, 128
        %v676 = vadd.s32 %v659, 136
        %v677 = vadd.s32 %v659, 144
        %v678 = vadd.s32 %v659, 152
        %v679 = vadd.s32 %v659, 160
        %v680 = vadd.s32 %v659, 168
        %v681 = vadd.s32 %v659, 176
        %v682 = vadd.s32 %v659, 184
        %v683 = vadd.s32 %v659, 192
        %v684 = vadd.s32 %v659, 200
        %v685 = vadd.s32 %v659, 208
        %v686 = vadd.s32 %v659, 216
        %v687 = vadd.s32 %v659, 224
        %v688 = vadd.s32 %v659, 232
        %v689 = vadd.s32 %v659, 240
        %v690 = vadd.s32 %v659, 248
        %v691 = vstv %s657
        %v692 = vadd.s32 %v691, %v659
        %v693 = vadd.s32 %v691, %v660
        %v694 = vadd.s32 %v691, %v661
        %v695 = vadd.s32 %v691, %v662
        %v696 = vadd.s32 %v691, %v663
        %v697 = vadd.s32 %v691, %v664
        %v698 = vadd.s32 %v691, %v665
        %v699 = vadd.s32 %v691, %v666
        %v700 = vadd.s32 %v691, %v667
        %v701 = vadd.s32 %v691, %v668
        %v702 = vadd.s32 %v691, %v669
        %v703 = vadd.s32 %v691, %v670
        %v704 = vadd.s32 %v691, %v671
        %v705 = vadd.s32 %v691, %v672
        %v706 = vadd.s32 %v691, %v673
        %v707 = vadd.s32 %v691, %v674
        %v708 = vadd.s32 %v691, %v675
        %v709 = vadd.s32 %v691, %v676
        %v710 = vadd.s32 %v691, %v677
        %v711 = vadd.s32 %v691, %v678
        %v712 = vadd.s32 %v691, %v679
        %v713 = vadd.s32 %v691, %v680
        %v714 = vadd.s32 %v691, %v681
        %v715 = vadd.s32 %v691, %v682
        %v716 = vadd.s32 %v691, %v683
        %v717 = vadd.s32 %v691, %v684
        %v718 = vadd.s32 %v691, %v685
        %v719 = vadd.s32 %v691, %v686
        %v720 = vadd.s32 %v691, %v687
        %v721 = vadd.s32 %v691, %v688
        %v722 = vadd.s32 %v691, %v689
        %v723 = vadd.s32 %v691, %v690
        %vm724 = vcmp.lt.s32.totalorder %v692, 512
        %vm725 = vcmp.lt.s32.totalorder %v693, 512
        %vm726 = vcmp.lt.s32.totalorder %v694, 512
        %vm727 = vcmp.lt.s32.totalorder %v695, 512
        %vm728 = vcmp.lt.s32.totalorder %v696, 512
        %vm729 = vcmp.lt.s32.totalorder %v697, 512
        %vm730 = vcmp.lt.s32.totalorder %v698, 512
        %vm731 = vcmp.lt.s32.totalorder %v699, 512
        %vm732 = vcmp.lt.s32.totalorder %v700, 512
        %vm733 = vcmp.lt.s32.totalorder %v701, 512
        %vm734 = vcmp.lt.s32.totalorder %v702, 512
        %vm735 = vcmp.lt.s32.totalorder %v703, 512
        %vm736 = vcmp.lt.s32.totalorder %v704, 512
        %vm737 = vcmp.lt.s32.totalorder %v705, 512
        %vm738 = vcmp.lt.s32.totalorder %v706, 512
        %vm739 = vcmp.lt.s32.totalorder %v707, 512
        %vm740 = vcmp.lt.s32.totalorder %v708, 512
        %vm741 = vcmp.lt.s32.totalorder %v709, 512
        %vm742 = vcmp.lt.s32.totalorder %v710, 512
        %vm743 = vcmp.lt.s32.totalorder %v711, 512
        %vm744 = vcmp.lt.s32.totalorder %v712, 512
        %vm745 = vcmp.lt.s32.totalorder %v713, 512
        %vm746 = vcmp.lt.s32.totalorder %v714, 512
        %vm747 = vcmp.lt.s32.totalorder %v715, 512
        %vm748 = vcmp.lt.s32.totalorder %v716, 512
        %vm749 = vcmp.lt.s32.totalorder %v717, 512
        %vm750 = vcmp.lt.s32.totalorder %v718, 512
        %vm751 = vcmp.lt.s32.totalorder %v719, 512
        %vm752 = vcmp.lt.s32.totalorder %v720, 512
        %vm753 = vcmp.lt.s32.totalorder %v721, 512
        %vm754 = vcmp.lt.s32.totalorder %v722, 512
        %vm755 = vcmp.lt.s32.totalorder %v723, 512
        %v756 = vsel %vm724, %v531, 0.0
        %v757 = vsel %vm725, %v534, 0.0
        %v758 = vsel %vm726, %v539, 0.0
        %v759 = vsel %vm727, %v542, 0.0
        %v760 = vsel %vm728, %v547, 0.0
        %v761 = vsel %vm729, %v550, 0.0
        %v762 = vsel %vm730, %v555, 0.0
        %v763 = vsel %vm731, %v558, 0.0
        %v764 = vsel %vm732, %v563, 0.0
        %v765 = vsel %vm733, %v566, 0.0
        %v766 = vsel %vm734, %v571, 0.0
        %v767 = vsel %vm735, %v574, 0.0
        %v768 = vsel %vm736, %v579, 0.0
        %v769 = vsel %vm737, %v582, 0.0
        %v770 = vsel %vm738, %v587, 0.0
        %v771 = vsel %vm739, %v590, 0.0
        %v772 = vsel %vm740, %v595, 0.0
        %v773 = vsel %vm741, %v598, 0.0
        %v774 = vsel %vm742, %v603, 0.0
        %v775 = vsel %vm743, %v606, 0.0
        %v776 = vsel %vm744, %v611, 0.0
        %v777 = vsel %vm745, %v614, 0.0
        %v778 = vsel %vm746, %v619, 0.0
        %v779 = vsel %vm747, %v622, 0.0
        %v780 = vsel %vm748, %v627, 0.0
        %v781 = vsel %vm749, %v630, 0.0
        %v782 = vsel %vm750, %v635, 0.0
        %v783 = vsel %vm751, %v638, 0.0
        %v784 = vsel %vm752, %v643, 0.0
        %v785 = vsel %vm753, %v646, 0.0
        %v786 = vsel %vm754, %v651, 0.0
        %v787 = vsel %vm755, %v654, 0.0
        %v788 = vadd.f32 %v756, %v757
        %v789 = vadd.f32 %v788, %v758
        %v790 = vadd.f32 %v789, %v759
        %v791 = vadd.f32 %v790, %v760
        %v792 = vadd.f32 %v791, %v761
        %v793 = vadd.f32 %v792, %v762
        %v794 = vadd.f32 %v793, %v763
        %v795 = vadd.f32 %v794, %v764
        %v796 = vadd.f32 %v795, %v765
        %v797 = vadd.f32 %v796, %v766
        %v798 = vadd.f32 %v797, %v767
        %v799 = vadd.f32 %v798, %v768
        %v800 = vadd.f32 %v799, %v769
        %v801 = vadd.f32 %v800, %v770
        %v802 = vadd.f32 %v801, %v771
        %v803 = vadd.f32 %v802, %v772
        %v804 = vadd.f32 %v803, %v773
        %v805 = vadd.f32 %v804, %v774
        %v806 = vadd.f32 %v805, %v775
        %v807 = vadd.f32 %v806, %v776
        %v808 = vadd.f32 %v807, %v777
        %v809 = vadd.f32 %v808, %v778
        %v810 = vadd.f32 %v809, %v779
        %v811 = vadd.f32 %v810, %v780
        %v812 = vadd.f32 %v811, %v781
        %v813 = vadd.f32 %v812, %v782
        %v814 = vadd.f32 %v813, %v783
        %v815 = vadd.f32 %v814, %v784
        %v816 = vadd.f32 %v815, %v785
        %v817 = vadd.f32 %v816, %v786
        %v818 = vadd.f32 %v817, %v787
        %v819 = vrot.slane %v818, 4
        %v820 = vadd.f32 %v818, %v819
        %v821 = vrot.slane %v820, 2
        %v822 = vadd.f32 %v820, %v821
        %v823 = vrot.slane %v822, 1
        %v824 = vadd.f32 %v822, %v823
        %825 = vst [vmem:[%s253] sm:$0x1] %v824
        %v826 = vmul.f32 %v756, %v756
        %v827 = vmul.f32 %v757, %v757
        %v828 = vmul.f32 %v758, %v758
        %v829 = vmul.f32 %v759, %v759
        %v830 = vmul.f32 %v760, %v760
        %v831 = vmul.f32 %v761, %v761
        %v832 = vmul.f32 %v762, %v762
        %v833 = vmul.f32 %v763, %v763
        %v834 = vmul.f32 %v764, %v764
        %v835 = vmul.f32 %v765, %v765
        %v836 = vmul.f32 %v766, %v766
        %v837 = vmul.f32 %v767, %v767
        %v838 = vmul.f32 %v768, %v768
        %v839 = vmul.f32 %v769, %v769
        %v840 = vmul.f32 %v770, %v770
        %v841 = vmul.f32 %v771, %v771
        %v842 = vmul.f32 %v772, %v772
        %v843 = vmul.f32 %v773, %v773
        %v844 = vmul.f32 %v774, %v774
        %v845 = vmul.f32 %v775, %v775
        %v846 = vmul.f32 %v776, %v776
        %v847 = vmul.f32 %v777, %v777
        %v848 = vmul.f32 %v778, %v778
        %v849 = vmul.f32 %v779, %v779
        %v850 = vmul.f32 %v780, %v780
        %v851 = vmul.f32 %v781, %v781
        %v852 = vmul.f32 %v782, %v782
        %v853 = vmul.f32 %v783, %v783
        %v854 = vmul.f32 %v784, %v784
        %v855 = vmul.f32 %v785, %v785
        %v856 = vmul.f32 %v786, %v786
        %v857 = vmul.f32 %v787, %v787
        %v858 = vadd.f32 %v826, %v827
        %v859 = vadd.f32 %v858, %v828
        %v860 = vadd.f32 %v859, %v829
        %v861 = vadd.f32 %v860, %v830
        %v862 = vadd.f32 %v861, %v831
        %v863 = vadd.f32 %v862, %v832
        %v864 = vadd.f32 %v863, %v833
        %v865 = vadd.f32 %v864, %v834
        %v866 = vadd.f32 %v865, %v835
        %v867 = vadd.f32 %v866, %v836
        %v868 = vadd.f32 %v867, %v837
        %v869 = vadd.f32 %v868, %v838
        %v870 = vadd.f32 %v869, %v839
        %v871 = vadd.f32 %v870, %v840
        %v872 = vadd.f32 %v871, %v841
        %v873 = vadd.f32 %v872, %v842
        %v874 = vadd.f32 %v873, %v843
        %v875 = vadd.f32 %v874, %v844
        %v876 = vadd.f32 %v875, %v845
        %v877 = vadd.f32 %v876, %v846
        %v878 = vadd.f32 %v877, %v847
        %v879 = vadd.f32 %v878, %v848
        %v880 = vadd.f32 %v879, %v849
        %v881 = vadd.f32 %v880, %v850
        %v882 = vadd.f32 %v881, %v851
        %v883 = vadd.f32 %v882, %v852
        %v884 = vadd.f32 %v883, %v853
        %v885 = vadd.f32 %v884, %v854
        %v886 = vadd.f32 %v885, %v855
        %v887 = vadd.f32 %v886, %v856
        %v888 = vadd.f32 %v887, %v857
        %v889 = vrot.slane %v888, 4
        %v890 = vadd.f32 %v888, %v889
        %v891 = vrot.slane %v890, 2
        %v892 = vadd.f32 %v890, %v891
        %v893 = vrot.slane %v892, 1
        %v894 = vadd.f32 %v892, %v893
        %895 = vst [vmem:[%s253 + $0x1] sm:$0x1] %v894
        %v896 = vpack.c.bf16 %v534, %v531
        %v897 = vpack.c.bf16 %v542, %v539
        %v898 = vpack.c.bf16 %v550, %v547
        %v899 = vpack.c.bf16 %v558, %v555
        %v900 = vpack.c.bf16 %v566, %v563
        %v901 = vpack.c.bf16 %v574, %v571
        %v902 = vpack.c.bf16 %v582, %v579
        %v903 = vpack.c.bf16 %v590, %v587
        %v904 = vpack.c.bf16 %v598, %v595
        %v905 = vpack.c.bf16 %v606, %v603
        %v906 = vpack.c.bf16 %v614, %v611
        %v907 = vpack.c.bf16 %v622, %v619
        %v908 = vpack.c.bf16 %v630, %v627
        %v909 = vpack.c.bf16 %v638, %v635
        %v910 = vpack.c.bf16 %v646, %v643
        %v911 = vpack.c.bf16 %v654, %v651
        %v928 = vunpack.c.l.b16 %v896
        %v929 = vunpack.c.h.b16 %v896
        %v930 = vunpack.c.l.b16 %v897
        %v931 = vunpack.c.h.b16 %v897
        %v932 = vunpack.c.l.b16 %v898
        %v933 = vunpack.c.h.b16 %v898
        %v934 = vunpack.c.l.b16 %v899
        %v935 = vunpack.c.h.b16 %v899
        %v936 = vunpack.c.l.b16 %v900
        %v937 = vunpack.c.h.b16 %v900
        %v938 = vunpack.c.l.b16 %v901
        %v939 = vunpack.c.h.b16 %v901
        %v940 = vunpack.c.l.b16 %v902
        %v941 = vunpack.c.h.b16 %v902
        %v942 = vunpack.c.l.b16 %v903
        %v943 = vunpack.c.h.b16 %v903
        %v944 = vunpack.c.l.b16 %v904
        %v945 = vunpack.c.h.b16 %v904
        %v946 = vunpack.c.l.b16 %v905
        %v947 = vunpack.c.h.b16 %v905
        %v948 = vunpack.c.l.b16 %v906
        %v949 = vunpack.c.h.b16 %v906
        %v950 = vunpack.c.l.b16 %v907
        %v951 = vunpack.c.h.b16 %v907
        %v952 = vunpack.c.l.b16 %v908
        %v953 = vunpack.c.h.b16 %v908
        %v954 = vunpack.c.l.b16 %v909
        %v955 = vunpack.c.h.b16 %v909
        %v956 = vunpack.c.l.b16 %v910
        %v957 = vunpack.c.h.b16 %v910
        %v958 = vunpack.c.l.b16 %v911
        %v959 = vunpack.c.h.b16 %v911
        %v960 = vpack.c.b16 %v928, %v928
        %v961 = vpack.c.b16 %v929, %v929
        %v962 = vpack.c.b16 %v930, %v930
        %v963 = vpack.c.b16 %v931, %v931
        %v964 = vpack.c.b16 %v932, %v932
        %v965 = vpack.c.b16 %v933, %v933
        %v966 = vpack.c.b16 %v934, %v934
        %v967 = vpack.c.b16 %v935, %v935
        %v968 = vpack.c.b16 %v936, %v936
        %v969 = vpack.c.b16 %v937, %v937
        %v970 = vpack.c.b16 %v938, %v938
        %v971 = vpack.c.b16 %v939, %v939
        %v972 = vpack.c.b16 %v940, %v940
        %v973 = vpack.c.b16 %v941, %v941
        %v974 = vpack.c.b16 %v942, %v942
        %v975 = vpack.c.b16 %v943, %v943
        %v976 = vpack.c.b16 %v944, %v944
        %v977 = vpack.c.b16 %v945, %v945
        %v978 = vpack.c.b16 %v946, %v946
        %v979 = vpack.c.b16 %v947, %v947
        %v980 = vpack.c.b16 %v948, %v948
        %v981 = vpack.c.b16 %v949, %v949
        %v982 = vpack.c.b16 %v950, %v950
        %v983 = vpack.c.b16 %v951, %v951
        %v984 = vpack.c.b16 %v952, %v952
        %v985 = vpack.c.b16 %v953, %v953
        %v986 = vpack.c.b16 %v954, %v954
        %v987 = vpack.c.b16 %v955, %v955
        %v988 = vpack.c.b16 %v956, %v956
        %v989 = vpack.c.b16 %v957, %v957
        %v990 = vpack.c.b16 %v958, %v958
        %v991 = vpack.c.b16 %v959, %v959
        %1024 = vst [vmem:[%s264] sm:$0xf] %v960
        %1025 = vst [vmem:[%s264 + $0x4] sm:$0xf] %v961
        %1026 = vst [vmem:[%s264 + $0x8] sm:$0xf] %v962
        %1027 = vst [vmem:[%s264 + $0xc] sm:$0xf] %v963
        %1028 = vst [vmem:[%s264 + $0x10] sm:$0xf] %v964
        %1029 = vst [vmem:[%s264 + $0x14] sm:$0xf] %v965
        %1030 = vst [vmem:[%s264 + $0x18] sm:$0xf] %v966
        %1031 = vst [vmem:[%s264 + $0x1c] sm:$0xf] %v967
        %1032 = vst [vmem:[%s264 + $0x20] sm:$0xf] %v968
        %1033 = vst [vmem:[%s264 + $0x24] sm:$0xf] %v969
        %1034 = vst [vmem:[%s264 + $0x28] sm:$0xf] %v970
        %1035 = vst [vmem:[%s264 + $0x2c] sm:$0xf] %v971
        %1036 = vst [vmem:[%s264 + $0x30] sm:$0xf] %v972
        %1037 = vst [vmem:[%s264 + $0x34] sm:$0xf] %v973
        %1038 = vst [vmem:[%s264 + $0x38] sm:$0xf] %v974
        %1039 = vst [vmem:[%s264 + $0x3c] sm:$0xf] %v975
        %1040 = vst [vmem:[%s264 + $0x40] sm:$0xf] %v976
        %1041 = vst [vmem:[%s264 + $0x44] sm:$0xf] %v977
        %1042 = vst [vmem:[%s264 + $0x48] sm:$0xf] %v978
        %1043 = vst [vmem:[%s264 + $0x4c] sm:$0xf] %v979
        %1044 = vst [vmem:[%s264 + $0x50] sm:$0xf] %v980
        %1045 = vst [vmem:[%s264 + $0x54] sm:$0xf] %v981
        %1046 = vst [vmem:[%s264 + $0x58] sm:$0xf] %v982
        %1047 = vst [vmem:[%s264 + $0x5c] sm:$0xf] %v983
        %1048 = vst [vmem:[%s264 + $0x60] sm:$0xf] %v984
        %1049 = vst [vmem:[%s264 + $0x64] sm:$0xf] %v985
        %1050 = vst [vmem:[%s264 + $0x68] sm:$0xf] %v986
        %1051 = vst [vmem:[%s264 + $0x6c] sm:$0xf] %v987
        %1052 = vst [vmem:[%s264 + $0x70] sm:$0xf] %v988
        %1053 = vst [vmem:[%s264 + $0x74] sm:$0xf] %v989
        %1054 = vst [vmem:[%s264 + $0x78] sm:$0xf] %v990
        %1055 = vst [vmem:[%s264 + $0x7c] sm:$0xf] %v991
        %s1056 = smul.u32 32, %s21
        %p1057 = scmp.lt.s32.totalorder %s1056, 63
        %s1058 = scalar_select %p1057, %s1056, 63
        %s1059 = smul.addr %s1058, 4
        %s1060 = scalar_lea.vmem %s5, %s1059
        %s1061 = sand.u32 %s165, 1
        %s1062 = scalar_lea.sflag [#allocation3], %s1061
        %s1063 = sand.u32 %s165, 1
        %s1064 = smul.addr %s1063, 2
        %s1065 = scalar_lea.vmem [#allocation2], %s1064
        // Predicated region
        $region41: #{_lambda_.10} parent=39 // pred_check
          %p1066 = pneg %p149
        $region42: #{_lambda_.10} parent=39 // pred_check_branch
          %1068 = sbr.rel (%p1066) target = $region44
        $region43: #{_lambda_.10} parent=39 // pred_region
          %s1069 = smul.u32 32, %s21
        $region44: #{_lambda_.10} parent=39 // pred_fallthru
          _
        // Predicated region
        $region45: #{_lambda_.10} parent=39 // pred_check
          %p1070 = pneg %p175
        $region46: #{_lambda_.10} parent=39 // pred_check_branch
          %1072 = sbr.rel (%p1070) target = $region48
        $region47: #{_lambda_.10} parent=39 // pred_region
          %s1074 = ssub.s32 32, 32
          %1075 = vsyncadd %s1062, %s1074
          %s1076 = smul.addr %s21, 32
          %s1077 = scalar_lea.hbm %s6, %s1076
          %s1079 = sshll.u32 %s1065, 4
          %s1080 = int_to_ptr.vmem [resolvable:$true] %s1079
          %1082 = dma.vmem_to_hbm [thread:$0]  %s1080, 32, %s1077, %s1062
        $region48: #{_lambda_.10} parent=39 // pred_fallthru
          _
      $region40: #{_lambda_.10} parent=5 // pred_fallthru
        _
      %p1083 = scmp.le.s32.totalorder 2, %s16
      // Predicated region
      $region49: #{_lambda_.10} parent=5 // pred_check
        %p1084 = pneg %p1083
      $region50: #{_lambda_.10} parent=5 // pred_check_branch
        %1086 = sbr.rel (%p1084) target = $region52
      $region51: #{_lambda_.10} parent=5 // pred_region
        %s1087 = ssub.s32 %s16, 2
        // Predicated region
        $region53: #{_lambda_.10} parent=51 // pred_check
          %p1088 = pneg %p155
        $region54: #{_lambda_.10} parent=51 // pred_check_branch
          %1090 = sbr.rel (%p1088) target = $region56
        $region55: #{_lambda_.10} parent=51 // pred_region
          %s1091 = smul.u32 32, %s22
          %p1092 = scmp.lt.s32.totalorder %s1091, 63
          %s1093 = scalar_select %p1092, %s1091, 63
          %s1094 = smul.addr %s1093, 4
          %s1095 = scalar_lea.vmem %s5, %s1094
        $region56: #{_lambda_.10} parent=51 // pred_fallthru
          _
        // Predicated region
        $region57: #{_lambda_.10} parent=51 // pred_check
          %p1096 = pneg %p181
        $region58: #{_lambda_.10} parent=51 // pred_check_branch
          %1098 = sbr.rel (%p1096) target = $region60
        $region59: #{_lambda_.10} parent=51 // pred_region
          %s1099 = sand.u32 %s166, 1
          %s1100 = scalar_lea.sflag [#allocation3], %s1099
          %s1101 = sand.u32 %s166, 1
          %s1102 = smul.addr %s1101, 2
          %s1103 = scalar_lea.vmem [#allocation2], %s1102
          %1104 = dma.done %s1100, 32
        $region60: #{_lambda_.10} parent=51 // pred_fallthru
          _
      $region52: #{_lambda_.10} parent=5 // pred_fallthru
        _
    $region6: #{_lambda_.10} parent=1 // loop_footer
      %s20 = sadd.s32 1, %s16
    $region7: #{_lambda_.10} parent=1 // loop_footer_branch
      %15 = sbr.rel target = $region3
    $region8: #{_lambda_.10} parent=1 // loop_exit
      _
    %1105 = vsyncpa [#allocation3], 1
    %s1106 = scalar_lea.sflag [#allocation3], 1
    %1107 = vsyncpa %s1106, 1

// kernel: tile.113
$region0: #{tile.113}
  #allocation0 [shape = 's32[1]{0}', space=sflag, size = 0x4, scoped, tag = 'scoped memory for tile.113']
  %s0 = inlined_call_operand.<no memory space> [shape: f32[], index: 0, kind: input, shape index: {}]
  %s1 = inlined_call_operand.vmem [shape: f32[72], index: 1, kind: output, shape index: {}]
  %v2 = vstv %s0
  %3 = vst [vmem:[%s1] sm:$0x1] %v2

// kernel: tile.222
$region0: #{tile.222}
  #allocation0 [shape = 's32[1]{0}', space=sflag, size = 0x4, scoped, tag = 'scoped memory for tile.222']
  %s0 = inlined_call_operand.vmem [shape: f32[3], index: 0, kind: input, shape index: {}]
  %s1 = inlined_call_operand.vmem [shape: f32[4,3], index: 1, kind: output, shape index: {}]
  // Predicated region
  $region2: #{tile.222} parent=0 // pred_check
    _
  $region3: #{tile.222} parent=0 // pred_check_branch
    %3 = sbr.rel (0) target = $region5
  $region4: #{tile.222} parent=0 // pred_region
    _
  $region5: #{tile.222} parent=0 // pred_fallthru
    _
  %v4 = vld [vmem:[%s0] ss:$0 sm:$0xff]
  %5 = vst [vmem:[%s1] sm:$0xf] %v4

// kernel: tile.223
$region0: #{tile.223}
  %s0 = inlined_call_operand.vmem [shape: f32[4,3], index: 0, kind: input, shape index: {}]
  %s1 = inlined_call_operand.vmem [shape: f32[12], index: 1, kind: output, shape index: {}]
  $region1: #{tile.223} parent=0
    #allocation0 [shape = 'u8[4096]{0}', space=vmem, size = 0x1000, scoped, tag = 'scoped mem for output reshape']
    #allocation1 [shape = 'u8[4096]{0}', space=vmem, size = 0x1000, scoped, tag = 'scoped mem for input reshape']
    %s3 = sshllo.u32 0, 4
    %v4 = vld [vmem:[%s0] sm:%s3]
    %5 = vst [vmem:[#allocation1] sm:%s3] %v4
    %v6 = vld [vmem:[#allocation1] sm:$0x1]
    %vm7 = vcmask 23552
    %8 = vst.msk [vmem:[#allocation0] sm:$0x1] %vm7, %v6
    %s9 = scalar_lea.vmem [#allocation1], 3
    %v10 = vld [vmem:[%s9] sm:$0x1]
    %11 = vrot.lane.b32.xlu0 %v10, 9
    %v12 = vpop.permute.xlu0 %11
    %vm13 = vcmask 97352
    %14 = vst.msk [vmem:[#allocation0] sm:$0x1] %vm13, %v12
    %s15 = scalar_lea.vmem [#allocation1], 2
    %v16 = vld [vmem:[%s15] sm:$0x1]
    %17 = vrot.lane.b32.xlu0 %v16, 6
    %v18 = vpop.permute.xlu0 %17
    %vm19 = vcmask 72752
    %20 = vst.msk [vmem:[#allocation0] sm:$0x1] %vm19, %v18
    %s21 = scalar_lea.vmem [#allocation1], 1
    %v22 = vld [vmem:[%s21] sm:$0x1]
    %23 = vrot.lane.b32.xlu0 %v22, 3
    %v24 = vpop.permute.xlu0 %23
    %vm25 = vcmask 48152
    %26 = vst.msk [vmem:[#allocation0] sm:$0x1] %vm25, %v24
    %s28 = sshllo.u32 0, 1
    %v30 = vld [vmem:[#allocation0] sm:%s28]
    %s31 = sshllo.u32 0, 1
    %32 = vst [vmem:[%s1] sm:%s31] %v30

// kernel: _lambda_.11
$region0: #{_lambda_.11}
  #allocation0 [shape = 'u32[]', space=smem, size = 0x4, offset = 0x4, fixed_abs, tag = 'smem constant byte address 0x4 - core index']
  #allocation1 [shape = 'u32[144,128]{1,0:T(1,128)}', space=vmem, size = 0x12000, scoped, tag = 'internal scratch']
  %s0 = inlined_call_operand.vmem [shape: bf16[128,128], index: 0, kind: input, shape index: {}]
  %s1 = inlined_call_operand.vmem [shape: bf16[128,128], index: 1, kind: input, shape index: {}]
  %s2 = inlined_call_operand.vmem [shape: f32[1,128], index: 2, kind: input, shape index: {}]
  %s3 = inlined_call_operand.vmem [shape: f32[1,128], index: 3, kind: input, shape index: {}, may-alias: {3,4}]
  %s4 = inlined_call_operand.vmem [shape: f32[1,128], index: 4, kind: input, shape index: {}, may-alias: {3,4}]
  %s5 = inlined_call_operand.vmem [shape: bf16[128,128], index: 5, kind: output, shape index: {0}]
  %s6 = inlined_call_operand.vmem [shape: f32[1,2,128], index: 6, kind: output, shape index: {1}]
  %7 = xla_tuple %s5, %s6
  %s8 = sld [smem:[#allocation0]]
  $region38: #{_lambda_.11} parent=0
    _
  %s10 = ssub.s32 1, %s8
  %s11 = scalar_select 0, %s10, %s8
  // Predicated region
  $region2: #{_lambda_.11} parent=0 // pred_check
    _
  $region3: #{_lambda_.11} parent=0 // pred_check_branch
    %13 = sbr.rel (0) target = $region5
  $region4: #{_lambda_.11} parent=0 // pred_region
    _
  $region5: #{_lambda_.11} parent=0 // pred_fallthru
    _
  // Predicated region
  $region6: #{_lambda_.11} parent=0 // pred_check
    _
  $region7: #{_lambda_.11} parent=0 // pred_check_branch
    %15 = sbr.rel (0) target = $region9
  $region8: #{_lambda_.11} parent=0 // pred_region
    _
  $region9: #{_lambda_.11} parent=0 // pred_fallthru
    _
  // Predicated region
  $region10: #{_lambda_.11} parent=0 // pred_check
    _
  $region11: #{_lambda_.11} parent=0 // pred_check_branch
    %17 = sbr.rel (0) target = $region13
  $region12: #{_lambda_.11} parent=0 // pred_region
    _
  $region13: #{_lambda_.11} parent=0 // pred_fallthru
    _
  // Predicated region
  $region14: #{_lambda_.11} parent=0 // pred_check
    _
  $region15: #{_lambda_.11} parent=0 // pred_check_branch
    %19 = sbr.rel (0) target = $region17
  $region16: #{_lambda_.11} parent=0 // pred_region
    _
  $region17: #{_lambda_.11} parent=0 // pred_fallthru
    _
  // Predicated region
  $region18: #{_lambda_.11} parent=0 // pred_check
    _
  $region19: #{_lambda_.11} parent=0 // pred_check_branch
    %21 = sbr.rel (0) target = $region21
  $region20: #{_lambda_.11} parent=0 // pred_region
    _
  $region21: #{_lambda_.11} parent=0 // pred_fallthru
    _
  %v23 = vld [vmem:[%s0] sm:$0xf]
  %v24 = vld [vmem:[%s0 + $0x4] sm:$0xf]
  %v25 = vld [vmem:[%s0 + $0x8] sm:$0xf]
  %v26 = vld [vmem:[%s0 + $0xc] sm:$0xf]
  %v27 = vld [vmem:[%s0 + $0x10] sm:$0xf]
  %v28 = vld [vmem:[%s0 + $0x14] sm:$0xf]
  %v29 = vld [vmem:[%s0 + $0x18] sm:$0xf]
  %v30 = vld [vmem:[%s0 + $0x1c] sm:$0xf]
  %v31 = vld [vmem:[%s0 + $0x20] sm:$0xf]
  %v32 = vld [vmem:[%s0 + $0x24] sm:$0xf]
  %v33 = vld [vmem:[%s0 + $0x28] sm:$0xf]
  %v34 = vld [vmem:[%s0 + $0x2c] sm:$0xf]
  %v35 = vld [vmem:[%s0 + $0x30] sm:$0xf]
  %v36 = vld [vmem:[%s0 + $0x34] sm:$0xf]
  %v37 = vld [vmem:[%s0 + $0x38] sm:$0xf]
  %v38 = vld [vmem:[%s0 + $0x3c] sm:$0xf]
  %v39 = vunpack.c.l.bf16 %v23
  %v40 = vunpack.c.l.bf16 %v24
  %v41 = vunpack.c.l.bf16 %v25
  %v42 = vunpack.c.l.bf16 %v26
  %v43 = vunpack.c.l.bf16 %v27
  %v44 = vunpack.c.l.bf16 %v28
  %v45 = vunpack.c.l.bf16 %v29
  %v46 = vunpack.c.l.bf16 %v30
  %v47 = vunpack.c.l.bf16 %v31
  %v48 = vunpack.c.l.bf16 %v32
  %v49 = vunpack.c.l.bf16 %v33
  %v50 = vunpack.c.l.bf16 %v34
  %v51 = vunpack.c.l.bf16 %v35
  %v52 = vunpack.c.l.bf16 %v36
  %v53 = vunpack.c.l.bf16 %v37
  %v54 = vunpack.c.l.bf16 %v38
  %v55 = vld [vmem:[%s2] sm:$0x1]
  %v57 = vlaneseq
  %v58 = vshrl.u32 %v57, 7
  %v59 = vsub.s32 0, %v58
  %v60 = vrot.slane %v55, %v59
  %v62 = vmul.f32 %v39, %v60
  %v63 = vmul.f32 %v40, %v60
  %v64 = vmul.f32 %v41, %v60
  %v65 = vmul.f32 %v42, %v60
  %v66 = vmul.f32 %v43, %v60
  %v67 = vmul.f32 %v44, %v60
  %v68 = vmul.f32 %v45, %v60
  %v69 = vmul.f32 %v46, %v60
  %v70 = vmul.f32 %v47, %v60
  %v71 = vmul.f32 %v48, %v60
  %v72 = vmul.f32 %v49, %v60
  %v73 = vmul.f32 %v50, %v60
  %v74 = vmul.f32 %v51, %v60
  %v75 = vmul.f32 %v52, %v60
  %v76 = vmul.f32 %v53, %v60
  %v77 = vmul.f32 %v54, %v60
  %v78 = vld [vmem:[%s3] sm:$0x1]
  %v80 = vlaneseq
  %v81 = vshrl.u32 %v80, 7
  %v82 = vsub.s32 0, %v81
  %v83 = vrot.slane %v78, %v82
  %v85 = vadd.f32 %v62, %v83
  %v86 = vadd.f32 %v63, %v83
  %v87 = vadd.f32 %v64, %v83
  %v88 = vadd.f32 %v65, %v83
  %v89 = vadd.f32 %v66, %v83
  %v90 = vadd.f32 %v67, %v83
  %v91 = vadd.f32 %v68, %v83
  %v92 = vadd.f32 %v69, %v83
  %v93 = vadd.f32 %v70, %v83
  %v94 = vadd.f32 %v71, %v83
  %v95 = vadd.f32 %v72, %v83
  %v96 = vadd.f32 %v73, %v83
  %v97 = vadd.f32 %v74, %v83
  %v98 = vadd.f32 %v75, %v83
  %v99 = vadd.f32 %v76, %v83
  %v100 = vadd.f32 %v77, %v83
  %vm101 = vcmp.ge.f32.partialorder %v85, 0.0
  %vm102 = vcmp.ge.f32.partialorder %v86, 0.0
  %vm103 = vcmp.ge.f32.partialorder %v87, 0.0
  %vm104 = vcmp.ge.f32.partialorder %v88, 0.0
  %vm105 = vcmp.ge.f32.partialorder %v89, 0.0
  %vm106 = vcmp.ge.f32.partialorder %v90, 0.0
  %vm107 = vcmp.ge.f32.partialorder %v91, 0.0
  %vm108 = vcmp.ge.f32.partialorder %v92, 0.0
  %vm109 = vcmp.ge.f32.partialorder %v93, 0.0
  %vm110 = vcmp.ge.f32.partialorder %v94, 0.0
  %vm111 = vcmp.ge.f32.partialorder %v95, 0.0
  %vm112 = vcmp.ge.f32.partialorder %v96, 0.0
  %vm113 = vcmp.ge.f32.partialorder %v97, 0.0
  %vm114 = vcmp.ge.f32.partialorder %v98, 0.0
  %vm115 = vcmp.ge.f32.partialorder %v99, 0.0
  %vm116 = vcmp.ge.f32.partialorder %v100, 0.0
  %v117 = vmul.f32 %v85, 0.2
  %v118 = vmul.f32 %v86, 0.2
  %v119 = vmul.f32 %v87, 0.2
  %v120 = vmul.f32 %v88, 0.2
  %v121 = vmul.f32 %v89, 0.2
  %v122 = vmul.f32 %v90, 0.2
  %v123 = vmul.f32 %v91, 0.2
  %v124 = vmul.f32 %v92, 0.2
  %v125 = vmul.f32 %v93, 0.2
  %v126 = vmul.f32 %v94, 0.2
  %v127 = vmul.f32 %v95, 0.2
  %v128 = vmul.f32 %v96, 0.2
  %v129 = vmul.f32 %v97, 0.2
  %v130 = vmul.f32 %v98, 0.2
  %v131 = vmul.f32 %v99, 0.2
  %v132 = vmul.f32 %v100, 0.2
  %v133 = vsel %vm101, %v85, %v117
  %v134 = vsel %vm102, %v86, %v118
  %v135 = vsel %vm103, %v87, %v119
  %v136 = vsel %vm104, %v88, %v120
  %v137 = vsel %vm105, %v89, %v121
  %v138 = vsel %vm106, %v90, %v122
  %v139 = vsel %vm107, %v91, %v123
  %v140 = vsel %vm108, %v92, %v124
  %v141 = vsel %vm109, %v93, %v125
  %v142 = vsel %vm110, %v94, %v126
  %v143 = vsel %vm111, %v95, %v127
  %v144 = vsel %vm112, %v96, %v128
  %v145 = vsel %vm113, %v97, %v129
  %v146 = vsel %vm114, %v98, %v130
  %v147 = vsel %vm115, %v99, %v131
  %v148 = vsel %vm116, %v100, %v132
  %v149 = vpack.c.bf16 %v134, %v133
  %v150 = vpack.c.bf16 %v136, %v135
  %v151 = vpack.c.bf16 %v138, %v137
  %v152 = vpack.c.bf16 %v140, %v139
  %v153 = vpack.c.bf16 %v142, %v141
  %v154 = vpack.c.bf16 %v144, %v143
  %v155 = vpack.c.bf16 %v146, %v145
  %v156 = vpack.c.bf16 %v148, %v147
  %v157 = vld [vmem:[%s1] sm:$0xf]
  %v158 = vld [vmem:[%s1 + $0x4] sm:$0xf]
  %v159 = vld [vmem:[%s1 + $0x8] sm:$0xf]
  %v160 = vld [vmem:[%s1 + $0xc] sm:$0xf]
  %v161 = vld [vmem:[%s1 + $0x10] sm:$0xf]
  %v162 = vld [vmem:[%s1 + $0x14] sm:$0xf]
  %v163 = vld [vmem:[%s1 + $0x18] sm:$0xf]
  %v164 = vld [vmem:[%s1 + $0x1c] sm:$0xf]
  %v165 = vld [vmem:[%s1 + $0x20] sm:$0xf]
  %v166 = vld [vmem:[%s1 + $0x24] sm:$0xf]
  %v167 = vld [vmem:[%s1 + $0x28] sm:$0xf]
  %v168 = vld [vmem:[%s1 + $0x2c] sm:$0xf]
  %v169 = vld [vmem:[%s1 + $0x30] sm:$0xf]
  %v170 = vld [vmem:[%s1 + $0x34] sm:$0xf]
  %v171 = vld [vmem:[%s1 + $0x38] sm:$0xf]
  %v172 = vld [vmem:[%s1 + $0x3c] sm:$0xf]
  %v173 = vld [vmem:[%s4] sm:$0x1]
  %v175 = vlaneseq
  %v176 = vshrl.u32 %v175, 7
  %v177 = vsub.s32 0, %v176
  %v178 = vrot.slane %v173, %v177
  %v196 = vunpack.c.l.b16 %v157
  %v197 = vunpack.c.l.b16 %v158
  %v198 = vunpack.c.l.b16 %v159
  %v199 = vunpack.c.l.b16 %v160
  %v200 = vunpack.c.l.b16 %v161
  %v201 = vunpack.c.l.b16 %v162
  %v202 = vunpack.c.l.b16 %v163
  %v203 = vunpack.c.l.b16 %v164
  %v204 = vunpack.c.l.b16 %v165
  %v205 = vunpack.c.l.b16 %v166
  %v206 = vunpack.c.l.b16 %v167
  %v207 = vunpack.c.l.b16 %v168
  %v208 = vunpack.c.l.b16 %v169
  %v209 = vunpack.c.l.b16 %v170
  %v210 = vunpack.c.l.b16 %v171
  %v211 = vunpack.c.l.b16 %v172
  %v212 = vpack.c.b16 %v197, %v196
  %v213 = vpack.c.b16 %v199, %v198
  %v214 = vpack.c.b16 %v201, %v200
  %v215 = vpack.c.b16 %v203, %v202
  %v216 = vpack.c.b16 %v205, %v204
  %v217 = vpack.c.b16 %v207, %v206
  %v218 = vpack.c.b16 %v209, %v208
  %v219 = vpack.c.b16 %v211, %v210
  %228 = vmatprep.subr.bf16.mxu0 0
  %229 = vmatpush1.bf16.msra.mxu0 %v212
  %230 = vmatprep.subr.bf16.mxu0 0
  %231 = vmatpush1.bf16.msra.mxu0 %v213
  %232 = vmatprep.subr.bf16.mxu0 0
  %233 = vmatpush1.bf16.msra.mxu0 %v214
  %234 = vmatprep.subr.bf16.mxu0 0
  %235 = vmatpush1.bf16.msra.mxu0 %v215
  %236 = vmatprep.subr.bf16.mxu0 0
  %237 = vmatpush1.bf16.msra.mxu0 %v216
  %238 = vmatprep.subr.bf16.mxu0 0
  %239 = vmatpush1.bf16.msra.mxu0 %v217
  %240 = vmatprep.subr.bf16.mxu0 0
  %241 = vmatpush1.bf16.msra.mxu0 %v218
  %242 = vmatprep.subr.bf16.mxu0 0
  %243 = vmatpush1.bf16.msra.mxu0 %v219
  %244 = vmatprep.subr.bf16.mxu0 0
  %245 = vmatpush1.bf16.msra.mxu0 0
  %246 = vmatprep.subr.bf16.mxu0 0
  %247 = vmatpush1.bf16.msra.mxu0 0
  %248 = vmatprep.subr.bf16.mxu0 0
  %249 = vmatpush1.bf16.msra.mxu0 0
  %250 = vmatprep.subr.bf16.mxu0 0
  %251 = vmatpush1.bf16.msra.mxu0 0
  %252 = vmatprep.subr.bf16.mxu0 0
  %253 = vmatpush1.bf16.msra.mxu0 0
  %254 = vmatprep.subr.bf16.mxu0 0
  %255 = vmatpush1.bf16.msra.mxu0 0
  %256 = vmatprep.subr.bf16.mxu0 0
  %257 = vmatpush1.bf16.msra.mxu0 0
  %258 = vmatprep.subr.bf16.mxu0 0
  %259 = vmatpush1.bf16.msra.mxu0 0
  %260 = vmatprep.mubr.bf16.mxu0 0
  %261 = vmatmul.mubr.bf16.gmra.mrb[0].mxu0 %v149
  %v262 = vpop.f32.mrb[0].mxu0
  %v263 = vadd.f32 %v178, %v262
  %v264 = vpop.f32.mrb[0].mxu0
  %v265 = vpop.f32.mrb[0].mxu0
  %v266 = vadd.f32 %v178, %v265
  %v267 = vpop.f32.mrb[0].mxu0
  %268 = vmatprep.mubr.bf16.mxu0 0
  %269 = vmatmul.mubr.bf16.gmra.mrb[0].mxu0 %v150
  %v270 = vpop.f32.mrb[0].mxu0
  %v271 = vadd.f32 %v178, %v270
  %v272 = vpop.f32.mrb[0].mxu0
  %v273 = vpop.f32.mrb[0].mxu0
  %v274 = vadd.f32 %v178, %v273
  %v275 = vpop.f32.mrb[0].mxu0
  %276 = vmatprep.mubr.bf16.mxu0 0
  %277 = vmatmul.mubr.bf16.gmra.mrb[0].mxu0 %v151
  %v278 = vpop.f32.mrb[0].mxu0
  %v279 = vadd.f32 %v178, %v278
  %v280 = vpop.f32.mrb[0].mxu0
  %v281 = vpop.f32.mrb[0].mxu0
  %v282 = vadd.f32 %v178, %v281
  %v283 = vpop.f32.mrb[0].mxu0
  %284 = vmatprep.mubr.bf16.mxu0 0
  %285 = vmatmul.mubr.bf16.gmra.mrb[0].mxu0 %v152
  %v286 = vpop.f32.mrb[0].mxu0
  %v287 = vadd.f32 %v178, %v286
  %v288 = vpop.f32.mrb[0].mxu0
  %v289 = vpop.f32.mrb[0].mxu0
  %v290 = vadd.f32 %v178, %v289
  %v291 = vpop.f32.mrb[0].mxu0
  %292 = vmatprep.mubr.bf16.mxu0 0
  %293 = vmatmul.mubr.bf16.gmra.mrb[0].mxu0 %v153
  %v294 = vpop.f32.mrb[0].mxu0
  %v295 = vadd.f32 %v178, %v294
  %v296 = vpop.f32.mrb[0].mxu0
  %v297 = vpop.f32.mrb[0].mxu0
  %v298 = vadd.f32 %v178, %v297
  %v299 = vpop.f32.mrb[0].mxu0
  %300 = vmatprep.mubr.bf16.mxu0 0
  %301 = vmatmul.mubr.bf16.gmra.mrb[0].mxu0 %v154
  %v302 = vpop.f32.mrb[0].mxu0
  %v303 = vadd.f32 %v178, %v302
  %v304 = vpop.f32.mrb[0].mxu0
  %v305 = vpop.f32.mrb[0].mxu0
  %v306 = vadd.f32 %v178, %v305
  %v307 = vpop.f32.mrb[0].mxu0
  %308 = vmatprep.mubr.bf16.mxu0 0
  %309 = vmatmul.mubr.bf16.gmra.mrb[0].mxu0 %v155
  %v310 = vpop.f32.mrb[0].mxu0
  %v311 = vadd.f32 %v178, %v310
  %v312 = vpop.f32.mrb[0].mxu0
  %v313 = vpop.f32.mrb[0].mxu0
  %v314 = vadd.f32 %v178, %v313
  %v315 = vpop.f32.mrb[0].mxu0
  %316 = vmatprep.mubr.bf16.mxu0 0
  %317 = vmatmul.mubr.bf16.gmra.mrb[0].mxu0 %v156
  %v318 = vpop.f32.mrb[0].mxu0
  %v319 = vadd.f32 %v178, %v318
  %v320 = vpop.f32.mrb[0].mxu0
  %v321 = vpop.f32.mrb[0].mxu0
  %v322 = vadd.f32 %v178, %v321
  %v323 = vpop.f32.mrb[0].mxu0
  %324 = vdwg.mxu0
  %s325 = smul.u32 0, 128
  %v326 = vlaneseq
  %v327 = vshrl.u32 %v326, 7
  %v328 = vadd.s32 %v327, 8
  %v329 = vadd.s32 %v327, 16
  %v330 = vadd.s32 %v327, 24
  %v331 = vadd.s32 %v327, 32
  %v332 = vadd.s32 %v327, 40
  %v333 = vadd.s32 %v327, 48
  %v334 = vadd.s32 %v327, 56
  %v335 = vadd.s32 %v327, 64
  %v336 = vadd.s32 %v327, 72
  %v337 = vadd.s32 %v327, 80
  %v338 = vadd.s32 %v327, 88
  %v339 = vadd.s32 %v327, 96
  %v340 = vadd.s32 %v327, 104
  %v341 = vadd.s32 %v327, 112
  %v342 = vadd.s32 %v327, 120
  %v343 = vstv %s325
  %v344 = vadd.s32 %v343, %v327
  %v345 = vadd.s32 %v343, %v328
  %v346 = vadd.s32 %v343, %v329
  %v347 = vadd.s32 %v343, %v330
  %v348 = vadd.s32 %v343, %v331
  %v349 = vadd.s32 %v343, %v332
  %v350 = vadd.s32 %v343, %v333
  %v351 = vadd.s32 %v343, %v334
  %v352 = vadd.s32 %v343, %v335
  %v353 = vadd.s32 %v343, %v336
  %v354 = vadd.s32 %v343, %v337
  %v355 = vadd.s32 %v343, %v338
  %v356 = vadd.s32 %v343, %v339
  %v357 = vadd.s32 %v343, %v340
  %v358 = vadd.s32 %v343, %v341
  %v359 = vadd.s32 %v343, %v342
  %vm360 = vcmp.lt.s32.totalorder %v344, 128
  %vm361 = vcmp.lt.s32.totalorder %v345, 128
  %vm362 = vcmp.lt.s32.totalorder %v346, 128
  %vm363 = vcmp.lt.s32.totalorder %v347, 128
  %vm364 = vcmp.lt.s32.totalorder %v348, 128
  %vm365 = vcmp.lt.s32.totalorder %v349, 128
  %vm366 = vcmp.lt.s32.totalorder %v350, 128
  %vm367 = vcmp.lt.s32.totalorder %v351, 128
  %vm368 = vcmp.lt.s32.totalorder %v352, 128
  %vm369 = vcmp.lt.s32.totalorder %v353, 128
  %vm370 = vcmp.lt.s32.totalorder %v354, 128
  %vm371 = vcmp.lt.s32.totalorder %v355, 128
  %vm372 = vcmp.lt.s32.totalorder %v356, 128
  %vm373 = vcmp.lt.s32.totalorder %v357, 128
  %vm374 = vcmp.lt.s32.totalorder %v358, 128
  %vm375 = vcmp.lt.s32.totalorder %v359, 128
  %v376 = vsel %vm360, %v263, 0.0
  %v377 = vsel %vm361, %v266, 0.0
  %v378 = vsel %vm362, %v271, 0.0
  %v379 = vsel %vm363, %v274, 0.0
  %v380 = vsel %vm364, %v279, 0.0
  %v381 = vsel %vm365, %v282, 0.0
  %v382 = vsel %vm366, %v287, 0.0
  %v383 = vsel %vm367, %v290, 0.0
  %v384 = vsel %vm368, %v295, 0.0
  %v385 = vsel %vm369, %v298, 0.0
  %v386 = vsel %vm370, %v303, 0.0
  %v387 = vsel %vm371, %v306, 0.0
  %v388 = vsel %vm372, %v311, 0.0
  %v389 = vsel %vm373, %v314, 0.0
  %v390 = vsel %vm374, %v319, 0.0
  %v391 = vsel %vm375, %v322, 0.0
  %v392 = vadd.f32 %v376, %v377
  %v393 = vadd.f32 %v392, %v378
  %v394 = vadd.f32 %v393, %v379
  %v395 = vadd.f32 %v394, %v380
  %v396 = vadd.f32 %v395, %v381
  %v397 = vadd.f32 %v396, %v382
  %v398 = vadd.f32 %v397, %v383
  %v399 = vadd.f32 %v398, %v384
  %v400 = vadd.f32 %v399, %v385
  %v401 = vadd.f32 %v400, %v386
  %v402 = vadd.f32 %v401, %v387
  %v403 = vadd.f32 %v402, %v388
  %v404 = vadd.f32 %v403, %v389
  %v405 = vadd.f32 %v404, %v390
  %v406 = vadd.f32 %v405, %v391
  %v407 = vrot.slane %v406, 4
  %v408 = vadd.f32 %v406, %v407
  %v409 = vrot.slane %v408, 2
  %v410 = vadd.f32 %v408, %v409
  %v411 = vrot.slane %v410, 1
  %v412 = vadd.f32 %v410, %v411
  %413 = vst [vmem:[%s6] sm:$0x1] %v412
  %v414 = vmul.f32 %v376, %v376
  %v415 = vmul.f32 %v377, %v377
  %v416 = vmul.f32 %v378, %v378
  %v417 = vmul.f32 %v379, %v379
  %v418 = vmul.f32 %v380, %v380
  %v419 = vmul.f32 %v381, %v381
  %v420 = vmul.f32 %v382, %v382
  %v421 = vmul.f32 %v383, %v383
  %v422 = vmul.f32 %v384, %v384
  %v423 = vmul.f32 %v385, %v385
  %v424 = vmul.f32 %v386, %v386
  %v425 = vmul.f32 %v387, %v387
  %v426 = vmul.f32 %v388, %v388
  %v427 = vmul.f32 %v389, %v389
  %v428 = vmul.f32 %v390, %v390
  %v429 = vmul.f32 %v391, %v391
  %v430 = vadd.f32 %v414, %v415
  %v431 = vadd.f32 %v430, %v416
  %v432 = vadd.f32 %v431, %v417
  %v433 = vadd.f32 %v432, %v418
  %v434 = vadd.f32 %v433, %v419
  %v435 = vadd.f32 %v434, %v420
  %v436 = vadd.f32 %v435, %v421
  %v437 = vadd.f32 %v436, %v422
  %v438 = vadd.f32 %v437, %v423
  %v439 = vadd.f32 %v438, %v424
  %v440 = vadd.f32 %v439, %v425
  %v441 = vadd.f32 %v440, %v426
  %v442 = vadd.f32 %v441, %v427
  %v443 = vadd.f32 %v442, %v428
  %v444 = vadd.f32 %v443, %v429
  %v445 = vrot.slane %v444, 4
  %v446 = vadd.f32 %v444, %v445
  %v447 = vrot.slane %v446, 2
  %v448 = vadd.f32 %v446, %v447
  %v449 = vrot.slane %v448, 1
  %v450 = vadd.f32 %v448, %v449
  %451 = vst [vmem:[%s6 + $0x1] sm:$0x1] %v450
  %v452 = vpack.c.bf16 %v266, %v263
  %v453 = vpack.c.bf16 %v274, %v271
  %v454 = vpack.c.bf16 %v282, %v279
  %v455 = vpack.c.bf16 %v290, %v287
  %v456 = vpack.c.bf16 %v298, %v295
  %v457 = vpack.c.bf16 %v306, %v303
  %v458 = vpack.c.bf16 %v314, %v311
  %v459 = vpack.c.bf16 %v322, %v319
  %v468 = vunpack.c.l.b16 %v452
  %v469 = vunpack.c.h.b16 %v452
  %v470 = vunpack.c.l.b16 %v453
  %v471 = vunpack.c.h.b16 %v453
  %v472 = vunpack.c.l.b16 %v454
  %v473 = vunpack.c.h.b16 %v454
  %v474 = vunpack.c.l.b16 %v455
  %v475 = vunpack.c.h.b16 %v455
  %v476 = vunpack.c.l.b16 %v456
  %v477 = vunpack.c.h.b16 %v456
  %v478 = vunpack.c.l.b16 %v457
  %v479 = vunpack.c.h.b16 %v457
  %v480 = vunpack.c.l.b16 %v458
  %v481 = vunpack.c.h.b16 %v458
  %v482 = vunpack.c.l.b16 %v459
  %v483 = vunpack.c.h.b16 %v459
  %v484 = vpack.c.b16 %v468, %v468
  %v485 = vpack.c.b16 %v469, %v469
  %v486 = vpack.c.b16 %v470, %v470
  %v487 = vpack.c.b16 %v471, %v471
  %v488 = vpack.c.b16 %v472, %v472
  %v489 = vpack.c.b16 %v473, %v473
  %v490 = vpack.c.b16 %v474, %v474
  %v491 = vpack.c.b16 %v475, %v475
  %v492 = vpack.c.b16 %v476, %v476
  %v493 = vpack.c.b16 %v477, %v477
  %v494 = vpack.c.b16 %v478, %v478
  %v495 = vpack.c.b16 %v479, %v479
  %v496 = vpack.c.b16 %v480, %v480
  %v497 = vpack.c.b16 %v481, %v481
  %v498 = vpack.c.b16 %v482, %v482
  %v499 = vpack.c.b16 %v483, %v483
  %516 = vst [vmem:[%s5] sm:$0xf] %v484
  %517 = vst [vmem:[%s5 + $0x4] sm:$0xf] %v485
  %518 = vst [vmem:[%s5 + $0x8] sm:$0xf] %v486
  %519 = vst [vmem:[%s5 + $0xc] sm:$0xf] %v487
  %520 = vst [vmem:[%s5 + $0x10] sm:$0xf] %v488
  %521 = vst [vmem:[%s5 + $0x14] sm:$0xf] %v489
  %522 = vst [vmem:[%s5 + $0x18] sm:$0xf] %v490
  %523 = vst [vmem:[%s5 + $0x1c] sm:$0xf] %v491
  %524 = vst [vmem:[%s5 + $0x20] sm:$0xf] %v492
  %525 = vst [vmem:[%s5 + $0x24] sm:$0xf] %v493
  %526 = vst [vmem:[%s5 + $0x28] sm:$0xf] %v494
  %527 = vst [vmem:[%s5 + $0x2c] sm:$0xf] %v495
  %528 = vst [vmem:[%s5 + $0x30] sm:$0xf] %v496
  %529 = vst [vmem:[%s5 + $0x34] sm:$0xf] %v497
  %530 = vst [vmem:[%s5 + $0x38] sm:$0xf] %v498
  %531 = vst [vmem:[%s5 + $0x3c] sm:$0xf] %v499
  // Predicated region
  $region22: #{_lambda_.11} parent=0 // pred_check
    _
  $region23: #{_lambda_.11} parent=0 // pred_check_branch
    %533 = sbr.rel (0) target = $region25
  $region24: #{_lambda_.11} parent=0 // pred_region
    _
  $region25: #{_lambda_.11} parent=0 // pred_fallthru
    _
  // Predicated region
  $region26: #{_lambda_.11} parent=0 // pred_check
    _
  $region27: #{_lambda_.11} parent=0 // pred_check_branch
    %535 = sbr.rel (0) target = $region29
  $region28: #{_lambda_.11} parent=0 // pred_region
    _
  $region29: #{_lambda_.11} parent=0 // pred_fallthru
    _
  // Predicated region
  $region30: #{_lambda_.11} parent=0 // pred_check
    _
  $region31: #{_lambda_.11} parent=0 // pred_check_branch
    %537 = sbr.rel (0) target = $region33
  $region32: #{_lambda_.11} parent=0 // pred_region
    _
  $region33: #{_lambda_.11} parent=0 // pred_fallthru
    _
  // Predicated region
  $region34: #{_lambda_.11} parent=0 // pred_check
    _
  $region35: #{_lambda_.11} parent=0 // pred_check_branch
    %539 = sbr.rel (0) target = $region37
  $region36: #{_lambda_.11} parent=0 // pred_region
    _
  $region37: #{_lambda_.11} parent=0 // pred_fallthru
    _

// kernel: tile.193
$region0: #{tile.193}
  #allocation0 [shape = 's32[1]{0}', space=sflag, size = 0x4, scoped, tag = 'scoped memory for tile.193']
  %s0 = inlined_call_operand.vmem [shape: f32[16], index: 0, kind: input, shape index: {}]
  %s1 = inlined_call_operand.vmem [shape: f32[9,16], index: 1, kind: output, shape index: {}]
  // Predicated region
  $region2: #{tile.193} parent=0 // pred_check
    _
  $region3: #{tile.193} parent=0 // pred_check_branch
    %3 = sbr.rel (0) target = $region5
  $region4: #{tile.193} parent=0 // pred_region
    _
  $region5: #{tile.193} parent=0 // pred_fallthru
    _
  %v4 = vld [vmem:[%s0] ss:$0 sm:$0xff]
  %5 = vst [vmem:[%s1] sm:$0xff] %v4
  %s6 = scalar_lea.vmem %s1, 8
  %7 = vst [vmem:[%s6] sm:$0xff] %v4

// kernel: tile.194
$region0: #{tile.194}
  %s0 = inlined_call_operand.vmem [shape: f32[9,16], index: 0, kind: input, shape index: {}]
  %s1 = inlined_call_operand.vmem [shape: f32[144], index: 1, kind: output, shape index: {}]
  $region1: #{tile.194} parent=0
    #allocation0 [shape = 'u8[4096]{0}', space=vmem, size = 0x1000, scoped, tag = 'scoped mem for output reshape']
    %s2 = smov 3
    %v3 = vld [vmem:[%s0] ss:$8 sm:%s2]
    %vm4 = vcmask 130048
    %5 = vst.msk [vmem:[#allocation0] sm:$0x3] %vm4, %v3
    %s6 = scalar_lea.vmem %s0, 7
    %v7 = vld [vmem:[%s6] sm:$0x1]
    %8 = vrot.lane.b32.xlu0 %v7, 112
    %v9 = vpop.permute.xlu0 %8
    %vm10 = vcmask 1048448
    %11 = vst.msk [vmem:[#allocation0] sm:$0x1] %vm10, %v9
    %s12 = scalar_lea.vmem %s0, 6
    %v13 = vld [vmem:[%s12] sm:$0x1]
    %14 = vrot.lane.b32.xlu0 %v13, 96
    %v15 = vpop.permute.xlu0 %14
    %vm16 = vcmask 917248
    %17 = vst.msk [vmem:[#allocation0] sm:$0x1] %vm16, %v15
    %s18 = scalar_lea.vmem %s0, 5
    %v19 = vld [vmem:[%s18] sm:$0x1]
    %20 = vrot.lane.b32.xlu0 %v19, 80
    %v21 = vpop.permute.xlu0 %20
    %vm22 = vcmask 786048
    %23 = vst.msk [vmem:[#allocation0] sm:$0x1] %vm22, %v21
    %s24 = scalar_lea.vmem %s0, 4
    %v25 = vld [vmem:[%s24] sm:$0x1]
    %26 = vrot.lane.b32.xlu0 %v25, 64
    %v27 = vpop.permute.xlu0 %26
    %vm28 = vcmask 654848
    %29 = vst.msk [vmem:[#allocation0] sm:$0x1] %vm28, %v27
    %s30 = scalar_lea.vmem %s0, 3
    %v31 = vld [vmem:[%s30] sm:$0x1]
    %32 = vrot.lane.b32.xlu0 %v31, 48
    %v33 = vpop.permute.xlu0 %32
    %vm34 = vcmask 523648
    %35 = vst.msk [vmem:[#allocation0] sm:$0x1] %vm34, %v33
    %s36 = scalar_lea.vmem %s0, 2
    %v37 = vld [vmem:[%s36] sm:$0x1]
    %38 = vrot.lane.b32.xlu0 %v37, 32
    %v39 = vpop.permute.xlu0 %38
    %vm40 = vcmask 392448
    %41 = vst.msk [vmem:[#allocation0] sm:$0x1] %vm40, %v39
    %s42 = scalar_lea.vmem %s0, 1
    %v43 = vld [vmem:[%s42] sm:$0x1]
    %44 = vrot.lane.b32.xlu0 %v43, 16
    %v45 = vpop.permute.xlu0 %44
    %vm46 = vcmask 261248
    %47 = vst.msk [vmem:[#allocation0] sm:$0x1] %vm46, %v45
    %s49 = sshllo.u32 0, 2
    %v51 = vld [vmem:[#allocation0] sm:%s49]
    %s52 = sshllo.u32 0, 2
    %53 = vst [vmem:[%s1] sm:%s52] %v51

// kernel: tile.123
$region0: #{tile.123}
  #allocation0 [shape = 's32[1]{0}', space=sflag, size = 0x4, scoped, tag = 'scoped memory for tile.123']
  %s0 = inlined_call_operand.vmem [shape: f32[16], index: 0, kind: input, shape index: {}]
  %s1 = inlined_call_operand.vmem [shape: f32[16,16], index: 1, kind: output, shape index: {}]
  // Predicated region
  $region2: #{tile.123} parent=0 // pred_check
    _
  $region3: #{tile.123} parent=0 // pred_check_branch
    %3 = sbr.rel (0) target = $region5
  $region4: #{tile.123} parent=0 // pred_region
    _
  $region5: #{tile.123} parent=0 // pred_fallthru
    _
  %v4 = vld [vmem:[%s0] ss:$0 sm:$0xff]
  %5 = vst [vmem:[%s1] sm:$0xff] %v4
  %s6 = scalar_lea.vmem %s1, 8
  %7 = vst [vmem:[%s6] sm:$0xff] %v4

// kernel: _lambda_.12
$region0: #{_lambda_.12}
  #allocation0 [shape = 'u32[]', space=smem, size = 0x4, offset = 0x4, fixed_abs, tag = 'smem constant byte address 0x4 - core index']
  #allocation1 [shape = 'u32[144,128]{1,0:T(1,128)}', space=vmem, size = 0x12000, scoped, tag = 'internal scratch']
  %s0 = inlined_call_operand.vmem [shape: bf16[32,256], index: 0, kind: input, shape index: {}]
  %s1 = inlined_call_operand.vmem [shape: bf16[256,128], index: 1, kind: input, shape index: {}]
  %s2 = inlined_call_operand.vmem [shape: f32[1,256], index: 2, kind: input, shape index: {}]
  %s3 = inlined_call_operand.vmem [shape: f32[1,256], index: 3, kind: input, shape index: {}]
  %s4 = inlined_call_operand.vmem [shape: f32[1,128], index: 4, kind: input, shape index: {}]
  %s5 = inlined_call_operand.vmem [shape: bf16[32,128], index: 5, kind: output, shape index: {0}]
  %s6 = inlined_call_operand.vmem [shape: f32[1,2,128], index: 6, kind: output, shape index: {1}]
  %7 = xla_tuple %s5, %s6
  %s8 = sld [smem:[#allocation0]]
  $region38: #{_lambda_.12} parent=0
    _
  %s10 = ssub.s32 1, %s8
  %s11 = scalar_select 0, %s10, %s8
  // Predicated region
  $region2: #{_lambda_.12} parent=0 // pred_check
    _
  $region3: #{_lambda_.12} parent=0 // pred_check_branch
    %13 = sbr.rel (0) target = $region5
  $region4: #{_lambda_.12} parent=0 // pred_region
    _
  $region5: #{_lambda_.12} parent=0 // pred_fallthru
    _
  // Predicated region
  $region6: #{_lambda_.12} parent=0 // pred_check
    _
  $region7: #{_lambda_.12} parent=0 // pred_check_branch
    %15 = sbr.rel (0) target = $region9
  $region8: #{_lambda_.12} parent=0 // pred_region
    _
  $region9: #{_lambda_.12} parent=0 // pred_fallthru
    _
  // Predicated region
  $region10: #{_lambda_.12} parent=0 // pred_check
    _
  $region11: #{_lambda_.12} parent=0 // pred_check_branch
    %17 = sbr.rel (0) target = $region13
  $region12: #{_lambda_.12} parent=0 // pred_region
    _
  $region13: #{_lambda_.12} parent=0 // pred_fallthru
    _
  // Predicated region
  $region14: #{_lambda_.12} parent=0 // pred_check
    _
  $region15: #{_lambda_.12} parent=0 // pred_check_branch
    %19 = sbr.rel (0) target = $region17
  $region16: #{_lambda_.12} parent=0 // pred_region
    _
  $region17: #{_lambda_.12} parent=0 // pred_fallthru
    _
  // Predicated region
  $region18: #{_lambda_.12} parent=0 // pred_check
    _
  $region19: #{_lambda_.12} parent=0 // pred_check_branch
    %21 = sbr.rel (0) target = $region21
  $region20: #{_lambda_.12} parent=0 // pred_region
    _
  $region21: #{_lambda_.12} parent=0 // pred_fallthru
    _
  %v23 = vld [vmem:[%s0] sm:$0xff]
  %v24 = vld [vmem:[%s0 + $0x8] sm:$0xff]
  %v25 = vld [vmem:[%s0 + $0x10] sm:$0xff]
  %v26 = vld [vmem:[%s0 + $0x18] sm:$0xff]
  %v27 = vunpack.c.l.bf16 %v23
  %v28 = vunpack.c.h.bf16 %v23
  %v29 = vunpack.c.l.bf16 %v24
  %v30 = vunpack.c.h.bf16 %v24
  %v31 = vunpack.c.l.bf16 %v25
  %v32 = vunpack.c.h.bf16 %v25
  %v33 = vunpack.c.l.bf16 %v26
  %v34 = vunpack.c.h.bf16 %v26
  %v35 = vld [vmem:[%s2] sm:$0x3]
  %v37 = vlaneseq
  %v38 = vshrl.u32 %v37, 7
  %v39 = vsub.s32 0, %v38
  %v40 = vrot.slane %v35, %v39
  %v41 = vlaneseq
  %v42 = vshrl.u32 %v41, 7
  %v43 = vsub.s32 1, %v42
  %v44 = vrot.slane %v35, %v43
  %v47 = vmul.f32 %v27, %v40
  %v48 = vmul.f32 %v28, %v44
  %v49 = vmul.f32 %v29, %v40
  %v50 = vmul.f32 %v30, %v44
  %v51 = vmul.f32 %v31, %v40
  %v52 = vmul.f32 %v32, %v44
  %v53 = vmul.f32 %v33, %v40
  %v54 = vmul.f32 %v34, %v44
  %v55 = vld [vmem:[%s3] sm:$0x3]
  %v57 = vlaneseq
  %v58 = vshrl.u32 %v57, 7
  %v59 = vsub.s32 0, %v58
  %v60 = vrot.slane %v55, %v59
  %v61 = vlaneseq
  %v62 = vshrl.u32 %v61, 7
  %v63 = vsub.s32 1, %v62
  %v64 = vrot.slane %v55, %v63
  %v67 = vadd.f32 %v47, %v60
  %v68 = vadd.f32 %v48, %v64
  %v69 = vadd.f32 %v49, %v60
  %v70 = vadd.f32 %v50, %v64
  %v71 = vadd.f32 %v51, %v60
  %v72 = vadd.f32 %v52, %v64
  %v73 = vadd.f32 %v53, %v60
  %v74 = vadd.f32 %v54, %v64
  %vm75 = vcmp.ge.f32.partialorder %v67, 0.0
  %vm76 = vcmp.ge.f32.partialorder %v68, 0.0
  %vm77 = vcmp.ge.f32.partialorder %v69, 0.0
  %vm78 = vcmp.ge.f32.partialorder %v70, 0.0
  %vm79 = vcmp.ge.f32.partialorder %v71, 0.0
  %vm80 = vcmp.ge.f32.partialorder %v72, 0.0
  %vm81 = vcmp.ge.f32.partialorder %v73, 0.0
  %vm82 = vcmp.ge.f32.partialorder %v74, 0.0
  %v83 = vmul.f32 %v67, 0.2
  %v84 = vmul.f32 %v68, 0.2
  %v85 = vmul.f32 %v69, 0.2
  %v86 = vmul.f32 %v70, 0.2
  %v87 = vmul.f32 %v71, 0.2
  %v88 = vmul.f32 %v72, 0.2
  %v89 = vmul.f32 %v73, 0.2
  %v90 = vmul.f32 %v74, 0.2
  %v91 = vsel %vm75, %v67, %v83
  %v92 = vsel %vm76, %v68, %v84
  %v93 = vsel %vm77, %v69, %v85
  %v94 = vsel %vm78, %v70, %v86
  %v95 = vsel %vm79, %v71, %v87
  %v96 = vsel %vm80, %v72, %v88
  %v97 = vsel %vm81, %v73, %v89
  %v98 = vsel %vm82, %v74, %v90
  %v99 = vpack.c.bf16 %v93, %v91
  %v100 = vpack.c.bf16 %v94, %v92
  %v101 = vpack.c.bf16 %v97, %v95
  %v102 = vpack.c.bf16 %v98, %v96
  %v103 = vld [vmem:[%s1] sm:$0xf]
  %v104 = vld [vmem:[%s1 + $0x4] sm:$0xf]
  %v105 = vld [vmem:[%s1 + $0x8] sm:$0xf]
  %v106 = vld [vmem:[%s1 + $0xc] sm:$0xf]
  %v107 = vld [vmem:[%s1 + $0x10] sm:$0xf]
  %v108 = vld [vmem:[%s1 + $0x14] sm:$0xf]
  %v109 = vld [vmem:[%s1 + $0x18] sm:$0xf]
  %v110 = vld [vmem:[%s1 + $0x1c] sm:$0xf]
  %v111 = vld [vmem:[%s1 + $0x20] sm:$0xf]
  %v112 = vld [vmem:[%s1 + $0x24] sm:$0xf]
  %v113 = vld [vmem:[%s1 + $0x28] sm:$0xf]
  %v114 = vld [vmem:[%s1 + $0x2c] sm:$0xf]
  %v115 = vld [vmem:[%s1 + $0x30] sm:$0xf]
  %v116 = vld [vmem:[%s1 + $0x34] sm:$0xf]
  %v117 = vld [vmem:[%s1 + $0x38] sm:$0xf]
  %v118 = vld [vmem:[%s1 + $0x3c] sm:$0xf]
  %v119 = vld [vmem:[%s1 + $0x40] sm:$0xf]
  %v120 = vld [vmem:[%s1 + $0x44] sm:$0xf]
  %v121 = vld [vmem:[%s1 + $0x48] sm:$0xf]
  %v122 = vld [vmem:[%s1 + $0x4c] sm:$0xf]
  %v123 = vld [vmem:[%s1 + $0x50] sm:$0xf]
  %v124 = vld [vmem:[%s1 + $0x54] sm:$0xf]
  %v125 = vld [vmem:[%s1 + $0x58] sm:$0xf]
  %v126 = vld [vmem:[%s1 + $0x5c] sm:$0xf]
  %v127 = vld [vmem:[%s1 + $0x60] sm:$0xf]
  %v128 = vld [vmem:[%s1 + $0x64] sm:$0xf]
  %v129 = vld [vmem:[%s1 + $0x68] sm:$0xf]
  %v130 = vld [vmem:[%s1 + $0x6c] sm:$0xf]
  %v131 = vld [vmem:[%s1 + $0x70] sm:$0xf]
  %v132 = vld [vmem:[%s1 + $0x74] sm:$0xf]
  %v133 = vld [vmem:[%s1 + $0x78] sm:$0xf]
  %v134 = vld [vmem:[%s1 + $0x7c] sm:$0xf]
  %v135 = vld [vmem:[%s4] sm:$0x1]
  %v137 = vlaneseq
  %v138 = vshrl.u32 %v137, 7
  %v139 = vsub.s32 0, %v138
  %v140 = vrot.slane %v135, %v139
  %v174 = vunpack.c.l.b16 %v103
  %v175 = vunpack.c.l.b16 %v104
  %v176 = vunpack.c.l.b16 %v105
  %v177 = vunpack.c.l.b16 %v106
  %v178 = vunpack.c.l.b16 %v107
  %v179 = vunpack.c.l.b16 %v108
  %v180 = vunpack.c.l.b16 %v109
  %v181 = vunpack.c.l.b16 %v110
  %v182 = vunpack.c.l.b16 %v111
  %v183 = vunpack.c.l.b16 %v112
  %v184 = vunpack.c.l.b16 %v113
  %v185 = vunpack.c.l.b16 %v114
  %v186 = vunpack.c.l.b16 %v115
  %v187 = vunpack.c.l.b16 %v116
  %v188 = vunpack.c.l.b16 %v117
  %v189 = vunpack.c.l.b16 %v118
  %v190 = vunpack.c.l.b16 %v119
  %v191 = vunpack.c.l.b16 %v120
  %v192 = vunpack.c.l.b16 %v121
  %v193 = vunpack.c.l.b16 %v122
  %v194 = vunpack.c.l.b16 %v123
  %v195 = vunpack.c.l.b16 %v124
  %v196 = vunpack.c.l.b16 %v125
  %v197 = vunpack.c.l.b16 %v126
  %v198 = vunpack.c.l.b16 %v127
  %v199 = vunpack.c.l.b16 %v128
  %v200 = vunpack.c.l.b16 %v129
  %v201 = vunpack.c.l.b16 %v130
  %v202 = vunpack.c.l.b16 %v131
  %v203 = vunpack.c.l.b16 %v132
  %v204 = vunpack.c.l.b16 %v133
  %v205 = vunpack.c.l.b16 %v134
  %v206 = vpack.c.b16 %v175, %v174
  %v207 = vpack.c.b16 %v177, %v176
  %v208 = vpack.c.b16 %v179, %v178
  %v209 = vpack.c.b16 %v181, %v180
  %v210 = vpack.c.b16 %v183, %v182
  %v211 = vpack.c.b16 %v185, %v184
  %v212 = vpack.c.b16 %v187, %v186
  %v213 = vpack.c.b16 %v189, %v188
  %v214 = vpack.c.b16 %v191, %v190
  %v215 = vpack.c.b16 %v193, %v192
  %v216 = vpack.c.b16 %v195, %v194
  %v217 = vpack.c.b16 %v197, %v196
  %v218 = vpack.c.b16 %v199, %v198
  %v219 = vpack.c.b16 %v201, %v200
  %v220 = vpack.c.b16 %v203, %v202
  %v221 = vpack.c.b16 %v205, %v204
  %238 = vmatprep.subr.bf16.mxu0 0
  %239 = vmatpush1.bf16.msra.mxu0 %v206
  %240 = vmatprep.subr.bf16.mxu0 0
  %241 = vmatpush1.bf16.msra.mxu0 %v207
  %242 = vmatprep.subr.bf16.mxu0 0
  %243 = vmatpush1.bf16.msra.mxu0 %v208
  %244 = vmatprep.subr.bf16.mxu0 0
  %245 = vmatpush1.bf16.msra.mxu0 %v209
  %246 = vmatprep.subr.bf16.mxu0 0
  %247 = vmatpush1.bf16.msra.mxu0 %v210
  %248 = vmatprep.subr.bf16.mxu0 0
  %249 = vmatpush1.bf16.msra.mxu0 %v211
  %250 = vmatprep.subr.bf16.mxu0 0
  %251 = vmatpush1.bf16.msra.mxu0 %v212
  %252 = vmatprep.subr.bf16.mxu0 0
  %253 = vmatpush1.bf16.msra.mxu0 %v213
  %254 = vmatprep.subr.bf16.mxu0 0
  %255 = vmatpush1.bf16.msra.mxu0 %v214
  %256 = vmatprep.subr.bf16.mxu0 0
  %257 = vmatpush1.bf16.msra.mxu0 %v215
  %258 = vmatprep.subr.bf16.mxu0 0
  %259 = vmatpush1.bf16.msra.mxu0 %v216
  %260 = vmatprep.subr.bf16.mxu0 0
  %261 = vmatpush1.bf16.msra.mxu0 %v217
  %262 = vmatprep.subr.bf16.mxu0 0
  %263 = vmatpush1.bf16.msra.mxu0 %v218
  %264 = vmatprep.subr.bf16.mxu0 0
  %265 = vmatpush1.bf16.msra.mxu0 %v219
  %266 = vmatprep.subr.bf16.mxu0 0
  %267 = vmatpush1.bf16.msra.mxu0 %v220
  %268 = vmatprep.subr.bf16.mxu0 0
  %269 = vmatpush1.bf16.msra.mxu0 %v221
  %270 = vmatprep.mubr.bf16.mxu0 %v100
  %271 = vmatmul.mubr.bf16.gmra.mrb[0].mxu0 %v99
  %v272 = vpop.f32.mrb[0].mxu0
  %v273 = vadd.f32 %v140, %v272
  %v274 = vpop.f32.mrb[0].mxu0
  %v275 = vpop.f32.mrb[0].mxu0
  %v276 = vadd.f32 %v140, %v275
  %v277 = vpop.f32.mrb[0].mxu0
  %278 = vmatprep.mubr.bf16.mxu0 %v102
  %279 = vmatmul.mubr.bf16.gmra.mrb[0].mxu0 %v101
  %v280 = vpop.f32.mrb[0].mxu0
  %v281 = vadd.f32 %v140, %v280
  %v282 = vpop.f32.mrb[0].mxu0
  %v283 = vpop.f32.mrb[0].mxu0
  %v284 = vadd.f32 %v140, %v283
  %v285 = vpop.f32.mrb[0].mxu0
  %286 = vdwg.mxu0
  %s287 = smul.u32 0, 32
  %v288 = vlaneseq
  %v289 = vshrl.u32 %v288, 7
  %v290 = vadd.s32 %v289, 8
  %v291 = vadd.s32 %v289, 16
  %v292 = vadd.s32 %v289, 24
  %v293 = vstv %s287
  %v294 = vadd.s32 %v293, %v289
  %v295 = vadd.s32 %v293, %v290
  %v296 = vadd.s32 %v293, %v291
  %v297 = vadd.s32 %v293, %v292
  %vm298 = vcmp.lt.s32.totalorder %v294, 32
  %vm299 = vcmp.lt.s32.totalorder %v295, 32
  %vm300 = vcmp.lt.s32.totalorder %v296, 32
  %vm301 = vcmp.lt.s32.totalorder %v297, 32
  %v302 = vsel %vm298, %v273, 0.0
  %v303 = vsel %vm299, %v276, 0.0
  %v304 = vsel %vm300, %v281, 0.0
  %v305 = vsel %vm301, %v284, 0.0
  %v306 = vadd.f32 %v302, %v303
  %v307 = vadd.f32 %v306, %v304
  %v308 = vadd.f32 %v307, %v305
  %v309 = vrot.slane %v308, 4
  %v310 = vadd.f32 %v308, %v309
  %v311 = vrot.slane %v310, 2
  %v312 = vadd.f32 %v310, %v311
  %v313 = vrot.slane %v312, 1
  %v314 = vadd.f32 %v312, %v313
  %315 = vst [vmem:[%s6] sm:$0x1] %v314
  %v316 = vmul.f32 %v302, %v302
  %v317 = vmul.f32 %v303, %v303
  %v318 = vmul.f32 %v304, %v304
  %v319 = vmul.f32 %v305, %v305
  %v320 = vadd.f32 %v316, %v317
  %v321 = vadd.f32 %v320, %v318
  %v322 = vadd.f32 %v321, %v319
  %v323 = vrot.slane %v322, 4
  %v324 = vadd.f32 %v322, %v323
  %v325 = vrot.slane %v324, 2
  %v326 = vadd.f32 %v324, %v325
  %v327 = vrot.slane %v326, 1
  %v328 = vadd.f32 %v326, %v327
  %329 = vst [vmem:[%s6 + $0x1] sm:$0x1] %v328
  %v330 = vpack.c.bf16 %v276, %v273
  %v331 = vpack.c.bf16 %v284, %v281
  %v334 = vunpack.c.l.b16 %v330
  %v335 = vunpack.c.h.b16 %v330
  %v336 = vunpack.c.l.b16 %v331
  %v337 = vunpack.c.h.b16 %v331
  %v338 = vpack.c.b16 %v334, %v334
  %v339 = vpack.c.b16 %v335, %v335
  %v340 = vpack.c.b16 %v336, %v336
  %v341 = vpack.c.b16 %v337, %v337
  %346 = vst [vmem:[%s5] sm:$0xf] %v338
  %347 = vst [vmem:[%s5 + $0x4] sm:$0xf] %v339
  %348 = vst [vmem:[%s5 + $0x8] sm:$0xf] %v340
  %349 = vst [vmem:[%s5 + $0xc] sm:$0xf] %v341
  // Predicated region
  $region22: #{_lambda_.12} parent=0 // pred_check
    _
  $region23: #{_lambda_.12} parent=0 // pred_check_branch
    %351 = sbr.rel (0) target = $region25
  $region24: #{_lambda_.12} parent=0 // pred_region
    _
  $region25: #{_lambda_.12} parent=0 // pred_fallthru
    _
  // Predicated region
  $region26: #{_lambda_.12} parent=0 // pred_check
    _
  $region27: #{_lambda_.12} parent=0 // pred_check_branch
    %353 = sbr.rel (0) target = $region29
  $region28: #{_lambda_.12} parent=0 // pred_region
    _
  $region29: #{_lambda_.12} parent=0 // pred_fallthru
    _
  // Predicated region
  $region30: #{_lambda_.12} parent=0 // pred_check
    _
  $region31: #{_lambda_.12} parent=0 // pred_check_branch
    %355 = sbr.rel (0) target = $region33
  $region32: #{_lambda_.12} parent=0 // pred_region
    _
  $region33: #{_lambda_.12} parent=0 // pred_fallthru
    _
  // Predicated region
  $region34: #{_lambda_.12} parent=0 // pred_check
    _
  $region35: #{_lambda_.12} parent=0 // pred_check_branch
    %357 = sbr.rel (0) target = $region37
  $region36: #{_lambda_.12} parent=0 // pred_region
    _
  $region37: #{_lambda_.12} parent=0 // pred_fallthru
    _

// kernel: tile.173
$region0: #{tile.173}
  #allocation0 [shape = 's32[1]{0}', space=sflag, size = 0x4, scoped, tag = 'scoped memory for tile.173']
  %s0 = inlined_call_operand.vmem [shape: f32[32], index: 0, kind: input, shape index: {}]
  %s1 = inlined_call_operand.vmem [shape: f32[9,32], index: 1, kind: output, shape index: {}]
  // Predicated region
  $region2: #{tile.173} parent=0 // pred_check
    _
  $region3: #{tile.173} parent=0 // pred_check_branch
    %3 = sbr.rel (0) target = $region5
  $region4: #{tile.173} parent=0 // pred_region
    _
  $region5: #{tile.173} parent=0 // pred_fallthru
    _
  %v4 = vld [vmem:[%s0] ss:$0 sm:$0xff]
  %5 = vst [vmem:[%s1] sm:$0xff] %v4
  %s6 = scalar_lea.vmem %s1, 8
  %7 = vst [vmem:[%s6] sm:$0xff] %v4

// kernel: tile.174
$region0: #{tile.174}
  %s0 = inlined_call_operand.vmem [shape: f32[9,32], index: 0, kind: input, shape index: {}]
  %s1 = inlined_call_operand.vmem [shape: f32[288], index: 1, kind: output, shape index: {}]
  $region1: #{tile.174} parent=0
    #allocation0 [shape = 'u8[4096]{0}', space=vmem, size = 0x1000, scoped, tag = 'scoped mem for output reshape']
    %v2 = vld [vmem:[%s0] ss:$4 sm:$0x7]
    %vm3 = vcmask 261120
    %4 = vst.msk [vmem:[#allocation0] sm:$0x7] %vm3, %v2
    %s5 = scalar_lea.vmem %s0, 3
    %s6 = smov 3
    %v7 = vld [vmem:[%s5] ss:$4 sm:%s6]
    %8 = vrot.lane.b32.xlu0 %v7, 96
    %v9 = vpop.permute.xlu0 %8
    %vm10 = vcmask 1048320
    %11 = vst.msk [vmem:[#allocation0] sm:$0x3] %vm10, %v9
    %s12 = scalar_lea.vmem %s0, 2
    %s13 = smov 3
    %v14 = vld [vmem:[%s12] ss:$4 sm:%s13]
    %15 = vrot.lane.b32.xlu0 %v14, 64
    %v16 = vpop.permute.xlu0 %15
    %vm17 = vcmask 785920
    %18 = vst.msk [vmem:[#allocation0] sm:$0x3] %vm17, %v16
    %s19 = scalar_lea.vmem %s0, 1
    %s20 = smov 3
    %v21 = vld [vmem:[%s19] ss:$4 sm:%s20]
    %22 = vrot.lane.b32.xlu0 %v21, 32
    %v23 = vpop.permute.xlu0 %22
    %vm24 = vcmask 523520
    %25 = vst.msk [vmem:[#allocation0] sm:$0x3] %vm24, %v23
    %s27 = sshllo.u32 0, 4
    %v29 = vld [vmem:[#allocation0] sm:%s27]
    %s30 = sshllo.u32 0, 4
    %31 = vst [vmem:[%s1] sm:%s30] %v29

// kernel: tile.133
$region0: #{tile.133}
  #allocation0 [shape = 's32[1]{0}', space=sflag, size = 0x4, scoped, tag = 'scoped memory for tile.133']
  %s0 = inlined_call_operand.vmem [shape: f32[32], index: 0, kind: input, shape index: {}]
  %s1 = inlined_call_operand.vmem [shape: f32[16,32], index: 1, kind: output, shape index: {}]
  // Predicated region
  $region2: #{tile.133} parent=0 // pred_check
    _
  $region3: #{tile.133} parent=0 // pred_check_branch
    %3 = sbr.rel (0) target = $region5
  $region4: #{tile.133} parent=0 // pred_region
    _
  $region5: #{tile.133} parent=0 // pred_fallthru
    _
  %v4 = vld [vmem:[%s0] ss:$0 sm:$0xff]
  %5 = vst [vmem:[%s1] sm:$0xff] %v4
  %s6 = scalar_lea.vmem %s1, 8
  %7 = vst [vmem:[%s6] sm:$0xff] %v4

// kernel: tile.153
$region0: #{tile.153}
  #allocation0 [shape = 's32[1]{0}', space=sflag, size = 0x4, scoped, tag = 'scoped memory for tile.153']
  %s0 = inlined_call_operand.vmem [shape: f32[64], index: 0, kind: input, shape index: {}]
  %s1 = inlined_call_operand.vmem [shape: f32[9,64], index: 1, kind: output, shape index: {}]
  // Predicated region
  $region2: #{tile.153} parent=0 // pred_check
    _
  $region3: #{tile.153} parent=0 // pred_check_branch
    %3 = sbr.rel (0) target = $region5
  $region4: #{tile.153} parent=0 // pred_region
    _
  $region5: #{tile.153} parent=0 // pred_fallthru
    _
  %v4 = vld [vmem:[%s0] ss:$0 sm:$0xff]
  %5 = vst [vmem:[%s1] sm:$0xff] %v4
  %s6 = scalar_lea.vmem %s1, 8
  %7 = vst [vmem:[%s6] sm:$0xff] %v4

// kernel: tile.154
$region0: #{tile.154}
  %s0 = inlined_call_operand.vmem [shape: f32[9,64], index: 0, kind: input, shape index: {}]
  %s1 = inlined_call_operand.vmem [shape: f32[576], index: 1, kind: output, shape index: {}]
  %v2 = vld [vmem:[%s0] ss:$2 sm:$0x1f]
  %vm3 = vcmask 523264
  %4 = vst.msk [vmem:[%s1] sm:$0x1f] %vm3, %v2
  %s5 = scalar_lea.vmem %s0, 1
  %v6 = vld [vmem:[%s5] ss:$2 sm:$0xf]
  %7 = vrot.lane.b32.xlu0 %v6, 64
  %v8 = vpop.permute.xlu0 %7
  %vm9 = vcmask 1048064
  %10 = vst.msk [vmem:[%s1] sm:$0xf] %vm9, %v8

// kernel: tile.143
$region0: #{tile.143}
  #allocation0 [shape = 's32[1]{0}', space=sflag, size = 0x4, scoped, tag = 'scoped memory for tile.143']
  %s0 = inlined_call_operand.vmem [shape: f32[64], index: 0, kind: input, shape index: {}]
  %s1 = inlined_call_operand.vmem [shape: f32[16,64], index: 1, kind: output, shape index: {}]
  // Predicated region
  $region2: #{tile.143} parent=0 // pred_check
    _
  $region3: #{tile.143} parent=0 // pred_check_branch
    %3 = sbr.rel (0) target = $region5
  $region4: #{tile.143} parent=0 // pred_region
    _
  $region5: #{tile.143} parent=0 // pred_fallthru
    _
  %v4 = vld [vmem:[%s0] ss:$0 sm:$0xff]
  %5 = vst [vmem:[%s1] sm:$0xff] %v4
  %s6 = scalar_lea.vmem %s1, 8
  %7 = vst [vmem:[%s6] sm:$0xff] %v4

// kernel: _lambda_.13
$region0: #{_lambda_.13}
  #allocation0 [shape = 'u32[]', space=smem, size = 0x4, offset = 0x4, fixed_abs, tag = 'smem constant byte address 0x4 - core index']
  #allocation1 [shape = 'u32[144,128]{1,0:T(1,128)}', space=vmem, size = 0x12000, scoped, tag = 'internal scratch']
  %s0 = inlined_call_operand.vmem [shape: bf16[8,512], index: 0, kind: input, shape index: {}]
  %s1 = inlined_call_operand.vmem [shape: bf16[512,128], index: 1, kind: input, shape index: {}]
  %s2 = inlined_call_operand.vmem [shape: f32[1,512], index: 2, kind: input, shape index: {}]
  %s3 = inlined_call_operand.vmem [shape: f32[1,512], index: 3, kind: input, shape index: {}]
  %s4 = inlined_call_operand.vmem [shape: f32[1,128], index: 4, kind: input, shape index: {}]
  %s5 = inlined_call_operand.vmem [shape: bf16[8,128], index: 5, kind: output, shape index: {0}]
  %s6 = inlined_call_operand.vmem [shape: f32[1,2,128], index: 6, kind: output, shape index: {1}]
  %7 = xla_tuple %s5, %s6
  %s8 = sld [smem:[#allocation0]]
  $region38: #{_lambda_.13} parent=0
    _
  %s10 = ssub.s32 1, %s8
  %s11 = scalar_select 0, %s10, %s8
  // Predicated region
  $region2: #{_lambda_.13} parent=0 // pred_check
    _
  $region3: #{_lambda_.13} parent=0 // pred_check_branch
    %13 = sbr.rel (0) target = $region5
  $region4: #{_lambda_.13} parent=0 // pred_region
    _
  $region5: #{_lambda_.13} parent=0 // pred_fallthru
    _
  // Predicated region
  $region6: #{_lambda_.13} parent=0 // pred_check
    _
  $region7: #{_lambda_.13} parent=0 // pred_check_branch
    %15 = sbr.rel (0) target = $region9
  $region8: #{_lambda_.13} parent=0 // pred_region
    _
  $region9: #{_lambda_.13} parent=0 // pred_fallthru
    _
  // Predicated region
  $region10: #{_lambda_.13} parent=0 // pred_check
    _
  $region11: #{_lambda_.13} parent=0 // pred_check_branch
    %17 = sbr.rel (0) target = $region13
  $region12: #{_lambda_.13} parent=0 // pred_region
    _
  $region13: #{_lambda_.13} parent=0 // pred_fallthru
    _
  // Predicated region
  $region14: #{_lambda_.13} parent=0 // pred_check
    _
  $region15: #{_lambda_.13} parent=0 // pred_check_branch
    %19 = sbr.rel (0) target = $region17
  $region16: #{_lambda_.13} parent=0 // pred_region
    _
  $region17: #{_lambda_.13} parent=0 // pred_fallthru
    _
  // Predicated region
  $region18: #{_lambda_.13} parent=0 // pred_check
    _
  $region19: #{_lambda_.13} parent=0 // pred_check_branch
    %21 = sbr.rel (0) target = $region21
  $region20: #{_lambda_.13} parent=0 // pred_region
    _
  $region21: #{_lambda_.13} parent=0 // pred_fallthru
    _
  %v23 = vld [vmem:[%s0] sm:$0xff]
  %v24 = vld [vmem:[%s0 + $0x8] sm:$0xff]
  %v25 = vunpack.c.l.bf16 %v23
  %v26 = vunpack.c.h.bf16 %v23
  %v27 = vunpack.c.l.bf16 %v24
  %v28 = vunpack.c.h.bf16 %v24
  %v29 = vld [vmem:[%s2] sm:$0xf]
  %v31 = vlaneseq
  %v32 = vshrl.u32 %v31, 7
  %v33 = vsub.s32 0, %v32
  %v34 = vrot.slane %v29, %v33
  %v35 = vlaneseq
  %v36 = vshrl.u32 %v35, 7
  %v37 = vsub.s32 1, %v36
  %v38 = vrot.slane %v29, %v37
  %v39 = vlaneseq
  %v40 = vshrl.u32 %v39, 7
  %v41 = vsub.s32 2, %v40
  %v42 = vrot.slane %v29, %v41
  %v43 = vlaneseq
  %v44 = vshrl.u32 %v43, 7
  %v45 = vsub.s32 3, %v44
  %v46 = vrot.slane %v29, %v45
  %v51 = vmul.f32 %v25, %v34
  %v52 = vmul.f32 %v26, %v38
  %v53 = vmul.f32 %v27, %v42
  %v54 = vmul.f32 %v28, %v46
  %v55 = vld [vmem:[%s3] sm:$0xf]
  %v57 = vlaneseq
  %v58 = vshrl.u32 %v57, 7
  %v59 = vsub.s32 0, %v58
  %v60 = vrot.slane %v55, %v59
  %v61 = vlaneseq
  %v62 = vshrl.u32 %v61, 7
  %v63 = vsub.s32 1, %v62
  %v64 = vrot.slane %v55, %v63
  %v65 = vlaneseq
  %v66 = vshrl.u32 %v65, 7
  %v67 = vsub.s32 2, %v66
  %v68 = vrot.slane %v55, %v67
  %v69 = vlaneseq
  %v70 = vshrl.u32 %v69, 7
  %v71 = vsub.s32 3, %v70
  %v72 = vrot.slane %v55, %v71
  %v77 = vadd.f32 %v51, %v60
  %v78 = vadd.f32 %v52, %v64
  %v79 = vadd.f32 %v53, %v68
  %v80 = vadd.f32 %v54, %v72
  %vm81 = vcmp.ge.f32.partialorder %v77, 0.0
  %vm82 = vcmp.ge.f32.partialorder %v78, 0.0
  %vm83 = vcmp.ge.f32.partialorder %v79, 0.0
  %vm84 = vcmp.ge.f32.partialorder %v80, 0.0
  %v85 = vmul.f32 %v77, 0.2
  %v86 = vmul.f32 %v78, 0.2
  %v87 = vmul.f32 %v79, 0.2
  %v88 = vmul.f32 %v80, 0.2
  %v89 = vsel %vm81, %v77, %v85
  %v90 = vsel %vm82, %v78, %v86
  %v91 = vsel %vm83, %v79, %v87
  %v92 = vsel %vm84, %v80, %v88
  %v93 = vpack.c.bf16 %v89, %v89
  %v94 = vpack.c.bf16 %v90, %v90
  %v95 = vpack.c.bf16 %v91, %v91
  %v96 = vpack.c.bf16 %v92, %v92
  %v97 = vld [vmem:[%s1] sm:$0xf]
  %v98 = vld [vmem:[%s1 + $0x4] sm:$0xf]
  %v99 = vld [vmem:[%s1 + $0x8] sm:$0xf]
  %v100 = vld [vmem:[%s1 + $0xc] sm:$0xf]
  %v101 = vld [vmem:[%s1 + $0x10] sm:$0xf]
  %v102 = vld [vmem:[%s1 + $0x14] sm:$0xf]
  %v103 = vld [vmem:[%s1 + $0x18] sm:$0xf]
  %v104 = vld [vmem:[%s1 + $0x1c] sm:$0xf]
  %v105 = vld [vmem:[%s1 + $0x20] sm:$0xf]
  %v106 = vld [vmem:[%s1 + $0x24] sm:$0xf]
  %v107 = vld [vmem:[%s1 + $0x28] sm:$0xf]
  %v108 = vld [vmem:[%s1 + $0x2c] sm:$0xf]
  %v109 = vld [vmem:[%s1 + $0x30] sm:$0xf]
  %v110 = vld [vmem:[%s1 + $0x34] sm:$0xf]
  %v111 = vld [vmem:[%s1 + $0x38] sm:$0xf]
  %v112 = vld [vmem:[%s1 + $0x3c] sm:$0xf]
  %v113 = vld [vmem:[%s1 + $0x40] sm:$0xf]
  %v114 = vld [vmem:[%s1 + $0x44] sm:$0xf]
  %v115 = vld [vmem:[%s1 + $0x48] sm:$0xf]
  %v116 = vld [vmem:[%s1 + $0x4c] sm:$0xf]
  %v117 = vld [vmem:[%s1 + $0x50] sm:$0xf]
  %v118 = vld [vmem:[%s1 + $0x54] sm:$0xf]
  %v119 = vld [vmem:[%s1 + $0x58] sm:$0xf]
  %v120 = vld [vmem:[%s1 + $0x5c] sm:$0xf]
  %v121 = vld [vmem:[%s1 + $0x60] sm:$0xf]
  %v122 = vld [vmem:[%s1 + $0x64] sm:$0xf]
  %v123 = vld [vmem:[%s1 + $0x68] sm:$0xf]
  %v124 = vld [vmem:[%s1 + $0x6c] sm:$0xf]
  %v125 = vld [vmem:[%s1 + $0x70] sm:$0xf]
  %v126 = vld [vmem:[%s1 + $0x74] sm:$0xf]
  %v127 = vld [vmem:[%s1 + $0x78] sm:$0xf]
  %v128 = vld [vmem:[%s1 + $0x7c] sm:$0xf]
  %v129 = vld [vmem:[%s1 + $0x80] sm:$0xf]
  %v130 = vld [vmem:[%s1 + $0x84] sm:$0xf]
  %v131 = vld [vmem:[%s1 + $0x88] sm:$0xf]
  %v132 = vld [vmem:[%s1 + $0x8c] sm:$0xf]
  %v133 = vld [vmem:[%s1 + $0x90] sm:$0xf]
  %v134 = vld [vmem:[%s1 + $0x94] sm:$0xf]
  %v135 = vld [vmem:[%s1 + $0x98] sm:$0xf]
  %v136 = vld [vmem:[%s1 + $0x9c] sm:$0xf]
  %v137 = vld [vmem:[%s1 + $0xa0] sm:$0xf]
  %v138 = vld [vmem:[%s1 + $0xa4] sm:$0xf]
  %v139 = vld [vmem:[%s1 + $0xa8] sm:$0xf]
  %v140 = vld [vmem:[%s1 + $0xac] sm:$0xf]
  %v141 = vld [vmem:[%s1 + $0xb0] sm:$0xf]
  %v142 = vld [vmem:[%s1 + $0xb4] sm:$0xf]
  %v143 = vld [vmem:[%s1 + $0xb8] sm:$0xf]
  %v144 = vld [vmem:[%s1 + $0xbc] sm:$0xf]
  %v145 = vld [vmem:[%s1 + $0xc0] sm:$0xf]
  %v146 = vld [vmem:[%s1 + $0xc4] sm:$0xf]
  %v147 = vld [vmem:[%s1 + $0xc8] sm:$0xf]
  %v148 = vld [vmem:[%s1 + $0xcc] sm:$0xf]
  %v149 = vld [vmem:[%s1 + $0xd0] sm:$0xf]
  %v150 = vld [vmem:[%s1 + $0xd4] sm:$0xf]
  %v151 = vld [vmem:[%s1 + $0xd8] sm:$0xf]
  %v152 = vld [vmem:[%s1 + $0xdc] sm:$0xf]
  %v153 = vld [vmem:[%s1 + $0xe0] sm:$0xf]
  %v154 = vld [vmem:[%s1 + $0xe4] sm:$0xf]
  %v155 = vld [vmem:[%s1 + $0xe8] sm:$0xf]
  %v156 = vld [vmem:[%s1 + $0xec] sm:$0xf]
  %v157 = vld [vmem:[%s1 + $0xf0] sm:$0xf]
  %v158 = vld [vmem:[%s1 + $0xf4] sm:$0xf]
  %v159 = vld [vmem:[%s1 + $0xf8] sm:$0xf]
  %v160 = vld [vmem:[%s1 + $0xfc] sm:$0xf]
  %v161 = vld [vmem:[%s4] sm:$0x1]
  %v163 = vlaneseq
  %v164 = vshrl.u32 %v163, 7
  %v165 = vsub.s32 0, %v164
  %v166 = vrot.slane %v161, %v165
  %v232 = vunpack.c.l.b16 %v97
  %v233 = vunpack.c.l.b16 %v98
  %v234 = vunpack.c.l.b16 %v99
  %v235 = vunpack.c.l.b16 %v100
  %v236 = vunpack.c.l.b16 %v101
  %v237 = vunpack.c.l.b16 %v102
  %v238 = vunpack.c.l.b16 %v103
  %v239 = vunpack.c.l.b16 %v104
  %v240 = vunpack.c.l.b16 %v105
  %v241 = vunpack.c.l.b16 %v106
  %v242 = vunpack.c.l.b16 %v107
  %v243 = vunpack.c.l.b16 %v108
  %v244 = vunpack.c.l.b16 %v109
  %v245 = vunpack.c.l.b16 %v110
  %v246 = vunpack.c.l.b16 %v111
  %v247 = vunpack.c.l.b16 %v112
  %v248 = vunpack.c.l.b16 %v113
  %v249 = vunpack.c.l.b16 %v114
  %v250 = vunpack.c.l.b16 %v115
  %v251 = vunpack.c.l.b16 %v116
  %v252 = vunpack.c.l.b16 %v117
  %v253 = vunpack.c.l.b16 %v118
  %v254 = vunpack.c.l.b16 %v119
  %v255 = vunpack.c.l.b16 %v120
  %v256 = vunpack.c.l.b16 %v121
  %v257 = vunpack.c.l.b16 %v122
  %v258 = vunpack.c.l.b16 %v123
  %v259 = vunpack.c.l.b16 %v124
  %v260 = vunpack.c.l.b16 %v125
  %v261 = vunpack.c.l.b16 %v126
  %v262 = vunpack.c.l.b16 %v127
  %v263 = vunpack.c.l.b16 %v128
  %v264 = vunpack.c.l.b16 %v129
  %v265 = vunpack.c.l.b16 %v130
  %v266 = vunpack.c.l.b16 %v131
  %v267 = vunpack.c.l.b16 %v132
  %v268 = vunpack.c.l.b16 %v133
  %v269 = vunpack.c.l.b16 %v134
  %v270 = vunpack.c.l.b16 %v135
  %v271 = vunpack.c.l.b16 %v136
  %v272 = vunpack.c.l.b16 %v137
  %v273 = vunpack.c.l.b16 %v138
  %v274 = vunpack.c.l.b16 %v139
  %v275 = vunpack.c.l.b16 %v140
  %v276 = vunpack.c.l.b16 %v141
  %v277 = vunpack.c.l.b16 %v142
  %v278 = vunpack.c.l.b16 %v143
  %v279 = vunpack.c.l.b16 %v144
  %v280 = vunpack.c.l.b16 %v145
  %v281 = vunpack.c.l.b16 %v146
  %v282 = vunpack.c.l.b16 %v147
  %v283 = vunpack.c.l.b16 %v148
  %v284 = vunpack.c.l.b16 %v149
  %v285 = vunpack.c.l.b16 %v150
  %v286 = vunpack.c.l.b16 %v151
  %v287 = vunpack.c.l.b16 %v152
  %v288 = vunpack.c.l.b16 %v153
  %v289 = vunpack.c.l.b16 %v154
  %v290 = vunpack.c.l.b16 %v155
  %v291 = vunpack.c.l.b16 %v156
  %v292 = vunpack.c.l.b16 %v157
  %v293 = vunpack.c.l.b16 %v158
  %v294 = vunpack.c.l.b16 %v159
  %v295 = vunpack.c.l.b16 %v160
  %v296 = vpack.c.b16 %v233, %v232
  %v297 = vpack.c.b16 %v235, %v234
  %v298 = vpack.c.b16 %v237, %v236
  %v299 = vpack.c.b16 %v239, %v238
  %v300 = vpack.c.b16 %v241, %v240
  %v301 = vpack.c.b16 %v243, %v242
  %v302 = vpack.c.b16 %v245, %v244
  %v303 = vpack.c.b16 %v247, %v246
  %v304 = vpack.c.b16 %v249, %v248
  %v305 = vpack.c.b16 %v251, %v250
  %v306 = vpack.c.b16 %v253, %v252
  %v307 = vpack.c.b16 %v255, %v254
  %v308 = vpack.c.b16 %v257, %v256
  %v309 = vpack.c.b16 %v259, %v258
  %v310 = vpack.c.b16 %v261, %v260
  %v311 = vpack.c.b16 %v263, %v262
  %v312 = vpack.c.b16 %v265, %v264
  %v313 = vpack.c.b16 %v267, %v266
  %v314 = vpack.c.b16 %v269, %v268
  %v315 = vpack.c.b16 %v271, %v270
  %v316 = vpack.c.b16 %v273, %v272
  %v317 = vpack.c.b16 %v275, %v274
  %v318 = vpack.c.b16 %v277, %v276
  %v319 = vpack.c.b16 %v279, %v278
  %v320 = vpack.c.b16 %v281, %v280
  %v321 = vpack.c.b16 %v283, %v282
  %v322 = vpack.c.b16 %v285, %v284
  %v323 = vpack.c.b16 %v287, %v286
  %v324 = vpack.c.b16 %v289, %v288
  %v325 = vpack.c.b16 %v291, %v290
  %v326 = vpack.c.b16 %v293, %v292
  %v327 = vpack.c.b16 %v295, %v294
  %360 = vmatprep.subr.bf16.mxu0 0
  %361 = vmatpush1.bf16.msra.mxu0 %v296
  %362 = vmatprep.subr.bf16.mxu0 0
  %363 = vmatpush1.bf16.msra.mxu0 %v297
  %364 = vmatprep.subr.bf16.mxu0 0
  %365 = vmatpush1.bf16.msra.mxu0 %v298
  %366 = vmatprep.subr.bf16.mxu0 0
  %367 = vmatpush1.bf16.msra.mxu0 %v299
  %368 = vmatprep.subr.bf16.mxu0 0
  %369 = vmatpush1.bf16.msra.mxu0 %v300
  %370 = vmatprep.subr.bf16.mxu0 0
  %371 = vmatpush1.bf16.msra.mxu0 %v301
  %372 = vmatprep.subr.bf16.mxu0 0
  %373 = vmatpush1.bf16.msra.mxu0 %v302
  %374 = vmatprep.subr.bf16.mxu0 0
  %375 = vmatpush1.bf16.msra.mxu0 %v303
  %376 = vmatprep.subr.bf16.mxu0 0
  %377 = vmatpush1.bf16.msra.mxu0 %v304
  %378 = vmatprep.subr.bf16.mxu0 0
  %379 = vmatpush1.bf16.msra.mxu0 %v305
  %380 = vmatprep.subr.bf16.mxu0 0
  %381 = vmatpush1.bf16.msra.mxu0 %v306
  %382 = vmatprep.subr.bf16.mxu0 0
  %383 = vmatpush1.bf16.msra.mxu0 %v307
  %384 = vmatprep.subr.bf16.mxu0 0
  %385 = vmatpush1.bf16.msra.mxu0 %v308
  %386 = vmatprep.subr.bf16.mxu0 0
  %387 = vmatpush1.bf16.msra.mxu0 %v309
  %388 = vmatprep.subr.bf16.mxu0 0
  %389 = vmatpush1.bf16.msra.mxu0 %v310
  %390 = vmatprep.subr.bf16.mxu0 0
  %391 = vmatpush1.bf16.msra.mxu0 %v311
  %392 = vmatprep.mubr.bf16.mxu0 %v94
  %393 = vmatmul.mubr.bf16.gmra.mrb[0].mxu0 %v93
  %v394 = vpop.f32.mrb[0].mxu0
  %v395 = vadd.f32 %v166, %v394
  %v396 = vpop.f32.mrb[0].mxu0
  %v397 = vpop.f32.mrb[0].mxu0
  %v398 = vpop.f32.mrb[0].mxu0
  %399 = vdwg.mxu0
  %400 = vmatprep.subr.bf16.mxu0 0
  %401 = vmatpush1.bf16.msra.mxu0 %v312
  %402 = vmatprep.subr.bf16.mxu0 0
  %403 = vmatpush1.bf16.msra.mxu0 %v313
  %404 = vmatprep.subr.bf16.mxu0 0
  %405 = vmatpush1.bf16.msra.mxu0 %v314
  %406 = vmatprep.subr.bf16.mxu0 0
  %407 = vmatpush1.bf16.msra.mxu0 %v315
  %408 = vmatprep.subr.bf16.mxu0 0
  %409 = vmatpush1.bf16.msra.mxu0 %v316
  %410 = vmatprep.subr.bf16.mxu0 0
  %411 = vmatpush1.bf16.msra.mxu0 %v317
  %412 = vmatprep.subr.bf16.mxu0 0
  %413 = vmatpush1.bf16.msra.mxu0 %v318
  %414 = vmatprep.subr.bf16.mxu0 0
  %415 = vmatpush1.bf16.msra.mxu0 %v319
  %416 = vmatprep.subr.bf16.mxu0 0
  %417 = vmatpush1.bf16.msra.mxu0 %v320
  %418 = vmatprep.subr.bf16.mxu0 0
  %419 = vmatpush1.bf16.msra.mxu0 %v321
  %420 = vmatprep.subr.bf16.mxu0 0
  %421 = vmatpush1.bf16.msra.mxu0 %v322
  %422 = vmatprep.subr.bf16.mxu0 0
  %423 = vmatpush1.bf16.msra.mxu0 %v323
  %424 = vmatprep.subr.bf16.mxu0 0
  %425 = vmatpush1.bf16.msra.mxu0 %v324
  %426 = vmatprep.subr.bf16.mxu0 0
  %427 = vmatpush1.bf16.msra.mxu0 %v325
  %428 = vmatprep.subr.bf16.mxu0 0
  %429 = vmatpush1.bf16.msra.mxu0 %v326
  %430 = vmatprep.subr.bf16.mxu0 0
  %431 = vmatpush1.bf16.msra.mxu0 %v327
  %432 = vmatprep.mubr.bf16.mxu0 %v96
  %433 = vmatmul.mubr.bf16.gmra.mrb[0].mxu0 %v95
  %v434 = vpop.f32.mrb[0].mxu0
  %v435 = vadd.f32 %v395, %v434
  %v436 = vpop.f32.mrb[0].mxu0
  %v437 = vpop.f32.mrb[0].mxu0
  %v438 = vpop.f32.mrb[0].mxu0
  %439 = vdwg.mxu0
  %s440 = smul.u32 0, 8
  %v441 = vlaneseq
  %v442 = vshrl.u32 %v441, 7
  %v443 = vstv %s440
  %v444 = vadd.s32 %v443, %v442
  %vm445 = vcmp.lt.s32.totalorder %v444, 8
  %v446 = vsel %vm445, %v435, 0.0
  %v447 = vrot.slane %v446, 4
  %v448 = vadd.f32 %v446, %v447
  %v449 = vrot.slane %v448, 2
  %v450 = vadd.f32 %v448, %v449
  %v451 = vrot.slane %v450, 1
  %v452 = vadd.f32 %v450, %v451
  %453 = vst [vmem:[%s6] sm:$0x1] %v452
  %v454 = vmul.f32 %v446, %v446
  %v455 = vrot.slane %v454, 4
  %v456 = vadd.f32 %v454, %v455
  %v457 = vrot.slane %v456, 2
  %v458 = vadd.f32 %v456, %v457
  %v459 = vrot.slane %v458, 1
  %v460 = vadd.f32 %v458, %v459
  %461 = vst [vmem:[%s6 + $0x1] sm:$0x1] %v460
  %v462 = vpack.c.bf16 %v435, %v435
  %463 = vst [vmem:[%s5] sm:$0xf] %v462
  // Predicated region
  $region22: #{_lambda_.13} parent=0 // pred_check
    _
  $region23: #{_lambda_.13} parent=0 // pred_check_branch
    %465 = sbr.rel (0) target = $region25
  $region24: #{_lambda_.13} parent=0 // pred_region
    _
  $region25: #{_lambda_.13} parent=0 // pred_fallthru
    _
  // Predicated region
  $region26: #{_lambda_.13} parent=0 // pred_check
    _
  $region27: #{_lambda_.13} parent=0 // pred_check_branch
    %467 = sbr.rel (0) target = $region29
  $region28: #{_lambda_.13} parent=0 // pred_region
    _
  $region29: #{_lambda_.13} parent=0 // pred_fallthru
    _
  // Predicated region
  $region30: #{_lambda_.13} parent=0 // pred_check
    _
  $region31: #{_lambda_.13} parent=0 // pred_check_branch
    %469 = sbr.rel (0) target = $region33
  $region32: #{_lambda_.13} parent=0 // pred_region
    _
  $region33: #{_lambda_.13} parent=0 // pred_fallthru
    _
  // Predicated region
  $region34: #{_lambda_.13} parent=0 // pred_check
    _
  $region35: #{_lambda_.13} parent=0 // pred_check_branch
    %471 = sbr.rel (0) target = $region37
  $region36: #{_lambda_.13} parent=0 // pred_region
    _
  $region37: #{_lambda_.13} parent=0 // pred_fallthru
    _

// kernel: tile.115
$region0: #{tile.115}
  #allocation0 [shape = 's32[1]{0}', space=sflag, size = 0x4, scoped, tag = 'scoped memory for tile.115']
  %s0 = inlined_call_operand.<no memory space> [shape: f32[], index: 0, kind: input, shape index: {}]
  %s1 = inlined_call_operand.vmem [shape: f32[576], index: 1, kind: output, shape index: {}]
  %v2 = vstv %s0
  %3 = vst [vmem:[%s1] sm:$0xff] %v2

// kernel: _lambda_.14
$region0: #{_lambda_.14}
  #allocation0 [shape = 'u32[]', space=smem, size = 0x4, offset = 0x4, fixed_abs, tag = 'smem constant byte address 0x4 - core index']
  #allocation1 [shape = 'u32[144,128]{1,0:T(1,128)}', space=vmem, size = 0x12000, scoped, tag = 'internal scratch']
  %s0 = inlined_call_operand.vmem [shape: bf16[8,1024], index: 0, kind: input, shape index: {}]
  %s1 = inlined_call_operand.vmem [shape: bf16[1024,128], index: 1, kind: input, shape index: {}]
  %s2 = inlined_call_operand.vmem [shape: f32[1,1024], index: 2, kind: input, shape index: {}]
  %s3 = inlined_call_operand.vmem [shape: f32[1,1024], index: 3, kind: input, shape index: {}]
  %s4 = inlined_call_operand.vmem [shape: f32[1,128], index: 4, kind: input, shape index: {}]
  %s5 = inlined_call_operand.vmem [shape: bf16[8,128], index: 5, kind: output, shape index: {0}]
  %s6 = inlined_call_operand.hbm [shape: f32[1,2,128], index: 6, kind: output, shape index: {1}]
  %7 = xla_tuple %s5, %s6
  %s8 = sld [smem:[#allocation0]]
  $region38: #{_lambda_.14} parent=0
    _
  %s10 = ssub.s32 1, %s8
  %s11 = scalar_select 0, %s10, %s8
  $region1: #{_lambda_.14} parent=0
    #allocation2 [shape = 'u8[1024]{0}', space=vmem, size = 0x400, scoped, tag = 'output window, operand 1, single buffered']
    #allocation3 [shape = 's32[1]{0}', space=sflag, size = 0x4, scoped, tag = 'scoped memory for _lambda_.14']
    %12 = vsyncpa [#allocation3], 0
    // Predicated region
    $region2: #{_lambda_.14} parent=1 // pred_check
      _
    $region3: #{_lambda_.14} parent=1 // pred_check_branch
      %14 = sbr.rel (0) target = $region5
    $region4: #{_lambda_.14} parent=1 // pred_region
      _
    $region5: #{_lambda_.14} parent=1 // pred_fallthru
      _
    // Predicated region
    $region6: #{_lambda_.14} parent=1 // pred_check
      _
    $region7: #{_lambda_.14} parent=1 // pred_check_branch
      %16 = sbr.rel (0) target = $region9
    $region8: #{_lambda_.14} parent=1 // pred_region
      _
    $region9: #{_lambda_.14} parent=1 // pred_fallthru
      _
    // Predicated region
    $region10: #{_lambda_.14} parent=1 // pred_check
      _
    $region11: #{_lambda_.14} parent=1 // pred_check_branch
      %18 = sbr.rel (0) target = $region13
    $region12: #{_lambda_.14} parent=1 // pred_region
      _
    $region13: #{_lambda_.14} parent=1 // pred_fallthru
      _
    // Predicated region
    $region14: #{_lambda_.14} parent=1 // pred_check
      _
    $region15: #{_lambda_.14} parent=1 // pred_check_branch
      %20 = sbr.rel (0) target = $region17
    $region16: #{_lambda_.14} parent=1 // pred_region
      _
    $region17: #{_lambda_.14} parent=1 // pred_fallthru
      _
    // Predicated region
    $region18: #{_lambda_.14} parent=1 // pred_check
      _
    $region19: #{_lambda_.14} parent=1 // pred_check_branch
      %22 = sbr.rel (0) target = $region21
    $region20: #{_lambda_.14} parent=1 // pred_region
      _
    $region21: #{_lambda_.14} parent=1 // pred_fallthru
      _
    %v24 = vld [vmem:[%s0] sm:$0xff]
    %v25 = vld [vmem:[%s0 + $0x8] sm:$0xff]
    %v26 = vld [vmem:[%s0 + $0x10] sm:$0xff]
    %v27 = vld [vmem:[%s0 + $0x18] sm:$0xff]
    %v28 = vunpack.c.l.bf16 %v24
    %v29 = vunpack.c.h.bf16 %v24
    %v30 = vunpack.c.l.bf16 %v25
    %v31 = vunpack.c.h.bf16 %v25
    %v32 = vunpack.c.l.bf16 %v26
    %v33 = vunpack.c.h.bf16 %v26
    %v34 = vunpack.c.l.bf16 %v27
    %v35 = vunpack.c.h.bf16 %v27
    %v36 = vld [vmem:[%s2] sm:$0xff]
    %v38 = vlaneseq
    %v39 = vshrl.u32 %v38, 7
    %v40 = vsub.s32 0, %v39
    %v41 = vrot.slane %v36, %v40
    %v42 = vlaneseq
    %v43 = vshrl.u32 %v42, 7
    %v44 = vsub.s32 1, %v43
    %v45 = vrot.slane %v36, %v44
    %v46 = vlaneseq
    %v47 = vshrl.u32 %v46, 7
    %v48 = vsub.s32 2, %v47
    %v49 = vrot.slane %v36, %v48
    %v50 = vlaneseq
    %v51 = vshrl.u32 %v50, 7
    %v52 = vsub.s32 3, %v51
    %v53 = vrot.slane %v36, %v52
    %v54 = vlaneseq
    %v55 = vshrl.u32 %v54, 7
    %v56 = vsub.s32 4, %v55
    %v57 = vrot.slane %v36, %v56
    %v58 = vlaneseq
    %v59 = vshrl.u32 %v58, 7
    %v60 = vsub.s32 5, %v59
    %v61 = vrot.slane %v36, %v60
    %v62 = vlaneseq
    %v63 = vshrl.u32 %v62, 7
    %v64 = vsub.s32 6, %v63
    %v65 = vrot.slane %v36, %v64
    %v66 = vlaneseq
    %v67 = vshrl.u32 %v66, 7
    %v68 = vsub.s32 7, %v67
    %v69 = vrot.slane %v36, %v68
    %v78 = vmul.f32 %v28, %v41
    %v79 = vmul.f32 %v29, %v45
    %v80 = vmul.f32 %v30, %v49
    %v81 = vmul.f32 %v31, %v53
    %v82 = vmul.f32 %v32, %v57
    %v83 = vmul.f32 %v33, %v61
    %v84 = vmul.f32 %v34, %v65
    %v85 = vmul.f32 %v35, %v69
    %v86 = vld [vmem:[%s3] sm:$0xff]
    %v88 = vlaneseq
    %v89 = vshrl.u32 %v88, 7
    %v90 = vsub.s32 0, %v89
    %v91 = vrot.slane %v86, %v90
    %v92 = vlaneseq
    %v93 = vshrl.u32 %v92, 7
    %v94 = vsub.s32 1, %v93
    %v95 = vrot.slane %v86, %v94
    %v96 = vlaneseq
    %v97 = vshrl.u32 %v96, 7
    %v98 = vsub.s32 2, %v97
    %v99 = vrot.slane %v86, %v98
    %v100 = vlaneseq
    %v101 = vshrl.u32 %v100, 7
    %v102 = vsub.s32 3, %v101
    %v103 = vrot.slane %v86, %v102
    %v104 = vlaneseq
    %v105 = vshrl.u32 %v104, 7
    %v106 = vsub.s32 4, %v105
    %v107 = vrot.slane %v86, %v106
    %v108 = vlaneseq
    %v109 = vshrl.u32 %v108, 7
    %v110 = vsub.s32 5, %v109
    %v111 = vrot.slane %v86, %v110
    %v112 = vlaneseq
    %v113 = vshrl.u32 %v112, 7
    %v114 = vsub.s32 6, %v113
    %v115 = vrot.slane %v86, %v114
    %v116 = vlaneseq
    %v117 = vshrl.u32 %v116, 7
    %v118 = vsub.s32 7, %v117
    %v119 = vrot.slane %v86, %v118
    %v128 = vadd.f32 %v78, %v91
    %v129 = vadd.f32 %v79, %v95
    %v130 = vadd.f32 %v80, %v99
    %v131 = vadd.f32 %v81, %v103
    %v132 = vadd.f32 %v82, %v107
    %v133 = vadd.f32 %v83, %v111
    %v134 = vadd.f32 %v84, %v115
    %v135 = vadd.f32 %v85, %v119
    %vm136 = vcmp.ge.f32.partialorder %v128, 0.0
    %vm137 = vcmp.ge.f32.partialorder %v129, 0.0
    %vm138 = vcmp.ge.f32.partialorder %v130, 0.0
    %vm139 = vcmp.ge.f32.partialorder %v131, 0.0
    %vm140 = vcmp.ge.f32.partialorder %v132, 0.0
    %vm141 = vcmp.ge.f32.partialorder %v133, 0.0
    %vm142 = vcmp.ge.f32.partialorder %v134, 0.0
    %vm143 = vcmp.ge.f32.partialorder %v135, 0.0
    %v144 = vmul.f32 %v128, 0.2
    %v145 = vmul.f32 %v129, 0.2
    %v146 = vmul.f32 %v130, 0.2
    %v147 = vmul.f32 %v131, 0.2
    %v148 = vmul.f32 %v132, 0.2
    %v149 = vmul.f32 %v133, 0.2
    %v150 = vmul.f32 %v134, 0.2
    %v151 = vmul.f32 %v135, 0.2
    %v152 = vsel %vm136, %v128, %v144
    %v153 = vsel %vm137, %v129, %v145
    %v154 = vsel %vm138, %v130, %v146
    %v155 = vsel %vm139, %v131, %v147
    %v156 = vsel %vm140, %v132, %v148
    %v157 = vsel %vm141, %v133, %v149
    %v158 = vsel %vm142, %v134, %v150
    %v159 = vsel %vm143, %v135, %v151
    %v160 = vpack.c.bf16 %v152, %v152
    %v161 = vpack.c.bf16 %v153, %v153
    %v162 = vpack.c.bf16 %v154, %v154
    %v163 = vpack.c.bf16 %v155, %v155
    %v164 = vpack.c.bf16 %v156, %v156
    %v165 = vpack.c.bf16 %v157, %v157
    %v166 = vpack.c.bf16 %v158, %v158
    %v167 = vpack.c.bf16 %v159, %v159
    %v168 = vld [vmem:[%s1] sm:$0xf]
    %v169 = vld [vmem:[%s1 + $0x4] sm:$0xf]
    %v170 = vld [vmem:[%s1 + $0x8] sm:$0xf]
    %v171 = vld [vmem:[%s1 + $0xc] sm:$0xf]
    %v172 = vld [vmem:[%s1 + $0x10] sm:$0xf]
    %v173 = vld [vmem:[%s1 + $0x14] sm:$0xf]
    %v174 = vld [vmem:[%s1 + $0x18] sm:$0xf]
    %v175 = vld [vmem:[%s1 + $0x1c] sm:$0xf]
    %v176 = vld [vmem:[%s1 + $0x20] sm:$0xf]
    %v177 = vld [vmem:[%s1 + $0x24] sm:$0xf]
    %v178 = vld [vmem:[%s1 + $0x28] sm:$0xf]
    %v179 = vld [vmem:[%s1 + $0x2c] sm:$0xf]
    %v180 = vld [vmem:[%s1 + $0x30] sm:$0xf]
    %v181 = vld [vmem:[%s1 + $0x34] sm:$0xf]
    %v182 = vld [vmem:[%s1 + $0x38] sm:$0xf]
    %v183 = vld [vmem:[%s1 + $0x3c] sm:$0xf]
    %v184 = vld [vmem:[%s1 + $0x40] sm:$0xf]
    %v185 = vld [vmem:[%s1 + $0x44] sm:$0xf]
    %v186 = vld [vmem:[%s1 + $0x48] sm:$0xf]
    %v187 = vld [vmem:[%s1 + $0x4c] sm:$0xf]
    %v188 = vld [vmem:[%s1 + $0x50] sm:$0xf]
    %v189 = vld [vmem:[%s1 + $0x54] sm:$0xf]
    %v190 = vld [vmem:[%s1 + $0x58] sm:$0xf]
    %v191 = vld [vmem:[%s1 + $0x5c] sm:$0xf]
    %v192 = vld [vmem:[%s1 + $0x60] sm:$0xf]
    %v193 = vld [vmem:[%s1 + $0x64] sm:$0xf]
    %v194 = vld [vmem:[%s1 + $0x68] sm:$0xf]
    %v195 = vld [vmem:[%s1 + $0x6c] sm:$0xf]
    %v196 = vld [vmem:[%s1 + $0x70] sm:$0xf]
    %v197 = vld [vmem:[%s1 + $0x74] sm:$0xf]
    %v198 = vld [vmem:[%s1 + $0x78] sm:$0xf]
    %v199 = vld [vmem:[%s1 + $0x7c] sm:$0xf]
    %v200 = vld [vmem:[%s1 + $0x80] sm:$0xf]
    %v201 = vld [vmem:[%s1 + $0x84] sm:$0xf]
    %v202 = vld [vmem:[%s1 + $0x88] sm:$0xf]
    %v203 = vld [vmem:[%s1 + $0x8c] sm:$0xf]
    %v204 = vld [vmem:[%s1 + $0x90] sm:$0xf]
    %v205 = vld [vmem:[%s1 + $0x94] sm:$0xf]
    %v206 = vld [vmem:[%s1 + $0x98] sm:$0xf]
    %v207 = vld [vmem:[%s1 + $0x9c] sm:$0xf]
    %v208 = vld [vmem:[%s1 + $0xa0] sm:$0xf]
    %v209 = vld [vmem:[%s1 + $0xa4] sm:$0xf]
    %v210 = vld [vmem:[%s1 + $0xa8] sm:$0xf]
    %v211 = vld [vmem:[%s1 + $0xac] sm:$0xf]
    %v212 = vld [vmem:[%s1 + $0xb0] sm:$0xf]
    %v213 = vld [vmem:[%s1 + $0xb4] sm:$0xf]
    %v214 = vld [vmem:[%s1 + $0xb8] sm:$0xf]
    %v215 = vld [vmem:[%s1 + $0xbc] sm:$0xf]
    %v216 = vld [vmem:[%s1 + $0xc0] sm:$0xf]
    %v217 = vld [vmem:[%s1 + $0xc4] sm:$0xf]
    %v218 = vld [vmem:[%s1 + $0xc8] sm:$0xf]
    %v219 = vld [vmem:[%s1 + $0xcc] sm:$0xf]
    %v220 = vld [vmem:[%s1 + $0xd0] sm:$0xf]
    %v221 = vld [vmem:[%s1 + $0xd4] sm:$0xf]
    %v222 = vld [vmem:[%s1 + $0xd8] sm:$0xf]
    %v223 = vld [vmem:[%s1 + $0xdc] sm:$0xf]
    %v224 = vld [vmem:[%s1 + $0xe0] sm:$0xf]
    %v225 = vld [vmem:[%s1 + $0xe4] sm:$0xf]
    %v226 = vld [vmem:[%s1 + $0xe8] sm:$0xf]
    %v227 = vld [vmem:[%s1 + $0xec] sm:$0xf]
    %v228 = vld [vmem:[%s1 + $0xf0] sm:$0xf]
    %v229 = vld [vmem:[%s1 + $0xf4] sm:$0xf]
    %v230 = vld [vmem:[%s1 + $0xf8] sm:$0xf]
    %v231 = vld [vmem:[%s1 + $0xfc] sm:$0xf]
    %v232 = vld [vmem:[%s1 + $0x100] sm:$0xf]
    %v233 = vld [vmem:[%s1 + $0x104] sm:$0xf]
    %v234 = vld [vmem:[%s1 + $0x108] sm:$0xf]
    %v235 = vld [vmem:[%s1 + $0x10c] sm:$0xf]
    %v236 = vld [vmem:[%s1 + $0x110] sm:$0xf]
    %v237 = vld [vmem:[%s1 + $0x114] sm:$0xf]
    %v238 = vld [vmem:[%s1 + $0x118] sm:$0xf]
    %v239 = vld [vmem:[%s1 + $0x11c] sm:$0xf]
    %v240 = vld [vmem:[%s1 + $0x120] sm:$0xf]
    %v241 = vld [vmem:[%s1 + $0x124] sm:$0xf]
    %v242 = vld [vmem:[%s1 + $0x128] sm:$0xf]
    %v243 = vld [vmem:[%s1 + $0x12c] sm:$0xf]
    %v244 = vld [vmem:[%s1 + $0x130] sm:$0xf]
    %v245 = vld [vmem:[%s1 + $0x134] sm:$0xf]
    %v246 = vld [vmem:[%s1 + $0x138] sm:$0xf]
    %v247 = vld [vmem:[%s1 + $0x13c] sm:$0xf]
    %v248 = vld [vmem:[%s1 + $0x140] sm:$0xf]
    %v249 = vld [vmem:[%s1 + $0x144] sm:$0xf]
    %v250 = vld [vmem:[%s1 + $0x148] sm:$0xf]
    %v251 = vld [vmem:[%s1 + $0x14c] sm:$0xf]
    %v252 = vld [vmem:[%s1 + $0x150] sm:$0xf]
    %v253 = vld [vmem:[%s1 + $0x154] sm:$0xf]
    %v254 = vld [vmem:[%s1 + $0x158] sm:$0xf]
    %v255 = vld [vmem:[%s1 + $0x15c] sm:$0xf]
    %v256 = vld [vmem:[%s1 + $0x160] sm:$0xf]
    %v257 = vld [vmem:[%s1 + $0x164] sm:$0xf]
    %v258 = vld [vmem:[%s1 + $0x168] sm:$0xf]
    %v259 = vld [vmem:[%s1 + $0x16c] sm:$0xf]
    %v260 = vld [vmem:[%s1 + $0x170] sm:$0xf]
    %v261 = vld [vmem:[%s1 + $0x174] sm:$0xf]
    %v262 = vld [vmem:[%s1 + $0x178] sm:$0xf]
    %v263 = vld [vmem:[%s1 + $0x17c] sm:$0xf]
    %v264 = vld [vmem:[%s1 + $0x180] sm:$0xf]
    %v265 = vld [vmem:[%s1 + $0x184] sm:$0xf]
    %v266 = vld [vmem:[%s1 + $0x188] sm:$0xf]
    %v267 = vld [vmem:[%s1 + $0x18c] sm:$0xf]
    %v268 = vld [vmem:[%s1 + $0x190] sm:$0xf]
    %v269 = vld [vmem:[%s1 + $0x194] sm:$0xf]
    %v270 = vld [vmem:[%s1 + $0x198] sm:$0xf]
    %v271 = vld [vmem:[%s1 + $0x19c] sm:$0xf]
    %v272 = vld [vmem:[%s1 + $0x1a0] sm:$0xf]
    %v273 = vld [vmem:[%s1 + $0x1a4] sm:$0xf]
    %v274 = vld [vmem:[%s1 + $0x1a8] sm:$0xf]
    %v275 = vld [vmem:[%s1 + $0x1ac] sm:$0xf]
    %v276 = vld [vmem:[%s1 + $0x1b0] sm:$0xf]
    %v277 = vld [vmem:[%s1 + $0x1b4] sm:$0xf]
    %v278 = vld [vmem:[%s1 + $0x1b8] sm:$0xf]
    %v279 = vld [vmem:[%s1 + $0x1bc] sm:$0xf]
    %v280 = vld [vmem:[%s1 + $0x1c0] sm:$0xf]
    %v281 = vld [vmem:[%s1 + $0x1c4] sm:$0xf]
    %v282 = vld [vmem:[%s1 + $0x1c8] sm:$0xf]
    %v283 = vld [vmem:[%s1 + $0x1cc] sm:$0xf]
    %v284 = vld [vmem:[%s1 + $0x1d0] sm:$0xf]
    %v285 = vld [vmem:[%s1 + $0x1d4] sm:$0xf]
    %v286 = vld [vmem:[%s1 + $0x1d8] sm:$0xf]
    %v287 = vld [vmem:[%s1 + $0x1dc] sm:$0xf]
    %v288 = vld [vmem:[%s1 + $0x1e0] sm:$0xf]
    %v289 = vld [vmem:[%s1 + $0x1e4] sm:$0xf]
    %v290 = vld [vmem:[%s1 + $0x1e8] sm:$0xf]
    %v291 = vld [vmem:[%s1 + $0x1ec] sm:$0xf]
    %v292 = vld [vmem:[%s1 + $0x1f0] sm:$0xf]
    %v293 = vld [vmem:[%s1 + $0x1f4] sm:$0xf]
    %v294 = vld [vmem:[%s1 + $0x1f8] sm:$0xf]
    %v295 = vld [vmem:[%s1 + $0x1fc] sm:$0xf]
    %v296 = vld [vmem:[%s4] sm:$0x1]
    %v298 = vlaneseq
    %v299 = vshrl.u32 %v298, 7
    %v300 = vsub.s32 0, %v299
    %v301 = vrot.slane %v296, %v300
    %v431 = vunpack.c.l.b16 %v168
    %v432 = vunpack.c.l.b16 %v169
    %v433 = vunpack.c.l.b16 %v170
    %v434 = vunpack.c.l.b16 %v171
    %v435 = vunpack.c.l.b16 %v172
    %v436 = vunpack.c.l.b16 %v173
    %v437 = vunpack.c.l.b16 %v174
    %v438 = vunpack.c.l.b16 %v175
    %v439 = vunpack.c.l.b16 %v176
    %v440 = vunpack.c.l.b16 %v177
    %v441 = vunpack.c.l.b16 %v178
    %v442 = vunpack.c.l.b16 %v179
    %v443 = vunpack.c.l.b16 %v180
    %v444 = vunpack.c.l.b16 %v181
    %v445 = vunpack.c.l.b16 %v182
    %v446 = vunpack.c.l.b16 %v183
    %v447 = vunpack.c.l.b16 %v184
    %v448 = vunpack.c.l.b16 %v185
    %v449 = vunpack.c.l.b16 %v186
    %v450 = vunpack.c.l.b16 %v187
    %v451 = vunpack.c.l.b16 %v188
    %v452 = vunpack.c.l.b16 %v189
    %v453 = vunpack.c.l.b16 %v190
    %v454 = vunpack.c.l.b16 %v191
    %v455 = vunpack.c.l.b16 %v192
    %v456 = vunpack.c.l.b16 %v193
    %v457 = vunpack.c.l.b16 %v194
    %v458 = vunpack.c.l.b16 %v195
    %v459 = vunpack.c.l.b16 %v196
    %v460 = vunpack.c.l.b16 %v197
    %v461 = vunpack.c.l.b16 %v198
    %v462 = vunpack.c.l.b16 %v199
    %v463 = vunpack.c.l.b16 %v200
    %v464 = vunpack.c.l.b16 %v201
    %v465 = vunpack.c.l.b16 %v202
    %v466 = vunpack.c.l.b16 %v203
    %v467 = vunpack.c.l.b16 %v204
    %v468 = vunpack.c.l.b16 %v205
    %v469 = vunpack.c.l.b16 %v206
    %v470 = vunpack.c.l.b16 %v207
    %v471 = vunpack.c.l.b16 %v208
    %v472 = vunpack.c.l.b16 %v209
    %v473 = vunpack.c.l.b16 %v210
    %v474 = vunpack.c.l.b16 %v211
    %v475 = vunpack.c.l.b16 %v212
    %v476 = vunpack.c.l.b16 %v213
    %v477 = vunpack.c.l.b16 %v214
    %v478 = vunpack.c.l.b16 %v215
    %v479 = vunpack.c.l.b16 %v216
    %v480 = vunpack.c.l.b16 %v217
    %v481 = vunpack.c.l.b16 %v218
    %v482 = vunpack.c.l.b16 %v219
    %v483 = vunpack.c.l.b16 %v220
    %v484 = vunpack.c.l.b16 %v221
    %v485 = vunpack.c.l.b16 %v222
    %v486 = vunpack.c.l.b16 %v223
    %v487 = vunpack.c.l.b16 %v224
    %v488 = vunpack.c.l.b16 %v225
    %v489 = vunpack.c.l.b16 %v226
    %v490 = vunpack.c.l.b16 %v227
    %v491 = vunpack.c.l.b16 %v228
    %v492 = vunpack.c.l.b16 %v229
    %v493 = vunpack.c.l.b16 %v230
    %v494 = vunpack.c.l.b16 %v231
    %v495 = vunpack.c.l.b16 %v232
    %v496 = vunpack.c.l.b16 %v233
    %v497 = vunpack.c.l.b16 %v234
    %v498 = vunpack.c.l.b16 %v235
    %v499 = vunpack.c.l.b16 %v236
    %v500 = vunpack.c.l.b16 %v237
    %v501 = vunpack.c.l.b16 %v238
    %v502 = vunpack.c.l.b16 %v239
    %v503 = vunpack.c.l.b16 %v240
    %v504 = vunpack.c.l.b16 %v241
    %v505 = vunpack.c.l.b16 %v242
    %v506 = vunpack.c.l.b16 %v243
    %v507 = vunpack.c.l.b16 %v244
    %v508 = vunpack.c.l.b16 %v245
    %v509 = vunpack.c.l.b16 %v246
    %v510 = vunpack.c.l.b16 %v247
    %v511 = vunpack.c.l.b16 %v248
    %v512 = vunpack.c.l.b16 %v249
    %v513 = vunpack.c.l.b16 %v250
    %v514 = vunpack.c.l.b16 %v251
    %v515 = vunpack.c.l.b16 %v252
    %v516 = vunpack.c.l.b16 %v253
    %v517 = vunpack.c.l.b16 %v254
    %v518 = vunpack.c.l.b16 %v255
    %v519 = vunpack.c.l.b16 %v256
    %v520 = vunpack.c.l.b16 %v257
    %v521 = vunpack.c.l.b16 %v258
    %v522 = vunpack.c.l.b16 %v259
    %v523 = vunpack.c.l.b16 %v260
    %v524 = vunpack.c.l.b16 %v261
    %v525 = vunpack.c.l.b16 %v262
    %v526 = vunpack.c.l.b16 %v263
    %v527 = vunpack.c.l.b16 %v264
    %v528 = vunpack.c.l.b16 %v265
    %v529 = vunpack.c.l.b16 %v266
    %v530 = vunpack.c.l.b16 %v267
    %v531 = vunpack.c.l.b16 %v268
    %v532 = vunpack.c.l.b16 %v269
    %v533 = vunpack.c.l.b16 %v270
    %v534 = vunpack.c.l.b16 %v271
    %v535 = vunpack.c.l.b16 %v272
    %v536 = vunpack.c.l.b16 %v273
    %v537 = vunpack.c.l.b16 %v274
    %v538 = vunpack.c.l.b16 %v275
    %v539 = vunpack.c.l.b16 %v276
    %v540 = vunpack.c.l.b16 %v277
    %v541 = vunpack.c.l.b16 %v278
    %v542 = vunpack.c.l.b16 %v279
    %v543 = vunpack.c.l.b16 %v280
    %v544 = vunpack.c.l.b16 %v281
    %v545 = vunpack.c.l.b16 %v282
    %v546 = vunpack.c.l.b16 %v283
    %v547 = vunpack.c.l.b16 %v284
    %v548 = vunpack.c.l.b16 %v285
    %v549 = vunpack.c.l.b16 %v286
    %v550 = vunpack.c.l.b16 %v287
    %v551 = vunpack.c.l.b16 %v288
    %v552 = vunpack.c.l.b16 %v289
    %v553 = vunpack.c.l.b16 %v290
    %v554 = vunpack.c.l.b16 %v291
    %v555 = vunpack.c.l.b16 %v292
    %v556 = vunpack.c.l.b16 %v293
    %v557 = vunpack.c.l.b16 %v294
    %v558 = vunpack.c.l.b16 %v295
    %v559 = vpack.c.b16 %v432, %v431
    %v560 = vpack.c.b16 %v434, %v433
    %v561 = vpack.c.b16 %v436, %v435
    %v562 = vpack.c.b16 %v438, %v437
    %v563 = vpack.c.b16 %v440, %v439
    %v564 = vpack.c.b16 %v442, %v441
    %v565 = vpack.c.b16 %v444, %v443
    %v566 = vpack.c.b16 %v446, %v445
    %v567 = vpack.c.b16 %v448, %v447
    %v568 = vpack.c.b16 %v450, %v449
    %v569 = vpack.c.b16 %v452, %v451
    %v570 = vpack.c.b16 %v454, %v453
    %v571 = vpack.c.b16 %v456, %v455
    %v572 = vpack.c.b16 %v458, %v457
    %v573 = vpack.c.b16 %v460, %v459
    %v574 = vpack.c.b16 %v462, %v461
    %v575 = vpack.c.b16 %v464, %v463
    %v576 = vpack.c.b16 %v466, %v465
    %v577 = vpack.c.b16 %v468, %v467
    %v578 = vpack.c.b16 %v470, %v469
    %v579 = vpack.c.b16 %v472, %v471
    %v580 = vpack.c.b16 %v474, %v473
    %v581 = vpack.c.b16 %v476, %v475
    %v582 = vpack.c.b16 %v478, %v477
    %v583 = vpack.c.b16 %v480, %v479
    %v584 = vpack.c.b16 %v482, %v481
    %v585 = vpack.c.b16 %v484, %v483
    %v586 = vpack.c.b16 %v486, %v485
    %v587 = vpack.c.b16 %v488, %v487
    %v588 = vpack.c.b16 %v490, %v489
    %v589 = vpack.c.b16 %v492, %v491
    %v590 = vpack.c.b16 %v494, %v493
    %v591 = vpack.c.b16 %v496, %v495
    %v592 = vpack.c.b16 %v498, %v497
    %v593 = vpack.c.b16 %v500, %v499
    %v594 = vpack.c.b16 %v502, %v501
    %v595 = vpack.c.b16 %v504, %v503
    %v596 = vpack.c.b16 %v506, %v505
    %v597 = vpack.c.b16 %v508, %v507
    %v598 = vpack.c.b16 %v510, %v509
    %v599 = vpack.c.b16 %v512, %v511
    %v600 = vpack.c.b16 %v514, %v513
    %v601 = vpack.c.b16 %v516, %v515
    %v602 = vpack.c.b16 %v518, %v517
    %v603 = vpack.c.b16 %v520, %v519
    %v604 = vpack.c.b16 %v522, %v521
    %v605 = vpack.c.b16 %v524, %v523
    %v606 = vpack.c.b16 %v526, %v525
    %v607 = vpack.c.b16 %v528, %v527
    %v608 = vpack.c.b16 %v530, %v529
    %v609 = vpack.c.b16 %v532, %v531
    %v610 = vpack.c.b16 %v534, %v533
    %v611 = vpack.c.b16 %v536, %v535
    %v612 = vpack.c.b16 %v538, %v537
    %v613 = vpack.c.b16 %v540, %v539
    %v614 = vpack.c.b16 %v542, %v541
    %v615 = vpack.c.b16 %v544, %v543
    %v616 = vpack.c.b16 %v546, %v545
    %v617 = vpack.c.b16 %v548, %v547
    %v618 = vpack.c.b16 %v550, %v549
    %v619 = vpack.c.b16 %v552, %v551
    %v620 = vpack.c.b16 %v554, %v553
    %v621 = vpack.c.b16 %v556, %v555
    %v622 = vpack.c.b16 %v558, %v557
    %687 = vmatprep.subr.bf16.mxu0 0
    %688 = vmatpush1.bf16.msra.mxu0 %v559
    %689 = vmatprep.subr.bf16.mxu0 0
    %690 = vmatpush1.bf16.msra.mxu0 %v560
    %691 = vmatprep.subr.bf16.mxu0 0
    %692 = vmatpush1.bf16.msra.mxu0 %v561
    %693 = vmatprep.subr.bf16.mxu0 0
    %694 = vmatpush1.bf16.msra.mxu0 %v562
    %695 = vmatprep.subr.bf16.mxu0 0
    %696 = vmatpush1.bf16.msra.mxu0 %v563
    %697 = vmatprep.subr.bf16.mxu0 0
    %698 = vmatpush1.bf16.msra.mxu0 %v564
    %699 = vmatprep.subr.bf16.mxu0 0
    %700 = vmatpush1.bf16.msra.mxu0 %v565
    %701 = vmatprep.subr.bf16.mxu0 0
    %702 = vmatpush1.bf16.msra.mxu0 %v566
    %703 = vmatprep.subr.bf16.mxu0 0
    %704 = vmatpush1.bf16.msra.mxu0 %v567
    %705 = vmatprep.subr.bf16.mxu0 0
    %706 = vmatpush1.bf16.msra.mxu0 %v568
    %707 = vmatprep.subr.bf16.mxu0 0
    %708 = vmatpush1.bf16.msra.mxu0 %v569
    %709 = vmatprep.subr.bf16.mxu0 0
    %710 = vmatpush1.bf16.msra.mxu0 %v570
    %711 = vmatprep.subr.bf16.mxu0 0
    %712 = vmatpush1.bf16.msra.mxu0 %v571
    %713 = vmatprep.subr.bf16.mxu0 0
    %714 = vmatpush1.bf16.msra.mxu0 %v572
    %715 = vmatprep.subr.bf16.mxu0 0
    %716 = vmatpush1.bf16.msra.mxu0 %v573
    %717 = vmatprep.subr.bf16.mxu0 0
    %718 = vmatpush1.bf16.msra.mxu0 %v574
    %719 = vmatprep.mubr.bf16.mxu0 %v161
    %720 = vmatmul.mubr.bf16.gmra.mrb[0].mxu0 %v160
    %v721 = vpop.f32.mrb[0].mxu0
    %v722 = vadd.f32 %v301, %v721
    %v723 = vpop.f32.mrb[0].mxu0
    %v724 = vpop.f32.mrb[0].mxu0
    %v725 = vpop.f32.mrb[0].mxu0
    %726 = vdwg.mxu0
    %727 = vmatprep.subr.bf16.mxu0 0
    %728 = vmatpush1.bf16.msra.mxu0 %v575
    %729 = vmatprep.subr.bf16.mxu0 0
    %730 = vmatpush1.bf16.msra.mxu0 %v576
    %731 = vmatprep.subr.bf16.mxu0 0
    %732 = vmatpush1.bf16.msra.mxu0 %v577
    %733 = vmatprep.subr.bf16.mxu0 0
    %734 = vmatpush1.bf16.msra.mxu0 %v578
    %735 = vmatprep.subr.bf16.mxu0 0
    %736 = vmatpush1.bf16.msra.mxu0 %v579
    %737 = vmatprep.subr.bf16.mxu0 0
    %738 = vmatpush1.bf16.msra.mxu0 %v580
    %739 = vmatprep.subr.bf16.mxu0 0
    %740 = vmatpush1.bf16.msra.mxu0 %v581
    %741 = vmatprep.subr.bf16.mxu0 0
    %742 = vmatpush1.bf16.msra.mxu0 %v582
    %743 = vmatprep.subr.bf16.mxu0 0
    %744 = vmatpush1.bf16.msra.mxu0 %v583
    %745 = vmatprep.subr.bf16.mxu0 0
    %746 = vmatpush1.bf16.msra.mxu0 %v584
    %747 = vmatprep.subr.bf16.mxu0 0
    %748 = vmatpush1.bf16.msra.mxu0 %v585
    %749 = vmatprep.subr.bf16.mxu0 0
    %750 = vmatpush1.bf16.msra.mxu0 %v586
    %751 = vmatprep.subr.bf16.mxu0 0
    %752 = vmatpush1.bf16.msra.mxu0 %v587
    %753 = vmatprep.subr.bf16.mxu0 0
    %754 = vmatpush1.bf16.msra.mxu0 %v588
    %755 = vmatprep.subr.bf16.mxu0 0
    %756 = vmatpush1.bf16.msra.mxu0 %v589
    %757 = vmatprep.subr.bf16.mxu0 0
    %758 = vmatpush1.bf16.msra.mxu0 %v590
    %759 = vmatprep.mubr.bf16.mxu0 %v163
    %760 = vmatmul.mubr.bf16.gmra.mrb[0].mxu0 %v162
    %v761 = vpop.f32.mrb[0].mxu0
    %v762 = vadd.f32 %v722, %v761
    %v763 = vpop.f32.mrb[0].mxu0
    %v764 = vpop.f32.mrb[0].mxu0
    %v765 = vpop.f32.mrb[0].mxu0
    %766 = vdwg.mxu0
    %767 = vmatprep.subr.bf16.mxu0 0
    %768 = vmatpush1.bf16.msra.mxu0 %v591
    %769 = vmatprep.subr.bf16.mxu0 0
    %770 = vmatpush1.bf16.msra.mxu0 %v592
    %771 = vmatprep.subr.bf16.mxu0 0
    %772 = vmatpush1.bf16.msra.mxu0 %v593
    %773 = vmatprep.subr.bf16.mxu0 0
    %774 = vmatpush1.bf16.msra.mxu0 %v594
    %775 = vmatprep.subr.bf16.mxu0 0
    %776 = vmatpush1.bf16.msra.mxu0 %v595
    %777 = vmatprep.subr.bf16.mxu0 0
    %778 = vmatpush1.bf16.msra.mxu0 %v596
    %779 = vmatprep.subr.bf16.mxu0 0
    %780 = vmatpush1.bf16.msra.mxu0 %v597
    %781 = vmatprep.subr.bf16.mxu0 0
    %782 = vmatpush1.bf16.msra.mxu0 %v598
    %783 = vmatprep.subr.bf16.mxu0 0
    %784 = vmatpush1.bf16.msra.mxu0 %v599
    %785 = vmatprep.subr.bf16.mxu0 0
    %786 = vmatpush1.bf16.msra.mxu0 %v600
    %787 = vmatprep.subr.bf16.mxu0 0
    %788 = vmatpush1.bf16.msra.mxu0 %v601
    %789 = vmatprep.subr.bf16.mxu0 0
    %790 = vmatpush1.bf16.msra.mxu0 %v602
    %791 = vmatprep.subr.bf16.mxu0 0
    %792 = vmatpush1.bf16.msra.mxu0 %v603
    %793 = vmatprep.subr.bf16.mxu0 0
    %794 = vmatpush1.bf16.msra.mxu0 %v604
    %795 = vmatprep.subr.bf16.mxu0 0
    %796 = vmatpush1.bf16.msra.mxu0 %v605
    %797 = vmatprep.subr.bf16.mxu0 0
    %798 = vmatpush1.bf16.msra.mxu0 %v606
    %799 = vmatprep.mubr.bf16.mxu0 %v165
    %800 = vmatmul.mubr.bf16.gmra.mrb[0].mxu0 %v164
    %v801 = vpop.f32.mrb[0].mxu0
    %v802 = vadd.f32 %v762, %v801
    %v803 = vpop.f32.mrb[0].mxu0
    %v804 = vpop.f32.mrb[0].mxu0
    %v805 = vpop.f32.mrb[0].mxu0
    %806 = vdwg.mxu0
    %807 = vmatprep.subr.bf16.mxu0 0
    %808 = vmatpush1.bf16.msra.mxu0 %v607
    %809 = vmatprep.subr.bf16.mxu0 0
    %810 = vmatpush1.bf16.msra.mxu0 %v608
    %811 = vmatprep.subr.bf16.mxu0 0
    %812 = vmatpush1.bf16.msra.mxu0 %v609
    %813 = vmatprep.subr.bf16.mxu0 0
    %814 = vmatpush1.bf16.msra.mxu0 %v610
    %815 = vmatprep.subr.bf16.mxu0 0
    %816 = vmatpush1.bf16.msra.mxu0 %v611
    %817 = vmatprep.subr.bf16.mxu0 0
    %818 = vmatpush1.bf16.msra.mxu0 %v612
    %819 = vmatprep.subr.bf16.mxu0 0
    %820 = vmatpush1.bf16.msra.mxu0 %v613
    %821 = vmatprep.subr.bf16.mxu0 0
    %822 = vmatpush1.bf16.msra.mxu0 %v614
    %823 = vmatprep.subr.bf16.mxu0 0
    %824 = vmatpush1.bf16.msra.mxu0 %v615
    %825 = vmatprep.subr.bf16.mxu0 0
    %826 = vmatpush1.bf16.msra.mxu0 %v616
    %827 = vmatprep.subr.bf16.mxu0 0
    %828 = vmatpush1.bf16.msra.mxu0 %v617
    %829 = vmatprep.subr.bf16.mxu0 0
    %830 = vmatpush1.bf16.msra.mxu0 %v618
    %831 = vmatprep.subr.bf16.mxu0 0
    %832 = vmatpush1.bf16.msra.mxu0 %v619
    %833 = vmatprep.subr.bf16.mxu0 0
    %834 = vmatpush1.bf16.msra.mxu0 %v620
    %835 = vmatprep.subr.bf16.mxu0 0
    %836 = vmatpush1.bf16.msra.mxu0 %v621
    %837 = vmatprep.subr.bf16.mxu0 0
    %838 = vmatpush1.bf16.msra.mxu0 %v622
    %839 = vmatprep.mubr.bf16.mxu0 %v167
    %840 = vmatmul.mubr.bf16.gmra.mrb[0].mxu0 %v166
    %v841 = vpop.f32.mrb[0].mxu0
    %v842 = vadd.f32 %v802, %v841
    %v843 = vpop.f32.mrb[0].mxu0
    %v844 = vpop.f32.mrb[0].mxu0
    %v845 = vpop.f32.mrb[0].mxu0
    %846 = vdwg.mxu0
    %s847 = smul.u32 0, 8
    %v848 = vlaneseq
    %v849 = vshrl.u32 %v848, 7
    %v850 = vstv %s847
    %v851 = vadd.s32 %v850, %v849
    %vm852 = vcmp.lt.s32.totalorder %v851, 2
    %v853 = vsel %vm852, %v842, 0.0
    %v854 = vrot.slane %v853, 4
    %v855 = vadd.f32 %v853, %v854
    %v856 = vrot.slane %v855, 2
    %v857 = vadd.f32 %v855, %v856
    %v858 = vrot.slane %v857, 1
    %v859 = vadd.f32 %v857, %v858
    %860 = vst [vmem:[#allocation2] sm:$0x1] %v859
    %v861 = vmul.f32 %v853, %v853
    %v862 = vrot.slane %v861, 4
    %v863 = vadd.f32 %v861, %v862
    %v864 = vrot.slane %v863, 2
    %v865 = vadd.f32 %v863, %v864
    %v866 = vrot.slane %v865, 1
    %v867 = vadd.f32 %v865, %v866
    %868 = vst [vmem:[#allocation2 + $0x1] sm:$0x1] %v867
    %v869 = vpack.c.bf16 %v842, %v842
    %870 = vst [vmem:[%s5] sm:$0xf] %v869
    // Predicated region
    $region22: #{_lambda_.14} parent=1 // pred_check
      _
    $region23: #{_lambda_.14} parent=1 // pred_check_branch
      %872 = sbr.rel (0) target = $region25
    $region24: #{_lambda_.14} parent=1 // pred_region
      _
    $region25: #{_lambda_.14} parent=1 // pred_fallthru
      _
    // Predicated region
    $region26: #{_lambda_.14} parent=1 // pred_check
      _
    $region27: #{_lambda_.14} parent=1 // pred_check_branch
      %874 = sbr.rel (0) target = $region29
    $region28: #{_lambda_.14} parent=1 // pred_region
      %s876 = ssub.s32 32, 32
      %877 = vsyncadd [#allocation3], %s876
      %s879 = sshll.u32 [#allocation2], 4
      %s880 = int_to_ptr.vmem [resolvable:$true] %s879
      %882 = dma.vmem_to_hbm [thread:$0]  %s880, 32, %s6, [#allocation3]
    $region29: #{_lambda_.14} parent=1 // pred_fallthru
      _
    // Predicated region
    $region30: #{_lambda_.14} parent=1 // pred_check
      _
    $region31: #{_lambda_.14} parent=1 // pred_check_branch
      %884 = sbr.rel (0) target = $region33
    $region32: #{_lambda_.14} parent=1 // pred_region
      _
    $region33: #{_lambda_.14} parent=1 // pred_fallthru
      _
    // Predicated region
    $region34: #{_lambda_.14} parent=1 // pred_check
      _
    $region35: #{_lambda_.14} parent=1 // pred_check_branch
      %886 = sbr.rel (0) target = $region37
    $region36: #{_lambda_.14} parent=1 // pred_region
      %887 = dma.done [#allocation3], 32
    $region37: #{_lambda_.14} parent=1 // pred_fallthru
      _
    %888 = vsyncpa [#allocation3], 1

// kernel: _lambda_.15
$region0: #{_lambda_.15}
  #allocation0 [shape = 'u32[]', space=smem, size = 0x4, offset = 0x4, fixed_abs, tag = 'smem constant byte address 0x4 - core index']
  #allocation1 [shape = 'u32[144,128]{1,0:T(1,128)}', space=vmem, size = 0x12000, scoped, tag = 'internal scratch']
  %s0 = inlined_call_operand.vmem [shape: bf16[8,640], index: 0, kind: input, shape index: {}]
  %s1 = inlined_call_operand.vmem [shape: bf16[640,256], index: 1, kind: input, shape index: {}]
  %s2 = inlined_call_operand.vmem [shape: f32[1,640], index: 2, kind: input, shape index: {}]
  %s3 = inlined_call_operand.vmem [shape: f32[1,640], index: 3, kind: input, shape index: {}]
  %s4 = inlined_call_operand.vmem [shape: f32[1,256], index: 4, kind: input, shape index: {}]
  %s5 = inlined_call_operand.vmem [shape: bf16[8,256], index: 5, kind: output, shape index: {0}]
  %s6 = inlined_call_operand.vmem [shape: f32[1,2,256], index: 6, kind: output, shape index: {1}]
  %7 = xla_tuple %s5, %s6
  %s8 = sld [smem:[#allocation0]]
  $region38: #{_lambda_.15} parent=0
    _
  %s10 = ssub.s32 1, %s8
  %s11 = scalar_select 0, %s10, %s8
  // Predicated region
  $region2: #{_lambda_.15} parent=0 // pred_check
    _
  $region3: #{_lambda_.15} parent=0 // pred_check_branch
    %13 = sbr.rel (0) target = $region5
  $region4: #{_lambda_.15} parent=0 // pred_region
    _
  $region5: #{_lambda_.15} parent=0 // pred_fallthru
    _
  // Predicated region
  $region6: #{_lambda_.15} parent=0 // pred_check
    _
  $region7: #{_lambda_.15} parent=0 // pred_check_branch
    %15 = sbr.rel (0) target = $region9
  $region8: #{_lambda_.15} parent=0 // pred_region
    _
  $region9: #{_lambda_.15} parent=0 // pred_fallthru
    _
  // Predicated region
  $region10: #{_lambda_.15} parent=0 // pred_check
    _
  $region11: #{_lambda_.15} parent=0 // pred_check_branch
    %17 = sbr.rel (0) target = $region13
  $region12: #{_lambda_.15} parent=0 // pred_region
    _
  $region13: #{_lambda_.15} parent=0 // pred_fallthru
    _
  // Predicated region
  $region14: #{_lambda_.15} parent=0 // pred_check
    _
  $region15: #{_lambda_.15} parent=0 // pred_check_branch
    %19 = sbr.rel (0) target = $region17
  $region16: #{_lambda_.15} parent=0 // pred_region
    _
  $region17: #{_lambda_.15} parent=0 // pred_fallthru
    _
  // Predicated region
  $region18: #{_lambda_.15} parent=0 // pred_check
    _
  $region19: #{_lambda_.15} parent=0 // pred_check_branch
    %21 = sbr.rel (0) target = $region21
  $region20: #{_lambda_.15} parent=0 // pred_region
    _
  $region21: #{_lambda_.15} parent=0 // pred_fallthru
    _
  %v23 = vld [vmem:[%s0] sm:$0xff]
  %v24 = vld [vmem:[%s0 + $0x8] sm:$0xff]
  %v25 = vld [vmem:[%s0 + $0x10] sm:$0xf]
  %v26 = vunpack.c.l.bf16 %v23
  %v27 = vunpack.c.h.bf16 %v23
  %v28 = vunpack.c.l.bf16 %v24
  %v29 = vunpack.c.h.bf16 %v24
  %v30 = vunpack.c.l.bf16 %v25
  %v31 = vld [vmem:[%s2] sm:$0x1f]
  %v33 = vlaneseq
  %v34 = vshrl.u32 %v33, 7
  %v35 = vsub.s32 0, %v34
  %v36 = vrot.slane %v31, %v35
  %v37 = vlaneseq
  %v38 = vshrl.u32 %v37, 7
  %v39 = vsub.s32 1, %v38
  %v40 = vrot.slane %v31, %v39
  %v41 = vlaneseq
  %v42 = vshrl.u32 %v41, 7
  %v43 = vsub.s32 2, %v42
  %v44 = vrot.slane %v31, %v43
  %v45 = vlaneseq
  %v46 = vshrl.u32 %v45, 7
  %v47 = vsub.s32 3, %v46
  %v48 = vrot.slane %v31, %v47
  %v49 = vlaneseq
  %v50 = vshrl.u32 %v49, 7
  %v51 = vsub.s32 4, %v50
  %v52 = vrot.slane %v31, %v51
  %v58 = vmul.f32 %v26, %v36
  %v59 = vmul.f32 %v27, %v40
  %v60 = vmul.f32 %v28, %v44
  %v61 = vmul.f32 %v29, %v48
  %v62 = vmul.f32 %v30, %v52
  %v63 = vld [vmem:[%s3] sm:$0x1f]
  %v65 = vlaneseq
  %v66 = vshrl.u32 %v65, 7
  %v67 = vsub.s32 0, %v66
  %v68 = vrot.slane %v63, %v67
  %v69 = vlaneseq
  %v70 = vshrl.u32 %v69, 7
  %v71 = vsub.s32 1, %v70
  %v72 = vrot.slane %v63, %v71
  %v73 = vlaneseq
  %v74 = vshrl.u32 %v73, 7
  %v75 = vsub.s32 2, %v74
  %v76 = vrot.slane %v63, %v75
  %v77 = vlaneseq
  %v78 = vshrl.u32 %v77, 7
  %v79 = vsub.s32 3, %v78
  %v80 = vrot.slane %v63, %v79
  %v81 = vlaneseq
  %v82 = vshrl.u32 %v81, 7
  %v83 = vsub.s32 4, %v82
  %v84 = vrot.slane %v63, %v83
  %v90 = vadd.f32 %v58, %v68
  %v91 = vadd.f32 %v59, %v72
  %v92 = vadd.f32 %v60, %v76
  %v93 = vadd.f32 %v61, %v80
  %v94 = vadd.f32 %v62, %v84
  %v95 = vmax.f32 %v90, 0.0
  %v96 = vmax.f32 %v91, 0.0
  %v97 = vmax.f32 %v92, 0.0
  %v98 = vmax.f32 %v93, 0.0
  %v99 = vmax.f32 %v94, 0.0
  %v100 = vpack.c.bf16 %v95, %v95
  %v101 = vpack.c.bf16 %v96, %v96
  %v102 = vpack.c.bf16 %v97, %v97
  %v103 = vpack.c.bf16 %v98, %v98
  %v104 = vpack.c.bf16 %v99, %v99
  %v105 = vld [vmem:[%s1] sm:$0xff]
  %v106 = vld [vmem:[%s1 + $0x8] sm:$0xff]
  %v107 = vld [vmem:[%s1 + $0x10] sm:$0xff]
  %v108 = vld [vmem:[%s1 + $0x18] sm:$0xff]
  %v109 = vld [vmem:[%s1 + $0x20] sm:$0xff]
  %v110 = vld [vmem:[%s1 + $0x28] sm:$0xff]
  %v111 = vld [vmem:[%s1 + $0x30] sm:$0xff]
  %v112 = vld [vmem:[%s1 + $0x38] sm:$0xff]
  %v113 = vld [vmem:[%s1 + $0x40] sm:$0xff]
  %v114 = vld [vmem:[%s1 + $0x48] sm:$0xff]
  %v115 = vld [vmem:[%s1 + $0x50] sm:$0xff]
  %v116 = vld [vmem:[%s1 + $0x58] sm:$0xff]
  %v117 = vld [vmem:[%s1 + $0x60] sm:$0xff]
  %v118 = vld [vmem:[%s1 + $0x68] sm:$0xff]
  %v119 = vld [vmem:[%s1 + $0x70] sm:$0xff]
  %v120 = vld [vmem:[%s1 + $0x78] sm:$0xff]
  %v121 = vld [vmem:[%s1 + $0x80] sm:$0xff]
  %v122 = vld [vmem:[%s1 + $0x88] sm:$0xff]
  %v123 = vld [vmem:[%s1 + $0x90] sm:$0xff]
  %v124 = vld [vmem:[%s1 + $0x98] sm:$0xff]
  %v125 = vld [vmem:[%s1 + $0xa0] sm:$0xff]
  %v126 = vld [vmem:[%s1 + $0xa8] sm:$0xff]
  %v127 = vld [vmem:[%s1 + $0xb0] sm:$0xff]
  %v128 = vld [vmem:[%s1 + $0xb8] sm:$0xff]
  %v129 = vld [vmem:[%s1 + $0xc0] sm:$0xff]
  %v130 = vld [vmem:[%s1 + $0xc8] sm:$0xff]
  %v131 = vld [vmem:[%s1 + $0xd0] sm:$0xff]
  %v132 = vld [vmem:[%s1 + $0xd8] sm:$0xff]
  %v133 = vld [vmem:[%s1 + $0xe0] sm:$0xff]
  %v134 = vld [vmem:[%s1 + $0xe8] sm:$0xff]
  %v135 = vld [vmem:[%s1 + $0xf0] sm:$0xff]
  %v136 = vld [vmem:[%s1 + $0xf8] sm:$0xff]
  %v137 = vld [vmem:[%s1 + $0x100] sm:$0xff]
  %v138 = vld [vmem:[%s1 + $0x108] sm:$0xff]
  %v139 = vld [vmem:[%s1 + $0x110] sm:$0xff]
  %v140 = vld [vmem:[%s1 + $0x118] sm:$0xff]
  %v141 = vld [vmem:[%s1 + $0x120] sm:$0xff]
  %v142 = vld [vmem:[%s1 + $0x128] sm:$0xff]
  %v143 = vld [vmem:[%s1 + $0x130] sm:$0xff]
  %v144 = vld [vmem:[%s1 + $0x138] sm:$0xff]
  %v145 = vld [vmem:[%s1 + $0x140] sm:$0xff]
  %v146 = vld [vmem:[%s1 + $0x148] sm:$0xff]
  %v147 = vld [vmem:[%s1 + $0x150] sm:$0xff]
  %v148 = vld [vmem:[%s1 + $0x158] sm:$0xff]
  %v149 = vld [vmem:[%s1 + $0x160] sm:$0xff]
  %v150 = vld [vmem:[%s1 + $0x168] sm:$0xff]
  %v151 = vld [vmem:[%s1 + $0x170] sm:$0xff]
  %v152 = vld [vmem:[%s1 + $0x178] sm:$0xff]
  %v153 = vld [vmem:[%s1 + $0x180] sm:$0xff]
  %v154 = vld [vmem:[%s1 + $0x188] sm:$0xff]
  %v155 = vld [vmem:[%s1 + $0x190] sm:$0xff]
  %v156 = vld [vmem:[%s1 + $0x198] sm:$0xff]
  %v157 = vld [vmem:[%s1 + $0x1a0] sm:$0xff]
  %v158 = vld [vmem:[%s1 + $0x1a8] sm:$0xff]
  %v159 = vld [vmem:[%s1 + $0x1b0] sm:$0xff]
  %v160 = vld [vmem:[%s1 + $0x1b8] sm:$0xff]
  %v161 = vld [vmem:[%s1 + $0x1c0] sm:$0xff]
  %v162 = vld [vmem:[%s1 + $0x1c8] sm:$0xff]
  %v163 = vld [vmem:[%s1 + $0x1d0] sm:$0xff]
  %v164 = vld [vmem:[%s1 + $0x1d8] sm:$0xff]
  %v165 = vld [vmem:[%s1 + $0x1e0] sm:$0xff]
  %v166 = vld [vmem:[%s1 + $0x1e8] sm:$0xff]
  %v167 = vld [vmem:[%s1 + $0x1f0] sm:$0xff]
  %v168 = vld [vmem:[%s1 + $0x1f8] sm:$0xff]
  %v169 = vld [vmem:[%s1 + $0x200] sm:$0xff]
  %v170 = vld [vmem:[%s1 + $0x208] sm:$0xff]
  %v171 = vld [vmem:[%s1 + $0x210] sm:$0xff]
  %v172 = vld [vmem:[%s1 + $0x218] sm:$0xff]
  %v173 = vld [vmem:[%s1 + $0x220] sm:$0xff]
  %v174 = vld [vmem:[%s1 + $0x228] sm:$0xff]
  %v175 = vld [vmem:[%s1 + $0x230] sm:$0xff]
  %v176 = vld [vmem:[%s1 + $0x238] sm:$0xff]
  %v177 = vld [vmem:[%s1 + $0x240] sm:$0xff]
  %v178 = vld [vmem:[%s1 + $0x248] sm:$0xff]
  %v179 = vld [vmem:[%s1 + $0x250] sm:$0xff]
  %v180 = vld [vmem:[%s1 + $0x258] sm:$0xff]
  %v181 = vld [vmem:[%s1 + $0x260] sm:$0xff]
  %v182 = vld [vmem:[%s1 + $0x268] sm:$0xff]
  %v183 = vld [vmem:[%s1 + $0x270] sm:$0xff]
  %v184 = vld [vmem:[%s1 + $0x278] sm:$0xff]
  %v185 = vld [vmem:[%s4] sm:$0x3]
  %v187 = vlaneseq
  %v188 = vshrl.u32 %v187, 7
  %v189 = vsub.s32 0, %v188
  %v190 = vrot.slane %v185, %v189
  %v191 = vlaneseq
  %v192 = vshrl.u32 %v191, 7
  %v193 = vsub.s32 1, %v192
  %v194 = vrot.slane %v185, %v193
  %v277 = vunpack.c.l.b16 %v105
  %v278 = vunpack.c.h.b16 %v105
  %v279 = vunpack.c.l.b16 %v106
  %v280 = vunpack.c.h.b16 %v106
  %v281 = vunpack.c.l.b16 %v107
  %v282 = vunpack.c.h.b16 %v107
  %v283 = vunpack.c.l.b16 %v108
  %v284 = vunpack.c.h.b16 %v108
  %v285 = vunpack.c.l.b16 %v109
  %v286 = vunpack.c.h.b16 %v109
  %v287 = vunpack.c.l.b16 %v110
  %v288 = vunpack.c.h.b16 %v110
  %v289 = vunpack.c.l.b16 %v111
  %v290 = vunpack.c.h.b16 %v111
  %v291 = vunpack.c.l.b16 %v112
  %v292 = vunpack.c.h.b16 %v112
  %v293 = vunpack.c.l.b16 %v113
  %v294 = vunpack.c.h.b16 %v113
  %v295 = vunpack.c.l.b16 %v114
  %v296 = vunpack.c.h.b16 %v114
  %v297 = vunpack.c.l.b16 %v115
  %v298 = vunpack.c.h.b16 %v115
  %v299 = vunpack.c.l.b16 %v116
  %v300 = vunpack.c.h.b16 %v116
  %v301 = vunpack.c.l.b16 %v117
  %v302 = vunpack.c.h.b16 %v117
  %v303 = vunpack.c.l.b16 %v118
  %v304 = vunpack.c.h.b16 %v118
  %v305 = vunpack.c.l.b16 %v119
  %v306 = vunpack.c.h.b16 %v119
  %v307 = vunpack.c.l.b16 %v120
  %v308 = vunpack.c.h.b16 %v120
  %v309 = vunpack.c.l.b16 %v121
  %v310 = vunpack.c.h.b16 %v121
  %v311 = vunpack.c.l.b16 %v122
  %v312 = vunpack.c.h.b16 %v122
  %v313 = vunpack.c.l.b16 %v123
  %v314 = vunpack.c.h.b16 %v123
  %v315 = vunpack.c.l.b16 %v124
  %v316 = vunpack.c.h.b16 %v124
  %v317 = vunpack.c.l.b16 %v125
  %v318 = vunpack.c.h.b16 %v125
  %v319 = vunpack.c.l.b16 %v126
  %v320 = vunpack.c.h.b16 %v126
  %v321 = vunpack.c.l.b16 %v127
  %v322 = vunpack.c.h.b16 %v127
  %v323 = vunpack.c.l.b16 %v128
  %v324 = vunpack.c.h.b16 %v128
  %v325 = vunpack.c.l.b16 %v129
  %v326 = vunpack.c.h.b16 %v129
  %v327 = vunpack.c.l.b16 %v130
  %v328 = vunpack.c.h.b16 %v130
  %v329 = vunpack.c.l.b16 %v131
  %v330 = vunpack.c.h.b16 %v131
  %v331 = vunpack.c.l.b16 %v132
  %v332 = vunpack.c.h.b16 %v132
  %v333 = vunpack.c.l.b16 %v133
  %v334 = vunpack.c.h.b16 %v133
  %v335 = vunpack.c.l.b16 %v134
  %v336 = vunpack.c.h.b16 %v134
  %v337 = vunpack.c.l.b16 %v135
  %v338 = vunpack.c.h.b16 %v135
  %v339 = vunpack.c.l.b16 %v136
  %v340 = vunpack.c.h.b16 %v136
  %v341 = vunpack.c.l.b16 %v137
  %v342 = vunpack.c.h.b16 %v137
  %v343 = vunpack.c.l.b16 %v138
  %v344 = vunpack.c.h.b16 %v138
  %v345 = vunpack.c.l.b16 %v139
  %v346 = vunpack.c.h.b16 %v139
  %v347 = vunpack.c.l.b16 %v140
  %v348 = vunpack.c.h.b16 %v140
  %v349 = vunpack.c.l.b16 %v141
  %v350 = vunpack.c.h.b16 %v141
  %v351 = vunpack.c.l.b16 %v142
  %v352 = vunpack.c.h.b16 %v142
  %v353 = vunpack.c.l.b16 %v143
  %v354 = vunpack.c.h.b16 %v143
  %v355 = vunpack.c.l.b16 %v144
  %v356 = vunpack.c.h.b16 %v144
  %v357 = vunpack.c.l.b16 %v145
  %v358 = vunpack.c.h.b16 %v145
  %v359 = vunpack.c.l.b16 %v146
  %v360 = vunpack.c.h.b16 %v146
  %v361 = vunpack.c.l.b16 %v147
  %v362 = vunpack.c.h.b16 %v147
  %v363 = vunpack.c.l.b16 %v148
  %v364 = vunpack.c.h.b16 %v148
  %v365 = vunpack.c.l.b16 %v149
  %v366 = vunpack.c.h.b16 %v149
  %v367 = vunpack.c.l.b16 %v150
  %v368 = vunpack.c.h.b16 %v150
  %v369 = vunpack.c.l.b16 %v151
  %v370 = vunpack.c.h.b16 %v151
  %v371 = vunpack.c.l.b16 %v152
  %v372 = vunpack.c.h.b16 %v152
  %v373 = vunpack.c.l.b16 %v153
  %v374 = vunpack.c.h.b16 %v153
  %v375 = vunpack.c.l.b16 %v154
  %v376 = vunpack.c.h.b16 %v154
  %v377 = vunpack.c.l.b16 %v155
  %v378 = vunpack.c.h.b16 %v155
  %v379 = vunpack.c.l.b16 %v156
  %v380 = vunpack.c.h.b16 %v156
  %v381 = vunpack.c.l.b16 %v157
  %v382 = vunpack.c.h.b16 %v157
  %v383 = vunpack.c.l.b16 %v158
  %v384 = vunpack.c.h.b16 %v158
  %v385 = vunpack.c.l.b16 %v159
  %v386 = vunpack.c.h.b16 %v159
  %v387 = vunpack.c.l.b16 %v160
  %v388 = vunpack.c.h.b16 %v160
  %v389 = vunpack.c.l.b16 %v161
  %v390 = vunpack.c.h.b16 %v161
  %v391 = vunpack.c.l.b16 %v162
  %v392 = vunpack.c.h.b16 %v162
  %v393 = vunpack.c.l.b16 %v163
  %v394 = vunpack.c.h.b16 %v163
  %v395 = vunpack.c.l.b16 %v164
  %v396 = vunpack.c.h.b16 %v164
  %v397 = vunpack.c.l.b16 %v165
  %v398 = vunpack.c.h.b16 %v165
  %v399 = vunpack.c.l.b16 %v166
  %v400 = vunpack.c.h.b16 %v166
  %v401 = vunpack.c.l.b16 %v167
  %v402 = vunpack.c.h.b16 %v167
  %v403 = vunpack.c.l.b16 %v168
  %v404 = vunpack.c.h.b16 %v168
  %v405 = vunpack.c.l.b16 %v169
  %v406 = vunpack.c.h.b16 %v169
  %v407 = vunpack.c.l.b16 %v170
  %v408 = vunpack.c.h.b16 %v170
  %v409 = vunpack.c.l.b16 %v171
  %v410 = vunpack.c.h.b16 %v171
  %v411 = vunpack.c.l.b16 %v172
  %v412 = vunpack.c.h.b16 %v172
  %v413 = vunpack.c.l.b16 %v173
  %v414 = vunpack.c.h.b16 %v173
  %v415 = vunpack.c.l.b16 %v174
  %v416 = vunpack.c.h.b16 %v174
  %v417 = vunpack.c.l.b16 %v175
  %v418 = vunpack.c.h.b16 %v175
  %v419 = vunpack.c.l.b16 %v176
  %v420 = vunpack.c.h.b16 %v176
  %v421 = vunpack.c.l.b16 %v177
  %v422 = vunpack.c.h.b16 %v177
  %v423 = vunpack.c.l.b16 %v178
  %v424 = vunpack.c.h.b16 %v178
  %v425 = vunpack.c.l.b16 %v179
  %v426 = vunpack.c.h.b16 %v179
  %v427 = vunpack.c.l.b16 %v180
  %v428 = vunpack.c.h.b16 %v180
  %v429 = vunpack.c.l.b16 %v181
  %v430 = vunpack.c.h.b16 %v181
  %v431 = vunpack.c.l.b16 %v182
  %v432 = vunpack.c.h.b16 %v182
  %v433 = vunpack.c.l.b16 %v183
  %v434 = vunpack.c.h.b16 %v183
  %v435 = vunpack.c.l.b16 %v184
  %v436 = vunpack.c.h.b16 %v184
  %v437 = vpack.c.b16 %v279, %v277
  %v438 = vpack.c.b16 %v280, %v278
  %v439 = vpack.c.b16 %v283, %v281
  %v440 = vpack.c.b16 %v284, %v282
  %v441 = vpack.c.b16 %v287, %v285
  %v442 = vpack.c.b16 %v288, %v286
  %v443 = vpack.c.b16 %v291, %v289
  %v444 = vpack.c.b16 %v292, %v290
  %v445 = vpack.c.b16 %v295, %v293
  %v446 = vpack.c.b16 %v296, %v294
  %v447 = vpack.c.b16 %v299, %v297
  %v448 = vpack.c.b16 %v300, %v298
  %v449 = vpack.c.b16 %v303, %v301
  %v450 = vpack.c.b16 %v304, %v302
  %v451 = vpack.c.b16 %v307, %v305
  %v452 = vpack.c.b16 %v308, %v306
  %v453 = vpack.c.b16 %v311, %v309
  %v454 = vpack.c.b16 %v312, %v310
  %v455 = vpack.c.b16 %v315, %v313
  %v456 = vpack.c.b16 %v316, %v314
  %v457 = vpack.c.b16 %v319, %v317
  %v458 = vpack.c.b16 %v320, %v318
  %v459 = vpack.c.b16 %v323, %v321
  %v460 = vpack.c.b16 %v324, %v322
  %v461 = vpack.c.b16 %v327, %v325
  %v462 = vpack.c.b16 %v328, %v326
  %v463 = vpack.c.b16 %v331, %v329
  %v464 = vpack.c.b16 %v332, %v330
  %v465 = vpack.c.b16 %v335, %v333
  %v466 = vpack.c.b16 %v336, %v334
  %v467 = vpack.c.b16 %v339, %v337
  %v468 = vpack.c.b16 %v340, %v338
  %v469 = vpack.c.b16 %v343, %v341
  %v470 = vpack.c.b16 %v344, %v342
  %v471 = vpack.c.b16 %v347, %v345
  %v472 = vpack.c.b16 %v348, %v346
  %v473 = vpack.c.b16 %v351, %v349
  %v474 = vpack.c.b16 %v352, %v350
  %v475 = vpack.c.b16 %v355, %v353
  %v476 = vpack.c.b16 %v356, %v354
  %v477 = vpack.c.b16 %v359, %v357
  %v478 = vpack.c.b16 %v360, %v358
  %v479 = vpack.c.b16 %v363, %v361
  %v480 = vpack.c.b16 %v364, %v362
  %v481 = vpack.c.b16 %v367, %v365
  %v482 = vpack.c.b16 %v368, %v366
  %v483 = vpack.c.b16 %v371, %v369
  %v484 = vpack.c.b16 %v372, %v370
  %v485 = vpack.c.b16 %v375, %v373
  %v486 = vpack.c.b16 %v376, %v374
  %v487 = vpack.c.b16 %v379, %v377
  %v488 = vpack.c.b16 %v380, %v378
  %v489 = vpack.c.b16 %v383, %v381
  %v490 = vpack.c.b16 %v384, %v382
  %v491 = vpack.c.b16 %v387, %v385
  %v492 = vpack.c.b16 %v388, %v386
  %v493 = vpack.c.b16 %v391, %v389
  %v494 = vpack.c.b16 %v392, %v390
  %v495 = vpack.c.b16 %v395, %v393
  %v496 = vpack.c.b16 %v396, %v394
  %v497 = vpack.c.b16 %v399, %v397
  %v498 = vpack.c.b16 %v400, %v398
  %v499 = vpack.c.b16 %v403, %v401
  %v500 = vpack.c.b16 %v404, %v402
  %v501 = vpack.c.b16 %v407, %v405
  %v502 = vpack.c.b16 %v408, %v406
  %v503 = vpack.c.b16 %v411, %v409
  %v504 = vpack.c.b16 %v412, %v410
  %v505 = vpack.c.b16 %v415, %v413
  %v506 = vpack.c.b16 %v416, %v414
  %v507 = vpack.c.b16 %v419, %v417
  %v508 = vpack.c.b16 %v420, %v418
  %v509 = vpack.c.b16 %v423, %v421
  %v510 = vpack.c.b16 %v424, %v422
  %v511 = vpack.c.b16 %v427, %v425
  %v512 = vpack.c.b16 %v428, %v426
  %v513 = vpack.c.b16 %v431, %v429
  %v514 = vpack.c.b16 %v432, %v430
  %v515 = vpack.c.b16 %v435, %v433
  %v516 = vpack.c.b16 %v436, %v434
  %597 = vmatprep.subr.bf16.mxu0 %v438
  %598 = vmatpush1.bf16.msra.mxu0 %v437
  %599 = vmatprep.subr.bf16.mxu0 %v440
  %600 = vmatpush1.bf16.msra.mxu0 %v439
  %601 = vmatprep.subr.bf16.mxu0 %v442
  %602 = vmatpush1.bf16.msra.mxu0 %v441
  %603 = vmatprep.subr.bf16.mxu0 %v444
  %604 = vmatpush1.bf16.msra.mxu0 %v443
  %605 = vmatprep.subr.bf16.mxu0 %v446
  %606 = vmatpush1.bf16.msra.mxu0 %v445
  %607 = vmatprep.subr.bf16.mxu0 %v448
  %608 = vmatpush1.bf16.msra.mxu0 %v447
  %609 = vmatprep.subr.bf16.mxu0 %v450
  %610 = vmatpush1.bf16.msra.mxu0 %v449
  %611 = vmatprep.subr.bf16.mxu0 %v452
  %612 = vmatpush1.bf16.msra.mxu0 %v451
  %613 = vmatprep.subr.bf16.mxu0 %v454
  %614 = vmatpush1.bf16.msra.mxu0 %v453
  %615 = vmatprep.subr.bf16.mxu0 %v456
  %616 = vmatpush1.bf16.msra.mxu0 %v455
  %617 = vmatprep.subr.bf16.mxu0 %v458
  %618 = vmatpush1.bf16.msra.mxu0 %v457
  %619 = vmatprep.subr.bf16.mxu0 %v460
  %620 = vmatpush1.bf16.msra.mxu0 %v459
  %621 = vmatprep.subr.bf16.mxu0 %v462
  %622 = vmatpush1.bf16.msra.mxu0 %v461
  %623 = vmatprep.subr.bf16.mxu0 %v464
  %624 = vmatpush1.bf16.msra.mxu0 %v463
  %625 = vmatprep.subr.bf16.mxu0 %v466
  %626 = vmatpush1.bf16.msra.mxu0 %v465
  %627 = vmatprep.subr.bf16.mxu0 %v468
  %628 = vmatpush1.bf16.msra.mxu0 %v467
  %629 = vmatprep.mubr.bf16.mxu0 %v101
  %630 = vmatmul.mubr.bf16.gmra.mrb[0].mxu0 %v100
  %v631 = vpop.f32.mrb[0].mxu0
  %v632 = vadd.f32 %v190, %v631
  %v633 = vpop.f32.mrb[0].mxu0
  %v634 = vadd.f32 %v194, %v633
  %v635 = vpop.f32.mrb[0].mxu0
  %v636 = vpop.f32.mrb[0].mxu0
  %637 = vdwg.mxu0
  %638 = vmatprep.subr.bf16.mxu0 %v470
  %639 = vmatpush1.bf16.msra.mxu0 %v469
  %640 = vmatprep.subr.bf16.mxu0 %v472
  %641 = vmatpush1.bf16.msra.mxu0 %v471
  %642 = vmatprep.subr.bf16.mxu0 %v474
  %643 = vmatpush1.bf16.msra.mxu0 %v473
  %644 = vmatprep.subr.bf16.mxu0 %v476
  %645 = vmatpush1.bf16.msra.mxu0 %v475
  %646 = vmatprep.subr.bf16.mxu0 %v478
  %647 = vmatpush1.bf16.msra.mxu0 %v477
  %648 = vmatprep.subr.bf16.mxu0 %v480
  %649 = vmatpush1.bf16.msra.mxu0 %v479
  %650 = vmatprep.subr.bf16.mxu0 %v482
  %651 = vmatpush1.bf16.msra.mxu0 %v481
  %652 = vmatprep.subr.bf16.mxu0 %v484
  %653 = vmatpush1.bf16.msra.mxu0 %v483
  %654 = vmatprep.subr.bf16.mxu0 %v486
  %655 = vmatpush1.bf16.msra.mxu0 %v485
  %656 = vmatprep.subr.bf16.mxu0 %v488
  %657 = vmatpush1.bf16.msra.mxu0 %v487
  %658 = vmatprep.subr.bf16.mxu0 %v490
  %659 = vmatpush1.bf16.msra.mxu0 %v489
  %660 = vmatprep.subr.bf16.mxu0 %v492
  %661 = vmatpush1.bf16.msra.mxu0 %v491
  %662 = vmatprep.subr.bf16.mxu0 %v494
  %663 = vmatpush1.bf16.msra.mxu0 %v493
  %664 = vmatprep.subr.bf16.mxu0 %v496
  %665 = vmatpush1.bf16.msra.mxu0 %v495
  %666 = vmatprep.subr.bf16.mxu0 %v498
  %667 = vmatpush1.bf16.msra.mxu0 %v497
  %668 = vmatprep.subr.bf16.mxu0 %v500
  %669 = vmatpush1.bf16.msra.mxu0 %v499
  %670 = vmatprep.mubr.bf16.mxu0 %v103
  %671 = vmatmul.mubr.bf16.gmra.mrb[0].mxu0 %v102
  %v672 = vpop.f32.mrb[0].mxu0
  %v673 = vadd.f32 %v632, %v672
  %v674 = vpop.f32.mrb[0].mxu0
  %v675 = vadd.f32 %v634, %v674
  %v676 = vpop.f32.mrb[0].mxu0
  %v677 = vpop.f32.mrb[0].mxu0
  %678 = vdwg.mxu0
  %679 = vmatprep.subr.bf16.mxu0 %v502
  %680 = vmatpush1.bf16.msra.mxu0 %v501
  %681 = vmatprep.subr.bf16.mxu0 %v504
  %682 = vmatpush1.bf16.msra.mxu0 %v503
  %683 = vmatprep.subr.bf16.mxu0 %v506
  %684 = vmatpush1.bf16.msra.mxu0 %v505
  %685 = vmatprep.subr.bf16.mxu0 %v508
  %686 = vmatpush1.bf16.msra.mxu0 %v507
  %687 = vmatprep.subr.bf16.mxu0 %v510
  %688 = vmatpush1.bf16.msra.mxu0 %v509
  %689 = vmatprep.subr.bf16.mxu0 %v512
  %690 = vmatpush1.bf16.msra.mxu0 %v511
  %691 = vmatprep.subr.bf16.mxu0 %v514
  %692 = vmatpush1.bf16.msra.mxu0 %v513
  %693 = vmatprep.subr.bf16.mxu0 %v516
  %694 = vmatpush1.bf16.msra.mxu0 %v515
  %695 = vmatprep.subr.bf16.mxu0 0
  %696 = vmatpush1.bf16.msra.mxu0 0
  %697 = vmatprep.subr.bf16.mxu0 0
  %698 = vmatpush1.bf16.msra.mxu0 0
  %699 = vmatprep.subr.bf16.mxu0 0
  %700 = vmatpush1.bf16.msra.mxu0 0
  %701 = vmatprep.subr.bf16.mxu0 0
  %702 = vmatpush1.bf16.msra.mxu0 0
  %703 = vmatprep.subr.bf16.mxu0 0
  %704 = vmatpush1.bf16.msra.mxu0 0
  %705 = vmatprep.subr.bf16.mxu0 0
  %706 = vmatpush1.bf16.msra.mxu0 0
  %707 = vmatprep.subr.bf16.mxu0 0
  %708 = vmatpush1.bf16.msra.mxu0 0
  %709 = vmatprep.subr.bf16.mxu0 0
  %710 = vmatpush1.bf16.msra.mxu0 0
  %711 = vmatprep.mubr.bf16.mxu0 0
  %712 = vmatmul.mubr.bf16.gmra.mrb[0].mxu0 %v104
  %v713 = vpop.f32.mrb[0].mxu0
  %v714 = vadd.f32 %v673, %v713
  %v715 = vpop.f32.mrb[0].mxu0
  %v716 = vadd.f32 %v675, %v715
  %v717 = vpop.f32.mrb[0].mxu0
  %v718 = vpop.f32.mrb[0].mxu0
  %719 = vdwg.mxu0
  %s720 = smul.u32 0, 8
  %v721 = vlaneseq
  %v722 = vshrl.u32 %v721, 7
  %v723 = vstv %s720
  %v724 = vadd.s32 %v723, %v722
  %vm725 = vcmp.lt.s32.totalorder %v724, 2
  %v726 = vsel %vm725, %v714, 0.0
  %v727 = vsel %vm725, %v716, 0.0
  %v728 = vrot.slane %v726, 4
  %v729 = vadd.f32 %v726, %v728
  %v730 = vrot.slane %v729, 2
  %v731 = vadd.f32 %v729, %v730
  %v732 = vrot.slane %v731, 1
  %v733 = vadd.f32 %v731, %v732
  %v734 = vrot.slane %v727, 4
  %v735 = vadd.f32 %v727, %v734
  %v736 = vrot.slane %v735, 2
  %v737 = vadd.f32 %v735, %v736
  %v738 = vrot.slane %v737, 1
  %v739 = vadd.f32 %v737, %v738
  %v742 = vcombine.low %v733, %v739
  %v744 = vunpack.c.l.s4 1966171168
  %v745 = vunpack.c.0.s8 %v744
  %v746 = vlaneseq
  %v747 = vshrl.u32 %v746, 7
  %v748 = vsub.s32 %v745, %v747
  %v749 = vrot.slane %v742, %v748
  %v751 = vunpack.c.l.s4 1966171168
  %v752 = vunpack.c.0.s8 %v751
  %v753 = vlaneseq
  %v754 = vshrl.u32 %v753, 7
  %v755 = vsub.s32 %v752, %v754
  %v756 = vrot.slane %v749, %v755
  %v758 = vlaneseq
  %vm759 = vcmp.ge.s32.totalorder %v758, 0
  %vm760 = vcmp.lt.s32.totalorder %v758, 256
  %vm761 = vmand %vm759, %vm760
  %762 = vst.msk [vmem:[%s6] ss:$2 sm:$0x3] %vm761, %v756
  %v763 = vmul.f32 %v726, %v726
  %v764 = vmul.f32 %v727, %v727
  %v765 = vrot.slane %v763, 4
  %v766 = vadd.f32 %v763, %v765
  %v767 = vrot.slane %v766, 2
  %v768 = vadd.f32 %v766, %v767
  %v769 = vrot.slane %v768, 1
  %v770 = vadd.f32 %v768, %v769
  %v771 = vrot.slane %v764, 4
  %v772 = vadd.f32 %v764, %v771
  %v773 = vrot.slane %v772, 2
  %v774 = vadd.f32 %v772, %v773
  %v775 = vrot.slane %v774, 1
  %v776 = vadd.f32 %v774, %v775
  %v779 = vcombine.low %v770, %v776
  %v781 = vunpack.c.l.s4 1966171168
  %v782 = vunpack.c.0.s8 %v781
  %v783 = vlaneseq
  %v784 = vshrl.u32 %v783, 7
  %v785 = vsub.s32 %v782, %v784
  %v786 = vrot.slane %v779, %v785
  %v788 = vunpack.c.l.s4 1966171168
  %v789 = vunpack.c.0.s8 %v788
  %v790 = vlaneseq
  %v791 = vshrl.u32 %v790, 7
  %v792 = vsub.s32 %v789, %v791
  %v793 = vrot.slane %v786, %v792
  %s795 = scalar_lea.vmem %s6, 1
  %796 = vst.msk [vmem:[%s795] ss:$2 sm:$0x3] %vm761, %v793
  %v797 = vpack.c.bf16 %v714, %v714
  %v798 = vpack.c.bf16 %v716, %v716
  %v801 = vunpack.c.l.b16 %v797
  %v802 = vunpack.c.l.b16 %v798
  %v803 = vpack.c.b16 %v802, %v801
  %805 = vst [vmem:[%s5] sm:$0xff] %v803
  // Predicated region
  $region22: #{_lambda_.15} parent=0 // pred_check
    _
  $region23: #{_lambda_.15} parent=0 // pred_check_branch
    %807 = sbr.rel (0) target = $region25
  $region24: #{_lambda_.15} parent=0 // pred_region
    _
  $region25: #{_lambda_.15} parent=0 // pred_fallthru
    _
  // Predicated region
  $region26: #{_lambda_.15} parent=0 // pred_check
    _
  $region27: #{_lambda_.15} parent=0 // pred_check_branch
    %809 = sbr.rel (0) target = $region29
  $region28: #{_lambda_.15} parent=0 // pred_region
    _
  $region29: #{_lambda_.15} parent=0 // pred_fallthru
    _
  // Predicated region
  $region30: #{_lambda_.15} parent=0 // pred_check
    _
  $region31: #{_lambda_.15} parent=0 // pred_check_branch
    %811 = sbr.rel (0) target = $region33
  $region32: #{_lambda_.15} parent=0 // pred_region
    _
  $region33: #{_lambda_.15} parent=0 // pred_fallthru
    _
  // Predicated region
  $region34: #{_lambda_.15} parent=0 // pred_check
    _
  $region35: #{_lambda_.15} parent=0 // pred_check_branch
    %813 = sbr.rel (0) target = $region37
  $region36: #{_lambda_.15} parent=0 // pred_region
    _
  $region37: #{_lambda_.15} parent=0 // pred_fallthru
    _

// kernel: _lambda_.16
$region0: #{_lambda_.16}
  #allocation0 [shape = 'u32[]', space=smem, size = 0x4, offset = 0x4, fixed_abs, tag = 'smem constant byte address 0x4 - core index']
  #allocation1 [shape = 'u32[144,128]{1,0:T(1,128)}', space=vmem, size = 0x12000, scoped, tag = 'internal scratch']
  %s0 = inlined_call_operand.vmem [shape: bf16[8,640], index: 0, kind: input, shape index: {}]
  %s1 = inlined_call_operand.vmem [shape: bf16[640,128], index: 1, kind: input, shape index: {}]
  %s2 = inlined_call_operand.vmem [shape: f32[1,640], index: 2, kind: input, shape index: {}]
  %s3 = inlined_call_operand.vmem [shape: f32[1,640], index: 3, kind: input, shape index: {}]
  %s4 = inlined_call_operand.vmem [shape: bf16[8,640], index: 4, kind: input, shape index: {}]
  %s5 = inlined_call_operand.vmem [shape: bf16[640,128], index: 5, kind: input, shape index: {}]
  %s6 = inlined_call_operand.vmem [shape: f32[1,640], index: 6, kind: input, shape index: {}]
  %s7 = inlined_call_operand.vmem [shape: f32[1,640], index: 7, kind: input, shape index: {}]
  %s8 = inlined_call_operand.vmem [shape: f32[1,128], index: 8, kind: input, shape index: {}]
  %s9 = inlined_call_operand.vmem [shape: bf16[8,128], index: 9, kind: output, shape index: {0}]
  %s10 = inlined_call_operand.vmem [shape: f32[1,2,128], index: 10, kind: output, shape index: {1}]
  %11 = xla_tuple %s9, %s10
  %s12 = sld [smem:[#allocation0]]
  $region54: #{_lambda_.16} parent=0
    _
  %s14 = ssub.s32 1, %s12
  %s15 = scalar_select 0, %s14, %s12
  // Predicated region
  $region2: #{_lambda_.16} parent=0 // pred_check
    _
  $region3: #{_lambda_.16} parent=0 // pred_check_branch
    %17 = sbr.rel (0) target = $region5
  $region4: #{_lambda_.16} parent=0 // pred_region
    _
  $region5: #{_lambda_.16} parent=0 // pred_fallthru
    _
  // Predicated region
  $region6: #{_lambda_.16} parent=0 // pred_check
    _
  $region7: #{_lambda_.16} parent=0 // pred_check_branch
    %19 = sbr.rel (0) target = $region9
  $region8: #{_lambda_.16} parent=0 // pred_region
    _
  $region9: #{_lambda_.16} parent=0 // pred_fallthru
    _
  // Predicated region
  $region10: #{_lambda_.16} parent=0 // pred_check
    _
  $region11: #{_lambda_.16} parent=0 // pred_check_branch
    %21 = sbr.rel (0) target = $region13
  $region12: #{_lambda_.16} parent=0 // pred_region
    _
  $region13: #{_lambda_.16} parent=0 // pred_fallthru
    _
  // Predicated region
  $region14: #{_lambda_.16} parent=0 // pred_check
    _
  $region15: #{_lambda_.16} parent=0 // pred_check_branch
    %23 = sbr.rel (0) target = $region17
  $region16: #{_lambda_.16} parent=0 // pred_region
    _
  $region17: #{_lambda_.16} parent=0 // pred_fallthru
    _
  // Predicated region
  $region18: #{_lambda_.16} parent=0 // pred_check
    _
  $region19: #{_lambda_.16} parent=0 // pred_check_branch
    %25 = sbr.rel (0) target = $region21
  $region20: #{_lambda_.16} parent=0 // pred_region
    _
  $region21: #{_lambda_.16} parent=0 // pred_fallthru
    _
  // Predicated region
  $region22: #{_lambda_.16} parent=0 // pred_check
    _
  $region23: #{_lambda_.16} parent=0 // pred_check_branch
    %27 = sbr.rel (0) target = $region25
  $region24: #{_lambda_.16} parent=0 // pred_region
    _
  $region25: #{_lambda_.16} parent=0 // pred_fallthru
    _
  // Predicated region
  $region26: #{_lambda_.16} parent=0 // pred_check
    _
  $region27: #{_lambda_.16} parent=0 // pred_check_branch
    %29 = sbr.rel (0) target = $region29
  $region28: #{_lambda_.16} parent=0 // pred_region
    _
  $region29: #{_lambda_.16} parent=0 // pred_fallthru
    _
  // Predicated region
  $region30: #{_lambda_.16} parent=0 // pred_check
    _
  $region31: #{_lambda_.16} parent=0 // pred_check_branch
    %31 = sbr.rel (0) target = $region33
  $region32: #{_lambda_.16} parent=0 // pred_region
    _
  $region33: #{_lambda_.16} parent=0 // pred_fallthru
    _
  // Predicated region
  $region34: #{_lambda_.16} parent=0 // pred_check
    _
  $region35: #{_lambda_.16} parent=0 // pred_check_branch
    %33 = sbr.rel (0) target = $region37
  $region36: #{_lambda_.16} parent=0 // pred_region
    _
  $region37: #{_lambda_.16} parent=0 // pred_fallthru
    _
  %v35 = vld [vmem:[%s0] sm:$0xff]
  %v36 = vld [vmem:[%s0 + $0x8] sm:$0xff]
  %v37 = vld [vmem:[%s0 + $0x10] sm:$0xf]
  %v38 = vunpack.c.l.bf16 %v35
  %v39 = vunpack.c.h.bf16 %v35
  %v40 = vunpack.c.l.bf16 %v36
  %v41 = vunpack.c.h.bf16 %v36
  %v42 = vunpack.c.l.bf16 %v37
  %v43 = vld [vmem:[%s2] sm:$0x1f]
  %v45 = vlaneseq
  %v46 = vshrl.u32 %v45, 7
  %v47 = vsub.s32 0, %v46
  %v48 = vrot.slane %v43, %v47
  %v49 = vlaneseq
  %v50 = vshrl.u32 %v49, 7
  %v51 = vsub.s32 1, %v50
  %v52 = vrot.slane %v43, %v51
  %v53 = vlaneseq
  %v54 = vshrl.u32 %v53, 7
  %v55 = vsub.s32 2, %v54
  %v56 = vrot.slane %v43, %v55
  %v57 = vlaneseq
  %v58 = vshrl.u32 %v57, 7
  %v59 = vsub.s32 3, %v58
  %v60 = vrot.slane %v43, %v59
  %v61 = vlaneseq
  %v62 = vshrl.u32 %v61, 7
  %v63 = vsub.s32 4, %v62
  %v64 = vrot.slane %v43, %v63
  %v70 = vmul.f32 %v38, %v48
  %v71 = vmul.f32 %v39, %v52
  %v72 = vmul.f32 %v40, %v56
  %v73 = vmul.f32 %v41, %v60
  %v74 = vmul.f32 %v42, %v64
  %v75 = vld [vmem:[%s3] sm:$0x1f]
  %v77 = vlaneseq
  %v78 = vshrl.u32 %v77, 7
  %v79 = vsub.s32 0, %v78
  %v80 = vrot.slane %v75, %v79
  %v81 = vlaneseq
  %v82 = vshrl.u32 %v81, 7
  %v83 = vsub.s32 1, %v82
  %v84 = vrot.slane %v75, %v83
  %v85 = vlaneseq
  %v86 = vshrl.u32 %v85, 7
  %v87 = vsub.s32 2, %v86
  %v88 = vrot.slane %v75, %v87
  %v89 = vlaneseq
  %v90 = vshrl.u32 %v89, 7
  %v91 = vsub.s32 3, %v90
  %v92 = vrot.slane %v75, %v91
  %v93 = vlaneseq
  %v94 = vshrl.u32 %v93, 7
  %v95 = vsub.s32 4, %v94
  %v96 = vrot.slane %v75, %v95
  %v102 = vadd.f32 %v70, %v80
  %v103 = vadd.f32 %v71, %v84
  %v104 = vadd.f32 %v72, %v88
  %v105 = vadd.f32 %v73, %v92
  %v106 = vadd.f32 %v74, %v96
  %v107 = vmax.f32 %v102, 0.0
  %v108 = vmax.f32 %v103, 0.0
  %v109 = vmax.f32 %v104, 0.0
  %v110 = vmax.f32 %v105, 0.0
  %v111 = vmax.f32 %v106, 0.0
  %v112 = vpack.c.bf16 %v107, %v107
  %v113 = vpack.c.bf16 %v108, %v108
  %v114 = vpack.c.bf16 %v109, %v109
  %v115 = vpack.c.bf16 %v110, %v110
  %v116 = vpack.c.bf16 %v111, %v111
  %v117 = vld [vmem:[%s1] sm:$0xf]
  %v118 = vld [vmem:[%s1 + $0x4] sm:$0xf]
  %v119 = vld [vmem:[%s1 + $0x8] sm:$0xf]
  %v120 = vld [vmem:[%s1 + $0xc] sm:$0xf]
  %v121 = vld [vmem:[%s1 + $0x10] sm:$0xf]
  %v122 = vld [vmem:[%s1 + $0x14] sm:$0xf]
  %v123 = vld [vmem:[%s1 + $0x18] sm:$0xf]
  %v124 = vld [vmem:[%s1 + $0x1c] sm:$0xf]
  %v125 = vld [vmem:[%s1 + $0x20] sm:$0xf]
  %v126 = vld [vmem:[%s1 + $0x24] sm:$0xf]
  %v127 = vld [vmem:[%s1 + $0x28] sm:$0xf]
  %v128 = vld [vmem:[%s1 + $0x2c] sm:$0xf]
  %v129 = vld [vmem:[%s1 + $0x30] sm:$0xf]
  %v130 = vld [vmem:[%s1 + $0x34] sm:$0xf]
  %v131 = vld [vmem:[%s1 + $0x38] sm:$0xf]
  %v132 = vld [vmem:[%s1 + $0x3c] sm:$0xf]
  %v133 = vld [vmem:[%s1 + $0x40] sm:$0xf]
  %v134 = vld [vmem:[%s1 + $0x44] sm:$0xf]
  %v135 = vld [vmem:[%s1 + $0x48] sm:$0xf]
  %v136 = vld [vmem:[%s1 + $0x4c] sm:$0xf]
  %v137 = vld [vmem:[%s1 + $0x50] sm:$0xf]
  %v138 = vld [vmem:[%s1 + $0x54] sm:$0xf]
  %v139 = vld [vmem:[%s1 + $0x58] sm:$0xf]
  %v140 = vld [vmem:[%s1 + $0x5c] sm:$0xf]
  %v141 = vld [vmem:[%s1 + $0x60] sm:$0xf]
  %v142 = vld [vmem:[%s1 + $0x64] sm:$0xf]
  %v143 = vld [vmem:[%s1 + $0x68] sm:$0xf]
  %v144 = vld [vmem:[%s1 + $0x6c] sm:$0xf]
  %v145 = vld [vmem:[%s1 + $0x70] sm:$0xf]
  %v146 = vld [vmem:[%s1 + $0x74] sm:$0xf]
  %v147 = vld [vmem:[%s1 + $0x78] sm:$0xf]
  %v148 = vld [vmem:[%s1 + $0x7c] sm:$0xf]
  %v149 = vld [vmem:[%s1 + $0x80] sm:$0xf]
  %v150 = vld [vmem:[%s1 + $0x84] sm:$0xf]
  %v151 = vld [vmem:[%s1 + $0x88] sm:$0xf]
  %v152 = vld [vmem:[%s1 + $0x8c] sm:$0xf]
  %v153 = vld [vmem:[%s1 + $0x90] sm:$0xf]
  %v154 = vld [vmem:[%s1 + $0x94] sm:$0xf]
  %v155 = vld [vmem:[%s1 + $0x98] sm:$0xf]
  %v156 = vld [vmem:[%s1 + $0x9c] sm:$0xf]
  %v157 = vld [vmem:[%s1 + $0xa0] sm:$0xf]
  %v158 = vld [vmem:[%s1 + $0xa4] sm:$0xf]
  %v159 = vld [vmem:[%s1 + $0xa8] sm:$0xf]
  %v160 = vld [vmem:[%s1 + $0xac] sm:$0xf]
  %v161 = vld [vmem:[%s1 + $0xb0] sm:$0xf]
  %v162 = vld [vmem:[%s1 + $0xb4] sm:$0xf]
  %v163 = vld [vmem:[%s1 + $0xb8] sm:$0xf]
  %v164 = vld [vmem:[%s1 + $0xbc] sm:$0xf]
  %v165 = vld [vmem:[%s1 + $0xc0] sm:$0xf]
  %v166 = vld [vmem:[%s1 + $0xc4] sm:$0xf]
  %v167 = vld [vmem:[%s1 + $0xc8] sm:$0xf]
  %v168 = vld [vmem:[%s1 + $0xcc] sm:$0xf]
  %v169 = vld [vmem:[%s1 + $0xd0] sm:$0xf]
  %v170 = vld [vmem:[%s1 + $0xd4] sm:$0xf]
  %v171 = vld [vmem:[%s1 + $0xd8] sm:$0xf]
  %v172 = vld [vmem:[%s1 + $0xdc] sm:$0xf]
  %v173 = vld [vmem:[%s1 + $0xe0] sm:$0xf]
  %v174 = vld [vmem:[%s1 + $0xe4] sm:$0xf]
  %v175 = vld [vmem:[%s1 + $0xe8] sm:$0xf]
  %v176 = vld [vmem:[%s1 + $0xec] sm:$0xf]
  %v177 = vld [vmem:[%s1 + $0xf0] sm:$0xf]
  %v178 = vld [vmem:[%s1 + $0xf4] sm:$0xf]
  %v179 = vld [vmem:[%s1 + $0xf8] sm:$0xf]
  %v180 = vld [vmem:[%s1 + $0xfc] sm:$0xf]
  %v181 = vld [vmem:[%s1 + $0x100] sm:$0xf]
  %v182 = vld [vmem:[%s1 + $0x104] sm:$0xf]
  %v183 = vld [vmem:[%s1 + $0x108] sm:$0xf]
  %v184 = vld [vmem:[%s1 + $0x10c] sm:$0xf]
  %v185 = vld [vmem:[%s1 + $0x110] sm:$0xf]
  %v186 = vld [vmem:[%s1 + $0x114] sm:$0xf]
  %v187 = vld [vmem:[%s1 + $0x118] sm:$0xf]
  %v188 = vld [vmem:[%s1 + $0x11c] sm:$0xf]
  %v189 = vld [vmem:[%s1 + $0x120] sm:$0xf]
  %v190 = vld [vmem:[%s1 + $0x124] sm:$0xf]
  %v191 = vld [vmem:[%s1 + $0x128] sm:$0xf]
  %v192 = vld [vmem:[%s1 + $0x12c] sm:$0xf]
  %v193 = vld [vmem:[%s1 + $0x130] sm:$0xf]
  %v194 = vld [vmem:[%s1 + $0x134] sm:$0xf]
  %v195 = vld [vmem:[%s1 + $0x138] sm:$0xf]
  %v196 = vld [vmem:[%s1 + $0x13c] sm:$0xf]
  %v197 = vld [vmem:[%s4] sm:$0xff]
  %v198 = vld [vmem:[%s4 + $0x8] sm:$0xff]
  %v199 = vld [vmem:[%s4 + $0x10] sm:$0xf]
  %v200 = vunpack.c.l.bf16 %v197
  %v201 = vunpack.c.h.bf16 %v197
  %v202 = vunpack.c.l.bf16 %v198
  %v203 = vunpack.c.h.bf16 %v198
  %v204 = vunpack.c.l.bf16 %v199
  %v205 = vld [vmem:[%s6] sm:$0x1f]
  %v207 = vlaneseq
  %v208 = vshrl.u32 %v207, 7
  %v209 = vsub.s32 0, %v208
  %v210 = vrot.slane %v205, %v209
  %v211 = vlaneseq
  %v212 = vshrl.u32 %v211, 7
  %v213 = vsub.s32 1, %v212
  %v214 = vrot.slane %v205, %v213
  %v215 = vlaneseq
  %v216 = vshrl.u32 %v215, 7
  %v217 = vsub.s32 2, %v216
  %v218 = vrot.slane %v205, %v217
  %v219 = vlaneseq
  %v220 = vshrl.u32 %v219, 7
  %v221 = vsub.s32 3, %v220
  %v222 = vrot.slane %v205, %v221
  %v223 = vlaneseq
  %v224 = vshrl.u32 %v223, 7
  %v225 = vsub.s32 4, %v224
  %v226 = vrot.slane %v205, %v225
  %v232 = vmul.f32 %v200, %v210
  %v233 = vmul.f32 %v201, %v214
  %v234 = vmul.f32 %v202, %v218
  %v235 = vmul.f32 %v203, %v222
  %v236 = vmul.f32 %v204, %v226
  %v237 = vld [vmem:[%s7] sm:$0x1f]
  %v239 = vlaneseq
  %v240 = vshrl.u32 %v239, 7
  %v241 = vsub.s32 0, %v240
  %v242 = vrot.slane %v237, %v241
  %v243 = vlaneseq
  %v244 = vshrl.u32 %v243, 7
  %v245 = vsub.s32 1, %v244
  %v246 = vrot.slane %v237, %v245
  %v247 = vlaneseq
  %v248 = vshrl.u32 %v247, 7
  %v249 = vsub.s32 2, %v248
  %v250 = vrot.slane %v237, %v249
  %v251 = vlaneseq
  %v252 = vshrl.u32 %v251, 7
  %v253 = vsub.s32 3, %v252
  %v254 = vrot.slane %v237, %v253
  %v255 = vlaneseq
  %v256 = vshrl.u32 %v255, 7
  %v257 = vsub.s32 4, %v256
  %v258 = vrot.slane %v237, %v257
  %v264 = vadd.f32 %v232, %v242
  %v265 = vadd.f32 %v233, %v246
  %v266 = vadd.f32 %v234, %v250
  %v267 = vadd.f32 %v235, %v254
  %v268 = vadd.f32 %v236, %v258
  %v269 = vmax.f32 %v264, 0.0
  %v270 = vmax.f32 %v265, 0.0
  %v271 = vmax.f32 %v266, 0.0
  %v272 = vmax.f32 %v267, 0.0
  %v273 = vmax.f32 %v268, 0.0
  %v274 = vpack.c.bf16 %v269, %v269
  %v275 = vpack.c.bf16 %v270, %v270
  %v276 = vpack.c.bf16 %v271, %v271
  %v277 = vpack.c.bf16 %v272, %v272
  %v278 = vpack.c.bf16 %v273, %v273
  %v279 = vld [vmem:[%s5] sm:$0xf]
  %v280 = vld [vmem:[%s5 + $0x4] sm:$0xf]
  %v281 = vld [vmem:[%s5 + $0x8] sm:$0xf]
  %v282 = vld [vmem:[%s5 + $0xc] sm:$0xf]
  %v283 = vld [vmem:[%s5 + $0x10] sm:$0xf]
  %v284 = vld [vmem:[%s5 + $0x14] sm:$0xf]
  %v285 = vld [vmem:[%s5 + $0x18] sm:$0xf]
  %v286 = vld [vmem:[%s5 + $0x1c] sm:$0xf]
  %v287 = vld [vmem:[%s5 + $0x20] sm:$0xf]
  %v288 = vld [vmem:[%s5 + $0x24] sm:$0xf]
  %v289 = vld [vmem:[%s5 + $0x28] sm:$0xf]
  %v290 = vld [vmem:[%s5 + $0x2c] sm:$0xf]
  %v291 = vld [vmem:[%s5 + $0x30] sm:$0xf]
  %v292 = vld [vmem:[%s5 + $0x34] sm:$0xf]
  %v293 = vld [vmem:[%s5 + $0x38] sm:$0xf]
  %v294 = vld [vmem:[%s5 + $0x3c] sm:$0xf]
  %v295 = vld [vmem:[%s5 + $0x40] sm:$0xf]
  %v296 = vld [vmem:[%s5 + $0x44] sm:$0xf]
  %v297 = vld [vmem:[%s5 + $0x48] sm:$0xf]
  %v298 = vld [vmem:[%s5 + $0x4c] sm:$0xf]
  %v299 = vld [vmem:[%s5 + $0x50] sm:$0xf]
  %v300 = vld [vmem:[%s5 + $0x54] sm:$0xf]
  %v301 = vld [vmem:[%s5 + $0x58] sm:$0xf]
  %v302 = vld [vmem:[%s5 + $0x5c] sm:$0xf]
  %v303 = vld [vmem:[%s5 + $0x60] sm:$0xf]
  %v304 = vld [vmem:[%s5 + $0x64] sm:$0xf]
  %v305 = vld [vmem:[%s5 + $0x68] sm:$0xf]
  %v306 = vld [vmem:[%s5 + $0x6c] sm:$0xf]
  %v307 = vld [vmem:[%s5 + $0x70] sm:$0xf]
  %v308 = vld [vmem:[%s5 + $0x74] sm:$0xf]
  %v309 = vld [vmem:[%s5 + $0x78] sm:$0xf]
  %v310 = vld [vmem:[%s5 + $0x7c] sm:$0xf]
  %v311 = vld [vmem:[%s5 + $0x80] sm:$0xf]
  %v312 = vld [vmem:[%s5 + $0x84] sm:$0xf]
  %v313 = vld [vmem:[%s5 + $0x88] sm:$0xf]
  %v314 = vld [vmem:[%s5 + $0x8c] sm:$0xf]
  %v315 = vld [vmem:[%s5 + $0x90] sm:$0xf]
  %v316 = vld [vmem:[%s5 + $0x94] sm:$0xf]
  %v317 = vld [vmem:[%s5 + $0x98] sm:$0xf]
  %v318 = vld [vmem:[%s5 + $0x9c] sm:$0xf]
  %v319 = vld [vmem:[%s5 + $0xa0] sm:$0xf]
  %v320 = vld [vmem:[%s5 + $0xa4] sm:$0xf]
  %v321 = vld [vmem:[%s5 + $0xa8] sm:$0xf]
  %v322 = vld [vmem:[%s5 + $0xac] sm:$0xf]
  %v323 = vld [vmem:[%s5 + $0xb0] sm:$0xf]
  %v324 = vld [vmem:[%s5 + $0xb4] sm:$0xf]
  %v325 = vld [vmem:[%s5 + $0xb8] sm:$0xf]
  %v326 = vld [vmem:[%s5 + $0xbc] sm:$0xf]
  %v327 = vld [vmem:[%s5 + $0xc0] sm:$0xf]
  %v328 = vld [vmem:[%s5 + $0xc4] sm:$0xf]
  %v329 = vld [vmem:[%s5 + $0xc8] sm:$0xf]
  %v330 = vld [vmem:[%s5 + $0xcc] sm:$0xf]
  %v331 = vld [vmem:[%s5 + $0xd0] sm:$0xf]
  %v332 = vld [vmem:[%s5 + $0xd4] sm:$0xf]
  %v333 = vld [vmem:[%s5 + $0xd8] sm:$0xf]
  %v334 = vld [vmem:[%s5 + $0xdc] sm:$0xf]
  %v335 = vld [vmem:[%s5 + $0xe0] sm:$0xf]
  %v336 = vld [vmem:[%s5 + $0xe4] sm:$0xf]
  %v337 = vld [vmem:[%s5 + $0xe8] sm:$0xf]
  %v338 = vld [vmem:[%s5 + $0xec] sm:$0xf]
  %v339 = vld [vmem:[%s5 + $0xf0] sm:$0xf]
  %v340 = vld [vmem:[%s5 + $0xf4] sm:$0xf]
  %v341 = vld [vmem:[%s5 + $0xf8] sm:$0xf]
  %v342 = vld [vmem:[%s5 + $0xfc] sm:$0xf]
  %v343 = vld [vmem:[%s5 + $0x100] sm:$0xf]
  %v344 = vld [vmem:[%s5 + $0x104] sm:$0xf]
  %v345 = vld [vmem:[%s5 + $0x108] sm:$0xf]
  %v346 = vld [vmem:[%s5 + $0x10c] sm:$0xf]
  %v347 = vld [vmem:[%s5 + $0x110] sm:$0xf]
  %v348 = vld [vmem:[%s5 + $0x114] sm:$0xf]
  %v349 = vld [vmem:[%s5 + $0x118] sm:$0xf]
  %v350 = vld [vmem:[%s5 + $0x11c] sm:$0xf]
  %v351 = vld [vmem:[%s5 + $0x120] sm:$0xf]
  %v352 = vld [vmem:[%s5 + $0x124] sm:$0xf]
  %v353 = vld [vmem:[%s5 + $0x128] sm:$0xf]
  %v354 = vld [vmem:[%s5 + $0x12c] sm:$0xf]
  %v355 = vld [vmem:[%s5 + $0x130] sm:$0xf]
  %v356 = vld [vmem:[%s5 + $0x134] sm:$0xf]
  %v357 = vld [vmem:[%s5 + $0x138] sm:$0xf]
  %v358 = vld [vmem:[%s5 + $0x13c] sm:$0xf]
  %v439 = vunpack.c.l.b16 %v279
  %v440 = vunpack.c.l.b16 %v280
  %v441 = vunpack.c.l.b16 %v281
  %v442 = vunpack.c.l.b16 %v282
  %v443 = vunpack.c.l.b16 %v283
  %v444 = vunpack.c.l.b16 %v284
  %v445 = vunpack.c.l.b16 %v285
  %v446 = vunpack.c.l.b16 %v286
  %v447 = vunpack.c.l.b16 %v287
  %v448 = vunpack.c.l.b16 %v288
  %v449 = vunpack.c.l.b16 %v289
  %v450 = vunpack.c.l.b16 %v290
  %v451 = vunpack.c.l.b16 %v291
  %v452 = vunpack.c.l.b16 %v292
  %v453 = vunpack.c.l.b16 %v293
  %v454 = vunpack.c.l.b16 %v294
  %v455 = vunpack.c.l.b16 %v295
  %v456 = vunpack.c.l.b16 %v296
  %v457 = vunpack.c.l.b16 %v297
  %v458 = vunpack.c.l.b16 %v298
  %v459 = vunpack.c.l.b16 %v299
  %v460 = vunpack.c.l.b16 %v300
  %v461 = vunpack.c.l.b16 %v301
  %v462 = vunpack.c.l.b16 %v302
  %v463 = vunpack.c.l.b16 %v303
  %v464 = vunpack.c.l.b16 %v304
  %v465 = vunpack.c.l.b16 %v305
  %v466 = vunpack.c.l.b16 %v306
  %v467 = vunpack.c.l.b16 %v307
  %v468 = vunpack.c.l.b16 %v308
  %v469 = vunpack.c.l.b16 %v309
  %v470 = vunpack.c.l.b16 %v310
  %v471 = vunpack.c.l.b16 %v311
  %v472 = vunpack.c.l.b16 %v312
  %v473 = vunpack.c.l.b16 %v313
  %v474 = vunpack.c.l.b16 %v314
  %v475 = vunpack.c.l.b16 %v315
  %v476 = vunpack.c.l.b16 %v316
  %v477 = vunpack.c.l.b16 %v317
  %v478 = vunpack.c.l.b16 %v318
  %v479 = vunpack.c.l.b16 %v319
  %v480 = vunpack.c.l.b16 %v320
  %v481 = vunpack.c.l.b16 %v321
  %v482 = vunpack.c.l.b16 %v322
  %v483 = vunpack.c.l.b16 %v323
  %v484 = vunpack.c.l.b16 %v324
  %v485 = vunpack.c.l.b16 %v325
  %v486 = vunpack.c.l.b16 %v326
  %v487 = vunpack.c.l.b16 %v327
  %v488 = vunpack.c.l.b16 %v328
  %v489 = vunpack.c.l.b16 %v329
  %v490 = vunpack.c.l.b16 %v330
  %v491 = vunpack.c.l.b16 %v331
  %v492 = vunpack.c.l.b16 %v332
  %v493 = vunpack.c.l.b16 %v333
  %v494 = vunpack.c.l.b16 %v334
  %v495 = vunpack.c.l.b16 %v335
  %v496 = vunpack.c.l.b16 %v336
  %v497 = vunpack.c.l.b16 %v337
  %v498 = vunpack.c.l.b16 %v338
  %v499 = vunpack.c.l.b16 %v339
  %v500 = vunpack.c.l.b16 %v340
  %v501 = vunpack.c.l.b16 %v341
  %v502 = vunpack.c.l.b16 %v342
  %v503 = vunpack.c.l.b16 %v343
  %v504 = vunpack.c.l.b16 %v344
  %v505 = vunpack.c.l.b16 %v345
  %v506 = vunpack.c.l.b16 %v346
  %v507 = vunpack.c.l.b16 %v347
  %v508 = vunpack.c.l.b16 %v348
  %v509 = vunpack.c.l.b16 %v349
  %v510 = vunpack.c.l.b16 %v350
  %v511 = vunpack.c.l.b16 %v351
  %v512 = vunpack.c.l.b16 %v352
  %v513 = vunpack.c.l.b16 %v353
  %v514 = vunpack.c.l.b16 %v354
  %v515 = vunpack.c.l.b16 %v355
  %v516 = vunpack.c.l.b16 %v356
  %v517 = vunpack.c.l.b16 %v357
  %v518 = vunpack.c.l.b16 %v358
  %v519 = vpack.c.b16 %v440, %v439
  %v520 = vpack.c.b16 %v442, %v441
  %v521 = vpack.c.b16 %v444, %v443
  %v522 = vpack.c.b16 %v446, %v445
  %v523 = vpack.c.b16 %v448, %v447
  %v524 = vpack.c.b16 %v450, %v449
  %v525 = vpack.c.b16 %v452, %v451
  %v526 = vpack.c.b16 %v454, %v453
  %v527 = vpack.c.b16 %v456, %v455
  %v528 = vpack.c.b16 %v458, %v457
  %v529 = vpack.c.b16 %v460, %v459
  %v530 = vpack.c.b16 %v462, %v461
  %v531 = vpack.c.b16 %v464, %v463
  %v532 = vpack.c.b16 %v466, %v465
  %v533 = vpack.c.b16 %v468, %v467
  %v534 = vpack.c.b16 %v470, %v469
  %v535 = vpack.c.b16 %v472, %v471
  %v536 = vpack.c.b16 %v474, %v473
  %v537 = vpack.c.b16 %v476, %v475
  %v538 = vpack.c.b16 %v478, %v477
  %v539 = vpack.c.b16 %v480, %v479
  %v540 = vpack.c.b16 %v482, %v481
  %v541 = vpack.c.b16 %v484, %v483
  %v542 = vpack.c.b16 %v486, %v485
  %v543 = vpack.c.b16 %v488, %v487
  %v544 = vpack.c.b16 %v490, %v489
  %v545 = vpack.c.b16 %v492, %v491
  %v546 = vpack.c.b16 %v494, %v493
  %v547 = vpack.c.b16 %v496, %v495
  %v548 = vpack.c.b16 %v498, %v497
  %v549 = vpack.c.b16 %v500, %v499
  %v550 = vpack.c.b16 %v502, %v501
  %v551 = vpack.c.b16 %v504, %v503
  %v552 = vpack.c.b16 %v506, %v505
  %v553 = vpack.c.b16 %v508, %v507
  %v554 = vpack.c.b16 %v510, %v509
  %v555 = vpack.c.b16 %v512, %v511
  %v556 = vpack.c.b16 %v514, %v513
  %v557 = vpack.c.b16 %v516, %v515
  %v558 = vpack.c.b16 %v518, %v517
  %599 = vmatprep.subr.bf16.mxu0 0
  %600 = vmatpush1.bf16.msra.mxu0 %v519
  %601 = vmatprep.subr.bf16.mxu0 0
  %602 = vmatpush1.bf16.msra.mxu0 %v520
  %603 = vmatprep.subr.bf16.mxu0 0
  %604 = vmatpush1.bf16.msra.mxu0 %v521
  %605 = vmatprep.subr.bf16.mxu0 0
  %606 = vmatpush1.bf16.msra.mxu0 %v522
  %607 = vmatprep.subr.bf16.mxu0 0
  %608 = vmatpush1.bf16.msra.mxu0 %v523
  %609 = vmatprep.subr.bf16.mxu0 0
  %610 = vmatpush1.bf16.msra.mxu0 %v524
  %611 = vmatprep.subr.bf16.mxu0 0
  %612 = vmatpush1.bf16.msra.mxu0 %v525
  %613 = vmatprep.subr.bf16.mxu0 0
  %614 = vmatpush1.bf16.msra.mxu0 %v526
  %615 = vmatprep.subr.bf16.mxu0 0
  %616 = vmatpush1.bf16.msra.mxu0 %v527
  %617 = vmatprep.subr.bf16.mxu0 0
  %618 = vmatpush1.bf16.msra.mxu0 %v528
  %619 = vmatprep.subr.bf16.mxu0 0
  %620 = vmatpush1.bf16.msra.mxu0 %v529
  %621 = vmatprep.subr.bf16.mxu0 0
  %622 = vmatpush1.bf16.msra.mxu0 %v530
  %623 = vmatprep.subr.bf16.mxu0 0
  %624 = vmatpush1.bf16.msra.mxu0 %v531
  %625 = vmatprep.subr.bf16.mxu0 0
  %626 = vmatpush1.bf16.msra.mxu0 %v532
  %627 = vmatprep.subr.bf16.mxu0 0
  %628 = vmatpush1.bf16.msra.mxu0 %v533
  %629 = vmatprep.subr.bf16.mxu0 0
  %630 = vmatpush1.bf16.msra.mxu0 %v534
  %631 = vmatprep.mubr.bf16.mxu0 %v275
  %632 = vmatmul.mubr.bf16.gmra.mrb[0].mxu0 %v274
  %v633 = vpop.f32.mrb[0].mxu0
  %v634 = vadd.f32 0.0, %v633
  %v635 = vpop.f32.mrb[0].mxu0
  %v636 = vpop.f32.mrb[0].mxu0
  %v637 = vpop.f32.mrb[0].mxu0
  %638 = vdwg.mxu0
  %639 = vmatprep.subr.bf16.mxu0 0
  %640 = vmatpush1.bf16.msra.mxu0 %v535
  %641 = vmatprep.subr.bf16.mxu0 0
  %642 = vmatpush1.bf16.msra.mxu0 %v536
  %643 = vmatprep.subr.bf16.mxu0 0
  %644 = vmatpush1.bf16.msra.mxu0 %v537
  %645 = vmatprep.subr.bf16.mxu0 0
  %646 = vmatpush1.bf16.msra.mxu0 %v538
  %647 = vmatprep.subr.bf16.mxu0 0
  %648 = vmatpush1.bf16.msra.mxu0 %v539
  %649 = vmatprep.subr.bf16.mxu0 0
  %650 = vmatpush1.bf16.msra.mxu0 %v540
  %651 = vmatprep.subr.bf16.mxu0 0
  %652 = vmatpush1.bf16.msra.mxu0 %v541
  %653 = vmatprep.subr.bf16.mxu0 0
  %654 = vmatpush1.bf16.msra.mxu0 %v542
  %655 = vmatprep.subr.bf16.mxu0 0
  %656 = vmatpush1.bf16.msra.mxu0 %v543
  %657 = vmatprep.subr.bf16.mxu0 0
  %658 = vmatpush1.bf16.msra.mxu0 %v544
  %659 = vmatprep.subr.bf16.mxu0 0
  %660 = vmatpush1.bf16.msra.mxu0 %v545
  %661 = vmatprep.subr.bf16.mxu0 0
  %662 = vmatpush1.bf16.msra.mxu0 %v546
  %663 = vmatprep.subr.bf16.mxu0 0
  %664 = vmatpush1.bf16.msra.mxu0 %v547
  %665 = vmatprep.subr.bf16.mxu0 0
  %666 = vmatpush1.bf16.msra.mxu0 %v548
  %667 = vmatprep.subr.bf16.mxu0 0
  %668 = vmatpush1.bf16.msra.mxu0 %v549
  %669 = vmatprep.subr.bf16.mxu0 0
  %670 = vmatpush1.bf16.msra.mxu0 %v550
  %671 = vmatprep.mubr.bf16.mxu0 %v277
  %672 = vmatmul.mubr.bf16.gmra.mrb[0].mxu0 %v276
  %v673 = vpop.f32.mrb[0].mxu0
  %v674 = vadd.f32 %v634, %v673
  %v675 = vpop.f32.mrb[0].mxu0
  %v676 = vpop.f32.mrb[0].mxu0
  %v677 = vpop.f32.mrb[0].mxu0
  %678 = vdwg.mxu0
  %679 = vmatprep.subr.bf16.mxu0 0
  %680 = vmatpush1.bf16.msra.mxu0 %v551
  %681 = vmatprep.subr.bf16.mxu0 0
  %682 = vmatpush1.bf16.msra.mxu0 %v552
  %683 = vmatprep.subr.bf16.mxu0 0
  %684 = vmatpush1.bf16.msra.mxu0 %v553
  %685 = vmatprep.subr.bf16.mxu0 0
  %686 = vmatpush1.bf16.msra.mxu0 %v554
  %687 = vmatprep.subr.bf16.mxu0 0
  %688 = vmatpush1.bf16.msra.mxu0 %v555
  %689 = vmatprep.subr.bf16.mxu0 0
  %690 = vmatpush1.bf16.msra.mxu0 %v556
  %691 = vmatprep.subr.bf16.mxu0 0
  %692 = vmatpush1.bf16.msra.mxu0 %v557
  %693 = vmatprep.subr.bf16.mxu0 0
  %694 = vmatpush1.bf16.msra.mxu0 %v558
  %695 = vmatprep.subr.bf16.mxu0 0
  %696 = vmatpush1.bf16.msra.mxu0 0
  %697 = vmatprep.subr.bf16.mxu0 0
  %698 = vmatpush1.bf16.msra.mxu0 0
  %699 = vmatprep.subr.bf16.mxu0 0
  %700 = vmatpush1.bf16.msra.mxu0 0
  %701 = vmatprep.subr.bf16.mxu0 0
  %702 = vmatpush1.bf16.msra.mxu0 0
  %703 = vmatprep.subr.bf16.mxu0 0
  %704 = vmatpush1.bf16.msra.mxu0 0
  %705 = vmatprep.subr.bf16.mxu0 0
  %706 = vmatpush1.bf16.msra.mxu0 0
  %707 = vmatprep.subr.bf16.mxu0 0
  %708 = vmatpush1.bf16.msra.mxu0 0
  %709 = vmatprep.subr.bf16.mxu0 0
  %710 = vmatpush1.bf16.msra.mxu0 0
  %711 = vmatprep.mubr.bf16.mxu0 0
  %712 = vmatmul.mubr.bf16.gmra.mrb[0].mxu0 %v278
  %v713 = vpop.f32.mrb[0].mxu0
  %v714 = vadd.f32 %v674, %v713
  %v715 = vpop.f32.mrb[0].mxu0
  %v716 = vpop.f32.mrb[0].mxu0
  %v717 = vpop.f32.mrb[0].mxu0
  %718 = vdwg.mxu0
  %v799 = vunpack.c.l.b16 %v117
  %v800 = vunpack.c.l.b16 %v118
  %v801 = vunpack.c.l.b16 %v119
  %v802 = vunpack.c.l.b16 %v120
  %v803 = vunpack.c.l.b16 %v121
  %v804 = vunpack.c.l.b16 %v122
  %v805 = vunpack.c.l.b16 %v123
  %v806 = vunpack.c.l.b16 %v124
  %v807 = vunpack.c.l.b16 %v125
  %v808 = vunpack.c.l.b16 %v126
  %v809 = vunpack.c.l.b16 %v127
  %v810 = vunpack.c.l.b16 %v128
  %v811 = vunpack.c.l.b16 %v129
  %v812 = vunpack.c.l.b16 %v130
  %v813 = vunpack.c.l.b16 %v131
  %v814 = vunpack.c.l.b16 %v132
  %v815 = vunpack.c.l.b16 %v133
  %v816 = vunpack.c.l.b16 %v134
  %v817 = vunpack.c.l.b16 %v135
  %v818 = vunpack.c.l.b16 %v136
  %v819 = vunpack.c.l.b16 %v137
  %v820 = vunpack.c.l.b16 %v138
  %v821 = vunpack.c.l.b16 %v139
  %v822 = vunpack.c.l.b16 %v140
  %v823 = vunpack.c.l.b16 %v141
  %v824 = vunpack.c.l.b16 %v142
  %v825 = vunpack.c.l.b16 %v143
  %v826 = vunpack.c.l.b16 %v144
  %v827 = vunpack.c.l.b16 %v145
  %v828 = vunpack.c.l.b16 %v146
  %v829 = vunpack.c.l.b16 %v147
  %v830 = vunpack.c.l.b16 %v148
  %v831 = vunpack.c.l.b16 %v149
  %v832 = vunpack.c.l.b16 %v150
  %v833 = vunpack.c.l.b16 %v151
  %v834 = vunpack.c.l.b16 %v152
  %v835 = vunpack.c.l.b16 %v153
  %v836 = vunpack.c.l.b16 %v154
  %v837 = vunpack.c.l.b16 %v155
  %v838 = vunpack.c.l.b16 %v156
  %v839 = vunpack.c.l.b16 %v157
  %v840 = vunpack.c.l.b16 %v158
  %v841 = vunpack.c.l.b16 %v159
  %v842 = vunpack.c.l.b16 %v160
  %v843 = vunpack.c.l.b16 %v161
  %v844 = vunpack.c.l.b16 %v162
  %v845 = vunpack.c.l.b16 %v163
  %v846 = vunpack.c.l.b16 %v164
  %v847 = vunpack.c.l.b16 %v165
  %v848 = vunpack.c.l.b16 %v166
  %v849 = vunpack.c.l.b16 %v167
  %v850 = vunpack.c.l.b16 %v168
  %v851 = vunpack.c.l.b16 %v169
  %v852 = vunpack.c.l.b16 %v170
  %v853 = vunpack.c.l.b16 %v171
  %v854 = vunpack.c.l.b16 %v172
  %v855 = vunpack.c.l.b16 %v173
  %v856 = vunpack.c.l.b16 %v174
  %v857 = vunpack.c.l.b16 %v175
  %v858 = vunpack.c.l.b16 %v176
  %v859 = vunpack.c.l.b16 %v177
  %v860 = vunpack.c.l.b16 %v178
  %v861 = vunpack.c.l.b16 %v179
  %v862 = vunpack.c.l.b16 %v180
  %v863 = vunpack.c.l.b16 %v181
  %v864 = vunpack.c.l.b16 %v182
  %v865 = vunpack.c.l.b16 %v183
  %v866 = vunpack.c.l.b16 %v184
  %v867 = vunpack.c.l.b16 %v185
  %v868 = vunpack.c.l.b16 %v186
  %v869 = vunpack.c.l.b16 %v187
  %v870 = vunpack.c.l.b16 %v188
  %v871 = vunpack.c.l.b16 %v189
  %v872 = vunpack.c.l.b16 %v190
  %v873 = vunpack.c.l.b16 %v191
  %v874 = vunpack.c.l.b16 %v192
  %v875 = vunpack.c.l.b16 %v193
  %v876 = vunpack.c.l.b16 %v194
  %v877 = vunpack.c.l.b16 %v195
  %v878 = vunpack.c.l.b16 %v196
  %v879 = vpack.c.b16 %v800, %v799
  %v880 = vpack.c.b16 %v802, %v801
  %v881 = vpack.c.b16 %v804, %v803
  %v882 = vpack.c.b16 %v806, %v805
  %v883 = vpack.c.b16 %v808, %v807
  %v884 = vpack.c.b16 %v810, %v809
  %v885 = vpack.c.b16 %v812, %v811
  %v886 = vpack.c.b16 %v814, %v813
  %v887 = vpack.c.b16 %v816, %v815
  %v888 = vpack.c.b16 %v818, %v817
  %v889 = vpack.c.b16 %v820, %v819
  %v890 = vpack.c.b16 %v822, %v821
  %v891 = vpack.c.b16 %v824, %v823
  %v892 = vpack.c.b16 %v826, %v825
  %v893 = vpack.c.b16 %v828, %v827
  %v894 = vpack.c.b16 %v830, %v829
  %v895 = vpack.c.b16 %v832, %v831
  %v896 = vpack.c.b16 %v834, %v833
  %v897 = vpack.c.b16 %v836, %v835
  %v898 = vpack.c.b16 %v838, %v837
  %v899 = vpack.c.b16 %v840, %v839
  %v900 = vpack.c.b16 %v842, %v841
  %v901 = vpack.c.b16 %v844, %v843
  %v902 = vpack.c.b16 %v846, %v845
  %v903 = vpack.c.b16 %v848, %v847
  %v904 = vpack.c.b16 %v850, %v849
  %v905 = vpack.c.b16 %v852, %v851
  %v906 = vpack.c.b16 %v854, %v853
  %v907 = vpack.c.b16 %v856, %v855
  %v908 = vpack.c.b16 %v858, %v857
  %v909 = vpack.c.b16 %v860, %v859
  %v910 = vpack.c.b16 %v862, %v861
  %v911 = vpack.c.b16 %v864, %v863
  %v912 = vpack.c.b16 %v866, %v865
  %v913 = vpack.c.b16 %v868, %v867
  %v914 = vpack.c.b16 %v870, %v869
  %v915 = vpack.c.b16 %v872, %v871
  %v916 = vpack.c.b16 %v874, %v873
  %v917 = vpack.c.b16 %v876, %v875
  %v918 = vpack.c.b16 %v878, %v877
  %959 = vmatprep.subr.bf16.mxu0 0
  %960 = vmatpush1.bf16.msra.mxu0 %v879
  %961 = vmatprep.subr.bf16.mxu0 0
  %962 = vmatpush1.bf16.msra.mxu0 %v880
  %963 = vmatprep.subr.bf16.mxu0 0
  %964 = vmatpush1.bf16.msra.mxu0 %v881
  %965 = vmatprep.subr.bf16.mxu0 0
  %966 = vmatpush1.bf16.msra.mxu0 %v882
  %967 = vmatprep.subr.bf16.mxu0 0
  %968 = vmatpush1.bf16.msra.mxu0 %v883
  %969 = vmatprep.subr.bf16.mxu0 0
  %970 = vmatpush1.bf16.msra.mxu0 %v884
  %971 = vmatprep.subr.bf16.mxu0 0
  %972 = vmatpush1.bf16.msra.mxu0 %v885
  %973 = vmatprep.subr.bf16.mxu0 0
  %974 = vmatpush1.bf16.msra.mxu0 %v886
  %975 = vmatprep.subr.bf16.mxu0 0
  %976 = vmatpush1.bf16.msra.mxu0 %v887
  %977 = vmatprep.subr.bf16.mxu0 0
  %978 = vmatpush1.bf16.msra.mxu0 %v888
  %979 = vmatprep.subr.bf16.mxu0 0
  %980 = vmatpush1.bf16.msra.mxu0 %v889
  %981 = vmatprep.subr.bf16.mxu0 0
  %982 = vmatpush1.bf16.msra.mxu0 %v890
  %983 = vmatprep.subr.bf16.mxu0 0
  %984 = vmatpush1.bf16.msra.mxu0 %v891
  %985 = vmatprep.subr.bf16.mxu0 0
  %986 = vmatpush1.bf16.msra.mxu0 %v892
  %987 = vmatprep.subr.bf16.mxu0 0
  %988 = vmatpush1.bf16.msra.mxu0 %v893
  %989 = vmatprep.subr.bf16.mxu0 0
  %990 = vmatpush1.bf16.msra.mxu0 %v894
  %991 = vmatprep.mubr.bf16.mxu0 %v113
  %992 = vmatmul.mubr.bf16.gmra.mrb[0].mxu0 %v112
  %v993 = vpop.f32.mrb[0].mxu0
  %v994 = vadd.f32 %v714, %v993
  %v995 = vpop.f32.mrb[0].mxu0
  %v996 = vpop.f32.mrb[0].mxu0
  %v997 = vpop.f32.mrb[0].mxu0
  %998 = vdwg.mxu0
  %999 = vmatprep.subr.bf16.mxu0 0
  %1000 = vmatpush1.bf16.msra.mxu0 %v895
  %1001 = vmatprep.subr.bf16.mxu0 0
  %1002 = vmatpush1.bf16.msra.mxu0 %v896
  %1003 = vmatprep.subr.bf16.mxu0 0
  %1004 = vmatpush1.bf16.msra.mxu0 %v897
  %1005 = vmatprep.subr.bf16.mxu0 0
  %1006 = vmatpush1.bf16.msra.mxu0 %v898
  %1007 = vmatprep.subr.bf16.mxu0 0
  %1008 = vmatpush1.bf16.msra.mxu0 %v899
  %1009 = vmatprep.subr.bf16.mxu0 0
  %1010 = vmatpush1.bf16.msra.mxu0 %v900
  %1011 = vmatprep.subr.bf16.mxu0 0
  %1012 = vmatpush1.bf16.msra.mxu0 %v901
  %1013 = vmatprep.subr.bf16.mxu0 0
  %1014 = vmatpush1.bf16.msra.mxu0 %v902
  %1015 = vmatprep.subr.bf16.mxu0 0
  %1016 = vmatpush1.bf16.msra.mxu0 %v903
  %1017 = vmatprep.subr.bf16.mxu0 0
  %1018 = vmatpush1.bf16.msra.mxu0 %v904
  %1019 = vmatprep.subr.bf16.mxu0 0
  %1020 = vmatpush1.bf16.msra.mxu0 %v905
  %1021 = vmatprep.subr.bf16.mxu0 0
  %1022 = vmatpush1.bf16.msra.mxu0 %v906
  %1023 = vmatprep.subr.bf16.mxu0 0
  %1024 = vmatpush1.bf16.msra.mxu0 %v907
  %1025 = vmatprep.subr.bf16.mxu0 0
  %1026 = vmatpush1.bf16.msra.mxu0 %v908
  %1027 = vmatprep.subr.bf16.mxu0 0
  %1028 = vmatpush1.bf16.msra.mxu0 %v909
  %1029 = vmatprep.subr.bf16.mxu0 0
  %1030 = vmatpush1.bf16.msra.mxu0 %v910
  %1031 = vmatprep.mubr.bf16.mxu0 %v115
  %1032 = vmatmul.mubr.bf16.gmra.mrb[0].mxu0 %v114
  %v1033 = vpop.f32.mrb[0].mxu0
  %v1034 = vadd.f32 %v994, %v1033
  %v1035 = vpop.f32.mrb[0].mxu0
  %v1036 = vpop.f32.mrb[0].mxu0
  %v1037 = vpop.f32.mrb[0].mxu0
  %1038 = vdwg.mxu0
  %1039 = vmatprep.subr.bf16.mxu0 0
  %1040 = vmatpush1.bf16.msra.mxu0 %v911
  %1041 = vmatprep.subr.bf16.mxu0 0
  %1042 = vmatpush1.bf16.msra.mxu0 %v912
  %1043 = vmatprep.subr.bf16.mxu0 0
  %1044 = vmatpush1.bf16.msra.mxu0 %v913
  %1045 = vmatprep.subr.bf16.mxu0 0
  %1046 = vmatpush1.bf16.msra.mxu0 %v914
  %1047 = vmatprep.subr.bf16.mxu0 0
  %1048 = vmatpush1.bf16.msra.mxu0 %v915
  %1049 = vmatprep.subr.bf16.mxu0 0
  %1050 = vmatpush1.bf16.msra.mxu0 %v916
  %1051 = vmatprep.subr.bf16.mxu0 0
  %1052 = vmatpush1.bf16.msra.mxu0 %v917
  %1053 = vmatprep.subr.bf16.mxu0 0
  %1054 = vmatpush1.bf16.msra.mxu0 %v918
  %1055 = vmatprep.subr.bf16.mxu0 0
  %1056 = vmatpush1.bf16.msra.mxu0 0
  %1057 = vmatprep.subr.bf16.mxu0 0
  %1058 = vmatpush1.bf16.msra.mxu0 0
  %1059 = vmatprep.subr.bf16.mxu0 0
  %1060 = vmatpush1.bf16.msra.mxu0 0
  %1061 = vmatprep.subr.bf16.mxu0 0
  %1062 = vmatpush1.bf16.msra.mxu0 0
  %1063 = vmatprep.subr.bf16.mxu0 0
  %1064 = vmatpush1.bf16.msra.mxu0 0
  %1065 = vmatprep.subr.bf16.mxu0 0
  %1066 = vmatpush1.bf16.msra.mxu0 0
  %1067 = vmatprep.subr.bf16.mxu0 0
  %1068 = vmatpush1.bf16.msra.mxu0 0
  %1069 = vmatprep.subr.bf16.mxu0 0
  %1070 = vmatpush1.bf16.msra.mxu0 0
  %1071 = vmatprep.mubr.bf16.mxu0 0
  %1072 = vmatmul.mubr.bf16.gmra.mrb[0].mxu0 %v116
  %v1073 = vpop.f32.mrb[0].mxu0
  %v1074 = vadd.f32 %v1034, %v1073
  %v1075 = vpop.f32.mrb[0].mxu0
  %v1076 = vpop.f32.mrb[0].mxu0
  %v1077 = vpop.f32.mrb[0].mxu0
  %1078 = vdwg.mxu0
  %v1079 = vld [vmem:[%s8] sm:$0x1]
  %v1081 = vlaneseq
  %v1082 = vshrl.u32 %v1081, 7
  %v1083 = vsub.s32 0, %v1082
  %v1084 = vrot.slane %v1079, %v1083
  %v1086 = vadd.f32 %v1074, %v1084
  %s1087 = smul.u32 0, 8
  %v1088 = vlaneseq
  %v1089 = vshrl.u32 %v1088, 7
  %v1090 = vstv %s1087
  %v1091 = vadd.s32 %v1090, %v1089
  %vm1092 = vcmp.lt.s32.totalorder %v1091, 8
  %v1093 = vsel %vm1092, %v1086, 0.0
  %v1094 = vrot.slane %v1093, 4
  %v1095 = vadd.f32 %v1093, %v1094
  %v1096 = vrot.slane %v1095, 2
  %v1097 = vadd.f32 %v1095, %v1096
  %v1098 = vrot.slane %v1097, 1
  %v1099 = vadd.f32 %v1097, %v1098
  %1100 = vst [vmem:[%s10] sm:$0x1] %v1099
  %v1101 = vmul.f32 %v1093, %v1093
  %v1102 = vrot.slane %v1101, 4
  %v1103 = vadd.f32 %v1101, %v1102
  %v1104 = vrot.slane %v1103, 2
  %v1105 = vadd.f32 %v1103, %v1104
  %v1106 = vrot.slane %v1105, 1
  %v1107 = vadd.f32 %v1105, %v1106
  %1108 = vst [vmem:[%s10 + $0x1] sm:$0x1] %v1107
  %v1109 = vpack.c.bf16 %v1086, %v1086
  %1110 = vst [vmem:[%s9] sm:$0xf] %v1109
  // Predicated region
  $region38: #{_lambda_.16} parent=0 // pred_check
    _
  $region39: #{_lambda_.16} parent=0 // pred_check_branch
    %1112 = sbr.rel (0) target = $region41
  $region40: #{_lambda_.16} parent=0 // pred_region
    _
  $region41: #{_lambda_.16} parent=0 // pred_fallthru
    _
  // Predicated region
  $region42: #{_lambda_.16} parent=0 // pred_check
    _
  $region43: #{_lambda_.16} parent=0 // pred_check_branch
    %1114 = sbr.rel (0) target = $region45
  $region44: #{_lambda_.16} parent=0 // pred_region
    _
  $region45: #{_lambda_.16} parent=0 // pred_fallthru
    _
  // Predicated region
  $region46: #{_lambda_.16} parent=0 // pred_check
    _
  $region47: #{_lambda_.16} parent=0 // pred_check_branch
    %1116 = sbr.rel (0) target = $region49
  $region48: #{_lambda_.16} parent=0 // pred_region
    _
  $region49: #{_lambda_.16} parent=0 // pred_fallthru
    _
  // Predicated region
  $region50: #{_lambda_.16} parent=0 // pred_check
    _
  $region51: #{_lambda_.16} parent=0 // pred_check_branch
    %1118 = sbr.rel (0) target = $region53
  $region52: #{_lambda_.16} parent=0 // pred_region
    _
  $region53: #{_lambda_.16} parent=0 // pred_fallthru
    _

// kernel: _lambda_.17
$region0: #{_lambda_.17}
  #allocation0 [shape = 'u32[]', space=smem, size = 0x4, offset = 0x4, fixed_abs, tag = 'smem constant byte address 0x4 - core index']
  #allocation1 [shape = 'u32[144,128]{1,0:T(1,128)}', space=vmem, size = 0x12000, scoped, tag = 'internal scratch']
  %s0 = inlined_call_operand.vmem [shape: bf16[32,384], index: 0, kind: input, shape index: {}]
  %s1 = inlined_call_operand.vmem [shape: bf16[384,128], index: 1, kind: input, shape index: {}]
  %s2 = inlined_call_operand.vmem [shape: f32[1,384], index: 2, kind: input, shape index: {}]
  %s3 = inlined_call_operand.vmem [shape: f32[1,384], index: 3, kind: input, shape index: {}]
  %s4 = inlined_call_operand.vmem [shape: bf16[32,384], index: 4, kind: input, shape index: {}]
  %s5 = inlined_call_operand.vmem [shape: bf16[384,128], index: 5, kind: input, shape index: {}]
  %s6 = inlined_call_operand.vmem [shape: f32[1,384], index: 6, kind: input, shape index: {}]
  %s7 = inlined_call_operand.vmem [shape: f32[1,384], index: 7, kind: input, shape index: {}]
  %s8 = inlined_call_operand.vmem [shape: f32[1,128], index: 8, kind: input, shape index: {}]
  %s9 = inlined_call_operand.vmem [shape: bf16[32,128], index: 9, kind: output, shape index: {0}]
  %s10 = inlined_call_operand.vmem [shape: f32[1,2,128], index: 10, kind: output, shape index: {1}]
  %11 = xla_tuple %s9, %s10
  %s12 = sld [smem:[#allocation0]]
  $region54: #{_lambda_.17} parent=0
    _
  %s14 = ssub.s32 1, %s12
  %s15 = scalar_select 0, %s14, %s12
  // Predicated region
  $region2: #{_lambda_.17} parent=0 // pred_check
    _
  $region3: #{_lambda_.17} parent=0 // pred_check_branch
    %17 = sbr.rel (0) target = $region5
  $region4: #{_lambda_.17} parent=0 // pred_region
    _
  $region5: #{_lambda_.17} parent=0 // pred_fallthru
    _
  // Predicated region
  $region6: #{_lambda_.17} parent=0 // pred_check
    _
  $region7: #{_lambda_.17} parent=0 // pred_check_branch
    %19 = sbr.rel (0) target = $region9
  $region8: #{_lambda_.17} parent=0 // pred_region
    _
  $region9: #{_lambda_.17} parent=0 // pred_fallthru
    _
  // Predicated region
  $region10: #{_lambda_.17} parent=0 // pred_check
    _
  $region11: #{_lambda_.17} parent=0 // pred_check_branch
    %21 = sbr.rel (0) target = $region13
  $region12: #{_lambda_.17} parent=0 // pred_region
    _
  $region13: #{_lambda_.17} parent=0 // pred_fallthru
    _
  // Predicated region
  $region14: #{_lambda_.17} parent=0 // pred_check
    _
  $region15: #{_lambda_.17} parent=0 // pred_check_branch
    %23 = sbr.rel (0) target = $region17
  $region16: #{_lambda_.17} parent=0 // pred_region
    _
  $region17: #{_lambda_.17} parent=0 // pred_fallthru
    _
  // Predicated region
  $region18: #{_lambda_.17} parent=0 // pred_check
    _
  $region19: #{_lambda_.17} parent=0 // pred_check_branch
    %25 = sbr.rel (0) target = $region21
  $region20: #{_lambda_.17} parent=0 // pred_region
    _
  $region21: #{_lambda_.17} parent=0 // pred_fallthru
    _
  // Predicated region
  $region22: #{_lambda_.17} parent=0 // pred_check
    _
  $region23: #{_lambda_.17} parent=0 // pred_check_branch
    %27 = sbr.rel (0) target = $region25
  $region24: #{_lambda_.17} parent=0 // pred_region
    _
  $region25: #{_lambda_.17} parent=0 // pred_fallthru
    _
  // Predicated region
  $region26: #{_lambda_.17} parent=0 // pred_check
    _
  $region27: #{_lambda_.17} parent=0 // pred_check_branch
    %29 = sbr.rel (0) target = $region29
  $region28: #{_lambda_.17} parent=0 // pred_region
    _
  $region29: #{_lambda_.17} parent=0 // pred_fallthru
    _
  // Predicated region
  $region30: #{_lambda_.17} parent=0 // pred_check
    _
  $region31: #{_lambda_.17} parent=0 // pred_check_branch
    %31 = sbr.rel (0) target = $region33
  $region32: #{_lambda_.17} parent=0 // pred_region
    _
  $region33: #{_lambda_.17} parent=0 // pred_fallthru
    _
  // Predicated region
  $region34: #{_lambda_.17} parent=0 // pred_check
    _
  $region35: #{_lambda_.17} parent=0 // pred_check_branch
    %33 = sbr.rel (0) target = $region37
  $region36: #{_lambda_.17} parent=0 // pred_region
    _
  $region37: #{_lambda_.17} parent=0 // pred_fallthru
    _
  %v35 = vld [vmem:[%s0] sm:$0xff]
  %v36 = vld [vmem:[%s0 + $0x8] sm:$0xf]
  %v37 = vld [vmem:[%s0 + $0xc] sm:$0xff]
  %v38 = vld [vmem:[%s0 + $0x14] sm:$0xf]
  %v39 = vld [vmem:[%s0 + $0x18] sm:$0xff]
  %v40 = vld [vmem:[%s0 + $0x20] sm:$0xf]
  %v41 = vld [vmem:[%s0 + $0x24] sm:$0xff]
  %v42 = vld [vmem:[%s0 + $0x2c] sm:$0xf]
  %v43 = vunpack.c.l.bf16 %v35
  %v44 = vunpack.c.h.bf16 %v35
  %v45 = vunpack.c.l.bf16 %v36
  %v46 = vunpack.c.l.bf16 %v37
  %v47 = vunpack.c.h.bf16 %v37
  %v48 = vunpack.c.l.bf16 %v38
  %v49 = vunpack.c.l.bf16 %v39
  %v50 = vunpack.c.h.bf16 %v39
  %v51 = vunpack.c.l.bf16 %v40
  %v52 = vunpack.c.l.bf16 %v41
  %v53 = vunpack.c.h.bf16 %v41
  %v54 = vunpack.c.l.bf16 %v42
  %v55 = vld [vmem:[%s2] sm:$0x7]
  %v57 = vlaneseq
  %v58 = vshrl.u32 %v57, 7
  %v59 = vsub.s32 0, %v58
  %v60 = vrot.slane %v55, %v59
  %v61 = vlaneseq
  %v62 = vshrl.u32 %v61, 7
  %v63 = vsub.s32 1, %v62
  %v64 = vrot.slane %v55, %v63
  %v65 = vlaneseq
  %v66 = vshrl.u32 %v65, 7
  %v67 = vsub.s32 2, %v66
  %v68 = vrot.slane %v55, %v67
  %v72 = vmul.f32 %v43, %v60
  %v73 = vmul.f32 %v44, %v64
  %v74 = vmul.f32 %v45, %v68
  %v75 = vmul.f32 %v46, %v60
  %v76 = vmul.f32 %v47, %v64
  %v77 = vmul.f32 %v48, %v68
  %v78 = vmul.f32 %v49, %v60
  %v79 = vmul.f32 %v50, %v64
  %v80 = vmul.f32 %v51, %v68
  %v81 = vmul.f32 %v52, %v60
  %v82 = vmul.f32 %v53, %v64
  %v83 = vmul.f32 %v54, %v68
  %v84 = vld [vmem:[%s3] sm:$0x7]
  %v86 = vlaneseq
  %v87 = vshrl.u32 %v86, 7
  %v88 = vsub.s32 0, %v87
  %v89 = vrot.slane %v84, %v88
  %v90 = vlaneseq
  %v91 = vshrl.u32 %v90, 7
  %v92 = vsub.s32 1, %v91
  %v93 = vrot.slane %v84, %v92
  %v94 = vlaneseq
  %v95 = vshrl.u32 %v94, 7
  %v96 = vsub.s32 2, %v95
  %v97 = vrot.slane %v84, %v96
  %v101 = vadd.f32 %v72, %v89
  %v102 = vadd.f32 %v73, %v93
  %v103 = vadd.f32 %v74, %v97
  %v104 = vadd.f32 %v75, %v89
  %v105 = vadd.f32 %v76, %v93
  %v106 = vadd.f32 %v77, %v97
  %v107 = vadd.f32 %v78, %v89
  %v108 = vadd.f32 %v79, %v93
  %v109 = vadd.f32 %v80, %v97
  %v110 = vadd.f32 %v81, %v89
  %v111 = vadd.f32 %v82, %v93
  %v112 = vadd.f32 %v83, %v97
  %v113 = vmax.f32 %v101, 0.0
  %v114 = vmax.f32 %v102, 0.0
  %v115 = vmax.f32 %v103, 0.0
  %v116 = vmax.f32 %v104, 0.0
  %v117 = vmax.f32 %v105, 0.0
  %v118 = vmax.f32 %v106, 0.0
  %v119 = vmax.f32 %v107, 0.0
  %v120 = vmax.f32 %v108, 0.0
  %v121 = vmax.f32 %v109, 0.0
  %v122 = vmax.f32 %v110, 0.0
  %v123 = vmax.f32 %v111, 0.0
  %v124 = vmax.f32 %v112, 0.0
  %v125 = vpack.c.bf16 %v116, %v113
  %v126 = vpack.c.bf16 %v117, %v114
  %v127 = vpack.c.bf16 %v118, %v115
  %v128 = vpack.c.bf16 %v122, %v119
  %v129 = vpack.c.bf16 %v123, %v120
  %v130 = vpack.c.bf16 %v124, %v121
  %v131 = vld [vmem:[%s1] sm:$0xf]
  %v132 = vld [vmem:[%s1 + $0x4] sm:$0xf]
  %v133 = vld [vmem:[%s1 + $0x8] sm:$0xf]
  %v134 = vld [vmem:[%s1 + $0xc] sm:$0xf]
  %v135 = vld [vmem:[%s1 + $0x10] sm:$0xf]
  %v136 = vld [vmem:[%s1 + $0x14] sm:$0xf]
  %v137 = vld [vmem:[%s1 + $0x18] sm:$0xf]
  %v138 = vld [vmem:[%s1 + $0x1c] sm:$0xf]
  %v139 = vld [vmem:[%s1 + $0x20] sm:$0xf]
  %v140 = vld [vmem:[%s1 + $0x24] sm:$0xf]
  %v141 = vld [vmem:[%s1 + $0x28] sm:$0xf]
  %v142 = vld [vmem:[%s1 + $0x2c] sm:$0xf]
  %v143 = vld [vmem:[%s1 + $0x30] sm:$0xf]
  %v144 = vld [vmem:[%s1 + $0x34] sm:$0xf]
  %v145 = vld [vmem:[%s1 + $0x38] sm:$0xf]
  %v146 = vld [vmem:[%s1 + $0x3c] sm:$0xf]
  %v147 = vld [vmem:[%s1 + $0x40] sm:$0xf]
  %v148 = vld [vmem:[%s1 + $0x44] sm:$0xf]
  %v149 = vld [vmem:[%s1 + $0x48] sm:$0xf]
  %v150 = vld [vmem:[%s1 + $0x4c] sm:$0xf]
  %v151 = vld [vmem:[%s1 + $0x50] sm:$0xf]
  %v152 = vld [vmem:[%s1 + $0x54] sm:$0xf]
  %v153 = vld [vmem:[%s1 + $0x58] sm:$0xf]
  %v154 = vld [vmem:[%s1 + $0x5c] sm:$0xf]
  %v155 = vld [vmem:[%s1 + $0x60] sm:$0xf]
  %v156 = vld [vmem:[%s1 + $0x64] sm:$0xf]
  %v157 = vld [vmem:[%s1 + $0x68] sm:$0xf]
  %v158 = vld [vmem:[%s1 + $0x6c] sm:$0xf]
  %v159 = vld [vmem:[%s1 + $0x70] sm:$0xf]
  %v160 = vld [vmem:[%s1 + $0x74] sm:$0xf]
  %v161 = vld [vmem:[%s1 + $0x78] sm:$0xf]
  %v162 = vld [vmem:[%s1 + $0x7c] sm:$0xf]
  %v163 = vld [vmem:[%s1 + $0x80] sm:$0xf]
  %v164 = vld [vmem:[%s1 + $0x84] sm:$0xf]
  %v165 = vld [vmem:[%s1 + $0x88] sm:$0xf]
  %v166 = vld [vmem:[%s1 + $0x8c] sm:$0xf]
  %v167 = vld [vmem:[%s1 + $0x90] sm:$0xf]
  %v168 = vld [vmem:[%s1 + $0x94] sm:$0xf]
  %v169 = vld [vmem:[%s1 + $0x98] sm:$0xf]
  %v170 = vld [vmem:[%s1 + $0x9c] sm:$0xf]
  %v171 = vld [vmem:[%s1 + $0xa0] sm:$0xf]
  %v172 = vld [vmem:[%s1 + $0xa4] sm:$0xf]
  %v173 = vld [vmem:[%s1 + $0xa8] sm:$0xf]
  %v174 = vld [vmem:[%s1 + $0xac] sm:$0xf]
  %v175 = vld [vmem:[%s1 + $0xb0] sm:$0xf]
  %v176 = vld [vmem:[%s1 + $0xb4] sm:$0xf]
  %v177 = vld [vmem:[%s1 + $0xb8] sm:$0xf]
  %v178 = vld [vmem:[%s1 + $0xbc] sm:$0xf]
  %v179 = vld [vmem:[%s4] sm:$0xff]
  %v180 = vld [vmem:[%s4 + $0x8] sm:$0xf]
  %v181 = vld [vmem:[%s4 + $0xc] sm:$0xff]
  %v182 = vld [vmem:[%s4 + $0x14] sm:$0xf]
  %v183 = vld [vmem:[%s4 + $0x18] sm:$0xff]
  %v184 = vld [vmem:[%s4 + $0x20] sm:$0xf]
  %v185 = vld [vmem:[%s4 + $0x24] sm:$0xff]
  %v186 = vld [vmem:[%s4 + $0x2c] sm:$0xf]
  %v187 = vunpack.c.l.bf16 %v179
  %v188 = vunpack.c.h.bf16 %v179
  %v189 = vunpack.c.l.bf16 %v180
  %v190 = vunpack.c.l.bf16 %v181
  %v191 = vunpack.c.h.bf16 %v181
  %v192 = vunpack.c.l.bf16 %v182
  %v193 = vunpack.c.l.bf16 %v183
  %v194 = vunpack.c.h.bf16 %v183
  %v195 = vunpack.c.l.bf16 %v184
  %v196 = vunpack.c.l.bf16 %v185
  %v197 = vunpack.c.h.bf16 %v185
  %v198 = vunpack.c.l.bf16 %v186
  %v199 = vld [vmem:[%s6] sm:$0x7]
  %v201 = vlaneseq
  %v202 = vshrl.u32 %v201, 7
  %v203 = vsub.s32 0, %v202
  %v204 = vrot.slane %v199, %v203
  %v205 = vlaneseq
  %v206 = vshrl.u32 %v205, 7
  %v207 = vsub.s32 1, %v206
  %v208 = vrot.slane %v199, %v207
  %v209 = vlaneseq
  %v210 = vshrl.u32 %v209, 7
  %v211 = vsub.s32 2, %v210
  %v212 = vrot.slane %v199, %v211
  %v216 = vmul.f32 %v187, %v204
  %v217 = vmul.f32 %v188, %v208
  %v218 = vmul.f32 %v189, %v212
  %v219 = vmul.f32 %v190, %v204
  %v220 = vmul.f32 %v191, %v208
  %v221 = vmul.f32 %v192, %v212
  %v222 = vmul.f32 %v193, %v204
  %v223 = vmul.f32 %v194, %v208
  %v224 = vmul.f32 %v195, %v212
  %v225 = vmul.f32 %v196, %v204
  %v226 = vmul.f32 %v197, %v208
  %v227 = vmul.f32 %v198, %v212
  %v228 = vld [vmem:[%s7] sm:$0x7]
  %v230 = vlaneseq
  %v231 = vshrl.u32 %v230, 7
  %v232 = vsub.s32 0, %v231
  %v233 = vrot.slane %v228, %v232
  %v234 = vlaneseq
  %v235 = vshrl.u32 %v234, 7
  %v236 = vsub.s32 1, %v235
  %v237 = vrot.slane %v228, %v236
  %v238 = vlaneseq
  %v239 = vshrl.u32 %v238, 7
  %v240 = vsub.s32 2, %v239
  %v241 = vrot.slane %v228, %v240
  %v245 = vadd.f32 %v216, %v233
  %v246 = vadd.f32 %v217, %v237
  %v247 = vadd.f32 %v218, %v241
  %v248 = vadd.f32 %v219, %v233
  %v249 = vadd.f32 %v220, %v237
  %v250 = vadd.f32 %v221, %v241
  %v251 = vadd.f32 %v222, %v233
  %v252 = vadd.f32 %v223, %v237
  %v253 = vadd.f32 %v224, %v241
  %v254 = vadd.f32 %v225, %v233
  %v255 = vadd.f32 %v226, %v237
  %v256 = vadd.f32 %v227, %v241
  %v257 = vmax.f32 %v245, 0.0
  %v258 = vmax.f32 %v246, 0.0
  %v259 = vmax.f32 %v247, 0.0
  %v260 = vmax.f32 %v248, 0.0
  %v261 = vmax.f32 %v249, 0.0
  %v262 = vmax.f32 %v250, 0.0
  %v263 = vmax.f32 %v251, 0.0
  %v264 = vmax.f32 %v252, 0.0
  %v265 = vmax.f32 %v253, 0.0
  %v266 = vmax.f32 %v254, 0.0
  %v267 = vmax.f32 %v255, 0.0
  %v268 = vmax.f32 %v256, 0.0
  %v269 = vpack.c.bf16 %v260, %v257
  %v270 = vpack.c.bf16 %v261, %v258
  %v271 = vpack.c.bf16 %v262, %v259
  %v272 = vpack.c.bf16 %v266, %v263
  %v273 = vpack.c.bf16 %v267, %v264
  %v274 = vpack.c.bf16 %v268, %v265
  %v275 = vld [vmem:[%s5] sm:$0xf]
  %v276 = vld [vmem:[%s5 + $0x4] sm:$0xf]
  %v277 = vld [vmem:[%s5 + $0x8] sm:$0xf]
  %v278 = vld [vmem:[%s5 + $0xc] sm:$0xf]
  %v279 = vld [vmem:[%s5 + $0x10] sm:$0xf]
  %v280 = vld [vmem:[%s5 + $0x14] sm:$0xf]
  %v281 = vld [vmem:[%s5 + $0x18] sm:$0xf]
  %v282 = vld [vmem:[%s5 + $0x1c] sm:$0xf]
  %v283 = vld [vmem:[%s5 + $0x20] sm:$0xf]
  %v284 = vld [vmem:[%s5 + $0x24] sm:$0xf]
  %v285 = vld [vmem:[%s5 + $0x28] sm:$0xf]
  %v286 = vld [vmem:[%s5 + $0x2c] sm:$0xf]
  %v287 = vld [vmem:[%s5 + $0x30] sm:$0xf]
  %v288 = vld [vmem:[%s5 + $0x34] sm:$0xf]
  %v289 = vld [vmem:[%s5 + $0x38] sm:$0xf]
  %v290 = vld [vmem:[%s5 + $0x3c] sm:$0xf]
  %v291 = vld [vmem:[%s5 + $0x40] sm:$0xf]
  %v292 = vld [vmem:[%s5 + $0x44] sm:$0xf]
  %v293 = vld [vmem:[%s5 + $0x48] sm:$0xf]
  %v294 = vld [vmem:[%s5 + $0x4c] sm:$0xf]
  %v295 = vld [vmem:[%s5 + $0x50] sm:$0xf]
  %v296 = vld [vmem:[%s5 + $0x54] sm:$0xf]
  %v297 = vld [vmem:[%s5 + $0x58] sm:$0xf]
  %v298 = vld [vmem:[%s5 + $0x5c] sm:$0xf]
  %v299 = vld [vmem:[%s5 + $0x60] sm:$0xf]
  %v300 = vld [vmem:[%s5 + $0x64] sm:$0xf]
  %v301 = vld [vmem:[%s5 + $0x68] sm:$0xf]
  %v302 = vld [vmem:[%s5 + $0x6c] sm:$0xf]
  %v303 = vld [vmem:[%s5 + $0x70] sm:$0xf]
  %v304 = vld [vmem:[%s5 + $0x74] sm:$0xf]
  %v305 = vld [vmem:[%s5 + $0x78] sm:$0xf]
  %v306 = vld [vmem:[%s5 + $0x7c] sm:$0xf]
  %v307 = vld [vmem:[%s5 + $0x80] sm:$0xf]
  %v308 = vld [vmem:[%s5 + $0x84] sm:$0xf]
  %v309 = vld [vmem:[%s5 + $0x88] sm:$0xf]
  %v310 = vld [vmem:[%s5 + $0x8c] sm:$0xf]
  %v311 = vld [vmem:[%s5 + $0x90] sm:$0xf]
  %v312 = vld [vmem:[%s5 + $0x94] sm:$0xf]
  %v313 = vld [vmem:[%s5 + $0x98] sm:$0xf]
  %v314 = vld [vmem:[%s5 + $0x9c] sm:$0xf]
  %v315 = vld [vmem:[%s5 + $0xa0] sm:$0xf]
  %v316 = vld [vmem:[%s5 + $0xa4] sm:$0xf]
  %v317 = vld [vmem:[%s5 + $0xa8] sm:$0xf]
  %v318 = vld [vmem:[%s5 + $0xac] sm:$0xf]
  %v319 = vld [vmem:[%s5 + $0xb0] sm:$0xf]
  %v320 = vld [vmem:[%s5 + $0xb4] sm:$0xf]
  %v321 = vld [vmem:[%s5 + $0xb8] sm:$0xf]
  %v322 = vld [vmem:[%s5 + $0xbc] sm:$0xf]
  %v371 = vunpack.c.l.b16 %v275
  %v372 = vunpack.c.l.b16 %v276
  %v373 = vunpack.c.l.b16 %v277
  %v374 = vunpack.c.l.b16 %v278
  %v375 = vunpack.c.l.b16 %v279
  %v376 = vunpack.c.l.b16 %v280
  %v377 = vunpack.c.l.b16 %v281
  %v378 = vunpack.c.l.b16 %v282
  %v379 = vunpack.c.l.b16 %v283
  %v380 = vunpack.c.l.b16 %v284
  %v381 = vunpack.c.l.b16 %v285
  %v382 = vunpack.c.l.b16 %v286
  %v383 = vunpack.c.l.b16 %v287
  %v384 = vunpack.c.l.b16 %v288
  %v385 = vunpack.c.l.b16 %v289
  %v386 = vunpack.c.l.b16 %v290
  %v387 = vunpack.c.l.b16 %v291
  %v388 = vunpack.c.l.b16 %v292
  %v389 = vunpack.c.l.b16 %v293
  %v390 = vunpack.c.l.b16 %v294
  %v391 = vunpack.c.l.b16 %v295
  %v392 = vunpack.c.l.b16 %v296
  %v393 = vunpack.c.l.b16 %v297
  %v394 = vunpack.c.l.b16 %v298
  %v395 = vunpack.c.l.b16 %v299
  %v396 = vunpack.c.l.b16 %v300
  %v397 = vunpack.c.l.b16 %v301
  %v398 = vunpack.c.l.b16 %v302
  %v399 = vunpack.c.l.b16 %v303
  %v400 = vunpack.c.l.b16 %v304
  %v401 = vunpack.c.l.b16 %v305
  %v402 = vunpack.c.l.b16 %v306
  %v403 = vunpack.c.l.b16 %v307
  %v404 = vunpack.c.l.b16 %v308
  %v405 = vunpack.c.l.b16 %v309
  %v406 = vunpack.c.l.b16 %v310
  %v407 = vunpack.c.l.b16 %v311
  %v408 = vunpack.c.l.b16 %v312
  %v409 = vunpack.c.l.b16 %v313
  %v410 = vunpack.c.l.b16 %v314
  %v411 = vunpack.c.l.b16 %v315
  %v412 = vunpack.c.l.b16 %v316
  %v413 = vunpack.c.l.b16 %v317
  %v414 = vunpack.c.l.b16 %v318
  %v415 = vunpack.c.l.b16 %v319
  %v416 = vunpack.c.l.b16 %v320
  %v417 = vunpack.c.l.b16 %v321
  %v418 = vunpack.c.l.b16 %v322
  %v419 = vpack.c.b16 %v372, %v371
  %v420 = vpack.c.b16 %v374, %v373
  %v421 = vpack.c.b16 %v376, %v375
  %v422 = vpack.c.b16 %v378, %v377
  %v423 = vpack.c.b16 %v380, %v379
  %v424 = vpack.c.b16 %v382, %v381
  %v425 = vpack.c.b16 %v384, %v383
  %v426 = vpack.c.b16 %v386, %v385
  %v427 = vpack.c.b16 %v388, %v387
  %v428 = vpack.c.b16 %v390, %v389
  %v429 = vpack.c.b16 %v392, %v391
  %v430 = vpack.c.b16 %v394, %v393
  %v431 = vpack.c.b16 %v396, %v395
  %v432 = vpack.c.b16 %v398, %v397
  %v433 = vpack.c.b16 %v400, %v399
  %v434 = vpack.c.b16 %v402, %v401
  %v435 = vpack.c.b16 %v404, %v403
  %v436 = vpack.c.b16 %v406, %v405
  %v437 = vpack.c.b16 %v408, %v407
  %v438 = vpack.c.b16 %v410, %v409
  %v439 = vpack.c.b16 %v412, %v411
  %v440 = vpack.c.b16 %v414, %v413
  %v441 = vpack.c.b16 %v416, %v415
  %v442 = vpack.c.b16 %v418, %v417
  %467 = vmatprep.subr.bf16.mxu0 0
  %468 = vmatpush1.bf16.msra.mxu0 %v419
  %469 = vmatprep.subr.bf16.mxu0 0
  %470 = vmatpush1.bf16.msra.mxu0 %v420
  %471 = vmatprep.subr.bf16.mxu0 0
  %472 = vmatpush1.bf16.msra.mxu0 %v421
  %473 = vmatprep.subr.bf16.mxu0 0
  %474 = vmatpush1.bf16.msra.mxu0 %v422
  %475 = vmatprep.subr.bf16.mxu0 0
  %476 = vmatpush1.bf16.msra.mxu0 %v423
  %477 = vmatprep.subr.bf16.mxu0 0
  %478 = vmatpush1.bf16.msra.mxu0 %v424
  %479 = vmatprep.subr.bf16.mxu0 0
  %480 = vmatpush1.bf16.msra.mxu0 %v425
  %481 = vmatprep.subr.bf16.mxu0 0
  %482 = vmatpush1.bf16.msra.mxu0 %v426
  %483 = vmatprep.subr.bf16.mxu0 0
  %484 = vmatpush1.bf16.msra.mxu0 %v427
  %485 = vmatprep.subr.bf16.mxu0 0
  %486 = vmatpush1.bf16.msra.mxu0 %v428
  %487 = vmatprep.subr.bf16.mxu0 0
  %488 = vmatpush1.bf16.msra.mxu0 %v429
  %489 = vmatprep.subr.bf16.mxu0 0
  %490 = vmatpush1.bf16.msra.mxu0 %v430
  %491 = vmatprep.subr.bf16.mxu0 0
  %492 = vmatpush1.bf16.msra.mxu0 %v431
  %493 = vmatprep.subr.bf16.mxu0 0
  %494 = vmatpush1.bf16.msra.mxu0 %v432
  %495 = vmatprep.subr.bf16.mxu0 0
  %496 = vmatpush1.bf16.msra.mxu0 %v433
  %497 = vmatprep.subr.bf16.mxu0 0
  %498 = vmatpush1.bf16.msra.mxu0 %v434
  %499 = vmatprep.mubr.bf16.mxu0 %v270
  %500 = vmatmul.mubr.bf16.gmra.mrb[0].mxu0 %v269
  %v501 = vpop.f32.mrb[0].mxu0
  %v502 = vadd.f32 0.0, %v501
  %v503 = vpop.f32.mrb[0].mxu0
  %v504 = vpop.f32.mrb[0].mxu0
  %v505 = vadd.f32 0.0, %v504
  %v506 = vpop.f32.mrb[0].mxu0
  %507 = vmatprep.mubr.bf16.mxu0 %v273
  %508 = vmatmul.mubr.bf16.gmra.mrb[0].mxu0 %v272
  %v509 = vpop.f32.mrb[0].mxu0
  %v510 = vadd.f32 0.0, %v509
  %v511 = vpop.f32.mrb[0].mxu0
  %v512 = vpop.f32.mrb[0].mxu0
  %v513 = vadd.f32 0.0, %v512
  %v514 = vpop.f32.mrb[0].mxu0
  %515 = vdwg.mxu0
  %516 = vmatprep.subr.bf16.mxu0 0
  %517 = vmatpush1.bf16.msra.mxu0 %v435
  %518 = vmatprep.subr.bf16.mxu0 0
  %519 = vmatpush1.bf16.msra.mxu0 %v436
  %520 = vmatprep.subr.bf16.mxu0 0
  %521 = vmatpush1.bf16.msra.mxu0 %v437
  %522 = vmatprep.subr.bf16.mxu0 0
  %523 = vmatpush1.bf16.msra.mxu0 %v438
  %524 = vmatprep.subr.bf16.mxu0 0
  %525 = vmatpush1.bf16.msra.mxu0 %v439
  %526 = vmatprep.subr.bf16.mxu0 0
  %527 = vmatpush1.bf16.msra.mxu0 %v440
  %528 = vmatprep.subr.bf16.mxu0 0
  %529 = vmatpush1.bf16.msra.mxu0 %v441
  %530 = vmatprep.subr.bf16.mxu0 0
  %531 = vmatpush1.bf16.msra.mxu0 %v442
  %532 = vmatprep.subr.bf16.mxu0 0
  %533 = vmatpush1.bf16.msra.mxu0 0
  %534 = vmatprep.subr.bf16.mxu0 0
  %535 = vmatpush1.bf16.msra.mxu0 0
  %536 = vmatprep.subr.bf16.mxu0 0
  %537 = vmatpush1.bf16.msra.mxu0 0
  %538 = vmatprep.subr.bf16.mxu0 0
  %539 = vmatpush1.bf16.msra.mxu0 0
  %540 = vmatprep.subr.bf16.mxu0 0
  %541 = vmatpush1.bf16.msra.mxu0 0
  %542 = vmatprep.subr.bf16.mxu0 0
  %543 = vmatpush1.bf16.msra.mxu0 0
  %544 = vmatprep.subr.bf16.mxu0 0
  %545 = vmatpush1.bf16.msra.mxu0 0
  %546 = vmatprep.subr.bf16.mxu0 0
  %547 = vmatpush1.bf16.msra.mxu0 0
  %548 = vmatprep.mubr.bf16.mxu0 0
  %549 = vmatmul.mubr.bf16.gmra.mrb[0].mxu0 %v271
  %v550 = vpop.f32.mrb[0].mxu0
  %v551 = vadd.f32 %v502, %v550
  %v552 = vpop.f32.mrb[0].mxu0
  %v553 = vpop.f32.mrb[0].mxu0
  %v554 = vadd.f32 %v505, %v553
  %v555 = vpop.f32.mrb[0].mxu0
  %556 = vmatprep.mubr.bf16.mxu0 0
  %557 = vmatmul.mubr.bf16.gmra.mrb[0].mxu0 %v274
  %v558 = vpop.f32.mrb[0].mxu0
  %v559 = vadd.f32 %v510, %v558
  %v560 = vpop.f32.mrb[0].mxu0
  %v561 = vpop.f32.mrb[0].mxu0
  %v562 = vadd.f32 %v513, %v561
  %v563 = vpop.f32.mrb[0].mxu0
  %564 = vdwg.mxu0
  %v613 = vunpack.c.l.b16 %v131
  %v614 = vunpack.c.l.b16 %v132
  %v615 = vunpack.c.l.b16 %v133
  %v616 = vunpack.c.l.b16 %v134
  %v617 = vunpack.c.l.b16 %v135
  %v618 = vunpack.c.l.b16 %v136
  %v619 = vunpack.c.l.b16 %v137
  %v620 = vunpack.c.l.b16 %v138
  %v621 = vunpack.c.l.b16 %v139
  %v622 = vunpack.c.l.b16 %v140
  %v623 = vunpack.c.l.b16 %v141
  %v624 = vunpack.c.l.b16 %v142
  %v625 = vunpack.c.l.b16 %v143
  %v626 = vunpack.c.l.b16 %v144
  %v627 = vunpack.c.l.b16 %v145
  %v628 = vunpack.c.l.b16 %v146
  %v629 = vunpack.c.l.b16 %v147
  %v630 = vunpack.c.l.b16 %v148
  %v631 = vunpack.c.l.b16 %v149
  %v632 = vunpack.c.l.b16 %v150
  %v633 = vunpack.c.l.b16 %v151
  %v634 = vunpack.c.l.b16 %v152
  %v635 = vunpack.c.l.b16 %v153
  %v636 = vunpack.c.l.b16 %v154
  %v637 = vunpack.c.l.b16 %v155
  %v638 = vunpack.c.l.b16 %v156
  %v639 = vunpack.c.l.b16 %v157
  %v640 = vunpack.c.l.b16 %v158
  %v641 = vunpack.c.l.b16 %v159
  %v642 = vunpack.c.l.b16 %v160
  %v643 = vunpack.c.l.b16 %v161
  %v644 = vunpack.c.l.b16 %v162
  %v645 = vunpack.c.l.b16 %v163
  %v646 = vunpack.c.l.b16 %v164
  %v647 = vunpack.c.l.b16 %v165
  %v648 = vunpack.c.l.b16 %v166
  %v649 = vunpack.c.l.b16 %v167
  %v650 = vunpack.c.l.b16 %v168
  %v651 = vunpack.c.l.b16 %v169
  %v652 = vunpack.c.l.b16 %v170
  %v653 = vunpack.c.l.b16 %v171
  %v654 = vunpack.c.l.b16 %v172
  %v655 = vunpack.c.l.b16 %v173
  %v656 = vunpack.c.l.b16 %v174
  %v657 = vunpack.c.l.b16 %v175
  %v658 = vunpack.c.l.b16 %v176
  %v659 = vunpack.c.l.b16 %v177
  %v660 = vunpack.c.l.b16 %v178
  %v661 = vpack.c.b16 %v614, %v613
  %v662 = vpack.c.b16 %v616, %v615
  %v663 = vpack.c.b16 %v618, %v617
  %v664 = vpack.c.b16 %v620, %v619
  %v665 = vpack.c.b16 %v622, %v621
  %v666 = vpack.c.b16 %v624, %v623
  %v667 = vpack.c.b16 %v626, %v625
  %v668 = vpack.c.b16 %v628, %v627
  %v669 = vpack.c.b16 %v630, %v629
  %v670 = vpack.c.b16 %v632, %v631
  %v671 = vpack.c.b16 %v634, %v633
  %v672 = vpack.c.b16 %v636, %v635
  %v673 = vpack.c.b16 %v638, %v637
  %v674 = vpack.c.b16 %v640, %v639
  %v675 = vpack.c.b16 %v642, %v641
  %v676 = vpack.c.b16 %v644, %v643
  %v677 = vpack.c.b16 %v646, %v645
  %v678 = vpack.c.b16 %v648, %v647
  %v679 = vpack.c.b16 %v650, %v649
  %v680 = vpack.c.b16 %v652, %v651
  %v681 = vpack.c.b16 %v654, %v653
  %v682 = vpack.c.b16 %v656, %v655
  %v683 = vpack.c.b16 %v658, %v657
  %v684 = vpack.c.b16 %v660, %v659
  %709 = vmatprep.subr.bf16.mxu0 0
  %710 = vmatpush1.bf16.msra.mxu0 %v661
  %711 = vmatprep.subr.bf16.mxu0 0
  %712 = vmatpush1.bf16.msra.mxu0 %v662
  %713 = vmatprep.subr.bf16.mxu0 0
  %714 = vmatpush1.bf16.msra.mxu0 %v663
  %715 = vmatprep.subr.bf16.mxu0 0
  %716 = vmatpush1.bf16.msra.mxu0 %v664
  %717 = vmatprep.subr.bf16.mxu0 0
  %718 = vmatpush1.bf16.msra.mxu0 %v665
  %719 = vmatprep.subr.bf16.mxu0 0
  %720 = vmatpush1.bf16.msra.mxu0 %v666
  %721 = vmatprep.subr.bf16.mxu0 0
  %722 = vmatpush1.bf16.msra.mxu0 %v667
  %723 = vmatprep.subr.bf16.mxu0 0
  %724 = vmatpush1.bf16.msra.mxu0 %v668
  %725 = vmatprep.subr.bf16.mxu0 0
  %726 = vmatpush1.bf16.msra.mxu0 %v669
  %727 = vmatprep.subr.bf16.mxu0 0
  %728 = vmatpush1.bf16.msra.mxu0 %v670
  %729 = vmatprep.subr.bf16.mxu0 0
  %730 = vmatpush1.bf16.msra.mxu0 %v671
  %731 = vmatprep.subr.bf16.mxu0 0
  %732 = vmatpush1.bf16.msra.mxu0 %v672
  %733 = vmatprep.subr.bf16.mxu0 0
  %734 = vmatpush1.bf16.msra.mxu0 %v673
  %735 = vmatprep.subr.bf16.mxu0 0
  %736 = vmatpush1.bf16.msra.mxu0 %v674
  %737 = vmatprep.subr.bf16.mxu0 0
  %738 = vmatpush1.bf16.msra.mxu0 %v675
  %739 = vmatprep.subr.bf16.mxu0 0
  %740 = vmatpush1.bf16.msra.mxu0 %v676
  %741 = vmatprep.mubr.bf16.mxu0 %v126
  %742 = vmatmul.mubr.bf16.gmra.mrb[0].mxu0 %v125
  %v743 = vpop.f32.mrb[0].mxu0
  %v744 = vadd.f32 %v551, %v743
  %v745 = vpop.f32.mrb[0].mxu0
  %v746 = vpop.f32.mrb[0].mxu0
  %v747 = vadd.f32 %v554, %v746
  %v748 = vpop.f32.mrb[0].mxu0
  %749 = vmatprep.mubr.bf16.mxu0 %v129
  %750 = vmatmul.mubr.bf16.gmra.mrb[0].mxu0 %v128
  %v751 = vpop.f32.mrb[0].mxu0
  %v752 = vadd.f32 %v559, %v751
  %v753 = vpop.f32.mrb[0].mxu0
  %v754 = vpop.f32.mrb[0].mxu0
  %v755 = vadd.f32 %v562, %v754
  %v756 = vpop.f32.mrb[0].mxu0
  %757 = vdwg.mxu0
  %758 = vmatprep.subr.bf16.mxu0 0
  %759 = vmatpush1.bf16.msra.mxu0 %v677
  %760 = vmatprep.subr.bf16.mxu0 0
  %761 = vmatpush1.bf16.msra.mxu0 %v678
  %762 = vmatprep.subr.bf16.mxu0 0
  %763 = vmatpush1.bf16.msra.mxu0 %v679
  %764 = vmatprep.subr.bf16.mxu0 0
  %765 = vmatpush1.bf16.msra.mxu0 %v680
  %766 = vmatprep.subr.bf16.mxu0 0
  %767 = vmatpush1.bf16.msra.mxu0 %v681
  %768 = vmatprep.subr.bf16.mxu0 0
  %769 = vmatpush1.bf16.msra.mxu0 %v682
  %770 = vmatprep.subr.bf16.mxu0 0
  %771 = vmatpush1.bf16.msra.mxu0 %v683
  %772 = vmatprep.subr.bf16.mxu0 0
  %773 = vmatpush1.bf16.msra.mxu0 %v684
  %774 = vmatprep.subr.bf16.mxu0 0
  %775 = vmatpush1.bf16.msra.mxu0 0
  %776 = vmatprep.subr.bf16.mxu0 0
  %777 = vmatpush1.bf16.msra.mxu0 0
  %778 = vmatprep.subr.bf16.mxu0 0
  %779 = vmatpush1.bf16.msra.mxu0 0
  %780 = vmatprep.subr.bf16.mxu0 0
  %781 = vmatpush1.bf16.msra.mxu0 0
  %782 = vmatprep.subr.bf16.mxu0 0
  %783 = vmatpush1.bf16.msra.mxu0 0
  %784 = vmatprep.subr.bf16.mxu0 0
  %785 = vmatpush1.bf16.msra.mxu0 0
  %786 = vmatprep.subr.bf16.mxu0 0
  %787 = vmatpush1.bf16.msra.mxu0 0
  %788 = vmatprep.subr.bf16.mxu0 0
  %789 = vmatpush1.bf16.msra.mxu0 0
  %790 = vmatprep.mubr.bf16.mxu0 0
  %791 = vmatmul.mubr.bf16.gmra.mrb[0].mxu0 %v127
  %v792 = vpop.f32.mrb[0].mxu0
  %v793 = vadd.f32 %v744, %v792
  %v794 = vpop.f32.mrb[0].mxu0
  %v795 = vpop.f32.mrb[0].mxu0
  %v796 = vadd.f32 %v747, %v795
  %v797 = vpop.f32.mrb[0].mxu0
  %798 = vmatprep.mubr.bf16.mxu0 0
  %799 = vmatmul.mubr.bf16.gmra.mrb[0].mxu0 %v130
  %v800 = vpop.f32.mrb[0].mxu0
  %v801 = vadd.f32 %v752, %v800
  %v802 = vpop.f32.mrb[0].mxu0
  %v803 = vpop.f32.mrb[0].mxu0
  %v804 = vadd.f32 %v755, %v803
  %v805 = vpop.f32.mrb[0].mxu0
  %806 = vdwg.mxu0
  %v807 = vld [vmem:[%s8] sm:$0x1]
  %v809 = vlaneseq
  %v810 = vshrl.u32 %v809, 7
  %v811 = vsub.s32 0, %v810
  %v812 = vrot.slane %v807, %v811
  %v814 = vadd.f32 %v793, %v812
  %v815 = vadd.f32 %v796, %v812
  %v816 = vadd.f32 %v801, %v812
  %v817 = vadd.f32 %v804, %v812
  %s818 = smul.u32 0, 32
  %v819 = vlaneseq
  %v820 = vshrl.u32 %v819, 7
  %v821 = vadd.s32 %v820, 8
  %v822 = vadd.s32 %v820, 16
  %v823 = vadd.s32 %v820, 24
  %v824 = vstv %s818
  %v825 = vadd.s32 %v824, %v820
  %v826 = vadd.s32 %v824, %v821
  %v827 = vadd.s32 %v824, %v822
  %v828 = vadd.s32 %v824, %v823
  %vm829 = vcmp.lt.s32.totalorder %v825, 32
  %vm830 = vcmp.lt.s32.totalorder %v826, 32
  %vm831 = vcmp.lt.s32.totalorder %v827, 32
  %vm832 = vcmp.lt.s32.totalorder %v828, 32
  %v833 = vsel %vm829, %v814, 0.0
  %v834 = vsel %vm830, %v815, 0.0
  %v835 = vsel %vm831, %v816, 0.0
  %v836 = vsel %vm832, %v817, 0.0
  %v837 = vadd.f32 %v833, %v834
  %v838 = vadd.f32 %v837, %v835
  %v839 = vadd.f32 %v838, %v836
  %v840 = vrot.slane %v839, 4
  %v841 = vadd.f32 %v839, %v840
  %v842 = vrot.slane %v841, 2
  %v843 = vadd.f32 %v841, %v842
  %v844 = vrot.slane %v843, 1
  %v845 = vadd.f32 %v843, %v844
  %846 = vst [vmem:[%s10] sm:$0x1] %v845
  %v847 = vmul.f32 %v833, %v833
  %v848 = vmul.f32 %v834, %v834
  %v849 = vmul.f32 %v835, %v835
  %v850 = vmul.f32 %v836, %v836
  %v851 = vadd.f32 %v847, %v848
  %v852 = vadd.f32 %v851, %v849
  %v853 = vadd.f32 %v852, %v850
  %v854 = vrot.slane %v853, 4
  %v855 = vadd.f32 %v853, %v854
  %v856 = vrot.slane %v855, 2
  %v857 = vadd.f32 %v855, %v856
  %v858 = vrot.slane %v857, 1
  %v859 = vadd.f32 %v857, %v858
  %860 = vst [vmem:[%s10 + $0x1] sm:$0x1] %v859
  %v861 = vpack.c.bf16 %v815, %v814
  %v862 = vpack.c.bf16 %v817, %v816
  %v865 = vunpack.c.l.b16 %v861
  %v866 = vunpack.c.h.b16 %v861
  %v867 = vunpack.c.l.b16 %v862
  %v868 = vunpack.c.h.b16 %v862
  %v869 = vpack.c.b16 %v865, %v865
  %v870 = vpack.c.b16 %v866, %v866
  %v871 = vpack.c.b16 %v867, %v867
  %v872 = vpack.c.b16 %v868, %v868
  %877 = vst [vmem:[%s9] sm:$0xf] %v869
  %878 = vst [vmem:[%s9 + $0x4] sm:$0xf] %v870
  %879 = vst [vmem:[%s9 + $0x8] sm:$0xf] %v871
  %880 = vst [vmem:[%s9 + $0xc] sm:$0xf] %v872
  // Predicated region
  $region38: #{_lambda_.17} parent=0 // pred_check
    _
  $region39: #{_lambda_.17} parent=0 // pred_check_branch
    %882 = sbr.rel (0) target = $region41
  $region40: #{_lambda_.17} parent=0 // pred_region
    _
  $region41: #{_lambda_.17} parent=0 // pred_fallthru
    _
  // Predicated region
  $region42: #{_lambda_.17} parent=0 // pred_check
    _
  $region43: #{_lambda_.17} parent=0 // pred_check_branch
    %884 = sbr.rel (0) target = $region45
  $region44: #{_lambda_.17} parent=0 // pred_region
    _
  $region45: #{_lambda_.17} parent=0 // pred_fallthru
    _
  // Predicated region
  $region46: #{_lambda_.17} parent=0 // pred_check
    _
  $region47: #{_lambda_.17} parent=0 // pred_check_branch
    %886 = sbr.rel (0) target = $region49
  $region48: #{_lambda_.17} parent=0 // pred_region
    _
  $region49: #{_lambda_.17} parent=0 // pred_fallthru
    _
  // Predicated region
  $region50: #{_lambda_.17} parent=0 // pred_check
    _
  $region51: #{_lambda_.17} parent=0 // pred_check_branch
    %888 = sbr.rel (0) target = $region53
  $region52: #{_lambda_.17} parent=0 // pred_region
    _
  $region53: #{_lambda_.17} parent=0 // pred_fallthru
    _

// kernel: _lambda_.18
$region0: #{_lambda_.18}
  #allocation0 [shape = 'u32[]', space=smem, size = 0x4, offset = 0x4, fixed_abs, tag = 'smem constant byte address 0x4 - core index']
  #allocation1 [shape = 'u32[144,128]{1,0:T(1,128)}', space=vmem, size = 0x12000, scoped, tag = 'internal scratch']
  %s0 = inlined_call_operand.vmem [shape: bf16[128,256], index: 0, kind: input, shape index: {}]
  %s1 = inlined_call_operand.vmem [shape: bf16[256,128], index: 1, kind: input, shape index: {}]
  %s2 = inlined_call_operand.vmem [shape: f32[1,256], index: 2, kind: input, shape index: {}]
  %s3 = inlined_call_operand.vmem [shape: f32[1,256], index: 3, kind: input, shape index: {}]
  %s4 = inlined_call_operand.vmem [shape: bf16[128,256], index: 4, kind: input, shape index: {}]
  %s5 = inlined_call_operand.vmem [shape: bf16[256,128], index: 5, kind: input, shape index: {}]
  %s6 = inlined_call_operand.vmem [shape: f32[1,256], index: 6, kind: input, shape index: {}]
  %s7 = inlined_call_operand.vmem [shape: f32[1,256], index: 7, kind: input, shape index: {}]
  %s8 = inlined_call_operand.vmem [shape: f32[1,128], index: 8, kind: input, shape index: {}]
  %s9 = inlined_call_operand.vmem [shape: bf16[128,128], index: 9, kind: output, shape index: {0}]
  %s10 = inlined_call_operand.vmem [shape: f32[1,2,128], index: 10, kind: output, shape index: {1}]
  %11 = xla_tuple %s9, %s10
  %s12 = sld [smem:[#allocation0]]
  $region54: #{_lambda_.18} parent=0
    _
  %s14 = ssub.s32 1, %s12
  %s15 = scalar_select 0, %s14, %s12
  // Predicated region
  $region2: #{_lambda_.18} parent=0 // pred_check
    _
  $region3: #{_lambda_.18} parent=0 // pred_check_branch
    %17 = sbr.rel (0) target = $region5
  $region4: #{_lambda_.18} parent=0 // pred_region
    _
  $region5: #{_lambda_.18} parent=0 // pred_fallthru
    _
  // Predicated region
  $region6: #{_lambda_.18} parent=0 // pred_check
    _
  $region7: #{_lambda_.18} parent=0 // pred_check_branch
    %19 = sbr.rel (0) target = $region9
  $region8: #{_lambda_.18} parent=0 // pred_region
    _
  $region9: #{_lambda_.18} parent=0 // pred_fallthru
    _
  // Predicated region
  $region10: #{_lambda_.18} parent=0 // pred_check
    _
  $region11: #{_lambda_.18} parent=0 // pred_check_branch
    %21 = sbr.rel (0) target = $region13
  $region12: #{_lambda_.18} parent=0 // pred_region
    _
  $region13: #{_lambda_.18} parent=0 // pred_fallthru
    _
  // Predicated region
  $region14: #{_lambda_.18} parent=0 // pred_check
    _
  $region15: #{_lambda_.18} parent=0 // pred_check_branch
    %23 = sbr.rel (0) target = $region17
  $region16: #{_lambda_.18} parent=0 // pred_region
    _
  $region17: #{_lambda_.18} parent=0 // pred_fallthru
    _
  // Predicated region
  $region18: #{_lambda_.18} parent=0 // pred_check
    _
  $region19: #{_lambda_.18} parent=0 // pred_check_branch
    %25 = sbr.rel (0) target = $region21
  $region20: #{_lambda_.18} parent=0 // pred_region
    _
  $region21: #{_lambda_.18} parent=0 // pred_fallthru
    _
  // Predicated region
  $region22: #{_lambda_.18} parent=0 // pred_check
    _
  $region23: #{_lambda_.18} parent=0 // pred_check_branch
    %27 = sbr.rel (0) target = $region25
  $region24: #{_lambda_.18} parent=0 // pred_region
    _
  $region25: #{_lambda_.18} parent=0 // pred_fallthru
    _
  // Predicated region
  $region26: #{_lambda_.18} parent=0 // pred_check
    _
  $region27: #{_lambda_.18} parent=0 // pred_check_branch
    %29 = sbr.rel (0) target = $region29
  $region28: #{_lambda_.18} parent=0 // pred_region
    _
  $region29: #{_lambda_.18} parent=0 // pred_fallthru
    _
  // Predicated region
  $region30: #{_lambda_.18} parent=0 // pred_check
    _
  $region31: #{_lambda_.18} parent=0 // pred_check_branch
    %31 = sbr.rel (0) target = $region33
  $region32: #{_lambda_.18} parent=0 // pred_region
    _
  $region33: #{_lambda_.18} parent=0 // pred_fallthru
    _
  // Predicated region
  $region34: #{_lambda_.18} parent=0 // pred_check
    _
  $region35: #{_lambda_.18} parent=0 // pred_check_branch
    %33 = sbr.rel (0) target = $region37
  $region36: #{_lambda_.18} parent=0 // pred_region
    _
  $region37: #{_lambda_.18} parent=0 // pred_fallthru
    _
  %v35 = vld [vmem:[%s0] sm:$0xff]
  %v36 = vld [vmem:[%s0 + $0x8] sm:$0xff]
  %v37 = vld [vmem:[%s0 + $0x10] sm:$0xff]
  %v38 = vld [vmem:[%s0 + $0x18] sm:$0xff]
  %v39 = vld [vmem:[%s0 + $0x20] sm:$0xff]
  %v40 = vld [vmem:[%s0 + $0x28] sm:$0xff]
  %v41 = vld [vmem:[%s0 + $0x30] sm:$0xff]
  %v42 = vld [vmem:[%s0 + $0x38] sm:$0xff]
  %v43 = vld [vmem:[%s0 + $0x40] sm:$0xff]
  %v44 = vld [vmem:[%s0 + $0x48] sm:$0xff]
  %v45 = vld [vmem:[%s0 + $0x50] sm:$0xff]
  %v46 = vld [vmem:[%s0 + $0x58] sm:$0xff]
  %v47 = vld [vmem:[%s0 + $0x60] sm:$0xff]
  %v48 = vld [vmem:[%s0 + $0x68] sm:$0xff]
  %v49 = vld [vmem:[%s0 + $0x70] sm:$0xff]
  %v50 = vld [vmem:[%s0 + $0x78] sm:$0xff]
  %v51 = vunpack.c.l.bf16 %v35
  %v52 = vunpack.c.h.bf16 %v35
  %v53 = vunpack.c.l.bf16 %v36
  %v54 = vunpack.c.h.bf16 %v36
  %v55 = vunpack.c.l.bf16 %v37
  %v56 = vunpack.c.h.bf16 %v37
  %v57 = vunpack.c.l.bf16 %v38
  %v58 = vunpack.c.h.bf16 %v38
  %v59 = vunpack.c.l.bf16 %v39
  %v60 = vunpack.c.h.bf16 %v39
  %v61 = vunpack.c.l.bf16 %v40
  %v62 = vunpack.c.h.bf16 %v40
  %v63 = vunpack.c.l.bf16 %v41
  %v64 = vunpack.c.h.bf16 %v41
  %v65 = vunpack.c.l.bf16 %v42
  %v66 = vunpack.c.h.bf16 %v42
  %v67 = vunpack.c.l.bf16 %v43
  %v68 = vunpack.c.h.bf16 %v43
  %v69 = vunpack.c.l.bf16 %v44
  %v70 = vunpack.c.h.bf16 %v44
  %v71 = vunpack.c.l.bf16 %v45
  %v72 = vunpack.c.h.bf16 %v45
  %v73 = vunpack.c.l.bf16 %v46
  %v74 = vunpack.c.h.bf16 %v46
  %v75 = vunpack.c.l.bf16 %v47
  %v76 = vunpack.c.h.bf16 %v47
  %v77 = vunpack.c.l.bf16 %v48
  %v78 = vunpack.c.h.bf16 %v48
  %v79 = vunpack.c.l.bf16 %v49
  %v80 = vunpack.c.h.bf16 %v49
  %v81 = vunpack.c.l.bf16 %v50
  %v82 = vunpack.c.h.bf16 %v50
  %v83 = vld [vmem:[%s2] sm:$0x3]
  %v85 = vlaneseq
  %v86 = vshrl.u32 %v85, 7
  %v87 = vsub.s32 0, %v86
  %v88 = vrot.slane %v83, %v87
  %v89 = vlaneseq
  %v90 = vshrl.u32 %v89, 7
  %v91 = vsub.s32 1, %v90
  %v92 = vrot.slane %v83, %v91
  %v95 = vmul.f32 %v51, %v88
  %v96 = vmul.f32 %v52, %v92
  %v97 = vmul.f32 %v53, %v88
  %v98 = vmul.f32 %v54, %v92
  %v99 = vmul.f32 %v55, %v88
  %v100 = vmul.f32 %v56, %v92
  %v101 = vmul.f32 %v57, %v88
  %v102 = vmul.f32 %v58, %v92
  %v103 = vmul.f32 %v59, %v88
  %v104 = vmul.f32 %v60, %v92
  %v105 = vmul.f32 %v61, %v88
  %v106 = vmul.f32 %v62, %v92
  %v107 = vmul.f32 %v63, %v88
  %v108 = vmul.f32 %v64, %v92
  %v109 = vmul.f32 %v65, %v88
  %v110 = vmul.f32 %v66, %v92
  %v111 = vmul.f32 %v67, %v88
  %v112 = vmul.f32 %v68, %v92
  %v113 = vmul.f32 %v69, %v88
  %v114 = vmul.f32 %v70, %v92
  %v115 = vmul.f32 %v71, %v88
  %v116 = vmul.f32 %v72, %v92
  %v117 = vmul.f32 %v73, %v88
  %v118 = vmul.f32 %v74, %v92
  %v119 = vmul.f32 %v75, %v88
  %v120 = vmul.f32 %v76, %v92
  %v121 = vmul.f32 %v77, %v88
  %v122 = vmul.f32 %v78, %v92
  %v123 = vmul.f32 %v79, %v88
  %v124 = vmul.f32 %v80, %v92
  %v125 = vmul.f32 %v81, %v88
  %v126 = vmul.f32 %v82, %v92
  %v127 = vld [vmem:[%s3] sm:$0x3]
  %v129 = vlaneseq
  %v130 = vshrl.u32 %v129, 7
  %v131 = vsub.s32 0, %v130
  %v132 = vrot.slane %v127, %v131
  %v133 = vlaneseq
  %v134 = vshrl.u32 %v133, 7
  %v135 = vsub.s32 1, %v134
  %v136 = vrot.slane %v127, %v135
  %v139 = vadd.f32 %v95, %v132
  %v140 = vadd.f32 %v96, %v136
  %v141 = vadd.f32 %v97, %v132
  %v142 = vadd.f32 %v98, %v136
  %v143 = vadd.f32 %v99, %v132
  %v144 = vadd.f32 %v100, %v136
  %v145 = vadd.f32 %v101, %v132
  %v146 = vadd.f32 %v102, %v136
  %v147 = vadd.f32 %v103, %v132
  %v148 = vadd.f32 %v104, %v136
  %v149 = vadd.f32 %v105, %v132
  %v150 = vadd.f32 %v106, %v136
  %v151 = vadd.f32 %v107, %v132
  %v152 = vadd.f32 %v108, %v136
  %v153 = vadd.f32 %v109, %v132
  %v154 = vadd.f32 %v110, %v136
  %v155 = vadd.f32 %v111, %v132
  %v156 = vadd.f32 %v112, %v136
  %v157 = vadd.f32 %v113, %v132
  %v158 = vadd.f32 %v114, %v136
  %v159 = vadd.f32 %v115, %v132
  %v160 = vadd.f32 %v116, %v136
  %v161 = vadd.f32 %v117, %v132
  %v162 = vadd.f32 %v118, %v136
  %v163 = vadd.f32 %v119, %v132
  %v164 = vadd.f32 %v120, %v136
  %v165 = vadd.f32 %v121, %v132
  %v166 = vadd.f32 %v122, %v136
  %v167 = vadd.f32 %v123, %v132
  %v168 = vadd.f32 %v124, %v136
  %v169 = vadd.f32 %v125, %v132
  %v170 = vadd.f32 %v126, %v136
  %v171 = vmax.f32 %v139, 0.0
  %v172 = vmax.f32 %v140, 0.0
  %v173 = vmax.f32 %v141, 0.0
  %v174 = vmax.f32 %v142, 0.0
  %v175 = vmax.f32 %v143, 0.0
  %v176 = vmax.f32 %v144, 0.0
  %v177 = vmax.f32 %v145, 0.0
  %v178 = vmax.f32 %v146, 0.0
  %v179 = vmax.f32 %v147, 0.0
  %v180 = vmax.f32 %v148, 0.0
  %v181 = vmax.f32 %v149, 0.0
  %v182 = vmax.f32 %v150, 0.0
  %v183 = vmax.f32 %v151, 0.0
  %v184 = vmax.f32 %v152, 0.0
  %v185 = vmax.f32 %v153, 0.0
  %v186 = vmax.f32 %v154, 0.0
  %v187 = vmax.f32 %v155, 0.0
  %v188 = vmax.f32 %v156, 0.0
  %v189 = vmax.f32 %v157, 0.0
  %v190 = vmax.f32 %v158, 0.0
  %v191 = vmax.f32 %v159, 0.0
  %v192 = vmax.f32 %v160, 0.0
  %v193 = vmax.f32 %v161, 0.0
  %v194 = vmax.f32 %v162, 0.0
  %v195 = vmax.f32 %v163, 0.0
  %v196 = vmax.f32 %v164, 0.0
  %v197 = vmax.f32 %v165, 0.0
  %v198 = vmax.f32 %v166, 0.0
  %v199 = vmax.f32 %v167, 0.0
  %v200 = vmax.f32 %v168, 0.0
  %v201 = vmax.f32 %v169, 0.0
  %v202 = vmax.f32 %v170, 0.0
  %v203 = vpack.c.bf16 %v173, %v171
  %v204 = vpack.c.bf16 %v174, %v172
  %v205 = vpack.c.bf16 %v177, %v175
  %v206 = vpack.c.bf16 %v178, %v176
  %v207 = vpack.c.bf16 %v181, %v179
  %v208 = vpack.c.bf16 %v182, %v180
  %v209 = vpack.c.bf16 %v185, %v183
  %v210 = vpack.c.bf16 %v186, %v184
  %v211 = vpack.c.bf16 %v189, %v187
  %v212 = vpack.c.bf16 %v190, %v188
  %v213 = vpack.c.bf16 %v193, %v191
  %v214 = vpack.c.bf16 %v194, %v192
  %v215 = vpack.c.bf16 %v197, %v195
  %v216 = vpack.c.bf16 %v198, %v196
  %v217 = vpack.c.bf16 %v201, %v199
  %v218 = vpack.c.bf16 %v202, %v200
  %v219 = vld [vmem:[%s1] sm:$0xf]
  %v220 = vld [vmem:[%s1 + $0x4] sm:$0xf]
  %v221 = vld [vmem:[%s1 + $0x8] sm:$0xf]
  %v222 = vld [vmem:[%s1 + $0xc] sm:$0xf]
  %v223 = vld [vmem:[%s1 + $0x10] sm:$0xf]
  %v224 = vld [vmem:[%s1 + $0x14] sm:$0xf]
  %v225 = vld [vmem:[%s1 + $0x18] sm:$0xf]
  %v226 = vld [vmem:[%s1 + $0x1c] sm:$0xf]
  %v227 = vld [vmem:[%s1 + $0x20] sm:$0xf]
  %v228 = vld [vmem:[%s1 + $0x24] sm:$0xf]
  %v229 = vld [vmem:[%s1 + $0x28] sm:$0xf]
  %v230 = vld [vmem:[%s1 + $0x2c] sm:$0xf]
  %v231 = vld [vmem:[%s1 + $0x30] sm:$0xf]
  %v232 = vld [vmem:[%s1 + $0x34] sm:$0xf]
  %v233 = vld [vmem:[%s1 + $0x38] sm:$0xf]
  %v234 = vld [vmem:[%s1 + $0x3c] sm:$0xf]
  %v235 = vld [vmem:[%s1 + $0x40] sm:$0xf]
  %v236 = vld [vmem:[%s1 + $0x44] sm:$0xf]
  %v237 = vld [vmem:[%s1 + $0x48] sm:$0xf]
  %v238 = vld [vmem:[%s1 + $0x4c] sm:$0xf]
  %v239 = vld [vmem:[%s1 + $0x50] sm:$0xf]
  %v240 = vld [vmem:[%s1 + $0x54] sm:$0xf]
  %v241 = vld [vmem:[%s1 + $0x58] sm:$0xf]
  %v242 = vld [vmem:[%s1 + $0x5c] sm:$0xf]
  %v243 = vld [vmem:[%s1 + $0x60] sm:$0xf]
  %v244 = vld [vmem:[%s1 + $0x64] sm:$0xf]
  %v245 = vld [vmem:[%s1 + $0x68] sm:$0xf]
  %v246 = vld [vmem:[%s1 + $0x6c] sm:$0xf]
  %v247 = vld [vmem:[%s1 + $0x70] sm:$0xf]
  %v248 = vld [vmem:[%s1 + $0x74] sm:$0xf]
  %v249 = vld [vmem:[%s1 + $0x78] sm:$0xf]
  %v250 = vld [vmem:[%s1 + $0x7c] sm:$0xf]
  %v251 = vld [vmem:[%s4] sm:$0xff]
  %v252 = vld [vmem:[%s4 + $0x8] sm:$0xff]
  %v253 = vld [vmem:[%s4 + $0x10] sm:$0xff]
  %v254 = vld [vmem:[%s4 + $0x18] sm:$0xff]
  %v255 = vld [vmem:[%s4 + $0x20] sm:$0xff]
  %v256 = vld [vmem:[%s4 + $0x28] sm:$0xff]
  %v257 = vld [vmem:[%s4 + $0x30] sm:$0xff]
  %v258 = vld [vmem:[%s4 + $0x38] sm:$0xff]
  %v259 = vld [vmem:[%s4 + $0x40] sm:$0xff]
  %v260 = vld [vmem:[%s4 + $0x48] sm:$0xff]
  %v261 = vld [vmem:[%s4 + $0x50] sm:$0xff]
  %v262 = vld [vmem:[%s4 + $0x58] sm:$0xff]
  %v263 = vld [vmem:[%s4 + $0x60] sm:$0xff]
  %v264 = vld [vmem:[%s4 + $0x68] sm:$0xff]
  %v265 = vld [vmem:[%s4 + $0x70] sm:$0xff]
  %v266 = vld [vmem:[%s4 + $0x78] sm:$0xff]
  %v267 = vunpack.c.l.bf16 %v251
  %v268 = vunpack.c.h.bf16 %v251
  %v269 = vunpack.c.l.bf16 %v252
  %v270 = vunpack.c.h.bf16 %v252
  %v271 = vunpack.c.l.bf16 %v253
  %v272 = vunpack.c.h.bf16 %v253
  %v273 = vunpack.c.l.bf16 %v254
  %v274 = vunpack.c.h.bf16 %v254
  %v275 = vunpack.c.l.bf16 %v255
  %v276 = vunpack.c.h.bf16 %v255
  %v277 = vunpack.c.l.bf16 %v256
  %v278 = vunpack.c.h.bf16 %v256
  %v279 = vunpack.c.l.bf16 %v257
  %v280 = vunpack.c.h.bf16 %v257
  %v281 = vunpack.c.l.bf16 %v258
  %v282 = vunpack.c.h.bf16 %v258
  %v283 = vunpack.c.l.bf16 %v259
  %v284 = vunpack.c.h.bf16 %v259
  %v285 = vunpack.c.l.bf16 %v260
  %v286 = vunpack.c.h.bf16 %v260
  %v287 = vunpack.c.l.bf16 %v261
  %v288 = vunpack.c.h.bf16 %v261
  %v289 = vunpack.c.l.bf16 %v262
  %v290 = vunpack.c.h.bf16 %v262
  %v291 = vunpack.c.l.bf16 %v263
  %v292 = vunpack.c.h.bf16 %v263
  %v293 = vunpack.c.l.bf16 %v264
  %v294 = vunpack.c.h.bf16 %v264
  %v295 = vunpack.c.l.bf16 %v265
  %v296 = vunpack.c.h.bf16 %v265
  %v297 = vunpack.c.l.bf16 %v266
  %v298 = vunpack.c.h.bf16 %v266
  %v299 = vld [vmem:[%s6] sm:$0x3]
  %v301 = vlaneseq
  %v302 = vshrl.u32 %v301, 7
  %v303 = vsub.s32 0, %v302
  %v304 = vrot.slane %v299, %v303
  %v305 = vlaneseq
  %v306 = vshrl.u32 %v305, 7
  %v307 = vsub.s32 1, %v306
  %v308 = vrot.slane %v299, %v307
  %v311 = vmul.f32 %v267, %v304
  %v312 = vmul.f32 %v268, %v308
  %v313 = vmul.f32 %v269, %v304
  %v314 = vmul.f32 %v270, %v308
  %v315 = vmul.f32 %v271, %v304
  %v316 = vmul.f32 %v272, %v308
  %v317 = vmul.f32 %v273, %v304
  %v318 = vmul.f32 %v274, %v308
  %v319 = vmul.f32 %v275, %v304
  %v320 = vmul.f32 %v276, %v308
  %v321 = vmul.f32 %v277, %v304
  %v322 = vmul.f32 %v278, %v308
  %v323 = vmul.f32 %v279, %v304
  %v324 = vmul.f32 %v280, %v308
  %v325 = vmul.f32 %v281, %v304
  %v326 = vmul.f32 %v282, %v308
  %v327 = vmul.f32 %v283, %v304
  %v328 = vmul.f32 %v284, %v308
  %v329 = vmul.f32 %v285, %v304
  %v330 = vmul.f32 %v286, %v308
  %v331 = vmul.f32 %v287, %v304
  %v332 = vmul.f32 %v288, %v308
  %v333 = vmul.f32 %v289, %v304
  %v334 = vmul.f32 %v290, %v308
  %v335 = vmul.f32 %v291, %v304
  %v336 = vmul.f32 %v292, %v308
  %v337 = vmul.f32 %v293, %v304
  %v338 = vmul.f32 %v294, %v308
  %v339 = vmul.f32 %v295, %v304
  %v340 = vmul.f32 %v296, %v308
  %v341 = vmul.f32 %v297, %v304
  %v342 = vmul.f32 %v298, %v308
  %v343 = vld [vmem:[%s7] sm:$0x3]
  %v345 = vlaneseq
  %v346 = vshrl.u32 %v345, 7
  %v347 = vsub.s32 0, %v346
  %v348 = vrot.slane %v343, %v347
  %v349 = vlaneseq
  %v350 = vshrl.u32 %v349, 7
  %v351 = vsub.s32 1, %v350
  %v352 = vrot.slane %v343, %v351
  %v355 = vadd.f32 %v311, %v348
  %v356 = vadd.f32 %v312, %v352
  %v357 = vadd.f32 %v313, %v348
  %v358 = vadd.f32 %v314, %v352
  %v359 = vadd.f32 %v315, %v348
  %v360 = vadd.f32 %v316, %v352
  %v361 = vadd.f32 %v317, %v348
  %v362 = vadd.f32 %v318, %v352
  %v363 = vadd.f32 %v319, %v348
  %v364 = vadd.f32 %v320, %v352
  %v365 = vadd.f32 %v321, %v348
  %v366 = vadd.f32 %v322, %v352
  %v367 = vadd.f32 %v323, %v348
  %v368 = vadd.f32 %v324, %v352
  %v369 = vadd.f32 %v325, %v348
  %v370 = vadd.f32 %v326, %v352
  %v371 = vadd.f32 %v327, %v348
  %v372 = vadd.f32 %v328, %v352
  %v373 = vadd.f32 %v329, %v348
  %v374 = vadd.f32 %v330, %v352
  %v375 = vadd.f32 %v331, %v348
  %v376 = vadd.f32 %v332, %v352
  %v377 = vadd.f32 %v333, %v348
  %v378 = vadd.f32 %v334, %v352
  %v379 = vadd.f32 %v335, %v348
  %v380 = vadd.f32 %v336, %v352
  %v381 = vadd.f32 %v337, %v348
  %v382 = vadd.f32 %v338, %v352
  %v383 = vadd.f32 %v339, %v348
  %v384 = vadd.f32 %v340, %v352
  %v385 = vadd.f32 %v341, %v348
  %v386 = vadd.f32 %v342, %v352
  %v387 = vmax.f32 %v355, 0.0
  %v388 = vmax.f32 %v356, 0.0
  %v389 = vmax.f32 %v357, 0.0
  %v390 = vmax.f32 %v358, 0.0
  %v391 = vmax.f32 %v359, 0.0
  %v392 = vmax.f32 %v360, 0.0
  %v393 = vmax.f32 %v361, 0.0
  %v394 = vmax.f32 %v362, 0.0
  %v395 = vmax.f32 %v363, 0.0
  %v396 = vmax.f32 %v364, 0.0
  %v397 = vmax.f32 %v365, 0.0
  %v398 = vmax.f32 %v366, 0.0
  %v399 = vmax.f32 %v367, 0.0
  %v400 = vmax.f32 %v368, 0.0
  %v401 = vmax.f32 %v369, 0.0
  %v402 = vmax.f32 %v370, 0.0
  %v403 = vmax.f32 %v371, 0.0
  %v404 = vmax.f32 %v372, 0.0
  %v405 = vmax.f32 %v373, 0.0
  %v406 = vmax.f32 %v374, 0.0
  %v407 = vmax.f32 %v375, 0.0
  %v408 = vmax.f32 %v376, 0.0
  %v409 = vmax.f32 %v377, 0.0
  %v410 = vmax.f32 %v378, 0.0
  %v411 = vmax.f32 %v379, 0.0
  %v412 = vmax.f32 %v380, 0.0
  %v413 = vmax.f32 %v381, 0.0
  %v414 = vmax.f32 %v382, 0.0
  %v415 = vmax.f32 %v383, 0.0
  %v416 = vmax.f32 %v384, 0.0
  %v417 = vmax.f32 %v385, 0.0
  %v418 = vmax.f32 %v386, 0.0
  %v419 = vpack.c.bf16 %v389, %v387
  %v420 = vpack.c.bf16 %v390, %v388
  %v421 = vpack.c.bf16 %v393, %v391
  %v422 = vpack.c.bf16 %v394, %v392
  %v423 = vpack.c.bf16 %v397, %v395
  %v424 = vpack.c.bf16 %v398, %v396
  %v425 = vpack.c.bf16 %v401, %v399
  %v426 = vpack.c.bf16 %v402, %v400
  %v427 = vpack.c.bf16 %v405, %v403
  %v428 = vpack.c.bf16 %v406, %v404
  %v429 = vpack.c.bf16 %v409, %v407
  %v430 = vpack.c.bf16 %v410, %v408
  %v431 = vpack.c.bf16 %v413, %v411
  %v432 = vpack.c.bf16 %v414, %v412
  %v433 = vpack.c.bf16 %v417, %v415
  %v434 = vpack.c.bf16 %v418, %v416
  %v435 = vld [vmem:[%s5] sm:$0xf]
  %v436 = vld [vmem:[%s5 + $0x4] sm:$0xf]
  %v437 = vld [vmem:[%s5 + $0x8] sm:$0xf]
  %v438 = vld [vmem:[%s5 + $0xc] sm:$0xf]
  %v439 = vld [vmem:[%s5 + $0x10] sm:$0xf]
  %v440 = vld [vmem:[%s5 + $0x14] sm:$0xf]
  %v441 = vld [vmem:[%s5 + $0x18] sm:$0xf]
  %v442 = vld [vmem:[%s5 + $0x1c] sm:$0xf]
  %v443 = vld [vmem:[%s5 + $0x20] sm:$0xf]
  %v444 = vld [vmem:[%s5 + $0x24] sm:$0xf]
  %v445 = vld [vmem:[%s5 + $0x28] sm:$0xf]
  %v446 = vld [vmem:[%s5 + $0x2c] sm:$0xf]
  %v447 = vld [vmem:[%s5 + $0x30] sm:$0xf]
  %v448 = vld [vmem:[%s5 + $0x34] sm:$0xf]
  %v449 = vld [vmem:[%s5 + $0x38] sm:$0xf]
  %v450 = vld [vmem:[%s5 + $0x3c] sm:$0xf]
  %v451 = vld [vmem:[%s5 + $0x40] sm:$0xf]
  %v452 = vld [vmem:[%s5 + $0x44] sm:$0xf]
  %v453 = vld [vmem:[%s5 + $0x48] sm:$0xf]
  %v454 = vld [vmem:[%s5 + $0x4c] sm:$0xf]
  %v455 = vld [vmem:[%s5 + $0x50] sm:$0xf]
  %v456 = vld [vmem:[%s5 + $0x54] sm:$0xf]
  %v457 = vld [vmem:[%s5 + $0x58] sm:$0xf]
  %v458 = vld [vmem:[%s5 + $0x5c] sm:$0xf]
  %v459 = vld [vmem:[%s5 + $0x60] sm:$0xf]
  %v460 = vld [vmem:[%s5 + $0x64] sm:$0xf]
  %v461 = vld [vmem:[%s5 + $0x68] sm:$0xf]
  %v462 = vld [vmem:[%s5 + $0x6c] sm:$0xf]
  %v463 = vld [vmem:[%s5 + $0x70] sm:$0xf]
  %v464 = vld [vmem:[%s5 + $0x74] sm:$0xf]
  %v465 = vld [vmem:[%s5 + $0x78] sm:$0xf]
  %v466 = vld [vmem:[%s5 + $0x7c] sm:$0xf]
  %v499 = vunpack.c.l.b16 %v435
  %v500 = vunpack.c.l.b16 %v436
  %v501 = vunpack.c.l.b16 %v437
  %v502 = vunpack.c.l.b16 %v438
  %v503 = vunpack.c.l.b16 %v439
  %v504 = vunpack.c.l.b16 %v440
  %v505 = vunpack.c.l.b16 %v441
  %v506 = vunpack.c.l.b16 %v442
  %v507 = vunpack.c.l.b16 %v443
  %v508 = vunpack.c.l.b16 %v444
  %v509 = vunpack.c.l.b16 %v445
  %v510 = vunpack.c.l.b16 %v446
  %v511 = vunpack.c.l.b16 %v447
  %v512 = vunpack.c.l.b16 %v448
  %v513 = vunpack.c.l.b16 %v449
  %v514 = vunpack.c.l.b16 %v450
  %v515 = vunpack.c.l.b16 %v451
  %v516 = vunpack.c.l.b16 %v452
  %v517 = vunpack.c.l.b16 %v453
  %v518 = vunpack.c.l.b16 %v454
  %v519 = vunpack.c.l.b16 %v455
  %v520 = vunpack.c.l.b16 %v456
  %v521 = vunpack.c.l.b16 %v457
  %v522 = vunpack.c.l.b16 %v458
  %v523 = vunpack.c.l.b16 %v459
  %v524 = vunpack.c.l.b16 %v460
  %v525 = vunpack.c.l.b16 %v461
  %v526 = vunpack.c.l.b16 %v462
  %v527 = vunpack.c.l.b16 %v463
  %v528 = vunpack.c.l.b16 %v464
  %v529 = vunpack.c.l.b16 %v465
  %v530 = vunpack.c.l.b16 %v466
  %v531 = vpack.c.b16 %v500, %v499
  %v532 = vpack.c.b16 %v502, %v501
  %v533 = vpack.c.b16 %v504, %v503
  %v534 = vpack.c.b16 %v506, %v505
  %v535 = vpack.c.b16 %v508, %v507
  %v536 = vpack.c.b16 %v510, %v509
  %v537 = vpack.c.b16 %v512, %v511
  %v538 = vpack.c.b16 %v514, %v513
  %v539 = vpack.c.b16 %v516, %v515
  %v540 = vpack.c.b16 %v518, %v517
  %v541 = vpack.c.b16 %v520, %v519
  %v542 = vpack.c.b16 %v522, %v521
  %v543 = vpack.c.b16 %v524, %v523
  %v544 = vpack.c.b16 %v526, %v525
  %v545 = vpack.c.b16 %v528, %v527
  %v546 = vpack.c.b16 %v530, %v529
  %563 = vmatprep.subr.bf16.mxu0 0
  %564 = vmatpush1.bf16.msra.mxu0 %v531
  %565 = vmatprep.subr.bf16.mxu0 0
  %566 = vmatpush1.bf16.msra.mxu0 %v532
  %567 = vmatprep.subr.bf16.mxu0 0
  %568 = vmatpush1.bf16.msra.mxu0 %v533
  %569 = vmatprep.subr.bf16.mxu0 0
  %570 = vmatpush1.bf16.msra.mxu0 %v534
  %571 = vmatprep.subr.bf16.mxu0 0
  %572 = vmatpush1.bf16.msra.mxu0 %v535
  %573 = vmatprep.subr.bf16.mxu0 0
  %574 = vmatpush1.bf16.msra.mxu0 %v536
  %575 = vmatprep.subr.bf16.mxu0 0
  %576 = vmatpush1.bf16.msra.mxu0 %v537
  %577 = vmatprep.subr.bf16.mxu0 0
  %578 = vmatpush1.bf16.msra.mxu0 %v538
  %579 = vmatprep.subr.bf16.mxu0 0
  %580 = vmatpush1.bf16.msra.mxu0 %v539
  %581 = vmatprep.subr.bf16.mxu0 0
  %582 = vmatpush1.bf16.msra.mxu0 %v540
  %583 = vmatprep.subr.bf16.mxu0 0
  %584 = vmatpush1.bf16.msra.mxu0 %v541
  %585 = vmatprep.subr.bf16.mxu0 0
  %586 = vmatpush1.bf16.msra.mxu0 %v542
  %587 = vmatprep.subr.bf16.mxu0 0
  %588 = vmatpush1.bf16.msra.mxu0 %v543
  %589 = vmatprep.subr.bf16.mxu0 0
  %590 = vmatpush1.bf16.msra.mxu0 %v544
  %591 = vmatprep.subr.bf16.mxu0 0
  %592 = vmatpush1.bf16.msra.mxu0 %v545
  %593 = vmatprep.subr.bf16.mxu0 0
  %594 = vmatpush1.bf16.msra.mxu0 %v546
  %595 = vmatprep.mubr.bf16.mxu0 %v420
  %596 = vmatmul.mubr.bf16.gmra.mrb[0].mxu0 %v419
  %v597 = vpop.f32.mrb[0].mxu0
  %v598 = vadd.f32 0.0, %v597
  %v599 = vpop.f32.mrb[0].mxu0
  %v600 = vpop.f32.mrb[0].mxu0
  %v601 = vadd.f32 0.0, %v600
  %v602 = vpop.f32.mrb[0].mxu0
  %603 = vmatprep.mubr.bf16.mxu0 %v422
  %604 = vmatmul.mubr.bf16.gmra.mrb[0].mxu0 %v421
  %v605 = vpop.f32.mrb[0].mxu0
  %v606 = vadd.f32 0.0, %v605
  %v607 = vpop.f32.mrb[0].mxu0
  %v608 = vpop.f32.mrb[0].mxu0
  %v609 = vadd.f32 0.0, %v608
  %v610 = vpop.f32.mrb[0].mxu0
  %611 = vmatprep.mubr.bf16.mxu0 %v424
  %612 = vmatmul.mubr.bf16.gmra.mrb[0].mxu0 %v423
  %v613 = vpop.f32.mrb[0].mxu0
  %v614 = vadd.f32 0.0, %v613
  %v615 = vpop.f32.mrb[0].mxu0
  %v616 = vpop.f32.mrb[0].mxu0
  %v617 = vadd.f32 0.0, %v616
  %v618 = vpop.f32.mrb[0].mxu0
  %619 = vmatprep.mubr.bf16.mxu0 %v426
  %620 = vmatmul.mubr.bf16.gmra.mrb[0].mxu0 %v425
  %v621 = vpop.f32.mrb[0].mxu0
  %v622 = vadd.f32 0.0, %v621
  %v623 = vpop.f32.mrb[0].mxu0
  %v624 = vpop.f32.mrb[0].mxu0
  %v625 = vadd.f32 0.0, %v624
  %v626 = vpop.f32.mrb[0].mxu0
  %627 = vmatprep.mubr.bf16.mxu0 %v428
  %628 = vmatmul.mubr.bf16.gmra.mrb[0].mxu0 %v427
  %v629 = vpop.f32.mrb[0].mxu0
  %v630 = vadd.f32 0.0, %v629
  %v631 = vpop.f32.mrb[0].mxu0
  %v632 = vpop.f32.mrb[0].mxu0
  %v633 = vadd.f32 0.0, %v632
  %v634 = vpop.f32.mrb[0].mxu0
  %635 = vmatprep.mubr.bf16.mxu0 %v430
  %636 = vmatmul.mubr.bf16.gmra.mrb[0].mxu0 %v429
  %v637 = vpop.f32.mrb[0].mxu0
  %v638 = vadd.f32 0.0, %v637
  %v639 = vpop.f32.mrb[0].mxu0
  %v640 = vpop.f32.mrb[0].mxu0
  %v641 = vadd.f32 0.0, %v640
  %v642 = vpop.f32.mrb[0].mxu0
  %643 = vmatprep.mubr.bf16.mxu0 %v432
  %644 = vmatmul.mubr.bf16.gmra.mrb[0].mxu0 %v431
  %v645 = vpop.f32.mrb[0].mxu0
  %v646 = vadd.f32 0.0, %v645
  %v647 = vpop.f32.mrb[0].mxu0
  %v648 = vpop.f32.mrb[0].mxu0
  %v649 = vadd.f32 0.0, %v648
  %v650 = vpop.f32.mrb[0].mxu0
  %651 = vmatprep.mubr.bf16.mxu0 %v434
  %652 = vmatmul.mubr.bf16.gmra.mrb[0].mxu0 %v433
  %v653 = vpop.f32.mrb[0].mxu0
  %v654 = vadd.f32 0.0, %v653
  %v655 = vpop.f32.mrb[0].mxu0
  %v656 = vpop.f32.mrb[0].mxu0
  %v657 = vadd.f32 0.0, %v656
  %v658 = vpop.f32.mrb[0].mxu0
  %659 = vdwg.mxu0
  %v692 = vunpack.c.l.b16 %v219
  %v693 = vunpack.c.l.b16 %v220
  %v694 = vunpack.c.l.b16 %v221
  %v695 = vunpack.c.l.b16 %v222
  %v696 = vunpack.c.l.b16 %v223
  %v697 = vunpack.c.l.b16 %v224
  %v698 = vunpack.c.l.b16 %v225
  %v699 = vunpack.c.l.b16 %v226
  %v700 = vunpack.c.l.b16 %v227
  %v701 = vunpack.c.l.b16 %v228
  %v702 = vunpack.c.l.b16 %v229
  %v703 = vunpack.c.l.b16 %v230
  %v704 = vunpack.c.l.b16 %v231
  %v705 = vunpack.c.l.b16 %v232
  %v706 = vunpack.c.l.b16 %v233
  %v707 = vunpack.c.l.b16 %v234
  %v708 = vunpack.c.l.b16 %v235
  %v709 = vunpack.c.l.b16 %v236
  %v710 = vunpack.c.l.b16 %v237
  %v711 = vunpack.c.l.b16 %v238
  %v712 = vunpack.c.l.b16 %v239
  %v713 = vunpack.c.l.b16 %v240
  %v714 = vunpack.c.l.b16 %v241
  %v715 = vunpack.c.l.b16 %v242
  %v716 = vunpack.c.l.b16 %v243
  %v717 = vunpack.c.l.b16 %v244
  %v718 = vunpack.c.l.b16 %v245
  %v719 = vunpack.c.l.b16 %v246
  %v720 = vunpack.c.l.b16 %v247
  %v721 = vunpack.c.l.b16 %v248
  %v722 = vunpack.c.l.b16 %v249
  %v723 = vunpack.c.l.b16 %v250
  %v724 = vpack.c.b16 %v693, %v692
  %v725 = vpack.c.b16 %v695, %v694
  %v726 = vpack.c.b16 %v697, %v696
  %v727 = vpack.c.b16 %v699, %v698
  %v728 = vpack.c.b16 %v701, %v700
  %v729 = vpack.c.b16 %v703, %v702
  %v730 = vpack.c.b16 %v705, %v704
  %v731 = vpack.c.b16 %v707, %v706
  %v732 = vpack.c.b16 %v709, %v708
  %v733 = vpack.c.b16 %v711, %v710
  %v734 = vpack.c.b16 %v713, %v712
  %v735 = vpack.c.b16 %v715, %v714
  %v736 = vpack.c.b16 %v717, %v716
  %v737 = vpack.c.b16 %v719, %v718
  %v738 = vpack.c.b16 %v721, %v720
  %v739 = vpack.c.b16 %v723, %v722
  %756 = vmatprep.subr.bf16.mxu0 0
  %757 = vmatpush1.bf16.msra.mxu0 %v724
  %758 = vmatprep.subr.bf16.mxu0 0
  %759 = vmatpush1.bf16.msra.mxu0 %v725
  %760 = vmatprep.subr.bf16.mxu0 0
  %761 = vmatpush1.bf16.msra.mxu0 %v726
  %762 = vmatprep.subr.bf16.mxu0 0
  %763 = vmatpush1.bf16.msra.mxu0 %v727
  %764 = vmatprep.subr.bf16.mxu0 0
  %765 = vmatpush1.bf16.msra.mxu0 %v728
  %766 = vmatprep.subr.bf16.mxu0 0
  %767 = vmatpush1.bf16.msra.mxu0 %v729
  %768 = vmatprep.subr.bf16.mxu0 0
  %769 = vmatpush1.bf16.msra.mxu0 %v730
  %770 = vmatprep.subr.bf16.mxu0 0
  %771 = vmatpush1.bf16.msra.mxu0 %v731
  %772 = vmatprep.subr.bf16.mxu0 0
  %773 = vmatpush1.bf16.msra.mxu0 %v732
  %774 = vmatprep.subr.bf16.mxu0 0
  %775 = vmatpush1.bf16.msra.mxu0 %v733
  %776 = vmatprep.subr.bf16.mxu0 0
  %777 = vmatpush1.bf16.msra.mxu0 %v734
  %778 = vmatprep.subr.bf16.mxu0 0
  %779 = vmatpush1.bf16.msra.mxu0 %v735
  %780 = vmatprep.subr.bf16.mxu0 0
  %781 = vmatpush1.bf16.msra.mxu0 %v736
  %782 = vmatprep.subr.bf16.mxu0 0
  %783 = vmatpush1.bf16.msra.mxu0 %v737
  %784 = vmatprep.subr.bf16.mxu0 0
  %785 = vmatpush1.bf16.msra.mxu0 %v738
  %786 = vmatprep.subr.bf16.mxu0 0
  %787 = vmatpush1.bf16.msra.mxu0 %v739
  %788 = vmatprep.mubr.bf16.mxu0 %v204
  %789 = vmatmul.mubr.bf16.gmra.mrb[0].mxu0 %v203
  %v790 = vpop.f32.mrb[0].mxu0
  %v791 = vadd.f32 %v598, %v790
  %v792 = vpop.f32.mrb[0].mxu0
  %v793 = vpop.f32.mrb[0].mxu0
  %v794 = vadd.f32 %v601, %v793
  %v795 = vpop.f32.mrb[0].mxu0
  %796 = vmatprep.mubr.bf16.mxu0 %v206
  %797 = vmatmul.mubr.bf16.gmra.mrb[0].mxu0 %v205
  %v798 = vpop.f32.mrb[0].mxu0
  %v799 = vadd.f32 %v606, %v798
  %v800 = vpop.f32.mrb[0].mxu0
  %v801 = vpop.f32.mrb[0].mxu0
  %v802 = vadd.f32 %v609, %v801
  %v803 = vpop.f32.mrb[0].mxu0
  %804 = vmatprep.mubr.bf16.mxu0 %v208
  %805 = vmatmul.mubr.bf16.gmra.mrb[0].mxu0 %v207
  %v806 = vpop.f32.mrb[0].mxu0
  %v807 = vadd.f32 %v614, %v806
  %v808 = vpop.f32.mrb[0].mxu0
  %v809 = vpop.f32.mrb[0].mxu0
  %v810 = vadd.f32 %v617, %v809
  %v811 = vpop.f32.mrb[0].mxu0
  %812 = vmatprep.mubr.bf16.mxu0 %v210
  %813 = vmatmul.mubr.bf16.gmra.mrb[0].mxu0 %v209
  %v814 = vpop.f32.mrb[0].mxu0
  %v815 = vadd.f32 %v622, %v814
  %v816 = vpop.f32.mrb[0].mxu0
  %v817 = vpop.f32.mrb[0].mxu0
  %v818 = vadd.f32 %v625, %v817
  %v819 = vpop.f32.mrb[0].mxu0
  %820 = vmatprep.mubr.bf16.mxu0 %v212
  %821 = vmatmul.mubr.bf16.gmra.mrb[0].mxu0 %v211
  %v822 = vpop.f32.mrb[0].mxu0
  %v823 = vadd.f32 %v630, %v822
  %v824 = vpop.f32.mrb[0].mxu0
  %v825 = vpop.f32.mrb[0].mxu0
  %v826 = vadd.f32 %v633, %v825
  %v827 = vpop.f32.mrb[0].mxu0
  %828 = vmatprep.mubr.bf16.mxu0 %v214
  %829 = vmatmul.mubr.bf16.gmra.mrb[0].mxu0 %v213
  %v830 = vpop.f32.mrb[0].mxu0
  %v831 = vadd.f32 %v638, %v830
  %v832 = vpop.f32.mrb[0].mxu0
  %v833 = vpop.f32.mrb[0].mxu0
  %v834 = vadd.f32 %v641, %v833
  %v835 = vpop.f32.mrb[0].mxu0
  %836 = vmatprep.mubr.bf16.mxu0 %v216
  %837 = vmatmul.mubr.bf16.gmra.mrb[0].mxu0 %v215
  %v838 = vpop.f32.mrb[0].mxu0
  %v839 = vadd.f32 %v646, %v838
  %v840 = vpop.f32.mrb[0].mxu0
  %v841 = vpop.f32.mrb[0].mxu0
  %v842 = vadd.f32 %v649, %v841
  %v843 = vpop.f32.mrb[0].mxu0
  %844 = vmatprep.mubr.bf16.mxu0 %v218
  %845 = vmatmul.mubr.bf16.gmra.mrb[0].mxu0 %v217
  %v846 = vpop.f32.mrb[0].mxu0
  %v847 = vadd.f32 %v654, %v846
  %v848 = vpop.f32.mrb[0].mxu0
  %v849 = vpop.f32.mrb[0].mxu0
  %v850 = vadd.f32 %v657, %v849
  %v851 = vpop.f32.mrb[0].mxu0
  %852 = vdwg.mxu0
  %v853 = vld [vmem:[%s8] sm:$0x1]
  %v855 = vlaneseq
  %v856 = vshrl.u32 %v855, 7
  %v857 = vsub.s32 0, %v856
  %v858 = vrot.slane %v853, %v857
  %v860 = vadd.f32 %v791, %v858
  %v861 = vadd.f32 %v794, %v858
  %v862 = vadd.f32 %v799, %v858
  %v863 = vadd.f32 %v802, %v858
  %v864 = vadd.f32 %v807, %v858
  %v865 = vadd.f32 %v810, %v858
  %v866 = vadd.f32 %v815, %v858
  %v867 = vadd.f32 %v818, %v858
  %v868 = vadd.f32 %v823, %v858
  %v869 = vadd.f32 %v826, %v858
  %v870 = vadd.f32 %v831, %v858
  %v871 = vadd.f32 %v834, %v858
  %v872 = vadd.f32 %v839, %v858
  %v873 = vadd.f32 %v842, %v858
  %v874 = vadd.f32 %v847, %v858
  %v875 = vadd.f32 %v850, %v858
  %s876 = smul.u32 0, 128
  %v877 = vlaneseq
  %v878 = vshrl.u32 %v877, 7
  %v879 = vadd.s32 %v878, 8
  %v880 = vadd.s32 %v878, 16
  %v881 = vadd.s32 %v878, 24
  %v882 = vadd.s32 %v878, 32
  %v883 = vadd.s32 %v878, 40
  %v884 = vadd.s32 %v878, 48
  %v885 = vadd.s32 %v878, 56
  %v886 = vadd.s32 %v878, 64
  %v887 = vadd.s32 %v878, 72
  %v888 = vadd.s32 %v878, 80
  %v889 = vadd.s32 %v878, 88
  %v890 = vadd.s32 %v878, 96
  %v891 = vadd.s32 %v878, 104
  %v892 = vadd.s32 %v878, 112
  %v893 = vadd.s32 %v878, 120
  %v894 = vstv %s876
  %v895 = vadd.s32 %v894, %v878
  %v896 = vadd.s32 %v894, %v879
  %v897 = vadd.s32 %v894, %v880
  %v898 = vadd.s32 %v894, %v881
  %v899 = vadd.s32 %v894, %v882
  %v900 = vadd.s32 %v894, %v883
  %v901 = vadd.s32 %v894, %v884
  %v902 = vadd.s32 %v894, %v885
  %v903 = vadd.s32 %v894, %v886
  %v904 = vadd.s32 %v894, %v887
  %v905 = vadd.s32 %v894, %v888
  %v906 = vadd.s32 %v894, %v889
  %v907 = vadd.s32 %v894, %v890
  %v908 = vadd.s32 %v894, %v891
  %v909 = vadd.s32 %v894, %v892
  %v910 = vadd.s32 %v894, %v893
  %vm911 = vcmp.lt.s32.totalorder %v895, 128
  %vm912 = vcmp.lt.s32.totalorder %v896, 128
  %vm913 = vcmp.lt.s32.totalorder %v897, 128
  %vm914 = vcmp.lt.s32.totalorder %v898, 128
  %vm915 = vcmp.lt.s32.totalorder %v899, 128
  %vm916 = vcmp.lt.s32.totalorder %v900, 128
  %vm917 = vcmp.lt.s32.totalorder %v901, 128
  %vm918 = vcmp.lt.s32.totalorder %v902, 128
  %vm919 = vcmp.lt.s32.totalorder %v903, 128
  %vm920 = vcmp.lt.s32.totalorder %v904, 128
  %vm921 = vcmp.lt.s32.totalorder %v905, 128
  %vm922 = vcmp.lt.s32.totalorder %v906, 128
  %vm923 = vcmp.lt.s32.totalorder %v907, 128
  %vm924 = vcmp.lt.s32.totalorder %v908, 128
  %vm925 = vcmp.lt.s32.totalorder %v909, 128
  %vm926 = vcmp.lt.s32.totalorder %v910, 128
  %v927 = vsel %vm911, %v860, 0.0
  %v928 = vsel %vm912, %v861, 0.0
  %v929 = vsel %vm913, %v862, 0.0
  %v930 = vsel %vm914, %v863, 0.0
  %v931 = vsel %vm915, %v864, 0.0
  %v932 = vsel %vm916, %v865, 0.0
  %v933 = vsel %vm917, %v866, 0.0
  %v934 = vsel %vm918, %v867, 0.0
  %v935 = vsel %vm919, %v868, 0.0
  %v936 = vsel %vm920, %v869, 0.0
  %v937 = vsel %vm921, %v870, 0.0
  %v938 = vsel %vm922, %v871, 0.0
  %v939 = vsel %vm923, %v872, 0.0
  %v940 = vsel %vm924, %v873, 0.0
  %v941 = vsel %vm925, %v874, 0.0
  %v942 = vsel %vm926, %v875, 0.0
  %v943 = vadd.f32 %v927, %v928
  %v944 = vadd.f32 %v943, %v929
  %v945 = vadd.f32 %v944, %v930
  %v946 = vadd.f32 %v945, %v931
  %v947 = vadd.f32 %v946, %v932
  %v948 = vadd.f32 %v947, %v933
  %v949 = vadd.f32 %v948, %v934
  %v950 = vadd.f32 %v949, %v935
  %v951 = vadd.f32 %v950, %v936
  %v952 = vadd.f32 %v951, %v937
  %v953 = vadd.f32 %v952, %v938
  %v954 = vadd.f32 %v953, %v939
  %v955 = vadd.f32 %v954, %v940
  %v956 = vadd.f32 %v955, %v941
  %v957 = vadd.f32 %v956, %v942
  %v958 = vrot.slane %v957, 4
  %v959 = vadd.f32 %v957, %v958
  %v960 = vrot.slane %v959, 2
  %v961 = vadd.f32 %v959, %v960
  %v962 = vrot.slane %v961, 1
  %v963 = vadd.f32 %v961, %v962
  %964 = vst [vmem:[%s10] sm:$0x1] %v963
  %v965 = vmul.f32 %v927, %v927
  %v966 = vmul.f32 %v928, %v928
  %v967 = vmul.f32 %v929, %v929
  %v968 = vmul.f32 %v930, %v930
  %v969 = vmul.f32 %v931, %v931
  %v970 = vmul.f32 %v932, %v932
  %v971 = vmul.f32 %v933, %v933
  %v972 = vmul.f32 %v934, %v934
  %v973 = vmul.f32 %v935, %v935
  %v974 = vmul.f32 %v936, %v936
  %v975 = vmul.f32 %v937, %v937
  %v976 = vmul.f32 %v938, %v938
  %v977 = vmul.f32 %v939, %v939
  %v978 = vmul.f32 %v940, %v940
  %v979 = vmul.f32 %v941, %v941
  %v980 = vmul.f32 %v942, %v942
  %v981 = vadd.f32 %v965, %v966
  %v982 = vadd.f32 %v981, %v967
  %v983 = vadd.f32 %v982, %v968
  %v984 = vadd.f32 %v983, %v969
  %v985 = vadd.f32 %v984, %v970
  %v986 = vadd.f32 %v985, %v971
  %v987 = vadd.f32 %v986, %v972
  %v988 = vadd.f32 %v987, %v973
  %v989 = vadd.f32 %v988, %v974
  %v990 = vadd.f32 %v989, %v975
  %v991 = vadd.f32 %v990, %v976
  %v992 = vadd.f32 %v991, %v977
  %v993 = vadd.f32 %v992, %v978
  %v994 = vadd.f32 %v993, %v979
  %v995 = vadd.f32 %v994, %v980
  %v996 = vrot.slane %v995, 4
  %v997 = vadd.f32 %v995, %v996
  %v998 = vrot.slane %v997, 2
  %v999 = vadd.f32 %v997, %v998
  %v1000 = vrot.slane %v999, 1
  %v1001 = vadd.f32 %v999, %v1000
  %1002 = vst [vmem:[%s10 + $0x1] sm:$0x1] %v1001
  %v1003 = vpack.c.bf16 %v861, %v860
  %v1004 = vpack.c.bf16 %v863, %v862
  %v1005 = vpack.c.bf16 %v865, %v864
  %v1006 = vpack.c.bf16 %v867, %v866
  %v1007 = vpack.c.bf16 %v869, %v868
  %v1008 = vpack.c.bf16 %v871, %v870
  %v1009 = vpack.c.bf16 %v873, %v872
  %v1010 = vpack.c.bf16 %v875, %v874
  %v1019 = vunpack.c.l.b16 %v1003
  %v1020 = vunpack.c.h.b16 %v1003
  %v1021 = vunpack.c.l.b16 %v1004
  %v1022 = vunpack.c.h.b16 %v1004
  %v1023 = vunpack.c.l.b16 %v1005
  %v1024 = vunpack.c.h.b16 %v1005
  %v1025 = vunpack.c.l.b16 %v1006
  %v1026 = vunpack.c.h.b16 %v1006
  %v1027 = vunpack.c.l.b16 %v1007
  %v1028 = vunpack.c.h.b16 %v1007
  %v1029 = vunpack.c.l.b16 %v1008
  %v1030 = vunpack.c.h.b16 %v1008
  %v1031 = vunpack.c.l.b16 %v1009
  %v1032 = vunpack.c.h.b16 %v1009
  %v1033 = vunpack.c.l.b16 %v1010
  %v1034 = vunpack.c.h.b16 %v1010
  %v1035 = vpack.c.b16 %v1019, %v1019
  %v1036 = vpack.c.b16 %v1020, %v1020
  %v1037 = vpack.c.b16 %v1021, %v1021
  %v1038 = vpack.c.b16 %v1022, %v1022
  %v1039 = vpack.c.b16 %v1023, %v1023
  %v1040 = vpack.c.b16 %v1024, %v1024
  %v1041 = vpack.c.b16 %v1025, %v1025
  %v1042 = vpack.c.b16 %v1026, %v1026
  %v1043 = vpack.c.b16 %v1027, %v1027
  %v1044 = vpack.c.b16 %v1028, %v1028
  %v1045 = vpack.c.b16 %v1029, %v1029
  %v1046 = vpack.c.b16 %v1030, %v1030
  %v1047 = vpack.c.b16 %v1031, %v1031
  %v1048 = vpack.c.b16 %v1032, %v1032
  %v1049 = vpack.c.b16 %v1033, %v1033
  %v1050 = vpack.c.b16 %v1034, %v1034
  %1067 = vst [vmem:[%s9] sm:$0xf] %v1035
  %1068 = vst [vmem:[%s9 + $0x4] sm:$0xf] %v1036
  %1069 = vst [vmem:[%s9 + $0x8] sm:$0xf] %v1037
  %1070 = vst [vmem:[%s9 + $0xc] sm:$0xf] %v1038
  %1071 = vst [vmem:[%s9 + $0x10] sm:$0xf] %v1039
  %1072 = vst [vmem:[%s9 + $0x14] sm:$0xf] %v1040
  %1073 = vst [vmem:[%s9 + $0x18] sm:$0xf] %v1041
  %1074 = vst [vmem:[%s9 + $0x1c] sm:$0xf] %v1042
  %1075 = vst [vmem:[%s9 + $0x20] sm:$0xf] %v1043
  %1076 = vst [vmem:[%s9 + $0x24] sm:$0xf] %v1044
  %1077 = vst [vmem:[%s9 + $0x28] sm:$0xf] %v1045
  %1078 = vst [vmem:[%s9 + $0x2c] sm:$0xf] %v1046
  %1079 = vst [vmem:[%s9 + $0x30] sm:$0xf] %v1047
  %1080 = vst [vmem:[%s9 + $0x34] sm:$0xf] %v1048
  %1081 = vst [vmem:[%s9 + $0x38] sm:$0xf] %v1049
  %1082 = vst [vmem:[%s9 + $0x3c] sm:$0xf] %v1050
  // Predicated region
  $region38: #{_lambda_.18} parent=0 // pred_check
    _
  $region39: #{_lambda_.18} parent=0 // pred_check_branch
    %1084 = sbr.rel (0) target = $region41
  $region40: #{_lambda_.18} parent=0 // pred_region
    _
  $region41: #{_lambda_.18} parent=0 // pred_fallthru
    _
  // Predicated region
  $region42: #{_lambda_.18} parent=0 // pred_check
    _
  $region43: #{_lambda_.18} parent=0 // pred_check_branch
    %1086 = sbr.rel (0) target = $region45
  $region44: #{_lambda_.18} parent=0 // pred_region
    _
  $region45: #{_lambda_.18} parent=0 // pred_fallthru
    _
  // Predicated region
  $region46: #{_lambda_.18} parent=0 // pred_check
    _
  $region47: #{_lambda_.18} parent=0 // pred_check_branch
    %1088 = sbr.rel (0) target = $region49
  $region48: #{_lambda_.18} parent=0 // pred_region
    _
  $region49: #{_lambda_.18} parent=0 // pred_fallthru
    _
  // Predicated region
  $region50: #{_lambda_.18} parent=0 // pred_check
    _
  $region51: #{_lambda_.18} parent=0 // pred_check_branch
    %1090 = sbr.rel (0) target = $region53
  $region52: #{_lambda_.18} parent=0 // pred_region
    _
  $region53: #{_lambda_.18} parent=0 // pred_fallthru
    _

// kernel: tile.213
$region0: #{tile.213}
  #allocation0 [shape = 's32[1]{0}', space=sflag, size = 0x4, scoped, tag = 'scoped memory for tile.213']
  %s0 = inlined_call_operand.vmem [shape: f32[8], index: 0, kind: input, shape index: {}]
  %s1 = inlined_call_operand.vmem [shape: f32[9,8], index: 1, kind: output, shape index: {}]
  // Predicated region
  $region2: #{tile.213} parent=0 // pred_check
    _
  $region3: #{tile.213} parent=0 // pred_check_branch
    %3 = sbr.rel (0) target = $region5
  $region4: #{tile.213} parent=0 // pred_region
    _
  $region5: #{tile.213} parent=0 // pred_fallthru
    _
  %v4 = vld [vmem:[%s0] ss:$0 sm:$0xff]
  %5 = vst [vmem:[%s1] sm:$0xff] %v4
  %s6 = scalar_lea.vmem %s1, 8
  %7 = vst [vmem:[%s6] sm:$0xff] %v4

// kernel: tile.214
$region0: #{tile.214}
  %s0 = inlined_call_operand.vmem [shape: f32[9,8], index: 0, kind: input, shape index: {}]
  %s1 = inlined_call_operand.vmem [shape: f32[72], index: 1, kind: output, shape index: {}]
  $region1: #{tile.214} parent=0
    #allocation0 [shape = 'u8[4096]{0}', space=vmem, size = 0x1000, scoped, tag = 'scoped mem for output reshape']
    %v2 = vld [vmem:[%s0] sm:$0x1]
    %vm3 = vcmask 64512
    %4 = vst.msk [vmem:[#allocation0] sm:$0x1] %vm3, %v2
    %s5 = scalar_lea.vmem %s0, 8
    %v6 = vld [vmem:[%s5] sm:$0x1]
    %7 = vrot.lane.b32.xlu0 %v6, 64
    %v8 = vpop.permute.xlu0 %7
    %vm9 = vcmask 589312
    %10 = vst.msk [vmem:[#allocation0] sm:$0x1] %vm9, %v8
    %s11 = scalar_lea.vmem %s0, 7
    %v12 = vld [vmem:[%s11] sm:$0x1]
    %13 = vrot.lane.b32.xlu0 %v12, 56
    %v14 = vpop.permute.xlu0 %13
    %vm15 = vcmask 523712
    %16 = vst.msk [vmem:[#allocation0] sm:$0x1] %vm15, %v14
    %s17 = scalar_lea.vmem %s0, 6
    %v18 = vld [vmem:[%s17] sm:$0x1]
    %19 = vrot.lane.b32.xlu0 %v18, 48
    %v20 = vpop.permute.xlu0 %19
    %vm21 = vcmask 458112
    %22 = vst.msk [vmem:[#allocation0] sm:$0x1] %vm21, %v20
    %s23 = scalar_lea.vmem %s0, 5
    %v24 = vld [vmem:[%s23] sm:$0x1]
    %25 = vrot.lane.b32.xlu0 %v24, 40
    %v26 = vpop.permute.xlu0 %25
    %vm27 = vcmask 392512
    %28 = vst.msk [vmem:[#allocation0] sm:$0x1] %vm27, %v26
    %s29 = scalar_lea.vmem %s0, 4
    %v30 = vld [vmem:[%s29] sm:$0x1]
    %31 = vrot.lane.b32.xlu0 %v30, 32
    %v32 = vpop.permute.xlu0 %31
    %vm33 = vcmask 326912
    %34 = vst.msk [vmem:[#allocation0] sm:$0x1] %vm33, %v32
    %s35 = scalar_lea.vmem %s0, 3
    %v36 = vld [vmem:[%s35] sm:$0x1]
    %37 = vrot.lane.b32.xlu0 %v36, 24
    %v38 = vpop.permute.xlu0 %37
    %vm39 = vcmask 261312
    %40 = vst.msk [vmem:[#allocation0] sm:$0x1] %vm39, %v38
    %s41 = scalar_lea.vmem %s0, 2
    %v42 = vld [vmem:[%s41] sm:$0x1]
    %43 = vrot.lane.b32.xlu0 %v42, 16
    %v44 = vpop.permute.xlu0 %43
    %vm45 = vcmask 195712
    %46 = vst.msk [vmem:[#allocation0] sm:$0x1] %vm45, %v44
    %s47 = scalar_lea.vmem %s0, 1
    %v48 = vld [vmem:[%s47] sm:$0x1]
    %49 = vrot.lane.b32.xlu0 %v48, 8
    %v50 = vpop.permute.xlu0 %49
    %vm51 = vcmask 130112
    %52 = vst.msk [vmem:[#allocation0] sm:$0x1] %vm51, %v50
    %s54 = sshllo.u32 0, 1
    %v56 = vld [vmem:[#allocation0] sm:%s54]
    %s57 = sshllo.u32 0, 1
    %58 = vst [vmem:[%s1] sm:%s57] %v56

// kernel: _lambda_.19
$region0: #{_lambda_.19}
  #allocation0 [shape = 'u32[]', space=smem, size = 0x4, offset = 0x4, fixed_abs, tag = 'smem constant byte address 0x4 - core index']
  #allocation1 [shape = 'u32[144,128]{1,0:T(1,128)}', space=vmem, size = 0x12000, scoped, tag = 'internal scratch']
  %s0 = inlined_call_operand.vmem [shape: bf16[512,128], index: 0, kind: input, shape index: {}]
  %s1 = inlined_call_operand.vmem [shape: bf16[128,128], index: 1, kind: input, shape index: {}]
  %s2 = inlined_call_operand.vmem [shape: f32[1,128], index: 2, kind: input, shape index: {}]
  %s3 = inlined_call_operand.vmem [shape: f32[1,128], index: 3, kind: input, shape index: {}]
  %s4 = inlined_call_operand.vmem [shape: bf16[512,128], index: 4, kind: input, shape index: {}]
  %s5 = inlined_call_operand.vmem [shape: bf16[128,128], index: 5, kind: input, shape index: {}]
  %s6 = inlined_call_operand.vmem [shape: f32[1,128], index: 6, kind: input, shape index: {}]
  %s7 = inlined_call_operand.vmem [shape: f32[1,128], index: 7, kind: input, shape index: {}]
  %s8 = inlined_call_operand.vmem [shape: f32[1,128], index: 8, kind: input, shape index: {}]
  %s9 = inlined_call_operand.vmem [shape: f32[512,128], index: 9, kind: output, shape index: {0}]
  %s10 = inlined_call_operand.hbm [shape: f32[2,2,128], index: 10, kind: output, shape index: {1}]
  %11 = xla_tuple %s9, %s10
  %s12 = sld [smem:[#allocation0]]
  $region77: #{_lambda_.19} parent=0
    _
  %s14 = ssub.s32 1, %s12
  %s15 = scalar_select 0, %s14, %s12
  $region1: #{_lambda_.19} parent=0
    #allocation2 [shape = 'u8[2048]{0}', space=vmem, size = 0x800, scoped, tag = 'output window, operand 1']
    #allocation3 [shape = 's32[2]{0}', space=sflag, size = 0x8, scoped, tag = 'scoped memory for _lambda_.19']
    %16 = vsyncpa [#allocation3], 0
    %s17 = scalar_lea.sflag [#allocation3], 1
    %18 = vsyncpa %s17, 0
    loop: start=0, step=1, limit=4
    $region2: #{_lambda_.19} parent=1 // loop_pre_header
      _
    $region3: #{_lambda_.19} parent=1 // loop_header
      %s20 = sphi 0, %s24
      %p21 = scmp.ge.s32.totalorder %s20, 4
      %s30 = sphi 0, %s32
      %s33 = sphi 0, %s30
      %s34 = sphi 0, %s33
      %s50 = sphi 0, %s34
      %s54 = sphi 0, %s54
      %s56 = sphi 0, %s54
      %s57 = sphi 0, %s56
      %s71 = sphi 0, %s57
      %s75 = sphi 0, %s75
      %s77 = sphi 0, %s75
      %s78 = sphi 0, %s77
      %s92 = sphi 0, %s78
      %s96 = sphi 0, %s96
      %s98 = sphi 0, %s96
      %s99 = sphi 0, %s98
      %s113 = sphi 0, %s99
      %s119 = sphi 0, %s121
      %s122 = sphi 0, %s119
      %s123 = sphi 0, %s122
      %s139 = sphi 0, %s123
      %s143 = sphi 0, %s143
      %s145 = sphi 0, %s143
      %s146 = sphi 0, %s145
      %s160 = sphi 0, %s146
      %s164 = sphi 0, %s164
      %s166 = sphi 0, %s164
      %s167 = sphi 0, %s166
      %s181 = sphi 0, %s167
      %s185 = sphi 0, %s185
      %s187 = sphi 0, %s185
      %s188 = sphi 0, %s187
      %s202 = sphi 0, %s188
      %s206 = sphi 0, %s206
      %s208 = sphi 0, %s206
      %s209 = sphi 0, %s208
      %s223 = sphi 0, %s209
      %s229 = sphi 0, %s231
      %s232 = sphi 0, %s229
      %s233 = sphi 0, %s232
      %s249 = sphi 0, %s233
      %s255 = sphi 0, %s257
      %s258 = sphi 0, %s255
      %s259 = sphi 0, %s258
      %s275 = sphi 0, %s259
    $region4: #{_lambda_.19} parent=1 // loop_header_branch
      %23 = sbr.rel (%p21) target = $region8
    $region5: #{_lambda_.19} parent=1 // loop_body
      %s25 = ssub.s32 %s20, 1
      %s26 = ssub.s32 %s20, 2
      %s27 = sadd.s32 %s20, 1
      %s28 = ssub.s32 %s20, %s27
      %p29 = scmp.eq.s32.totalorder %s28, 0
      %s31 = sadd.s32 %s30, 1
      %s32 = scalar_select %p29, %s30, %s31
      %p35 = pneg %p29
      %p36 = scmp.eq.s32.totalorder %s20, 1
      %p37 = por %p35, %p36
      %p38 = scmp.ne.s32.totalorder %s30, %s33
      %p39 = scmp.eq.s32.totalorder %s20, 0
      %p40 = por %p38, %p39
      %p41 = scmp.ne.s32.totalorder %s30, %s33
      %p42 = scmp.eq.s32.totalorder %s25, 1
      %p43 = por %p41, %p42
      %p44 = scmp.ne.s32.totalorder %s33, %s34
      %p45 = scmp.eq.s32.totalorder %s25, 0
      %p46 = por %p44, %p45
      %p47 = scmp.ne.s32.totalorder %s33, %s34
      %p48 = scmp.eq.s32.totalorder %s26, 1
      %p49 = por %p47, %p48
      %p51 = scmp.ne.s32.totalorder %s34, %s50
      %p52 = scmp.eq.s32.totalorder %s26, 0
      %p53 = por %p51, %p52
      %s55 = sadd.s32 %s54, 1
      %p58 = scmp.eq.s32.totalorder %s20, 1
      %p59 = scmp.ne.s32.totalorder %s54, %s56
      %p60 = scmp.eq.s32.totalorder %s20, 0
      %p61 = por %p59, %p60
      %p62 = scmp.ne.s32.totalorder %s54, %s56
      %p63 = scmp.eq.s32.totalorder %s25, 1
      %p64 = por %p62, %p63
      %p65 = scmp.ne.s32.totalorder %s56, %s57
      %p66 = scmp.eq.s32.totalorder %s25, 0
      %p67 = por %p65, %p66
      %p68 = scmp.ne.s32.totalorder %s56, %s57
      %p69 = scmp.eq.s32.totalorder %s26, 1
      %p70 = por %p68, %p69
      %p72 = scmp.ne.s32.totalorder %s57, %s71
      %p73 = scmp.eq.s32.totalorder %s26, 0
      %p74 = por %p72, %p73
      %s76 = sadd.s32 %s75, 1
      %p79 = scmp.eq.s32.totalorder %s20, 1
      %p80 = scmp.ne.s32.totalorder %s75, %s77
      %p81 = scmp.eq.s32.totalorder %s20, 0
      %p82 = por %p80, %p81
      %p83 = scmp.ne.s32.totalorder %s75, %s77
      %p84 = scmp.eq.s32.totalorder %s25, 1
      %p85 = por %p83, %p84
      %p86 = scmp.ne.s32.totalorder %s77, %s78
      %p87 = scmp.eq.s32.totalorder %s25, 0
      %p88 = por %p86, %p87
      %p89 = scmp.ne.s32.totalorder %s77, %s78
      %p90 = scmp.eq.s32.totalorder %s26, 1
      %p91 = por %p89, %p90
      %p93 = scmp.ne.s32.totalorder %s78, %s92
      %p94 = scmp.eq.s32.totalorder %s26, 0
      %p95 = por %p93, %p94
      %s97 = sadd.s32 %s96, 1
      %p100 = scmp.eq.s32.totalorder %s20, 1
      %p101 = scmp.ne.s32.totalorder %s96, %s98
      %p102 = scmp.eq.s32.totalorder %s20, 0
      %p103 = por %p101, %p102
      %p104 = scmp.ne.s32.totalorder %s96, %s98
      %p105 = scmp.eq.s32.totalorder %s25, 1
      %p106 = por %p104, %p105
      %p107 = scmp.ne.s32.totalorder %s98, %s99
      %p108 = scmp.eq.s32.totalorder %s25, 0
      %p109 = por %p107, %p108
      %p110 = scmp.ne.s32.totalorder %s98, %s99
      %p111 = scmp.eq.s32.totalorder %s26, 1
      %p112 = por %p110, %p111
      %p114 = scmp.ne.s32.totalorder %s99, %s113
      %p115 = scmp.eq.s32.totalorder %s26, 0
      %p116 = por %p114, %p115
      %s117 = ssub.s32 %s20, %s27
      %p118 = scmp.eq.s32.totalorder %s117, 0
      %s120 = sadd.s32 %s119, 1
      %s121 = scalar_select %p118, %s119, %s120
      %p124 = pneg %p118
      %p125 = scmp.eq.s32.totalorder %s20, 1
      %p126 = por %p124, %p125
      %p127 = scmp.ne.s32.totalorder %s119, %s122
      %p128 = scmp.eq.s32.totalorder %s20, 0
      %p129 = por %p127, %p128
      %p130 = scmp.ne.s32.totalorder %s119, %s122
      %p131 = scmp.eq.s32.totalorder %s25, 1
      %p132 = por %p130, %p131
      %p133 = scmp.ne.s32.totalorder %s122, %s123
      %p134 = scmp.eq.s32.totalorder %s25, 0
      %p135 = por %p133, %p134
      %p136 = scmp.ne.s32.totalorder %s122, %s123
      %p137 = scmp.eq.s32.totalorder %s26, 1
      %p138 = por %p136, %p137
      %p140 = scmp.ne.s32.totalorder %s123, %s139
      %p141 = scmp.eq.s32.totalorder %s26, 0
      %p142 = por %p140, %p141
      %s144 = sadd.s32 %s143, 1
      %p147 = scmp.eq.s32.totalorder %s20, 1
      %p148 = scmp.ne.s32.totalorder %s143, %s145
      %p149 = scmp.eq.s32.totalorder %s20, 0
      %p150 = por %p148, %p149
      %p151 = scmp.ne.s32.totalorder %s143, %s145
      %p152 = scmp.eq.s32.totalorder %s25, 1
      %p153 = por %p151, %p152
      %p154 = scmp.ne.s32.totalorder %s145, %s146
      %p155 = scmp.eq.s32.totalorder %s25, 0
      %p156 = por %p154, %p155
      %p157 = scmp.ne.s32.totalorder %s145, %s146
      %p158 = scmp.eq.s32.totalorder %s26, 1
      %p159 = por %p157, %p158
      %p161 = scmp.ne.s32.totalorder %s146, %s160
      %p162 = scmp.eq.s32.totalorder %s26, 0
      %p163 = por %p161, %p162
      %s165 = sadd.s32 %s164, 1
      %p168 = scmp.eq.s32.totalorder %s20, 1
      %p169 = scmp.ne.s32.totalorder %s164, %s166
      %p170 = scmp.eq.s32.totalorder %s20, 0
      %p171 = por %p169, %p170
      %p172 = scmp.ne.s32.totalorder %s164, %s166
      %p173 = scmp.eq.s32.totalorder %s25, 1
      %p174 = por %p172, %p173
      %p175 = scmp.ne.s32.totalorder %s166, %s167
      %p176 = scmp.eq.s32.totalorder %s25, 0
      %p177 = por %p175, %p176
      %p178 = scmp.ne.s32.totalorder %s166, %s167
      %p179 = scmp.eq.s32.totalorder %s26, 1
      %p180 = por %p178, %p179
      %p182 = scmp.ne.s32.totalorder %s167, %s181
      %p183 = scmp.eq.s32.totalorder %s26, 0
      %p184 = por %p182, %p183
      %s186 = sadd.s32 %s185, 1
      %p189 = scmp.eq.s32.totalorder %s20, 1
      %p190 = scmp.ne.s32.totalorder %s185, %s187
      %p191 = scmp.eq.s32.totalorder %s20, 0
      %p192 = por %p190, %p191
      %p193 = scmp.ne.s32.totalorder %s185, %s187
      %p194 = scmp.eq.s32.totalorder %s25, 1
      %p195 = por %p193, %p194
      %p196 = scmp.ne.s32.totalorder %s187, %s188
      %p197 = scmp.eq.s32.totalorder %s25, 0
      %p198 = por %p196, %p197
      %p199 = scmp.ne.s32.totalorder %s187, %s188
      %p200 = scmp.eq.s32.totalorder %s26, 1
      %p201 = por %p199, %p200
      %p203 = scmp.ne.s32.totalorder %s188, %s202
      %p204 = scmp.eq.s32.totalorder %s26, 0
      %p205 = por %p203, %p204
      %s207 = sadd.s32 %s206, 1
      %p210 = scmp.eq.s32.totalorder %s20, 1
      %p211 = scmp.ne.s32.totalorder %s206, %s208
      %p212 = scmp.eq.s32.totalorder %s20, 0
      %p213 = por %p211, %p212
      %p214 = scmp.ne.s32.totalorder %s206, %s208
      %p215 = scmp.eq.s32.totalorder %s25, 1
      %p216 = por %p214, %p215
      %p217 = scmp.ne.s32.totalorder %s208, %s209
      %p218 = scmp.eq.s32.totalorder %s25, 0
      %p219 = por %p217, %p218
      %p220 = scmp.ne.s32.totalorder %s208, %s209
      %p221 = scmp.eq.s32.totalorder %s26, 1
      %p222 = por %p220, %p221
      %p224 = scmp.ne.s32.totalorder %s209, %s223
      %p225 = scmp.eq.s32.totalorder %s26, 0
      %p226 = por %p224, %p225
      %s227 = ssub.s32 %s20, %s27
      %p228 = scmp.eq.s32.totalorder %s227, 0
      %s230 = sadd.s32 %s229, 1
      %s231 = scalar_select %p228, %s229, %s230
      %p234 = pneg %p228
      %p235 = scmp.eq.s32.totalorder %s20, 1
      %p236 = por %p234, %p235
      %p237 = scmp.ne.s32.totalorder %s229, %s232
      %p238 = scmp.eq.s32.totalorder %s20, 0
      %p239 = por %p237, %p238
      %p240 = scmp.ne.s32.totalorder %s229, %s232
      %p241 = scmp.eq.s32.totalorder %s25, 1
      %p242 = por %p240, %p241
      %p243 = scmp.ne.s32.totalorder %s232, %s233
      %p244 = scmp.eq.s32.totalorder %s25, 0
      %p245 = por %p243, %p244
      %p246 = scmp.ne.s32.totalorder %s232, %s233
      %p247 = scmp.eq.s32.totalorder %s26, 1
      %p248 = por %p246, %p247
      %p250 = scmp.ne.s32.totalorder %s233, %s249
      %p251 = scmp.eq.s32.totalorder %s26, 0
      %p252 = por %p250, %p251
      %s253 = ssub.s32 %s20, %s27
      %p254 = scmp.eq.s32.totalorder %s253, 0
      %s256 = sadd.s32 %s255, 1
      %s257 = scalar_select %p254, %s255, %s256
      %p260 = pneg %p254
      %p261 = scmp.eq.s32.totalorder %s20, 1
      %p262 = por %p260, %p261
      %p263 = scmp.ne.s32.totalorder %s255, %s258
      %p264 = scmp.eq.s32.totalorder %s20, 0
      %p265 = por %p263, %p264
      %p266 = scmp.ne.s32.totalorder %s255, %s258
      %p267 = scmp.eq.s32.totalorder %s25, 1
      %p268 = por %p266, %p267
      %p269 = scmp.ne.s32.totalorder %s258, %s259
      %p270 = scmp.eq.s32.totalorder %s25, 0
      %p271 = por %p269, %p270
      %p272 = scmp.ne.s32.totalorder %s258, %s259
      %p273 = scmp.eq.s32.totalorder %s26, 1
      %p274 = por %p272, %p273
      %p276 = scmp.ne.s32.totalorder %s259, %s275
      %p277 = scmp.eq.s32.totalorder %s26, 0
      %p278 = por %p276, %p277
      %p279 = scmp.le.s32.totalorder 1, %s20
      %p280 = scmp.lt.s32.totalorder %s20, 3
      %p281 = pnand %p279, %p280
      %p282 = pneg %p281
      // Predicated region
      $region9: #{_lambda_.19} parent=5 // pred_check
        _
      $region10: #{_lambda_.19} parent=5 // pred_check_branch
        %284 = sbr.rel (%p281) target = $region12
      $region11: #{_lambda_.19} parent=5 // pred_region
        %s285 = ssub.s32 %s20, 1
        // Predicated region
        $region13: #{_lambda_.19} parent=11 // pred_check
          %p286 = pneg %p67
        $region14: #{_lambda_.19} parent=11 // pred_check_branch
          %288 = sbr.rel (%p286) target = $region16
        $region15: #{_lambda_.19} parent=11 // pred_region
          _
        $region16: #{_lambda_.19} parent=11 // pred_fallthru
          _
        // Predicated region
        $region17: #{_lambda_.19} parent=11 // pred_check
          %p289 = pneg %p88
        $region18: #{_lambda_.19} parent=11 // pred_check_branch
          %291 = sbr.rel (%p289) target = $region20
        $region19: #{_lambda_.19} parent=11 // pred_region
          _
        $region20: #{_lambda_.19} parent=11 // pred_fallthru
          _
        // Predicated region
        $region21: #{_lambda_.19} parent=11 // pred_check
          %p292 = pneg %p109
        $region22: #{_lambda_.19} parent=11 // pred_check_branch
          %294 = sbr.rel (%p292) target = $region24
        $region23: #{_lambda_.19} parent=11 // pred_region
          _
        $region24: #{_lambda_.19} parent=11 // pred_fallthru
          _
        // Predicated region
        $region25: #{_lambda_.19} parent=11 // pred_check
          %p295 = pneg %p156
        $region26: #{_lambda_.19} parent=11 // pred_check_branch
          %297 = sbr.rel (%p295) target = $region28
        $region27: #{_lambda_.19} parent=11 // pred_region
          _
        $region28: #{_lambda_.19} parent=11 // pred_fallthru
          _
        // Predicated region
        $region29: #{_lambda_.19} parent=11 // pred_check
          %p298 = pneg %p177
        $region30: #{_lambda_.19} parent=11 // pred_check_branch
          %300 = sbr.rel (%p298) target = $region32
        $region31: #{_lambda_.19} parent=11 // pred_region
          _
        $region32: #{_lambda_.19} parent=11 // pred_fallthru
          _
        // Predicated region
        $region33: #{_lambda_.19} parent=11 // pred_check
          %p301 = pneg %p198
        $region34: #{_lambda_.19} parent=11 // pred_check_branch
          %303 = sbr.rel (%p301) target = $region36
        $region35: #{_lambda_.19} parent=11 // pred_region
          _
        $region36: #{_lambda_.19} parent=11 // pred_fallthru
          _
        // Predicated region
        $region37: #{_lambda_.19} parent=11 // pred_check
          %p304 = pneg %p219
        $region38: #{_lambda_.19} parent=11 // pred_check_branch
          %306 = sbr.rel (%p304) target = $region40
        $region39: #{_lambda_.19} parent=11 // pred_region
          _
        $region40: #{_lambda_.19} parent=11 // pred_fallthru
          _
      $region12: #{_lambda_.19} parent=5 // pred_fallthru
        _
      %p307 = scmp.lt.s32.totalorder %s20, 2
      // Predicated region
      $region41: #{_lambda_.19} parent=5 // pred_check
        %p308 = pneg %p307
      $region42: #{_lambda_.19} parent=5 // pred_check_branch
        %310 = sbr.rel (%p308) target = $region44
      $region43: #{_lambda_.19} parent=5 // pred_region
        // Predicated region
        $region45: #{_lambda_.19} parent=43 // pred_check
          %p311 = pneg %p40
        $region46: #{_lambda_.19} parent=43 // pred_check_branch
          %313 = sbr.rel (%p311) target = $region48
        $region47: #{_lambda_.19} parent=43 // pred_region
          %s314 = smul.u32 32, %s20
          %p315 = scmp.lt.s32.totalorder %s314, 63
          %s316 = scalar_select %p315, %s314, 63
          %s317 = smul.addr %s316, 4
          %s318 = scalar_lea.vmem %s0, %s317
          %s319 = smul.u32 32, %s20
        $region48: #{_lambda_.19} parent=43 // pred_fallthru
          _
        // Predicated region
        $region49: #{_lambda_.19} parent=43 // pred_check
          %p320 = pneg %p129
        $region50: #{_lambda_.19} parent=43 // pred_check_branch
          %322 = sbr.rel (%p320) target = $region52
        $region51: #{_lambda_.19} parent=43 // pred_region
          %s323 = smul.u32 32, %s20
          %p324 = scmp.lt.s32.totalorder %s323, 63
          %s325 = scalar_select %p324, %s323, 63
          %s326 = smul.addr %s325, 4
          %s327 = scalar_lea.vmem %s4, %s326
          %s328 = smul.u32 32, %s20
        $region52: #{_lambda_.19} parent=43 // pred_fallthru
          _
      $region44: #{_lambda_.19} parent=5 // pred_fallthru
        _
      %p329 = scmp.le.s32.totalorder 1, %s20
      %p330 = scmp.lt.s32.totalorder %s20, 3
      %p331 = pnand %p329, %p330
      %p332 = pneg %p331
      // Predicated region
      $region53: #{_lambda_.19} parent=5 // pred_check
        _
      $region54: #{_lambda_.19} parent=5 // pred_check_branch
        %334 = sbr.rel (%p331) target = $region56
      $region55: #{_lambda_.19} parent=5 // pred_region
        %s335 = ssub.s32 %s20, 1
        %s336 = smul.u32 32, %s25
        %p337 = scmp.lt.s32.totalorder %s336, 63
        %s338 = scalar_select %p337, %s336, 63
        %s339 = smul.addr %s338, 4
        %s340 = scalar_lea.vmem %s0, %s339
        %p341 = pneg %p46
        %p342 = pneg %p43
        %p343 = pneg %p67
        %p344 = pneg %p64
        %p345 = pneg %p88
        %p346 = pneg %p85
        %p347 = pneg %p109
        %p348 = pneg %p106
        %s349 = smul.u32 32, %s25
        %p350 = scmp.lt.s32.totalorder %s349, 63
        %s351 = scalar_select %p350, %s349, 63
        %s352 = smul.addr %s351, 4
        %s353 = scalar_lea.vmem %s4, %s352
        %p354 = pneg %p135
        %p355 = pneg %p132
        %p356 = pneg %p156
        %p357 = pneg %p153
        %p358 = pneg %p177
        %p359 = pneg %p174
        %p360 = pneg %p198
        %p361 = pneg %p195
        %p362 = pneg %p219
        %p363 = pneg %p216
        %p364 = pneg %p245
        %p365 = pneg %p242
        %s366 = smul.u32 32, %s25
        %p367 = scmp.lt.s32.totalorder %s366, 63
        %s368 = scalar_select %p367, %s366, 63
        %s369 = smul.addr %s368, 8
        %s370 = scalar_lea.vmem %s9, %s369
        %p371 = pneg %p271
        %p372 = pneg %p268
        %s373 = sand.u32 %s258, 1
        %s374 = scalar_lea.sflag [#allocation3], %s373
        %s375 = sand.u32 %s258, 1
        %s376 = smul.addr %s375, 2
        %s377 = scalar_lea.vmem [#allocation2], %s376
        %s378 = smul.u32 32, %s25
        %p379 = scmp.lt.s32.totalorder %s378, 63
        %s380 = scalar_select %p379, %s378, 63
        %s381 = smul.addr %s380, 4
        %s382 = scalar_lea.vmem %s0, %s381
        %s383 = smul.u32 32, %s25
        %s384 = smul.u32 32, %s25
        %p385 = scmp.lt.s32.totalorder %s384, 63
        %s386 = scalar_select %p385, %s384, 63
        %s387 = smul.addr %s386, 4
        %s388 = scalar_lea.vmem %s4, %s387
        %s389 = smul.u32 32, %s25
        %s390 = smul.u32 32, %s25
        %p391 = scmp.lt.s32.totalorder %s390, 63
        %s392 = scalar_select %p391, %s390, 63
        %s393 = smul.addr %s392, 8
        %s394 = scalar_lea.vmem %s9, %s393
        %s395 = smul.u32 32, %s25
        %v397 = vld [vmem:[%s382] sm:$0xf]
        %v398 = vld [vmem:[%s382 + $0x4] sm:$0xf]
        %v399 = vld [vmem:[%s382 + $0x8] sm:$0xf]
        %v400 = vld [vmem:[%s382 + $0xc] sm:$0xf]
        %v401 = vld [vmem:[%s382 + $0x10] sm:$0xf]
        %v402 = vld [vmem:[%s382 + $0x14] sm:$0xf]
        %v403 = vld [vmem:[%s382 + $0x18] sm:$0xf]
        %v404 = vld [vmem:[%s382 + $0x1c] sm:$0xf]
        %v405 = vld [vmem:[%s382 + $0x20] sm:$0xf]
        %v406 = vld [vmem:[%s382 + $0x24] sm:$0xf]
        %v407 = vld [vmem:[%s382 + $0x28] sm:$0xf]
        %v408 = vld [vmem:[%s382 + $0x2c] sm:$0xf]
        %v409 = vld [vmem:[%s382 + $0x30] sm:$0xf]
        %v410 = vld [vmem:[%s382 + $0x34] sm:$0xf]
        %v411 = vld [vmem:[%s382 + $0x38] sm:$0xf]
        %v412 = vld [vmem:[%s382 + $0x3c] sm:$0xf]
        %v413 = vld [vmem:[%s382 + $0x40] sm:$0xf]
        %v414 = vld [vmem:[%s382 + $0x44] sm:$0xf]
        %v415 = vld [vmem:[%s382 + $0x48] sm:$0xf]
        %v416 = vld [vmem:[%s382 + $0x4c] sm:$0xf]
        %v417 = vld [vmem:[%s382 + $0x50] sm:$0xf]
        %v418 = vld [vmem:[%s382 + $0x54] sm:$0xf]
        %v419 = vld [vmem:[%s382 + $0x58] sm:$0xf]
        %v420 = vld [vmem:[%s382 + $0x5c] sm:$0xf]
        %v421 = vld [vmem:[%s382 + $0x60] sm:$0xf]
        %v422 = vld [vmem:[%s382 + $0x64] sm:$0xf]
        %v423 = vld [vmem:[%s382 + $0x68] sm:$0xf]
        %v424 = vld [vmem:[%s382 + $0x6c] sm:$0xf]
        %v425 = vld [vmem:[%s382 + $0x70] sm:$0xf]
        %v426 = vld [vmem:[%s382 + $0x74] sm:$0xf]
        %v427 = vld [vmem:[%s382 + $0x78] sm:$0xf]
        %v428 = vld [vmem:[%s382 + $0x7c] sm:$0xf]
        %v429 = vunpack.c.l.bf16 %v397
        %v430 = vunpack.c.l.bf16 %v398
        %v431 = vunpack.c.l.bf16 %v399
        %v432 = vunpack.c.l.bf16 %v400
        %v433 = vunpack.c.l.bf16 %v401
        %v434 = vunpack.c.l.bf16 %v402
        %v435 = vunpack.c.l.bf16 %v403
        %v436 = vunpack.c.l.bf16 %v404
        %v437 = vunpack.c.l.bf16 %v405
        %v438 = vunpack.c.l.bf16 %v406
        %v439 = vunpack.c.l.bf16 %v407
        %v440 = vunpack.c.l.bf16 %v408
        %v441 = vunpack.c.l.bf16 %v409
        %v442 = vunpack.c.l.bf16 %v410
        %v443 = vunpack.c.l.bf16 %v411
        %v444 = vunpack.c.l.bf16 %v412
        %v445 = vunpack.c.l.bf16 %v413
        %v446 = vunpack.c.l.bf16 %v414
        %v447 = vunpack.c.l.bf16 %v415
        %v448 = vunpack.c.l.bf16 %v416
        %v449 = vunpack.c.l.bf16 %v417
        %v450 = vunpack.c.l.bf16 %v418
        %v451 = vunpack.c.l.bf16 %v419
        %v452 = vunpack.c.l.bf16 %v420
        %v453 = vunpack.c.l.bf16 %v421
        %v454 = vunpack.c.l.bf16 %v422
        %v455 = vunpack.c.l.bf16 %v423
        %v456 = vunpack.c.l.bf16 %v424
        %v457 = vunpack.c.l.bf16 %v425
        %v458 = vunpack.c.l.bf16 %v426
        %v459 = vunpack.c.l.bf16 %v427
        %v460 = vunpack.c.l.bf16 %v428
        %v461 = vld [vmem:[%s2] sm:$0x1]
        %v463 = vlaneseq
        %v464 = vshrl.u32 %v463, 7
        %v465 = vsub.s32 0, %v464
        %v466 = vrot.slane %v461, %v465
        %v468 = vmul.f32 %v429, %v466
        %v469 = vmul.f32 %v430, %v466
        %v470 = vmul.f32 %v431, %v466
        %v471 = vmul.f32 %v432, %v466
        %v472 = vmul.f32 %v433, %v466
        %v473 = vmul.f32 %v434, %v466
        %v474 = vmul.f32 %v435, %v466
        %v475 = vmul.f32 %v436, %v466
        %v476 = vmul.f32 %v437, %v466
        %v477 = vmul.f32 %v438, %v466
        %v478 = vmul.f32 %v439, %v466
        %v479 = vmul.f32 %v440, %v466
        %v480 = vmul.f32 %v441, %v466
        %v481 = vmul.f32 %v442, %v466
        %v482 = vmul.f32 %v443, %v466
        %v483 = vmul.f32 %v444, %v466
        %v484 = vmul.f32 %v445, %v466
        %v485 = vmul.f32 %v446, %v466
        %v486 = vmul.f32 %v447, %v466
        %v487 = vmul.f32 %v448, %v466
        %v488 = vmul.f32 %v449, %v466
        %v489 = vmul.f32 %v450, %v466
        %v490 = vmul.f32 %v451, %v466
        %v491 = vmul.f32 %v452, %v466
        %v492 = vmul.f32 %v453, %v466
        %v493 = vmul.f32 %v454, %v466
        %v494 = vmul.f32 %v455, %v466
        %v495 = vmul.f32 %v456, %v466
        %v496 = vmul.f32 %v457, %v466
        %v497 = vmul.f32 %v458, %v466
        %v498 = vmul.f32 %v459, %v466
        %v499 = vmul.f32 %v460, %v466
        %v500 = vld [vmem:[%s3] sm:$0x1]
        %v502 = vlaneseq
        %v503 = vshrl.u32 %v502, 7
        %v504 = vsub.s32 0, %v503
        %v505 = vrot.slane %v500, %v504
        %v507 = vadd.f32 %v468, %v505
        %v508 = vadd.f32 %v469, %v505
        %v509 = vadd.f32 %v470, %v505
        %v510 = vadd.f32 %v471, %v505
        %v511 = vadd.f32 %v472, %v505
        %v512 = vadd.f32 %v473, %v505
        %v513 = vadd.f32 %v474, %v505
        %v514 = vadd.f32 %v475, %v505
        %v515 = vadd.f32 %v476, %v505
        %v516 = vadd.f32 %v477, %v505
        %v517 = vadd.f32 %v478, %v505
        %v518 = vadd.f32 %v479, %v505
        %v519 = vadd.f32 %v480, %v505
        %v520 = vadd.f32 %v481, %v505
        %v521 = vadd.f32 %v482, %v505
        %v522 = vadd.f32 %v483, %v505
        %v523 = vadd.f32 %v484, %v505
        %v524 = vadd.f32 %v485, %v505
        %v525 = vadd.f32 %v486, %v505
        %v526 = vadd.f32 %v487, %v505
        %v527 = vadd.f32 %v488, %v505
        %v528 = vadd.f32 %v489, %v505
        %v529 = vadd.f32 %v490, %v505
        %v530 = vadd.f32 %v491, %v505
        %v531 = vadd.f32 %v492, %v505
        %v532 = vadd.f32 %v493, %v505
        %v533 = vadd.f32 %v494, %v505
        %v534 = vadd.f32 %v495, %v505
        %v535 = vadd.f32 %v496, %v505
        %v536 = vadd.f32 %v497, %v505
        %v537 = vadd.f32 %v498, %v505
        %v538 = vadd.f32 %v499, %v505
        %v539 = vmax.f32 %v507, 0.0
        %v540 = vmax.f32 %v508, 0.0
        %v541 = vmax.f32 %v509, 0.0
        %v542 = vmax.f32 %v510, 0.0
        %v543 = vmax.f32 %v511, 0.0
        %v544 = vmax.f32 %v512, 0.0
        %v545 = vmax.f32 %v513, 0.0
        %v546 = vmax.f32 %v514, 0.0
        %v547 = vmax.f32 %v515, 0.0
        %v548 = vmax.f32 %v516, 0.0
        %v549 = vmax.f32 %v517, 0.0
        %v550 = vmax.f32 %v518, 0.0
        %v551 = vmax.f32 %v519, 0.0
        %v552 = vmax.f32 %v520, 0.0
        %v553 = vmax.f32 %v521, 0.0
        %v554 = vmax.f32 %v522, 0.0
        %v555 = vmax.f32 %v523, 0.0
        %v556 = vmax.f32 %v524, 0.0
        %v557 = vmax.f32 %v525, 0.0
        %v558 = vmax.f32 %v526, 0.0
        %v559 = vmax.f32 %v527, 0.0
        %v560 = vmax.f32 %v528, 0.0
        %v561 = vmax.f32 %v529, 0.0
        %v562 = vmax.f32 %v530, 0.0
        %v563 = vmax.f32 %v531, 0.0
        %v564 = vmax.f32 %v532, 0.0
        %v565 = vmax.f32 %v533, 0.0
        %v566 = vmax.f32 %v534, 0.0
        %v567 = vmax.f32 %v535, 0.0
        %v568 = vmax.f32 %v536, 0.0
        %v569 = vmax.f32 %v537, 0.0
        %v570 = vmax.f32 %v538, 0.0
        %v571 = vpack.c.bf16 %v540, %v539
        %v572 = vpack.c.bf16 %v542, %v541
        %v573 = vpack.c.bf16 %v544, %v543
        %v574 = vpack.c.bf16 %v546, %v545
        %v575 = vpack.c.bf16 %v548, %v547
        %v576 = vpack.c.bf16 %v550, %v549
        %v577 = vpack.c.bf16 %v552, %v551
        %v578 = vpack.c.bf16 %v554, %v553
        %v579 = vpack.c.bf16 %v556, %v555
        %v580 = vpack.c.bf16 %v558, %v557
        %v581 = vpack.c.bf16 %v560, %v559
        %v582 = vpack.c.bf16 %v562, %v561
        %v583 = vpack.c.bf16 %v564, %v563
        %v584 = vpack.c.bf16 %v566, %v565
        %v585 = vpack.c.bf16 %v568, %v567
        %v586 = vpack.c.bf16 %v570, %v569
        %v587 = vld [vmem:[%s1] sm:$0xf]
        %v588 = vld [vmem:[%s1 + $0x4] sm:$0xf]
        %v589 = vld [vmem:[%s1 + $0x8] sm:$0xf]
        %v590 = vld [vmem:[%s1 + $0xc] sm:$0xf]
        %v591 = vld [vmem:[%s1 + $0x10] sm:$0xf]
        %v592 = vld [vmem:[%s1 + $0x14] sm:$0xf]
        %v593 = vld [vmem:[%s1 + $0x18] sm:$0xf]
        %v594 = vld [vmem:[%s1 + $0x1c] sm:$0xf]
        %v595 = vld [vmem:[%s1 + $0x20] sm:$0xf]
        %v596 = vld [vmem:[%s1 + $0x24] sm:$0xf]
        %v597 = vld [vmem:[%s1 + $0x28] sm:$0xf]
        %v598 = vld [vmem:[%s1 + $0x2c] sm:$0xf]
        %v599 = vld [vmem:[%s1 + $0x30] sm:$0xf]
        %v600 = vld [vmem:[%s1 + $0x34] sm:$0xf]
        %v601 = vld [vmem:[%s1 + $0x38] sm:$0xf]
        %v602 = vld [vmem:[%s1 + $0x3c] sm:$0xf]
        %v603 = vld [vmem:[%s388] sm:$0xf]
        %v604 = vld [vmem:[%s388 + $0x4] sm:$0xf]
        %v605 = vld [vmem:[%s388 + $0x8] sm:$0xf]
        %v606 = vld [vmem:[%s388 + $0xc] sm:$0xf]
        %v607 = vld [vmem:[%s388 + $0x10] sm:$0xf]
        %v608 = vld [vmem:[%s388 + $0x14] sm:$0xf]
        %v609 = vld [vmem:[%s388 + $0x18] sm:$0xf]
        %v610 = vld [vmem:[%s388 + $0x1c] sm:$0xf]
        %v611 = vld [vmem:[%s388 + $0x20] sm:$0xf]
        %v612 = vld [vmem:[%s388 + $0x24] sm:$0xf]
        %v613 = vld [vmem:[%s388 + $0x28] sm:$0xf]
        %v614 = vld [vmem:[%s388 + $0x2c] sm:$0xf]
        %v615 = vld [vmem:[%s388 + $0x30] sm:$0xf]
        %v616 = vld [vmem:[%s388 + $0x34] sm:$0xf]
        %v617 = vld [vmem:[%s388 + $0x38] sm:$0xf]
        %v618 = vld [vmem:[%s388 + $0x3c] sm:$0xf]
        %v619 = vld [vmem:[%s388 + $0x40] sm:$0xf]
        %v620 = vld [vmem:[%s388 + $0x44] sm:$0xf]
        %v621 = vld [vmem:[%s388 + $0x48] sm:$0xf]
        %v622 = vld [vmem:[%s388 + $0x4c] sm:$0xf]
        %v623 = vld [vmem:[%s388 + $0x50] sm:$0xf]
        %v624 = vld [vmem:[%s388 + $0x54] sm:$0xf]
        %v625 = vld [vmem:[%s388 + $0x58] sm:$0xf]
        %v626 = vld [vmem:[%s388 + $0x5c] sm:$0xf]
        %v627 = vld [vmem:[%s388 + $0x60] sm:$0xf]
        %v628 = vld [vmem:[%s388 + $0x64] sm:$0xf]
        %v629 = vld [vmem:[%s388 + $0x68] sm:$0xf]
        %v630 = vld [vmem:[%s388 + $0x6c] sm:$0xf]
        %v631 = vld [vmem:[%s388 + $0x70] sm:$0xf]
        %v632 = vld [vmem:[%s388 + $0x74] sm:$0xf]
        %v633 = vld [vmem:[%s388 + $0x78] sm:$0xf]
        %v634 = vld [vmem:[%s388 + $0x7c] sm:$0xf]
        %v635 = vunpack.c.l.bf16 %v603
        %v636 = vunpack.c.l.bf16 %v604
        %v637 = vunpack.c.l.bf16 %v605
        %v638 = vunpack.c.l.bf16 %v606
        %v639 = vunpack.c.l.bf16 %v607
        %v640 = vunpack.c.l.bf16 %v608
        %v641 = vunpack.c.l.bf16 %v609
        %v642 = vunpack.c.l.bf16 %v610
        %v643 = vunpack.c.l.bf16 %v611
        %v644 = vunpack.c.l.bf16 %v612
        %v645 = vunpack.c.l.bf16 %v613
        %v646 = vunpack.c.l.bf16 %v614
        %v647 = vunpack.c.l.bf16 %v615
        %v648 = vunpack.c.l.bf16 %v616
        %v649 = vunpack.c.l.bf16 %v617
        %v650 = vunpack.c.l.bf16 %v618
        %v651 = vunpack.c.l.bf16 %v619
        %v652 = vunpack.c.l.bf16 %v620
        %v653 = vunpack.c.l.bf16 %v621
        %v654 = vunpack.c.l.bf16 %v622
        %v655 = vunpack.c.l.bf16 %v623
        %v656 = vunpack.c.l.bf16 %v624
        %v657 = vunpack.c.l.bf16 %v625
        %v658 = vunpack.c.l.bf16 %v626
        %v659 = vunpack.c.l.bf16 %v627
        %v660 = vunpack.c.l.bf16 %v628
        %v661 = vunpack.c.l.bf16 %v629
        %v662 = vunpack.c.l.bf16 %v630
        %v663 = vunpack.c.l.bf16 %v631
        %v664 = vunpack.c.l.bf16 %v632
        %v665 = vunpack.c.l.bf16 %v633
        %v666 = vunpack.c.l.bf16 %v634
        %v667 = vld [vmem:[%s6] sm:$0x1]
        %v669 = vlaneseq
        %v670 = vshrl.u32 %v669, 7
        %v671 = vsub.s32 0, %v670
        %v672 = vrot.slane %v667, %v671
        %v674 = vmul.f32 %v635, %v672
        %v675 = vmul.f32 %v636, %v672
        %v676 = vmul.f32 %v637, %v672
        %v677 = vmul.f32 %v638, %v672
        %v678 = vmul.f32 %v639, %v672
        %v679 = vmul.f32 %v640, %v672
        %v680 = vmul.f32 %v641, %v672
        %v681 = vmul.f32 %v642, %v672
        %v682 = vmul.f32 %v643, %v672
        %v683 = vmul.f32 %v644, %v672
        %v684 = vmul.f32 %v645, %v672
        %v685 = vmul.f32 %v646, %v672
        %v686 = vmul.f32 %v647, %v672
        %v687 = vmul.f32 %v648, %v672
        %v688 = vmul.f32 %v649, %v672
        %v689 = vmul.f32 %v650, %v672
        %v690 = vmul.f32 %v651, %v672
        %v691 = vmul.f32 %v652, %v672
        %v692 = vmul.f32 %v653, %v672
        %v693 = vmul.f32 %v654, %v672
        %v694 = vmul.f32 %v655, %v672
        %v695 = vmul.f32 %v656, %v672
        %v696 = vmul.f32 %v657, %v672
        %v697 = vmul.f32 %v658, %v672
        %v698 = vmul.f32 %v659, %v672
        %v699 = vmul.f32 %v660, %v672
        %v700 = vmul.f32 %v661, %v672
        %v701 = vmul.f32 %v662, %v672
        %v702 = vmul.f32 %v663, %v672
        %v703 = vmul.f32 %v664, %v672
        %v704 = vmul.f32 %v665, %v672
        %v705 = vmul.f32 %v666, %v672
        %v706 = vld [vmem:[%s7] sm:$0x1]
        %v708 = vlaneseq
        %v709 = vshrl.u32 %v708, 7
        %v710 = vsub.s32 0, %v709
        %v711 = vrot.slane %v706, %v710
        %v713 = vadd.f32 %v674, %v711
        %v714 = vadd.f32 %v675, %v711
        %v715 = vadd.f32 %v676, %v711
        %v716 = vadd.f32 %v677, %v711
        %v717 = vadd.f32 %v678, %v711
        %v718 = vadd.f32 %v679, %v711
        %v719 = vadd.f32 %v680, %v711
        %v720 = vadd.f32 %v681, %v711
        %v721 = vadd.f32 %v682, %v711
        %v722 = vadd.f32 %v683, %v711
        %v723 = vadd.f32 %v684, %v711
        %v724 = vadd.f32 %v685, %v711
        %v725 = vadd.f32 %v686, %v711
        %v726 = vadd.f32 %v687, %v711
        %v727 = vadd.f32 %v688, %v711
        %v728 = vadd.f32 %v689, %v711
        %v729 = vadd.f32 %v690, %v711
        %v730 = vadd.f32 %v691, %v711
        %v731 = vadd.f32 %v692, %v711
        %v732 = vadd.f32 %v693, %v711
        %v733 = vadd.f32 %v694, %v711
        %v734 = vadd.f32 %v695, %v711
        %v735 = vadd.f32 %v696, %v711
        %v736 = vadd.f32 %v697, %v711
        %v737 = vadd.f32 %v698, %v711
        %v738 = vadd.f32 %v699, %v711
        %v739 = vadd.f32 %v700, %v711
        %v740 = vadd.f32 %v701, %v711
        %v741 = vadd.f32 %v702, %v711
        %v742 = vadd.f32 %v703, %v711
        %v743 = vadd.f32 %v704, %v711
        %v744 = vadd.f32 %v705, %v711
        %v745 = vmax.f32 %v713, 0.0
        %v746 = vmax.f32 %v714, 0.0
        %v747 = vmax.f32 %v715, 0.0
        %v748 = vmax.f32 %v716, 0.0
        %v749 = vmax.f32 %v717, 0.0
        %v750 = vmax.f32 %v718, 0.0
        %v751 = vmax.f32 %v719, 0.0
        %v752 = vmax.f32 %v720, 0.0
        %v753 = vmax.f32 %v721, 0.0
        %v754 = vmax.f32 %v722, 0.0
        %v755 = vmax.f32 %v723, 0.0
        %v756 = vmax.f32 %v724, 0.0
        %v757 = vmax.f32 %v725, 0.0
        %v758 = vmax.f32 %v726, 0.0
        %v759 = vmax.f32 %v727, 0.0
        %v760 = vmax.f32 %v728, 0.0
        %v761 = vmax.f32 %v729, 0.0
        %v762 = vmax.f32 %v730, 0.0
        %v763 = vmax.f32 %v731, 0.0
        %v764 = vmax.f32 %v732, 0.0
        %v765 = vmax.f32 %v733, 0.0
        %v766 = vmax.f32 %v734, 0.0
        %v767 = vmax.f32 %v735, 0.0
        %v768 = vmax.f32 %v736, 0.0
        %v769 = vmax.f32 %v737, 0.0
        %v770 = vmax.f32 %v738, 0.0
        %v771 = vmax.f32 %v739, 0.0
        %v772 = vmax.f32 %v740, 0.0
        %v773 = vmax.f32 %v741, 0.0
        %v774 = vmax.f32 %v742, 0.0
        %v775 = vmax.f32 %v743, 0.0
        %v776 = vmax.f32 %v744, 0.0
        %v777 = vpack.c.bf16 %v746, %v745
        %v778 = vpack.c.bf16 %v748, %v747
        %v779 = vpack.c.bf16 %v750, %v749
        %v780 = vpack.c.bf16 %v752, %v751
        %v781 = vpack.c.bf16 %v754, %v753
        %v782 = vpack.c.bf16 %v756, %v755
        %v783 = vpack.c.bf16 %v758, %v757
        %v784 = vpack.c.bf16 %v760, %v759
        %v785 = vpack.c.bf16 %v762, %v761
        %v786 = vpack.c.bf16 %v764, %v763
        %v787 = vpack.c.bf16 %v766, %v765
        %v788 = vpack.c.bf16 %v768, %v767
        %v789 = vpack.c.bf16 %v770, %v769
        %v790 = vpack.c.bf16 %v772, %v771
        %v791 = vpack.c.bf16 %v774, %v773
        %v792 = vpack.c.bf16 %v776, %v775
        %v793 = vld [vmem:[%s5] sm:$0xf]
        %v794 = vld [vmem:[%s5 + $0x4] sm:$0xf]
        %v795 = vld [vmem:[%s5 + $0x8] sm:$0xf]
        %v796 = vld [vmem:[%s5 + $0xc] sm:$0xf]
        %v797 = vld [vmem:[%s5 + $0x10] sm:$0xf]
        %v798 = vld [vmem:[%s5 + $0x14] sm:$0xf]
        %v799 = vld [vmem:[%s5 + $0x18] sm:$0xf]
        %v800 = vld [vmem:[%s5 + $0x1c] sm:$0xf]
        %v801 = vld [vmem:[%s5 + $0x20] sm:$0xf]
        %v802 = vld [vmem:[%s5 + $0x24] sm:$0xf]
        %v803 = vld [vmem:[%s5 + $0x28] sm:$0xf]
        %v804 = vld [vmem:[%s5 + $0x2c] sm:$0xf]
        %v805 = vld [vmem:[%s5 + $0x30] sm:$0xf]
        %v806 = vld [vmem:[%s5 + $0x34] sm:$0xf]
        %v807 = vld [vmem:[%s5 + $0x38] sm:$0xf]
        %v808 = vld [vmem:[%s5 + $0x3c] sm:$0xf]
        %v825 = vunpack.c.l.b16 %v793
        %v826 = vunpack.c.l.b16 %v794
        %v827 = vunpack.c.l.b16 %v795
        %v828 = vunpack.c.l.b16 %v796
        %v829 = vunpack.c.l.b16 %v797
        %v830 = vunpack.c.l.b16 %v798
        %v831 = vunpack.c.l.b16 %v799
        %v832 = vunpack.c.l.b16 %v800
        %v833 = vunpack.c.l.b16 %v801
        %v834 = vunpack.c.l.b16 %v802
        %v835 = vunpack.c.l.b16 %v803
        %v836 = vunpack.c.l.b16 %v804
        %v837 = vunpack.c.l.b16 %v805
        %v838 = vunpack.c.l.b16 %v806
        %v839 = vunpack.c.l.b16 %v807
        %v840 = vunpack.c.l.b16 %v808
        %v841 = vpack.c.b16 %v826, %v825
        %v842 = vpack.c.b16 %v828, %v827
        %v843 = vpack.c.b16 %v830, %v829
        %v844 = vpack.c.b16 %v832, %v831
        %v845 = vpack.c.b16 %v834, %v833
        %v846 = vpack.c.b16 %v836, %v835
        %v847 = vpack.c.b16 %v838, %v837
        %v848 = vpack.c.b16 %v840, %v839
        %857 = vmatprep.subr.bf16.mxu0 0
        %858 = vmatpush1.bf16.msra.mxu0 %v841
        %859 = vmatprep.subr.bf16.mxu0 0
        %860 = vmatpush1.bf16.msra.mxu0 %v842
        %861 = vmatprep.subr.bf16.mxu0 0
        %862 = vmatpush1.bf16.msra.mxu0 %v843
        %863 = vmatprep.subr.bf16.mxu0 0
        %864 = vmatpush1.bf16.msra.mxu0 %v844
        %865 = vmatprep.subr.bf16.mxu0 0
        %866 = vmatpush1.bf16.msra.mxu0 %v845
        %867 = vmatprep.subr.bf16.mxu0 0
        %868 = vmatpush1.bf16.msra.mxu0 %v846
        %869 = vmatprep.subr.bf16.mxu0 0
        %870 = vmatpush1.bf16.msra.mxu0 %v847
        %871 = vmatprep.subr.bf16.mxu0 0
        %872 = vmatpush1.bf16.msra.mxu0 %v848
        %873 = vmatprep.subr.bf16.mxu0 0
        %874 = vmatpush1.bf16.msra.mxu0 0
        %875 = vmatprep.subr.bf16.mxu0 0
        %876 = vmatpush1.bf16.msra.mxu0 0
        %877 = vmatprep.subr.bf16.mxu0 0
        %878 = vmatpush1.bf16.msra.mxu0 0
        %879 = vmatprep.subr.bf16.mxu0 0
        %880 = vmatpush1.bf16.msra.mxu0 0
        %881 = vmatprep.subr.bf16.mxu0 0
        %882 = vmatpush1.bf16.msra.mxu0 0
        %883 = vmatprep.subr.bf16.mxu0 0
        %884 = vmatpush1.bf16.msra.mxu0 0
        %885 = vmatprep.subr.bf16.mxu0 0
        %886 = vmatpush1.bf16.msra.mxu0 0
        %887 = vmatprep.subr.bf16.mxu0 0
        %888 = vmatpush1.bf16.msra.mxu0 0
        %889 = vmatprep.mubr.bf16.mxu0 0
        %890 = vmatmul.mubr.bf16.gmra.mrb[0].mxu0 %v777
        %v891 = vpop.f32.mrb[0].mxu0
        %v892 = vadd.f32 0.0, %v891
        %v893 = vpop.f32.mrb[0].mxu0
        %v894 = vpop.f32.mrb[0].mxu0
        %v895 = vadd.f32 0.0, %v894
        %v896 = vpop.f32.mrb[0].mxu0
        %897 = vmatprep.mubr.bf16.mxu0 0
        %898 = vmatmul.mubr.bf16.gmra.mrb[0].mxu0 %v778
        %v899 = vpop.f32.mrb[0].mxu0
        %v900 = vadd.f32 0.0, %v899
        %v901 = vpop.f32.mrb[0].mxu0
        %v902 = vpop.f32.mrb[0].mxu0
        %v903 = vadd.f32 0.0, %v902
        %v904 = vpop.f32.mrb[0].mxu0
        %905 = vmatprep.mubr.bf16.mxu0 0
        %906 = vmatmul.mubr.bf16.gmra.mrb[0].mxu0 %v779
        %v907 = vpop.f32.mrb[0].mxu0
        %v908 = vadd.f32 0.0, %v907
        %v909 = vpop.f32.mrb[0].mxu0
        %v910 = vpop.f32.mrb[0].mxu0
        %v911 = vadd.f32 0.0, %v910
        %v912 = vpop.f32.mrb[0].mxu0
        %913 = vmatprep.mubr.bf16.mxu0 0
        %914 = vmatmul.mubr.bf16.gmra.mrb[0].mxu0 %v780
        %v915 = vpop.f32.mrb[0].mxu0
        %v916 = vadd.f32 0.0, %v915
        %v917 = vpop.f32.mrb[0].mxu0
        %v918 = vpop.f32.mrb[0].mxu0
        %v919 = vadd.f32 0.0, %v918
        %v920 = vpop.f32.mrb[0].mxu0
        %921 = vmatprep.mubr.bf16.mxu0 0
        %922 = vmatmul.mubr.bf16.gmra.mrb[0].mxu0 %v781
        %v923 = vpop.f32.mrb[0].mxu0
        %v924 = vadd.f32 0.0, %v923
        %v925 = vpop.f32.mrb[0].mxu0
        %v926 = vpop.f32.mrb[0].mxu0
        %v927 = vadd.f32 0.0, %v926
        %v928 = vpop.f32.mrb[0].mxu0
        %929 = vmatprep.mubr.bf16.mxu0 0
        %930 = vmatmul.mubr.bf16.gmra.mrb[0].mxu0 %v782
        %v931 = vpop.f32.mrb[0].mxu0
        %v932 = vadd.f32 0.0, %v931
        %v933 = vpop.f32.mrb[0].mxu0
        %v934 = vpop.f32.mrb[0].mxu0
        %v935 = vadd.f32 0.0, %v934
        %v936 = vpop.f32.mrb[0].mxu0
        %937 = vmatprep.mubr.bf16.mxu0 0
        %938 = vmatmul.mubr.bf16.gmra.mrb[0].mxu0 %v783
        %v939 = vpop.f32.mrb[0].mxu0
        %v940 = vadd.f32 0.0, %v939
        %v941 = vpop.f32.mrb[0].mxu0
        %v942 = vpop.f32.mrb[0].mxu0
        %v943 = vadd.f32 0.0, %v942
        %v944 = vpop.f32.mrb[0].mxu0
        %945 = vmatprep.mubr.bf16.mxu0 0
        %946 = vmatmul.mubr.bf16.gmra.mrb[0].mxu0 %v784
        %v947 = vpop.f32.mrb[0].mxu0
        %v948 = vadd.f32 0.0, %v947
        %v949 = vpop.f32.mrb[0].mxu0
        %v950 = vpop.f32.mrb[0].mxu0
        %v951 = vadd.f32 0.0, %v950
        %v952 = vpop.f32.mrb[0].mxu0
        %953 = vmatprep.mubr.bf16.mxu0 0
        %954 = vmatmul.mubr.bf16.gmra.mrb[0].mxu0 %v785
        %v955 = vpop.f32.mrb[0].mxu0
        %v956 = vadd.f32 0.0, %v955
        %v957 = vpop.f32.mrb[0].mxu0
        %v958 = vpop.f32.mrb[0].mxu0
        %v959 = vadd.f32 0.0, %v958
        %v960 = vpop.f32.mrb[0].mxu0
        %961 = vmatprep.mubr.bf16.mxu0 0
        %962 = vmatmul.mubr.bf16.gmra.mrb[0].mxu0 %v786
        %v963 = vpop.f32.mrb[0].mxu0
        %v964 = vadd.f32 0.0, %v963
        %v965 = vpop.f32.mrb[0].mxu0
        %v966 = vpop.f32.mrb[0].mxu0
        %v967 = vadd.f32 0.0, %v966
        %v968 = vpop.f32.mrb[0].mxu0
        %969 = vmatprep.mubr.bf16.mxu0 0
        %970 = vmatmul.mubr.bf16.gmra.mrb[0].mxu0 %v787
        %v971 = vpop.f32.mrb[0].mxu0
        %v972 = vadd.f32 0.0, %v971
        %v973 = vpop.f32.mrb[0].mxu0
        %v974 = vpop.f32.mrb[0].mxu0
        %v975 = vadd.f32 0.0, %v974
        %v976 = vpop.f32.mrb[0].mxu0
        %977 = vmatprep.mubr.bf16.mxu0 0
        %978 = vmatmul.mubr.bf16.gmra.mrb[0].mxu0 %v788
        %v979 = vpop.f32.mrb[0].mxu0
        %v980 = vadd.f32 0.0, %v979
        %v981 = vpop.f32.mrb[0].mxu0
        %v982 = vpop.f32.mrb[0].mxu0
        %v983 = vadd.f32 0.0, %v982
        %v984 = vpop.f32.mrb[0].mxu0
        %985 = vmatprep.mubr.bf16.mxu0 0
        %986 = vmatmul.mubr.bf16.gmra.mrb[0].mxu0 %v789
        %v987 = vpop.f32.mrb[0].mxu0
        %v988 = vadd.f32 0.0, %v987
        %v989 = vpop.f32.mrb[0].mxu0
        %v990 = vpop.f32.mrb[0].mxu0
        %v991 = vadd.f32 0.0, %v990
        %v992 = vpop.f32.mrb[0].mxu0
        %993 = vmatprep.mubr.bf16.mxu0 0
        %994 = vmatmul.mubr.bf16.gmra.mrb[0].mxu0 %v790
        %v995 = vpop.f32.mrb[0].mxu0
        %v996 = vadd.f32 0.0, %v995
        %v997 = vpop.f32.mrb[0].mxu0
        %v998 = vpop.f32.mrb[0].mxu0
        %v999 = vadd.f32 0.0, %v998
        %v1000 = vpop.f32.mrb[0].mxu0
        %1001 = vmatprep.mubr.bf16.mxu0 0
        %1002 = vmatmul.mubr.bf16.gmra.mrb[0].mxu0 %v791
        %v1003 = vpop.f32.mrb[0].mxu0
        %v1004 = vadd.f32 0.0, %v1003
        %v1005 = vpop.f32.mrb[0].mxu0
        %v1006 = vpop.f32.mrb[0].mxu0
        %v1007 = vadd.f32 0.0, %v1006
        %v1008 = vpop.f32.mrb[0].mxu0
        %1009 = vmatprep.mubr.bf16.mxu0 0
        %1010 = vmatmul.mubr.bf16.gmra.mrb[0].mxu0 %v792
        %v1011 = vpop.f32.mrb[0].mxu0
        %v1012 = vadd.f32 0.0, %v1011
        %v1013 = vpop.f32.mrb[0].mxu0
        %v1014 = vpop.f32.mrb[0].mxu0
        %v1015 = vadd.f32 0.0, %v1014
        %v1016 = vpop.f32.mrb[0].mxu0
        %1017 = vdwg.mxu0
        %v1034 = vunpack.c.l.b16 %v587
        %v1035 = vunpack.c.l.b16 %v588
        %v1036 = vunpack.c.l.b16 %v589
        %v1037 = vunpack.c.l.b16 %v590
        %v1038 = vunpack.c.l.b16 %v591
        %v1039 = vunpack.c.l.b16 %v592
        %v1040 = vunpack.c.l.b16 %v593
        %v1041 = vunpack.c.l.b16 %v594
        %v1042 = vunpack.c.l.b16 %v595
        %v1043 = vunpack.c.l.b16 %v596
        %v1044 = vunpack.c.l.b16 %v597
        %v1045 = vunpack.c.l.b16 %v598
        %v1046 = vunpack.c.l.b16 %v599
        %v1047 = vunpack.c.l.b16 %v600
        %v1048 = vunpack.c.l.b16 %v601
        %v1049 = vunpack.c.l.b16 %v602
        %v1050 = vpack.c.b16 %v1035, %v1034
        %v1051 = vpack.c.b16 %v1037, %v1036
        %v1052 = vpack.c.b16 %v1039, %v1038
        %v1053 = vpack.c.b16 %v1041, %v1040
        %v1054 = vpack.c.b16 %v1043, %v1042
        %v1055 = vpack.c.b16 %v1045, %v1044
        %v1056 = vpack.c.b16 %v1047, %v1046
        %v1057 = vpack.c.b16 %v1049, %v1048
        %1066 = vmatprep.subr.bf16.mxu0 0
        %1067 = vmatpush1.bf16.msra.mxu0 %v1050
        %1068 = vmatprep.subr.bf16.mxu0 0
        %1069 = vmatpush1.bf16.msra.mxu0 %v1051
        %1070 = vmatprep.subr.bf16.mxu0 0
        %1071 = vmatpush1.bf16.msra.mxu0 %v1052
        %1072 = vmatprep.subr.bf16.mxu0 0
        %1073 = vmatpush1.bf16.msra.mxu0 %v1053
        %1074 = vmatprep.subr.bf16.mxu0 0
        %1075 = vmatpush1.bf16.msra.mxu0 %v1054
        %1076 = vmatprep.subr.bf16.mxu0 0
        %1077 = vmatpush1.bf16.msra.mxu0 %v1055
        %1078 = vmatprep.subr.bf16.mxu0 0
        %1079 = vmatpush1.bf16.msra.mxu0 %v1056
        %1080 = vmatprep.subr.bf16.mxu0 0
        %1081 = vmatpush1.bf16.msra.mxu0 %v1057
        %1082 = vmatprep.subr.bf16.mxu0 0
        %1083 = vmatpush1.bf16.msra.mxu0 0
        %1084 = vmatprep.subr.bf16.mxu0 0
        %1085 = vmatpush1.bf16.msra.mxu0 0
        %1086 = vmatprep.subr.bf16.mxu0 0
        %1087 = vmatpush1.bf16.msra.mxu0 0
        %1088 = vmatprep.subr.bf16.mxu0 0
        %1089 = vmatpush1.bf16.msra.mxu0 0
        %1090 = vmatprep.subr.bf16.mxu0 0
        %1091 = vmatpush1.bf16.msra.mxu0 0
        %1092 = vmatprep.subr.bf16.mxu0 0
        %1093 = vmatpush1.bf16.msra.mxu0 0
        %1094 = vmatprep.subr.bf16.mxu0 0
        %1095 = vmatpush1.bf16.msra.mxu0 0
        %1096 = vmatprep.subr.bf16.mxu0 0
        %1097 = vmatpush1.bf16.msra.mxu0 0
        %1098 = vmatprep.mubr.bf16.mxu0 0
        %1099 = vmatmul.mubr.bf16.gmra.mrb[0].mxu0 %v571
        %v1100 = vpop.f32.mrb[0].mxu0
        %v1101 = vadd.f32 %v892, %v1100
        %v1102 = vpop.f32.mrb[0].mxu0
        %v1103 = vpop.f32.mrb[0].mxu0
        %v1104 = vadd.f32 %v895, %v1103
        %v1105 = vpop.f32.mrb[0].mxu0
        %1106 = vmatprep.mubr.bf16.mxu0 0
        %1107 = vmatmul.mubr.bf16.gmra.mrb[0].mxu0 %v572
        %v1108 = vpop.f32.mrb[0].mxu0
        %v1109 = vadd.f32 %v900, %v1108
        %v1110 = vpop.f32.mrb[0].mxu0
        %v1111 = vpop.f32.mrb[0].mxu0
        %v1112 = vadd.f32 %v903, %v1111
        %v1113 = vpop.f32.mrb[0].mxu0
        %1114 = vmatprep.mubr.bf16.mxu0 0
        %1115 = vmatmul.mubr.bf16.gmra.mrb[0].mxu0 %v573
        %v1116 = vpop.f32.mrb[0].mxu0
        %v1117 = vadd.f32 %v908, %v1116
        %v1118 = vpop.f32.mrb[0].mxu0
        %v1119 = vpop.f32.mrb[0].mxu0
        %v1120 = vadd.f32 %v911, %v1119
        %v1121 = vpop.f32.mrb[0].mxu0
        %1122 = vmatprep.mubr.bf16.mxu0 0
        %1123 = vmatmul.mubr.bf16.gmra.mrb[0].mxu0 %v574
        %v1124 = vpop.f32.mrb[0].mxu0
        %v1125 = vadd.f32 %v916, %v1124
        %v1126 = vpop.f32.mrb[0].mxu0
        %v1127 = vpop.f32.mrb[0].mxu0
        %v1128 = vadd.f32 %v919, %v1127
        %v1129 = vpop.f32.mrb[0].mxu0
        %1130 = vmatprep.mubr.bf16.mxu0 0
        %1131 = vmatmul.mubr.bf16.gmra.mrb[0].mxu0 %v575
        %v1132 = vpop.f32.mrb[0].mxu0
        %v1133 = vadd.f32 %v924, %v1132
        %v1134 = vpop.f32.mrb[0].mxu0
        %v1135 = vpop.f32.mrb[0].mxu0
        %v1136 = vadd.f32 %v927, %v1135
        %v1137 = vpop.f32.mrb[0].mxu0
        %1138 = vmatprep.mubr.bf16.mxu0 0
        %1139 = vmatmul.mubr.bf16.gmra.mrb[0].mxu0 %v576
        %v1140 = vpop.f32.mrb[0].mxu0
        %v1141 = vadd.f32 %v932, %v1140
        %v1142 = vpop.f32.mrb[0].mxu0
        %v1143 = vpop.f32.mrb[0].mxu0
        %v1144 = vadd.f32 %v935, %v1143
        %v1145 = vpop.f32.mrb[0].mxu0
        %1146 = vmatprep.mubr.bf16.mxu0 0
        %1147 = vmatmul.mubr.bf16.gmra.mrb[0].mxu0 %v577
        %v1148 = vpop.f32.mrb[0].mxu0
        %v1149 = vadd.f32 %v940, %v1148
        %v1150 = vpop.f32.mrb[0].mxu0
        %v1151 = vpop.f32.mrb[0].mxu0
        %v1152 = vadd.f32 %v943, %v1151
        %v1153 = vpop.f32.mrb[0].mxu0
        %1154 = vmatprep.mubr.bf16.mxu0 0
        %1155 = vmatmul.mubr.bf16.gmra.mrb[0].mxu0 %v578
        %v1156 = vpop.f32.mrb[0].mxu0
        %v1157 = vadd.f32 %v948, %v1156
        %v1158 = vpop.f32.mrb[0].mxu0
        %v1159 = vpop.f32.mrb[0].mxu0
        %v1160 = vadd.f32 %v951, %v1159
        %v1161 = vpop.f32.mrb[0].mxu0
        %1162 = vmatprep.mubr.bf16.mxu0 0
        %1163 = vmatmul.mubr.bf16.gmra.mrb[0].mxu0 %v579
        %v1164 = vpop.f32.mrb[0].mxu0
        %v1165 = vadd.f32 %v956, %v1164
        %v1166 = vpop.f32.mrb[0].mxu0
        %v1167 = vpop.f32.mrb[0].mxu0
        %v1168 = vadd.f32 %v959, %v1167
        %v1169 = vpop.f32.mrb[0].mxu0
        %1170 = vmatprep.mubr.bf16.mxu0 0
        %1171 = vmatmul.mubr.bf16.gmra.mrb[0].mxu0 %v580
        %v1172 = vpop.f32.mrb[0].mxu0
        %v1173 = vadd.f32 %v964, %v1172
        %v1174 = vpop.f32.mrb[0].mxu0
        %v1175 = vpop.f32.mrb[0].mxu0
        %v1176 = vadd.f32 %v967, %v1175
        %v1177 = vpop.f32.mrb[0].mxu0
        %1178 = vmatprep.mubr.bf16.mxu0 0
        %1179 = vmatmul.mubr.bf16.gmra.mrb[0].mxu0 %v581
        %v1180 = vpop.f32.mrb[0].mxu0
        %v1181 = vadd.f32 %v972, %v1180
        %v1182 = vpop.f32.mrb[0].mxu0
        %v1183 = vpop.f32.mrb[0].mxu0
        %v1184 = vadd.f32 %v975, %v1183
        %v1185 = vpop.f32.mrb[0].mxu0
        %1186 = vmatprep.mubr.bf16.mxu0 0
        %1187 = vmatmul.mubr.bf16.gmra.mrb[0].mxu0 %v582
        %v1188 = vpop.f32.mrb[0].mxu0
        %v1189 = vadd.f32 %v980, %v1188
        %v1190 = vpop.f32.mrb[0].mxu0
        %v1191 = vpop.f32.mrb[0].mxu0
        %v1192 = vadd.f32 %v983, %v1191
        %v1193 = vpop.f32.mrb[0].mxu0
        %1194 = vmatprep.mubr.bf16.mxu0 0
        %1195 = vmatmul.mubr.bf16.gmra.mrb[0].mxu0 %v583
        %v1196 = vpop.f32.mrb[0].mxu0
        %v1197 = vadd.f32 %v988, %v1196
        %v1198 = vpop.f32.mrb[0].mxu0
        %v1199 = vpop.f32.mrb[0].mxu0
        %v1200 = vadd.f32 %v991, %v1199
        %v1201 = vpop.f32.mrb[0].mxu0
        %1202 = vmatprep.mubr.bf16.mxu0 0
        %1203 = vmatmul.mubr.bf16.gmra.mrb[0].mxu0 %v584
        %v1204 = vpop.f32.mrb[0].mxu0
        %v1205 = vadd.f32 %v996, %v1204
        %v1206 = vpop.f32.mrb[0].mxu0
        %v1207 = vpop.f32.mrb[0].mxu0
        %v1208 = vadd.f32 %v999, %v1207
        %v1209 = vpop.f32.mrb[0].mxu0
        %1210 = vmatprep.mubr.bf16.mxu0 0
        %1211 = vmatmul.mubr.bf16.gmra.mrb[0].mxu0 %v585
        %v1212 = vpop.f32.mrb[0].mxu0
        %v1213 = vadd.f32 %v1004, %v1212
        %v1214 = vpop.f32.mrb[0].mxu0
        %v1215 = vpop.f32.mrb[0].mxu0
        %v1216 = vadd.f32 %v1007, %v1215
        %v1217 = vpop.f32.mrb[0].mxu0
        %1218 = vmatprep.mubr.bf16.mxu0 0
        %1219 = vmatmul.mubr.bf16.gmra.mrb[0].mxu0 %v586
        %v1220 = vpop.f32.mrb[0].mxu0
        %v1221 = vadd.f32 %v1012, %v1220
        %v1222 = vpop.f32.mrb[0].mxu0
        %v1223 = vpop.f32.mrb[0].mxu0
        %v1224 = vadd.f32 %v1015, %v1223
        %v1225 = vpop.f32.mrb[0].mxu0
        %1226 = vdwg.mxu0
        %v1227 = vld [vmem:[%s8] sm:$0x1]
        %v1229 = vlaneseq
        %v1230 = vshrl.u32 %v1229, 7
        %v1231 = vsub.s32 0, %v1230
        %v1232 = vrot.slane %v1227, %v1231
        %v1234 = vadd.f32 %v1101, %v1232
        %v1235 = vadd.f32 %v1104, %v1232
        %v1236 = vadd.f32 %v1109, %v1232
        %v1237 = vadd.f32 %v1112, %v1232
        %v1238 = vadd.f32 %v1117, %v1232
        %v1239 = vadd.f32 %v1120, %v1232
        %v1240 = vadd.f32 %v1125, %v1232
        %v1241 = vadd.f32 %v1128, %v1232
        %v1242 = vadd.f32 %v1133, %v1232
        %v1243 = vadd.f32 %v1136, %v1232
        %v1244 = vadd.f32 %v1141, %v1232
        %v1245 = vadd.f32 %v1144, %v1232
        %v1246 = vadd.f32 %v1149, %v1232
        %v1247 = vadd.f32 %v1152, %v1232
        %v1248 = vadd.f32 %v1157, %v1232
        %v1249 = vadd.f32 %v1160, %v1232
        %v1250 = vadd.f32 %v1165, %v1232
        %v1251 = vadd.f32 %v1168, %v1232
        %v1252 = vadd.f32 %v1173, %v1232
        %v1253 = vadd.f32 %v1176, %v1232
        %v1254 = vadd.f32 %v1181, %v1232
        %v1255 = vadd.f32 %v1184, %v1232
        %v1256 = vadd.f32 %v1189, %v1232
        %v1257 = vadd.f32 %v1192, %v1232
        %v1258 = vadd.f32 %v1197, %v1232
        %v1259 = vadd.f32 %v1200, %v1232
        %v1260 = vadd.f32 %v1205, %v1232
        %v1261 = vadd.f32 %v1208, %v1232
        %v1262 = vadd.f32 %v1213, %v1232
        %v1263 = vadd.f32 %v1216, %v1232
        %v1264 = vadd.f32 %v1221, %v1232
        %v1265 = vadd.f32 %v1224, %v1232
        %s1266 = smul.u32 %s25, 256
        %v1267 = vlaneseq
        %v1268 = vshrl.u32 %v1267, 7
        %v1269 = vadd.s32 %v1268, 8
        %v1270 = vadd.s32 %v1268, 16
        %v1271 = vadd.s32 %v1268, 24
        %v1272 = vadd.s32 %v1268, 32
        %v1273 = vadd.s32 %v1268, 40
        %v1274 = vadd.s32 %v1268, 48
        %v1275 = vadd.s32 %v1268, 56
        %v1276 = vadd.s32 %v1268, 64
        %v1277 = vadd.s32 %v1268, 72
        %v1278 = vadd.s32 %v1268, 80
        %v1279 = vadd.s32 %v1268, 88
        %v1280 = vadd.s32 %v1268, 96
        %v1281 = vadd.s32 %v1268, 104
        %v1282 = vadd.s32 %v1268, 112
        %v1283 = vadd.s32 %v1268, 120
        %v1284 = vadd.s32 %v1268, 128
        %v1285 = vadd.s32 %v1268, 136
        %v1286 = vadd.s32 %v1268, 144
        %v1287 = vadd.s32 %v1268, 152
        %v1288 = vadd.s32 %v1268, 160
        %v1289 = vadd.s32 %v1268, 168
        %v1290 = vadd.s32 %v1268, 176
        %v1291 = vadd.s32 %v1268, 184
        %v1292 = vadd.s32 %v1268, 192
        %v1293 = vadd.s32 %v1268, 200
        %v1294 = vadd.s32 %v1268, 208
        %v1295 = vadd.s32 %v1268, 216
        %v1296 = vadd.s32 %v1268, 224
        %v1297 = vadd.s32 %v1268, 232
        %v1298 = vadd.s32 %v1268, 240
        %v1299 = vadd.s32 %v1268, 248
        %v1300 = vstv %s1266
        %v1301 = vadd.s32 %v1300, %v1268
        %v1302 = vadd.s32 %v1300, %v1269
        %v1303 = vadd.s32 %v1300, %v1270
        %v1304 = vadd.s32 %v1300, %v1271
        %v1305 = vadd.s32 %v1300, %v1272
        %v1306 = vadd.s32 %v1300, %v1273
        %v1307 = vadd.s32 %v1300, %v1274
        %v1308 = vadd.s32 %v1300, %v1275
        %v1309 = vadd.s32 %v1300, %v1276
        %v1310 = vadd.s32 %v1300, %v1277
        %v1311 = vadd.s32 %v1300, %v1278
        %v1312 = vadd.s32 %v1300, %v1279
        %v1313 = vadd.s32 %v1300, %v1280
        %v1314 = vadd.s32 %v1300, %v1281
        %v1315 = vadd.s32 %v1300, %v1282
        %v1316 = vadd.s32 %v1300, %v1283
        %v1317 = vadd.s32 %v1300, %v1284
        %v1318 = vadd.s32 %v1300, %v1285
        %v1319 = vadd.s32 %v1300, %v1286
        %v1320 = vadd.s32 %v1300, %v1287
        %v1321 = vadd.s32 %v1300, %v1288
        %v1322 = vadd.s32 %v1300, %v1289
        %v1323 = vadd.s32 %v1300, %v1290
        %v1324 = vadd.s32 %v1300, %v1291
        %v1325 = vadd.s32 %v1300, %v1292
        %v1326 = vadd.s32 %v1300, %v1293
        %v1327 = vadd.s32 %v1300, %v1294
        %v1328 = vadd.s32 %v1300, %v1295
        %v1329 = vadd.s32 %v1300, %v1296
        %v1330 = vadd.s32 %v1300, %v1297
        %v1331 = vadd.s32 %v1300, %v1298
        %v1332 = vadd.s32 %v1300, %v1299
        %vm1333 = vcmp.lt.s32.totalorder %v1301, 512
        %vm1334 = vcmp.lt.s32.totalorder %v1302, 512
        %vm1335 = vcmp.lt.s32.totalorder %v1303, 512
        %vm1336 = vcmp.lt.s32.totalorder %v1304, 512
        %vm1337 = vcmp.lt.s32.totalorder %v1305, 512
        %vm1338 = vcmp.lt.s32.totalorder %v1306, 512
        %vm1339 = vcmp.lt.s32.totalorder %v1307, 512
        %vm1340 = vcmp.lt.s32.totalorder %v1308, 512
        %vm1341 = vcmp.lt.s32.totalorder %v1309, 512
        %vm1342 = vcmp.lt.s32.totalorder %v1310, 512
        %vm1343 = vcmp.lt.s32.totalorder %v1311, 512
        %vm1344 = vcmp.lt.s32.totalorder %v1312, 512
        %vm1345 = vcmp.lt.s32.totalorder %v1313, 512
        %vm1346 = vcmp.lt.s32.totalorder %v1314, 512
        %vm1347 = vcmp.lt.s32.totalorder %v1315, 512
        %vm1348 = vcmp.lt.s32.totalorder %v1316, 512
        %vm1349 = vcmp.lt.s32.totalorder %v1317, 512
        %vm1350 = vcmp.lt.s32.totalorder %v1318, 512
        %vm1351 = vcmp.lt.s32.totalorder %v1319, 512
        %vm1352 = vcmp.lt.s32.totalorder %v1320, 512
        %vm1353 = vcmp.lt.s32.totalorder %v1321, 512
        %vm1354 = vcmp.lt.s32.totalorder %v1322, 512
        %vm1355 = vcmp.lt.s32.totalorder %v1323, 512
        %vm1356 = vcmp.lt.s32.totalorder %v1324, 512
        %vm1357 = vcmp.lt.s32.totalorder %v1325, 512
        %vm1358 = vcmp.lt.s32.totalorder %v1326, 512
        %vm1359 = vcmp.lt.s32.totalorder %v1327, 512
        %vm1360 = vcmp.lt.s32.totalorder %v1328, 512
        %vm1361 = vcmp.lt.s32.totalorder %v1329, 512
        %vm1362 = vcmp.lt.s32.totalorder %v1330, 512
        %vm1363 = vcmp.lt.s32.totalorder %v1331, 512
        %vm1364 = vcmp.lt.s32.totalorder %v1332, 512
        %v1365 = vsel %vm1333, %v1234, 0.0
        %v1366 = vsel %vm1334, %v1235, 0.0
        %v1367 = vsel %vm1335, %v1236, 0.0
        %v1368 = vsel %vm1336, %v1237, 0.0
        %v1369 = vsel %vm1337, %v1238, 0.0
        %v1370 = vsel %vm1338, %v1239, 0.0
        %v1371 = vsel %vm1339, %v1240, 0.0
        %v1372 = vsel %vm1340, %v1241, 0.0
        %v1373 = vsel %vm1341, %v1242, 0.0
        %v1374 = vsel %vm1342, %v1243, 0.0
        %v1375 = vsel %vm1343, %v1244, 0.0
        %v1376 = vsel %vm1344, %v1245, 0.0
        %v1377 = vsel %vm1345, %v1246, 0.0
        %v1378 = vsel %vm1346, %v1247, 0.0
        %v1379 = vsel %vm1347, %v1248, 0.0
        %v1380 = vsel %vm1348, %v1249, 0.0
        %v1381 = vsel %vm1349, %v1250, 0.0
        %v1382 = vsel %vm1350, %v1251, 0.0
        %v1383 = vsel %vm1351, %v1252, 0.0
        %v1384 = vsel %vm1352, %v1253, 0.0
        %v1385 = vsel %vm1353, %v1254, 0.0
        %v1386 = vsel %vm1354, %v1255, 0.0
        %v1387 = vsel %vm1355, %v1256, 0.0
        %v1388 = vsel %vm1356, %v1257, 0.0
        %v1389 = vsel %vm1357, %v1258, 0.0
        %v1390 = vsel %vm1358, %v1259, 0.0
        %v1391 = vsel %vm1359, %v1260, 0.0
        %v1392 = vsel %vm1360, %v1261, 0.0
        %v1393 = vsel %vm1361, %v1262, 0.0
        %v1394 = vsel %vm1362, %v1263, 0.0
        %v1395 = vsel %vm1363, %v1264, 0.0
        %v1396 = vsel %vm1364, %v1265, 0.0
        %v1397 = vadd.f32 %v1365, %v1366
        %v1398 = vadd.f32 %v1397, %v1367
        %v1399 = vadd.f32 %v1398, %v1368
        %v1400 = vadd.f32 %v1399, %v1369
        %v1401 = vadd.f32 %v1400, %v1370
        %v1402 = vadd.f32 %v1401, %v1371
        %v1403 = vadd.f32 %v1402, %v1372
        %v1404 = vadd.f32 %v1403, %v1373
        %v1405 = vadd.f32 %v1404, %v1374
        %v1406 = vadd.f32 %v1405, %v1375
        %v1407 = vadd.f32 %v1406, %v1376
        %v1408 = vadd.f32 %v1407, %v1377
        %v1409 = vadd.f32 %v1408, %v1378
        %v1410 = vadd.f32 %v1409, %v1379
        %v1411 = vadd.f32 %v1410, %v1380
        %v1412 = vadd.f32 %v1411, %v1381
        %v1413 = vadd.f32 %v1412, %v1382
        %v1414 = vadd.f32 %v1413, %v1383
        %v1415 = vadd.f32 %v1414, %v1384
        %v1416 = vadd.f32 %v1415, %v1385
        %v1417 = vadd.f32 %v1416, %v1386
        %v1418 = vadd.f32 %v1417, %v1387
        %v1419 = vadd.f32 %v1418, %v1388
        %v1420 = vadd.f32 %v1419, %v1389
        %v1421 = vadd.f32 %v1420, %v1390
        %v1422 = vadd.f32 %v1421, %v1391
        %v1423 = vadd.f32 %v1422, %v1392
        %v1424 = vadd.f32 %v1423, %v1393
        %v1425 = vadd.f32 %v1424, %v1394
        %v1426 = vadd.f32 %v1425, %v1395
        %v1427 = vadd.f32 %v1426, %v1396
        %v1428 = vrot.slane %v1427, 4
        %v1429 = vadd.f32 %v1427, %v1428
        %v1430 = vrot.slane %v1429, 2
        %v1431 = vadd.f32 %v1429, %v1430
        %v1432 = vrot.slane %v1431, 1
        %v1433 = vadd.f32 %v1431, %v1432
        %1434 = vst [vmem:[%s377] sm:$0x1] %v1433
        %v1435 = vmul.f32 %v1365, %v1365
        %v1436 = vmul.f32 %v1366, %v1366
        %v1437 = vmul.f32 %v1367, %v1367
        %v1438 = vmul.f32 %v1368, %v1368
        %v1439 = vmul.f32 %v1369, %v1369
        %v1440 = vmul.f32 %v1370, %v1370
        %v1441 = vmul.f32 %v1371, %v1371
        %v1442 = vmul.f32 %v1372, %v1372
        %v1443 = vmul.f32 %v1373, %v1373
        %v1444 = vmul.f32 %v1374, %v1374
        %v1445 = vmul.f32 %v1375, %v1375
        %v1446 = vmul.f32 %v1376, %v1376
        %v1447 = vmul.f32 %v1377, %v1377
        %v1448 = vmul.f32 %v1378, %v1378
        %v1449 = vmul.f32 %v1379, %v1379
        %v1450 = vmul.f32 %v1380, %v1380
        %v1451 = vmul.f32 %v1381, %v1381
        %v1452 = vmul.f32 %v1382, %v1382
        %v1453 = vmul.f32 %v1383, %v1383
        %v1454 = vmul.f32 %v1384, %v1384
        %v1455 = vmul.f32 %v1385, %v1385
        %v1456 = vmul.f32 %v1386, %v1386
        %v1457 = vmul.f32 %v1387, %v1387
        %v1458 = vmul.f32 %v1388, %v1388
        %v1459 = vmul.f32 %v1389, %v1389
        %v1460 = vmul.f32 %v1390, %v1390
        %v1461 = vmul.f32 %v1391, %v1391
        %v1462 = vmul.f32 %v1392, %v1392
        %v1463 = vmul.f32 %v1393, %v1393
        %v1464 = vmul.f32 %v1394, %v1394
        %v1465 = vmul.f32 %v1395, %v1395
        %v1466 = vmul.f32 %v1396, %v1396
        %v1467 = vadd.f32 %v1435, %v1436
        %v1468 = vadd.f32 %v1467, %v1437
        %v1469 = vadd.f32 %v1468, %v1438
        %v1470 = vadd.f32 %v1469, %v1439
        %v1471 = vadd.f32 %v1470, %v1440
        %v1472 = vadd.f32 %v1471, %v1441
        %v1473 = vadd.f32 %v1472, %v1442
        %v1474 = vadd.f32 %v1473, %v1443
        %v1475 = vadd.f32 %v1474, %v1444
        %v1476 = vadd.f32 %v1475, %v1445
        %v1477 = vadd.f32 %v1476, %v1446
        %v1478 = vadd.f32 %v1477, %v1447
        %v1479 = vadd.f32 %v1478, %v1448
        %v1480 = vadd.f32 %v1479, %v1449
        %v1481 = vadd.f32 %v1480, %v1450
        %v1482 = vadd.f32 %v1481, %v1451
        %v1483 = vadd.f32 %v1482, %v1452
        %v1484 = vadd.f32 %v1483, %v1453
        %v1485 = vadd.f32 %v1484, %v1454
        %v1486 = vadd.f32 %v1485, %v1455
        %v1487 = vadd.f32 %v1486, %v1456
        %v1488 = vadd.f32 %v1487, %v1457
        %v1489 = vadd.f32 %v1488, %v1458
        %v1490 = vadd.f32 %v1489, %v1459
        %v1491 = vadd.f32 %v1490, %v1460
        %v1492 = vadd.f32 %v1491, %v1461
        %v1493 = vadd.f32 %v1492, %v1462
        %v1494 = vadd.f32 %v1493, %v1463
        %v1495 = vadd.f32 %v1494, %v1464
        %v1496 = vadd.f32 %v1495, %v1465
        %v1497 = vadd.f32 %v1496, %v1466
        %v1498 = vrot.slane %v1497, 4
        %v1499 = vadd.f32 %v1497, %v1498
        %v1500 = vrot.slane %v1499, 2
        %v1501 = vadd.f32 %v1499, %v1500
        %v1502 = vrot.slane %v1501, 1
        %v1503 = vadd.f32 %v1501, %v1502
        %1504 = vst [vmem:[%s377 + $0x1] sm:$0x1] %v1503
        %v1505 = vtanh.pop %v1234
        %v1506 = vtanh.pop %v1235
        %v1507 = vtanh.pop %v1236
        %v1508 = vtanh.pop %v1237
        %v1509 = vtanh.pop %v1238
        %v1510 = vtanh.pop %v1239
        %v1511 = vtanh.pop %v1240
        %v1512 = vtanh.pop %v1241
        %v1513 = vtanh.pop %v1242
        %v1514 = vtanh.pop %v1243
        %v1515 = vtanh.pop %v1244
        %v1516 = vtanh.pop %v1245
        %v1517 = vtanh.pop %v1246
        %v1518 = vtanh.pop %v1247
        %v1519 = vtanh.pop %v1248
        %v1520 = vtanh.pop %v1249
        %v1521 = vtanh.pop %v1250
        %v1522 = vtanh.pop %v1251
        %v1523 = vtanh.pop %v1252
        %v1524 = vtanh.pop %v1253
        %v1525 = vtanh.pop %v1254
        %v1526 = vtanh.pop %v1255
        %v1527 = vtanh.pop %v1256
        %v1528 = vtanh.pop %v1257
        %v1529 = vtanh.pop %v1258
        %v1530 = vtanh.pop %v1259
        %v1531 = vtanh.pop %v1260
        %v1532 = vtanh.pop %v1261
        %v1533 = vtanh.pop %v1262
        %v1534 = vtanh.pop %v1263
        %v1535 = vtanh.pop %v1264
        %v1536 = vtanh.pop %v1265
        %1537 = vst [vmem:[%s394] sm:$0xff] %v1505
        %1538 = vst [vmem:[%s394 + $0x8] sm:$0xff] %v1506
        %1539 = vst [vmem:[%s394 + $0x10] sm:$0xff] %v1507
        %1540 = vst [vmem:[%s394 + $0x18] sm:$0xff] %v1508
        %1541 = vst [vmem:[%s394 + $0x20] sm:$0xff] %v1509
        %1542 = vst [vmem:[%s394 + $0x28] sm:$0xff] %v1510
        %1543 = vst [vmem:[%s394 + $0x30] sm:$0xff] %v1511
        %1544 = vst [vmem:[%s394 + $0x38] sm:$0xff] %v1512
        %1545 = vst [vmem:[%s394 + $0x40] sm:$0xff] %v1513
        %1546 = vst [vmem:[%s394 + $0x48] sm:$0xff] %v1514
        %1547 = vst [vmem:[%s394 + $0x50] sm:$0xff] %v1515
        %1548 = vst [vmem:[%s394 + $0x58] sm:$0xff] %v1516
        %1549 = vst [vmem:[%s394 + $0x60] sm:$0xff] %v1517
        %1550 = vst [vmem:[%s394 + $0x68] sm:$0xff] %v1518
        %1551 = vst [vmem:[%s394 + $0x70] sm:$0xff] %v1519
        %1552 = vst [vmem:[%s394 + $0x78] sm:$0xff] %v1520
        %1553 = vst [vmem:[%s394 + $0x80] sm:$0xff] %v1521
        %1554 = vst [vmem:[%s394 + $0x88] sm:$0xff] %v1522
        %1555 = vst [vmem:[%s394 + $0x90] sm:$0xff] %v1523
        %1556 = vst [vmem:[%s394 + $0x98] sm:$0xff] %v1524
        %1557 = vst [vmem:[%s394 + $0xa0] sm:$0xff] %v1525
        %1558 = vst [vmem:[%s394 + $0xa8] sm:$0xff] %v1526
        %1559 = vst [vmem:[%s394 + $0xb0] sm:$0xff] %v1527
        %1560 = vst [vmem:[%s394 + $0xb8] sm:$0xff] %v1528
        %1561 = vst [vmem:[%s394 + $0xc0] sm:$0xff] %v1529
        %1562 = vst [vmem:[%s394 + $0xc8] sm:$0xff] %v1530
        %1563 = vst [vmem:[%s394 + $0xd0] sm:$0xff] %v1531
        %1564 = vst [vmem:[%s394 + $0xd8] sm:$0xff] %v1532
        %1565 = vst [vmem:[%s394 + $0xe0] sm:$0xff] %v1533
        %1566 = vst [vmem:[%s394 + $0xe8] sm:$0xff] %v1534
        %1567 = vst [vmem:[%s394 + $0xf0] sm:$0xff] %v1535
        %1568 = vst [vmem:[%s394 + $0xf8] sm:$0xff] %v1536
        %s1569 = smul.u32 32, %s25
        %p1570 = scmp.lt.s32.totalorder %s1569, 63
        %s1571 = scalar_select %p1570, %s1569, 63
        %s1572 = smul.addr %s1571, 8
        %s1573 = scalar_lea.vmem %s9, %s1572
        %s1574 = sand.u32 %s258, 1
        %s1575 = scalar_lea.sflag [#allocation3], %s1574
        %s1576 = sand.u32 %s258, 1
        %s1577 = smul.addr %s1576, 2
        %s1578 = scalar_lea.vmem [#allocation2], %s1577
        // Predicated region
        $region57: #{_lambda_.19} parent=55 // pred_check
          %p1579 = pneg %p242
        $region58: #{_lambda_.19} parent=55 // pred_check_branch
          %1581 = sbr.rel (%p1579) target = $region60
        $region59: #{_lambda_.19} parent=55 // pred_region
          %s1582 = smul.u32 32, %s25
        $region60: #{_lambda_.19} parent=55 // pred_fallthru
          _
        // Predicated region
        $region61: #{_lambda_.19} parent=55 // pred_check
          %p1583 = pneg %p268
        $region62: #{_lambda_.19} parent=55 // pred_check_branch
          %1585 = sbr.rel (%p1583) target = $region64
        $region63: #{_lambda_.19} parent=55 // pred_region
          %s1587 = ssub.s32 32, 32
          %1588 = vsyncadd %s1575, %s1587
          %s1589 = smul.addr %s25, 32
          %s1590 = scalar_lea.hbm %s10, %s1589
          %s1592 = sshll.u32 %s1578, 4
          %s1593 = int_to_ptr.vmem [resolvable:$true] %s1592
          %1595 = dma.vmem_to_hbm [thread:$0]  %s1593, 32, %s1590, %s1575
        $region64: #{_lambda_.19} parent=55 // pred_fallthru
          _
      $region56: #{_lambda_.19} parent=5 // pred_fallthru
        _
      %p1596 = scmp.le.s32.totalorder 2, %s20
      // Predicated region
      $region65: #{_lambda_.19} parent=5 // pred_check
        %p1597 = pneg %p1596
      $region66: #{_lambda_.19} parent=5 // pred_check_branch
        %1599 = sbr.rel (%p1597) target = $region68
      $region67: #{_lambda_.19} parent=5 // pred_region
        %s1600 = ssub.s32 %s20, 2
        // Predicated region
        $region69: #{_lambda_.19} parent=67 // pred_check
          %p1601 = pneg %p248
        $region70: #{_lambda_.19} parent=67 // pred_check_branch
          %1603 = sbr.rel (%p1601) target = $region72
        $region71: #{_lambda_.19} parent=67 // pred_region
          %s1604 = smul.u32 32, %s26
          %p1605 = scmp.lt.s32.totalorder %s1604, 63
          %s1606 = scalar_select %p1605, %s1604, 63
          %s1607 = smul.addr %s1606, 8
          %s1608 = scalar_lea.vmem %s9, %s1607
        $region72: #{_lambda_.19} parent=67 // pred_fallthru
          _
        // Predicated region
        $region73: #{_lambda_.19} parent=67 // pred_check
          %p1609 = pneg %p274
        $region74: #{_lambda_.19} parent=67 // pred_check_branch
          %1611 = sbr.rel (%p1609) target = $region76
        $region75: #{_lambda_.19} parent=67 // pred_region
          %s1612 = sand.u32 %s259, 1
          %s1613 = scalar_lea.sflag [#allocation3], %s1612
          %s1614 = sand.u32 %s259, 1
          %s1615 = smul.addr %s1614, 2
          %s1616 = scalar_lea.vmem [#allocation2], %s1615
          %1617 = dma.done %s1613, 32
        $region76: #{_lambda_.19} parent=67 // pred_fallthru
          _
      $region68: #{_lambda_.19} parent=5 // pred_fallthru
        _
    $region6: #{_lambda_.19} parent=1 // loop_footer
      %s24 = sadd.s32 1, %s20
    $region7: #{_lambda_.19} parent=1 // loop_footer_branch
      %19 = sbr.rel target = $region3
    $region8: #{_lambda_.19} parent=1 // loop_exit
      _
    %1618 = vsyncpa [#allocation3], 1
    %s1619 = scalar_lea.sflag [#allocation3], 1
    %1620 = vsyncpa %s1619, 1

</llo_original>
